<compile_context>
chip_gen: v6e
topology: v6e:2x2x1
jax: 0.10.0
libtpu: 0.0.40
codegen_flags: <defaults>
</compile_context>

<pallas_src>
import jax
import jax.numpy as jnp
from jax import lax
from jax.experimental import pallas as pl
from jax.experimental.pallas import tpu as pltpu  # noqa: F401  (TPU backend assumed)

# Module hyper-parameters (small, consistent with NeuralCA.__init__ / forward).
EMBED = 32                 # embedding_size
HEADS = 4                  # num_heads
HEAD_DIM = EMBED // HEADS  # 8
FFN = 2048                 # PyTorch TransformerEncoderLayer default dim_feedforward
NUM_LAYERS = 2             # num_encoders
NUM_CLASSES = 16           # num_classes (embedding vocab == output classes)
SEQ = 8                    # sequence length fed to forward()
BATCH = 2
LN_EPS = 1e-5              # PyTorch LayerNorm default


def _layer_norm(x, w, b):
    mu = jnp.mean(x, axis=-1, keepdims=True)
    xc = x - mu
    var = jnp.mean(xc * xc, axis=-1, keepdims=True)
    return xc * lax.rsqrt(var + LN_EPS) * w + b


def _mm_t(a, w):
    # a @ w.T without materializing a transpose (contract last dims on MXU).
    return lax.dot_general(a, w, (((1,), (1,)), ((), ())),
                           preferred_element_type=jnp.float32)


def neural_ca_kernel(x_ref, wqkv_ref, bqkv_ref, wo_ref, bo_ref,
                     ln1w_ref, ln1b_ref, w1_ref, b1_ref, w2_ref, b2_ref,
                     ln2w_ref, ln2b_ref, fcw_ref, fcb_ref, o_ref):
    """Fused forward: NUM_LAYERS post-norm encoder layers + seq-mean + fc."""
    B, S, E = x_ref.shape
    x2 = x_ref[...].reshape(B * S, E)                       # (B*S, E) f32 slab

    for l in range(NUM_LAYERS):                             # static unroll
        # --- self attention: combined in_proj (q-scale pre-folded into weights)
        qkv = _mm_t(x2, wqkv_ref[l]) + bqkv_ref[l]          # (B*S, 3E)
        q = qkv[:, :E].reshape(B, S, E)
        k = qkv[:, E:2 * E].reshape(B, S, E)
        v = qkv[:, 2 * E:].reshape(B, S, E)

        heads = []
        for h in range(HEADS):                              # static unroll over heads
            sl = slice(h * HEAD_DIM, (h + 1) * HEAD_DIM)
            qh, kh, vh = q[..., sl], k[..., sl], v[..., sl]  # (B, S, D)
            s = jnp.einsum('bsd,btd->bst', qh, kh,
                           preferred_element_type=jnp.float32)         # (B, S, S)
            s = s - jnp.max(s, axis=-1, keepdims=True)
            p = jnp.exp(s)
            p = p * pl.reciprocal(jnp.sum(p, axis=-1, keepdims=True), approx=True)
            heads.append(jnp.einsum('bst,btd->bsd', p, vh,
                                    preferred_element_type=jnp.float32))
        attn = jnp.concatenate(heads, axis=-1).reshape(B * S, E)        # (B*S, E)
        attn = _mm_t(attn, wo_ref[l]) + bo_ref[l]

        # --- residual + norm1 (post-norm, PyTorch default norm_first=False)
        x2 = _layer_norm(x2 + attn, ln1w_ref[l], ln1b_ref[l])

        # --- feed-forward: linear2(relu(linear1(x))); bf16 MXU operands, f32 acc
        h1 = _mm_t(x2.astype(jnp.bfloat16), w1_ref[l]) + b1_ref[l]      # (B*S, FFN) f32
        h1 = jnp.maximum(h1, 0.0)
        h2 = _mm_t(h1.astype(jnp.bfloat16), w2_ref[l]) + b2_ref[l]      # (B*S, E) f32

        # --- residual + norm2
        x2 = _layer_norm(x2 + h2, ln2w_ref[l], ln2b_ref[l])

    # --- mean over the sequence axis, then the final Linear (fc)
    xm = jnp.mean(x2.reshape(B, S, E), axis=1)                          # (B, E)
    o_ref[...] = _mm_t(xm, fcw_ref[...]) + fcb_ref[...]                 # (B, C)


def neural_ca_pallas(x_emb, p):
    """Single fused pallas_call; everything fits in VMEM, so no grid / BlockSpecs."""
    B = x_emb.shape[0]
    args = [x_emb,
            p["wqkv"], p["bqkv"], p["wo"], p["bo"],
            p["ln1w"], p["ln1b"], p["w1"], p["b1"],
            p["w2"], p["b2"], p["ln2w"], p["ln2b"],
            p["fcw"], p["fcb"]]
    return pl.pallas_call(
        neural_ca_kernel,
        out_shape=jax.ShapeDtypeStruct((B, NUM_CLASSES), jnp.float32),
    )(*args)


def init_params(key):
    L = NUM_LAYERS
    std = 0.05
    ks = jax.random.split(key, 10)
    emb = jax.random.normal(ks[0], (NUM_CLASSES, EMBED), jnp.float32) * std

    wqkv = jax.random.normal(ks[1], (L, 3 * EMBED, EMBED), jnp.float32) * std
    bqkv = jax.random.normal(ks[2], (L, 1, 3 * EMBED), jnp.float32) * std
    # Fold the attention 1/sqrt(head_dim) scaling into the Q rows, once, at init.
    scale = 1.0 / (HEAD_DIM ** 0.5)
    wqkv = wqkv.at[:, :EMBED, :].multiply(scale)
    bqkv = bqkv.at[:, :, :EMBED].multiply(scale)

    params = dict(
        wqkv=wqkv,
        bqkv=bqkv,
        wo=jax.random.normal(ks[3], (L, EMBED, EMBED), jnp.float32) * std,
        bo=jax.random.normal(ks[4], (L, 1, EMBED), jnp.float32) * std,
        ln1w=jnp.ones((L, 1, EMBED), jnp.float32),
        ln1b=jnp.zeros((L, 1, EMBED), jnp.float32),
        # FFN weights stored in bf16 (MXU operands); biases / everything else f32.
        w1=(jax.random.normal(ks[5], (L, FFN, EMBED), jnp.float32) * std).astype(jnp.bfloat16),
        b1=jax.random.normal(ks[6], (L, 1, FFN), jnp.float32) * std,
        w2=(jax.random.normal(ks[7], (L, EMBED, FFN), jnp.float32) * std).astype(jnp.bfloat16),
        b2=jax.random.normal(ks[8], (L, 1, EMBED), jnp.float32) * std,
        ln2w=jnp.ones((L, 1, EMBED), jnp.float32),
        ln2b=jnp.zeros((L, 1, EMBED), jnp.float32),
        fcw=jax.random.normal(ks[9], (NUM_CLASSES, EMBED), jnp.float32) * std,
        fcb=jnp.zeros((1, NUM_CLASSES), jnp.float32),
    )
    return emb, params


@jax.jit
def neural_ca_forward(token_ids, emb, params):
    # nn.Embedding lookup = row gather (plain-JAX glue outside the kernel).
    x = jnp.take(emb, token_ids, axis=0).astype(jnp.float32)   # (B, S, E)
    return neural_ca_pallas(x, params)                          # (B, C)


if __name__ == "__main__":
    key = jax.random.PRNGKey(0)
    k_param, k_tok = jax.random.split(key)
    emb, params = init_params(k_param)
    token_ids = jax.random.randint(k_tok, (BATCH, SEQ), 0, NUM_CLASSES, dtype=jnp.int32)

    logits = neural_ca_forward(token_ids, emb, params)
    jax.block_until_ready(logits)
    assert logits.shape == (BATCH, NUM_CLASSES) and logits.dtype == jnp.float32
    print("KERNEL_OK")
</pallas_src>

<mosaic_0001>
module attributes {stable_mosaic.version = 11 : i64} {
  func.func @neural_ca_kernel(%arg0: memref<2x8x32xf32, #tpu.memory_space<vmem>>, %arg1: memref<2x96x32xf32, #tpu.memory_space<vmem>>, %arg2: memref<2x1x96xf32, #tpu.memory_space<vmem>>, %arg3: memref<2x32x32xf32, #tpu.memory_space<vmem>>, %arg4: memref<2x1x32xf32, #tpu.memory_space<vmem>>, %arg5: memref<2x1x32xf32, #tpu.memory_space<vmem>>, %arg6: memref<2x1x32xf32, #tpu.memory_space<vmem>>, %arg7: memref<2x2048x32xbf16, #tpu.memory_space<vmem>>, %arg8: memref<2x1x2048xf32, #tpu.memory_space<vmem>>, %arg9: memref<2x32x2048xbf16, #tpu.memory_space<vmem>>, %arg10: memref<2x1x32xf32, #tpu.memory_space<vmem>>, %arg11: memref<2x1x32xf32, #tpu.memory_space<vmem>>, %arg12: memref<2x1x32xf32, #tpu.memory_space<vmem>>, %arg13: memref<16x32xf32, #tpu.memory_space<vmem>>, %arg14: memref<1x16xf32, #tpu.memory_space<vmem>>, %arg15: memref<2x16xf32, #tpu.memory_space<vmem>>) attributes {dimension_semantics = [], scalar_prefetch = 0 : i64, scratch_operands = 0 : i64, tpu.core_type = #tpu.core_type<tc>} {
    %c0 = arith.constant 0 : index
    %c0_0 = arith.constant 0 : index
    %c0_1 = arith.constant 0 : index
    %0 = vector.load %arg0[%c0, %c0_0, %c0_1] : memref<2x8x32xf32, #tpu.memory_space<vmem>>, vector<2x8x32xf32>
    %1 = vector.shape_cast %0 : vector<2x8x32xf32> to vector<16x32xf32>
    %c0_2 = arith.constant 0 : index
    %c0_3 = arith.constant 0 : index
    %c0_4 = arith.constant 0 : index
    %2 = vector.load %arg1[%c0_2, %c0_3, %c0_4] : memref<2x96x32xf32, #tpu.memory_space<vmem>>, vector<1x96x32xf32>
    %3 = vector.shape_cast %2 : vector<1x96x32xf32> to vector<96x32xf32>
    %cst = arith.constant dense<0.000000e+00> : vector<16x96xf32>
    %4 = tpu.matmul %1, %3, %cst {dimension_numbers = #tpu.dot_dimension_numbers<[1], [1], [0], [0], [0, 0, 1, 0], [], []>} : vector<16x32xf32>, vector<96x32xf32>, vector<16x96xf32> -> vector<16x96xf32>
    %c0_5 = arith.constant 0 : index
    %c0_6 = arith.constant 0 : index
    %c0_7 = arith.constant 0 : index
    %5 = vector.load %arg2[%c0_5, %c0_6, %c0_7] : memref<2x1x96xf32, #tpu.memory_space<vmem>>, vector<1x1x96xf32>
    %6 = vector.shape_cast %5 : vector<1x1x96xf32> to vector<1x96xf32>
    %7 = vector.broadcast %6 : vector<1x96xf32> to vector<16x96xf32>
    %8 = arith.addf %4, %7 : vector<16x96xf32>
    %9 = vector.extract_strided_slice %8 {offsets = [0, 0], sizes = [16, 32], strides = [1, 1]} : vector<16x96xf32> to vector<16x32xf32>
    %10 = vector.shape_cast %9 : vector<16x32xf32> to vector<2x8x32xf32>
    %11 = vector.extract_strided_slice %8 {offsets = [0, 32], sizes = [16, 32], strides = [1, 1]} : vector<16x96xf32> to vector<16x32xf32>
    %12 = vector.shape_cast %11 : vector<16x32xf32> to vector<2x8x32xf32>
    %13 = vector.extract_strided_slice %8 {offsets = [0, 64], sizes = [16, 32], strides = [1, 1]} : vector<16x96xf32> to vector<16x32xf32>
    %14 = vector.shape_cast %13 : vector<16x32xf32> to vector<2x8x32xf32>
    %15 = vector.extract_strided_slice %10 {offsets = [0, 0, 0], sizes = [2, 8, 8], strides = [1, 1, 1]} : vector<2x8x32xf32> to vector<2x8x8xf32>
    %16 = vector.extract_strided_slice %12 {offsets = [0, 0, 0], sizes = [2, 8, 8], strides = [1, 1, 1]} : vector<2x8x32xf32> to vector<2x8x8xf32>
    %17 = vector.extract_strided_slice %14 {offsets = [0, 0, 0], sizes = [2, 8, 8], strides = [1, 1, 1]} : vector<2x8x32xf32> to vector<2x8x8xf32>
    "tpu.trace_start"() <{level = 10 : i32, message = "bsd,btd->bst"}> : () -> ()
    %cst_8 = arith.constant dense<0.000000e+00> : vector<2x8x8xf32>
    %18 = tpu.matmul %15, %16, %cst_8 {dimension_numbers = #tpu.dot_dimension_numbers<[2], [2], [1], [1], [0, 0, 0, 1, 1, 1], [0], [0]>} : vector<2x8x8xf32>, vector<2x8x8xf32>, vector<2x8x8xf32> -> vector<2x8x8xf32>
    "tpu.trace_stop"() : () -> ()
    %cst_9 = arith.constant dense<0xFF800000> : vector<2x8xf32>
    %19 = vector.multi_reduction <maximumf>, %18, %cst_9 [2] : vector<2x8x8xf32> to vector<2x8xf32>
    %20 = vector.shape_cast %19 : vector<2x8xf32> to vector<2x8x1xf32>
    %21 = vector.broadcast %20 : vector<2x8x1xf32> to vector<2x8x8xf32>
    %22 = arith.subf %18, %21 : vector<2x8x8xf32>
    %23 = math.exp %22 : vector<2x8x8xf32>
    %cst_10 = arith.constant dense<0.000000e+00> : vector<2x8xf32>
    %24 = vector.multi_reduction <add>, %23, %cst_10 [2] : vector<2x8x8xf32> to vector<2x8xf32>
    %25 = vector.shape_cast %24 : vector<2x8xf32> to vector<2x8x1xf32>
    %26 = tpu.reciprocal %25 {approx = true} : vector<2x8x1xf32> -> vector<2x8x1xf32>
    %27 = vector.broadcast %26 : vector<2x8x1xf32> to vector<2x8x8xf32>
    %28 = arith.mulf %23, %27 : vector<2x8x8xf32>
    "tpu.trace_start"() <{level = 10 : i32, message = "bst,btd->bsd"}> : () -> ()
    %cst_11 = arith.constant dense<0.000000e+00> : vector<2x8x8xf32>
    %29 = tpu.matmul %28, %17, %cst_11 {dimension_numbers = #tpu.dot_dimension_numbers<[2], [1], [1], [2], [0, 0, 0, 1, 1, 2], [0], [0]>} : vector<2x8x8xf32>, vector<2x8x8xf32>, vector<2x8x8xf32> -> vector<2x8x8xf32>
    "tpu.trace_stop"() : () -> ()
    %30 = vector.extract_strided_slice %10 {offsets = [0, 0, 8], sizes = [2, 8, 8], strides = [1, 1, 1]} : vector<2x8x32xf32> to vector<2x8x8xf32>
    %31 = vector.extract_strided_slice %12 {offsets = [0, 0, 8], sizes = [2, 8, 8], strides = [1, 1, 1]} : vector<2x8x32xf32> to vector<2x8x8xf32>
    %32 = vector.extract_strided_slice %14 {offsets = [0, 0, 8], sizes = [2, 8, 8], strides = [1, 1, 1]} : vector<2x8x32xf32> to vector<2x8x8xf32>
    "tpu.trace_start"() <{level = 10 : i32, message = "bsd,btd->bst"}> : () -> ()
    %cst_12 = arith.constant dense<0.000000e+00> : vector<2x8x8xf32>
    %33 = tpu.matmul %30, %31, %cst_12 {dimension_numbers = #tpu.dot_dimension_numbers<[2], [2], [1], [1], [0, 0, 0, 1, 1, 1], [0], [0]>} : vector<2x8x8xf32>, vector<2x8x8xf32>, vector<2x8x8xf32> -> vector<2x8x8xf32>
    "tpu.trace_stop"() : () -> ()
    %cst_13 = arith.constant dense<0xFF800000> : vector<2x8xf32>
    %34 = vector.multi_reduction <maximumf>, %33, %cst_13 [2] : vector<2x8x8xf32> to vector<2x8xf32>
    %35 = vector.shape_cast %34 : vector<2x8xf32> to vector<2x8x1xf32>
    %36 = vector.broadcast %35 : vector<2x8x1xf32> to vector<2x8x8xf32>
    %37 = arith.subf %33, %36 : vector<2x8x8xf32>
    %38 = math.exp %37 : vector<2x8x8xf32>
    %cst_14 = arith.constant dense<0.000000e+00> : vector<2x8xf32>
    %39 = vector.multi_reduction <add>, %38, %cst_14 [2] : vector<2x8x8xf32> to vector<2x8xf32>
    %40 = vector.shape_cast %39 : vector<2x8xf32> to vector<2x8x1xf32>
    %41 = tpu.reciprocal %40 {approx = true} : vector<2x8x1xf32> -> vector<2x8x1xf32>
    %42 = vector.broadcast %41 : vector<2x8x1xf32> to vector<2x8x8xf32>
    %43 = arith.mulf %38, %42 : vector<2x8x8xf32>
    "tpu.trace_start"() <{level = 10 : i32, message = "bst,btd->bsd"}> : () -> ()
    %cst_15 = arith.constant dense<0.000000e+00> : vector<2x8x8xf32>
    %44 = tpu.matmul %43, %32, %cst_15 {dimension_numbers = #tpu.dot_dimension_numbers<[2], [1], [1], [2], [0, 0, 0, 1, 1, 2], [0], [0]>} : vector<2x8x8xf32>, vector<2x8x8xf32>, vector<2x8x8xf32> -> vector<2x8x8xf32>
    "tpu.trace_stop"() : () -> ()
    %45 = vector.extract_strided_slice %10 {offsets = [0, 0, 16], sizes = [2, 8, 8], strides = [1, 1, 1]} : vector<2x8x32xf32> to vector<2x8x8xf32>
    %46 = vector.extract_strided_slice %12 {offsets = [0, 0, 16], sizes = [2, 8, 8], strides = [1, 1, 1]} : vector<2x8x32xf32> to vector<2x8x8xf32>
    %47 = vector.extract_strided_slice %14 {offsets = [0, 0, 16], sizes = [2, 8, 8], strides = [1, 1, 1]} : vector<2x8x32xf32> to vector<2x8x8xf32>
    "tpu.trace_start"() <{level = 10 : i32, message = "bsd,btd->bst"}> : () -> ()
    %cst_16 = arith.constant dense<0.000000e+00> : vector<2x8x8xf32>
    %48 = tpu.matmul %45, %46, %cst_16 {dimension_numbers = #tpu.dot_dimension_numbers<[2], [2], [1], [1], [0, 0, 0, 1, 1, 1], [0], [0]>} : vector<2x8x8xf32>, vector<2x8x8xf32>, vector<2x8x8xf32> -> vector<2x8x8xf32>
    "tpu.trace_stop"() : () -> ()
    %cst_17 = arith.constant dense<0xFF800000> : vector<2x8xf32>
    %49 = vector.multi_reduction <maximumf>, %48, %cst_17 [2] : vector<2x8x8xf32> to vector<2x8xf32>
    %50 = vector.shape_cast %49 : vector<2x8xf32> to vector<2x8x1xf32>
    %51 = vector.broadcast %50 : vector<2x8x1xf32> to vector<2x8x8xf32>
    %52 = arith.subf %48, %51 : vector<2x8x8xf32>
    %53 = math.exp %52 : vector<2x8x8xf32>
    %cst_18 = arith.constant dense<0.000000e+00> : vector<2x8xf32>
    %54 = vector.multi_reduction <add>, %53, %cst_18 [2] : vector<2x8x8xf32> to vector<2x8xf32>
    %55 = vector.shape_cast %54 : vector<2x8xf32> to vector<2x8x1xf32>
    %56 = tpu.reciprocal %55 {approx = true} : vector<2x8x1xf32> -> vector<2x8x1xf32>
    %57 = vector.broadcast %56 : vector<2x8x1xf32> to vector<2x8x8xf32>
    %58 = arith.mulf %53, %57 : vector<2x8x8xf32>
    "tpu.trace_start"() <{level = 10 : i32, message = "bst,btd->bsd"}> : () -> ()
    %cst_19 = arith.constant dense<0.000000e+00> : vector<2x8x8xf32>
    %59 = tpu.matmul %58, %47, %cst_19 {dimension_numbers = #tpu.dot_dimension_numbers<[2], [1], [1], [2], [0, 0, 0, 1, 1, 2], [0], [0]>} : vector<2x8x8xf32>, vector<2x8x8xf32>, vector<2x8x8xf32> -> vector<2x8x8xf32>
    "tpu.trace_stop"() : () -> ()
    %60 = vector.extract_strided_slice %10 {offsets = [0, 0, 24], sizes = [2, 8, 8], strides = [1, 1, 1]} : vector<2x8x32xf32> to vector<2x8x8xf32>
    %61 = vector.extract_strided_slice %12 {offsets = [0, 0, 24], sizes = [2, 8, 8], strides = [1, 1, 1]} : vector<2x8x32xf32> to vector<2x8x8xf32>
    %62 = vector.extract_strided_slice %14 {offsets = [0, 0, 24], sizes = [2, 8, 8], strides = [1, 1, 1]} : vector<2x8x32xf32> to vector<2x8x8xf32>
    "tpu.trace_start"() <{level = 10 : i32, message = "bsd,btd->bst"}> : () -> ()
    %cst_20 = arith.constant dense<0.000000e+00> : vector<2x8x8xf32>
    %63 = tpu.matmul %60, %61, %cst_20 {dimension_numbers = #tpu.dot_dimension_numbers<[2], [2], [1], [1], [0, 0, 0, 1, 1, 1], [0], [0]>} : vector<2x8x8xf32>, vector<2x8x8xf32>, vector<2x8x8xf32> -> vector<2x8x8xf32>
    "tpu.trace_stop"() : () -> ()
    %cst_21 = arith.constant dense<0xFF800000> : vector<2x8xf32>
    %64 = vector.multi_reduction <maximumf>, %63, %cst_21 [2] : vector<2x8x8xf32> to vector<2x8xf32>
    %65 = vector.shape_cast %64 : vector<2x8xf32> to vector<2x8x1xf32>
    %66 = vector.broadcast %65 : vector<2x8x1xf32> to vector<2x8x8xf32>
    %67 = arith.subf %63, %66 : vector<2x8x8xf32>
    %68 = math.exp %67 : vector<2x8x8xf32>
    %cst_22 = arith.constant dense<0.000000e+00> : vector<2x8xf32>
    %69 = vector.multi_reduction <add>, %68, %cst_22 [2] : vector<2x8x8xf32> to vector<2x8xf32>
    %70 = vector.shape_cast %69 : vector<2x8xf32> to vector<2x8x1xf32>
    %71 = tpu.reciprocal %70 {approx = true} : vector<2x8x1xf32> -> vector<2x8x1xf32>
    %72 = vector.broadcast %71 : vector<2x8x1xf32> to vector<2x8x8xf32>
    %73 = arith.mulf %68, %72 : vector<2x8x8xf32>
    "tpu.trace_start"() <{level = 10 : i32, message = "bst,btd->bsd"}> : () -> ()
    %cst_23 = arith.constant dense<0.000000e+00> : vector<2x8x8xf32>
    %74 = tpu.matmul %73, %62, %cst_23 {dimension_numbers = #tpu.dot_dimension_numbers<[2], [1], [1], [2], [0, 0, 0, 1, 1, 2], [0], [0]>} : vector<2x8x8xf32>, vector<2x8x8xf32>, vector<2x8x8xf32> -> vector<2x8x8xf32>
    "tpu.trace_stop"() : () -> ()
    %75 = tpu.concatenate %29, %44, %59, %74 in 2 : vector<2x8x8xf32>, vector<2x8x8xf32>, vector<2x8x8xf32>, vector<2x8x8xf32> -> vector<2x8x32xf32>
    %76 = vector.shape_cast %75 : vector<2x8x32xf32> to vector<16x32xf32>
    %c0_24 = arith.constant 0 : index
    %c0_25 = arith.constant 0 : index
    %c0_26 = arith.constant 0 : index
    %77 = vector.load %arg3[%c0_24, %c0_25, %c0_26] : memref<2x32x32xf32, #tpu.memory_space<vmem>>, vector<1x32x32xf32>
    %78 = vector.shape_cast %77 : vector<1x32x32xf32> to vector<32x32xf32>
    %cst_27 = arith.constant dense<0.000000e+00> : vector<16x32xf32>
    %79 = tpu.matmul %76, %78, %cst_27 {dimension_numbers = #tpu.dot_dimension_numbers<[1], [1], [0], [0], [0, 0, 1, 0], [], []>} : vector<16x32xf32>, vector<32x32xf32>, vector<16x32xf32> -> vector<16x32xf32>
    %c0_28 = arith.constant 0 : index
    %c0_29 = arith.constant 0 : index
    %c0_30 = arith.constant 0 : index
    %80 = vector.load %arg4[%c0_28, %c0_29, %c0_30] : memref<2x1x32xf32, #tpu.memory_space<vmem>>, vector<1x1x32xf32>
    %81 = vector.shape_cast %80 : vector<1x1x32xf32> to vector<1x32xf32>
    %82 = vector.broadcast %81 : vector<1x32xf32> to vector<16x32xf32>
    %83 = arith.addf %79, %82 : vector<16x32xf32>
    %84 = arith.addf %1, %83 : vector<16x32xf32>
    %c0_31 = arith.constant 0 : index
    %c0_32 = arith.constant 0 : index
    %c0_33 = arith.constant 0 : index
    %85 = vector.load %arg5[%c0_31, %c0_32, %c0_33] : memref<2x1x32xf32, #tpu.memory_space<vmem>>, vector<1x1x32xf32>
    %86 = vector.shape_cast %85 : vector<1x1x32xf32> to vector<1x32xf32>
    %c0_34 = arith.constant 0 : index
    %c0_35 = arith.constant 0 : index
    %c0_36 = arith.constant 0 : index
    %87 = vector.load %arg6[%c0_34, %c0_35, %c0_36] : memref<2x1x32xf32, #tpu.memory_space<vmem>>, vector<1x1x32xf32>
    %88 = vector.shape_cast %87 : vector<1x1x32xf32> to vector<1x32xf32>
    %cst_37 = arith.constant dense<0.000000e+00> : vector<16xf32>
    %89 = vector.multi_reduction <add>, %84, %cst_37 [1] : vector<16x32xf32> to vector<16xf32>
    %90 = vector.shape_cast %89 : vector<16xf32> to vector<16x1xf32>
    %cst_38 = arith.constant 3.200000e+01 : f32
    %91 = vector.broadcast %cst_38 : f32 to vector<16x1xf32>
    %92 = arith.divf %90, %91 : vector<16x1xf32>
    %93 = vector.broadcast %92 : vector<16x1xf32> to vector<16x32xf32>
    %94 = arith.subf %84, %93 : vector<16x32xf32>
    %95 = arith.mulf %94, %94 : vector<16x32xf32>
    %cst_39 = arith.constant dense<0.000000e+00> : vector<16xf32>
    %96 = vector.multi_reduction <add>, %95, %cst_39 [1] : vector<16x32xf32> to vector<16xf32>
    %97 = vector.shape_cast %96 : vector<16xf32> to vector<16x1xf32>
    %cst_40 = arith.constant 3.200000e+01 : f32
    %98 = vector.broadcast %cst_40 : f32 to vector<16x1xf32>
    %99 = arith.divf %97, %98 : vector<16x1xf32>
    %cst_41 = arith.constant 9.99999974E-6 : f32
    %100 = vector.broadcast %cst_41 : f32 to vector<16x1xf32>
    %101 = arith.addf %99, %100 : vector<16x1xf32>
    %102 = math.rsqrt %101 : vector<16x1xf32>
    %103 = vector.broadcast %102 : vector<16x1xf32> to vector<16x32xf32>
    %104 = arith.mulf %94, %103 : vector<16x32xf32>
    %105 = vector.broadcast %86 : vector<1x32xf32> to vector<16x32xf32>
    %106 = arith.mulf %104, %105 : vector<16x32xf32>
    %107 = vector.broadcast %88 : vector<1x32xf32> to vector<16x32xf32>
    %108 = arith.addf %106, %107 : vector<16x32xf32>
    %109 = arith.truncf %108 : vector<16x32xf32> to vector<16x32xbf16>
    %c0_42 = arith.constant 0 : index
    %c0_43 = arith.constant 0 : index
    %c0_44 = arith.constant 0 : index
    %110 = vector.load %arg7[%c0_42, %c0_43, %c0_44] : memref<2x2048x32xbf16, #tpu.memory_space<vmem>>, vector<1x2048x32xbf16>
    %111 = vector.shape_cast %110 : vector<1x2048x32xbf16> to vector<2048x32xbf16>
    %cst_45 = arith.constant dense<0.000000e+00> : vector<16x2048xf32>
    %112 = tpu.matmul %109, %111, %cst_45 {dimension_numbers = #tpu.dot_dimension_numbers<[1], [1], [0], [0], [0, 0, 1, 0], [], []>} : vector<16x32xbf16>, vector<2048x32xbf16>, vector<16x2048xf32> -> vector<16x2048xf32>
    %c0_46 = arith.constant 0 : index
    %c0_47 = arith.constant 0 : index
    %c0_48 = arith.constant 0 : index
    %113 = vector.load %arg8[%c0_46, %c0_47, %c0_48] : memref<2x1x2048xf32, #tpu.memory_space<vmem>>, vector<1x1x2048xf32>
    %114 = vector.shape_cast %113 : vector<1x1x2048xf32> to vector<1x2048xf32>
    %115 = vector.broadcast %114 : vector<1x2048xf32> to vector<16x2048xf32>
    %116 = arith.addf %112, %115 : vector<16x2048xf32>
    %cst_49 = arith.constant 0.000000e+00 : f32
    %117 = vector.broadcast %cst_49 : f32 to vector<16x2048xf32>
    %118 = arith.maximumf %116, %117 : vector<16x2048xf32>
    %119 = arith.truncf %118 : vector<16x2048xf32> to vector<16x2048xbf16>
    %c0_50 = arith.constant 0 : index
    %c0_51 = arith.constant 0 : index
    %c0_52 = arith.constant 0 : index
    %120 = vector.load %arg9[%c0_50, %c0_51, %c0_52] : memref<2x32x2048xbf16, #tpu.memory_space<vmem>>, vector<1x32x2048xbf16>
    %121 = vector.shape_cast %120 : vector<1x32x2048xbf16> to vector<32x2048xbf16>
    %cst_53 = arith.constant dense<0.000000e+00> : vector<16x32xf32>
    %122 = tpu.matmul %119, %121, %cst_53 {dimension_numbers = #tpu.dot_dimension_numbers<[1], [1], [0], [0], [0, 0, 1, 0], [], []>} : vector<16x2048xbf16>, vector<32x2048xbf16>, vector<16x32xf32> -> vector<16x32xf32>
    %c0_54 = arith.constant 0 : index
    %c0_55 = arith.constant 0 : index
    %c0_56 = arith.constant 0 : index
    %123 = vector.load %arg10[%c0_54, %c0_55, %c0_56] : memref<2x1x32xf32, #tpu.memory_space<vmem>>, vector<1x1x32xf32>
    %124 = vector.shape_cast %123 : vector<1x1x32xf32> to vector<1x32xf32>
    %125 = vector.broadcast %124 : vector<1x32xf32> to vector<16x32xf32>
    %126 = arith.addf %122, %125 : vector<16x32xf32>
    %127 = arith.addf %108, %126 : vector<16x32xf32>
    %c0_57 = arith.constant 0 : index
    %c0_58 = arith.constant 0 : index
    %c0_59 = arith.constant 0 : index
    %128 = vector.load %arg11[%c0_57, %c0_58, %c0_59] : memref<2x1x32xf32, #tpu.memory_space<vmem>>, vector<1x1x32xf32>
    %129 = vector.shape_cast %128 : vector<1x1x32xf32> to vector<1x32xf32>
    %c0_60 = arith.constant 0 : index
    %c0_61 = arith.constant 0 : index
    %c0_62 = arith.constant 0 : index
    %130 = vector.load %arg12[%c0_60, %c0_61, %c0_62] : memref<2x1x32xf32, #tpu.memory_space<vmem>>, vector<1x1x32xf32>
    %131 = vector.shape_cast %130 : vector<1x1x32xf32> to vector<1x32xf32>
    %cst_63 = arith.constant dense<0.000000e+00> : vector<16xf32>
    %132 = vector.multi_reduction <add>, %127, %cst_63 [1] : vector<16x32xf32> to vector<16xf32>
    %133 = vector.shape_cast %132 : vector<16xf32> to vector<16x1xf32>
    %cst_64 = arith.constant 3.200000e+01 : f32
    %134 = vector.broadcast %cst_64 : f32 to vector<16x1xf32>
    %135 = arith.divf %133, %134 : vector<16x1xf32>
    %136 = vector.broadcast %135 : vector<16x1xf32> to vector<16x32xf32>
    %137 = arith.subf %127, %136 : vector<16x32xf32>
    %138 = arith.mulf %137, %137 : vector<16x32xf32>
    %cst_65 = arith.constant dense<0.000000e+00> : vector<16xf32>
    %139 = vector.multi_reduction <add>, %138, %cst_65 [1] : vector<16x32xf32> to vector<16xf32>
    %140 = vector.shape_cast %139 : vector<16xf32> to vector<16x1xf32>
    %cst_66 = arith.constant 3.200000e+01 : f32
    %141 = vector.broadcast %cst_66 : f32 to vector<16x1xf32>
    %142 = arith.divf %140, %141 : vector<16x1xf32>
    %cst_67 = arith.constant 9.99999974E-6 : f32
    %143 = vector.broadcast %cst_67 : f32 to vector<16x1xf32>
    %144 = arith.addf %142, %143 : vector<16x1xf32>
    %145 = math.rsqrt %144 : vector<16x1xf32>
    %146 = vector.broadcast %145 : vector<16x1xf32> to vector<16x32xf32>
    %147 = arith.mulf %137, %146 : vector<16x32xf32>
    %148 = vector.broadcast %129 : vector<1x32xf32> to vector<16x32xf32>
    %149 = arith.mulf %147, %148 : vector<16x32xf32>
    %150 = vector.broadcast %131 : vector<1x32xf32> to vector<16x32xf32>
    %151 = arith.addf %149, %150 : vector<16x32xf32>
    %c1 = arith.constant 1 : index
    %c0_68 = arith.constant 0 : index
    %c0_69 = arith.constant 0 : index
    %152 = vector.load %arg1[%c1, %c0_68, %c0_69] : memref<2x96x32xf32, #tpu.memory_space<vmem>>, vector<1x96x32xf32>
    %153 = vector.shape_cast %152 : vector<1x96x32xf32> to vector<96x32xf32>
    %cst_70 = arith.constant dense<0.000000e+00> : vector<16x96xf32>
    %154 = tpu.matmul %151, %153, %cst_70 {dimension_numbers = #tpu.dot_dimension_numbers<[1], [1], [0], [0], [0, 0, 1, 0], [], []>} : vector<16x32xf32>, vector<96x32xf32>, vector<16x96xf32> -> vector<16x96xf32>
    %c1_71 = arith.constant 1 : index
    %c0_72 = arith.constant 0 : index
    %c0_73 = arith.constant 0 : index
    %155 = vector.load %arg2[%c1_71, %c0_72, %c0_73] : memref<2x1x96xf32, #tpu.memory_space<vmem>>, vector<1x1x96xf32>
    %156 = vector.shape_cast %155 : vector<1x1x96xf32> to vector<1x96xf32>
    %157 = vector.broadcast %156 : vector<1x96xf32> to vector<16x96xf32>
    %158 = arith.addf %154, %157 : vector<16x96xf32>
    %159 = vector.extract_strided_slice %158 {offsets = [0, 0], sizes = [16, 32], strides = [1, 1]} : vector<16x96xf32> to vector<16x32xf32>
    %160 = vector.shape_cast %159 : vector<16x32xf32> to vector<2x8x32xf32>
    %161 = vector.extract_strided_slice %158 {offsets = [0, 32], sizes = [16, 32], strides = [1, 1]} : vector<16x96xf32> to vector<16x32xf32>
    %162 = vector.shape_cast %161 : vector<16x32xf32> to vector<2x8x32xf32>
    %163 = vector.extract_strided_slice %158 {offsets = [0, 64], sizes = [16, 32], strides = [1, 1]} : vector<16x96xf32> to vector<16x32xf32>
    %164 = vector.shape_cast %163 : vector<16x32xf32> to vector<2x8x32xf32>
    %165 = vector.extract_strided_slice %160 {offsets = [0, 0, 0], sizes = [2, 8, 8], strides = [1, 1, 1]} : vector<2x8x32xf32> to vector<2x8x8xf32>
    %166 = vector.extract_strided_slice %162 {offsets = [0, 0, 0], sizes = [2, 8, 8], strides = [1, 1, 1]} : vector<2x8x32xf32> to vector<2x8x8xf32>
    %167 = vector.extract_strided_slice %164 {offsets = [0, 0, 0], sizes = [2, 8, 8], strides = [1, 1, 1]} : vector<2x8x32xf32> to vector<2x8x8xf32>
    "tpu.trace_start"() <{level = 10 : i32, message = "bsd,btd->bst"}> : () -> ()
    %cst_74 = arith.constant dense<0.000000e+00> : vector<2x8x8xf32>
    %168 = tpu.matmul %165, %166, %cst_74 {dimension_numbers = #tpu.dot_dimension_numbers<[2], [2], [1], [1], [0, 0, 0, 1, 1, 1], [0], [0]>} : vector<2x8x8xf32>, vector<2x8x8xf32>, vector<2x8x8xf32> -> vector<2x8x8xf32>
    "tpu.trace_stop"() : () -> ()
    %cst_75 = arith.constant dense<0xFF800000> : vector<2x8xf32>
    %169 = vector.multi_reduction <maximumf>, %168, %cst_75 [2] : vector<2x8x8xf32> to vector<2x8xf32>
    %170 = vector.shape_cast %169 : vector<2x8xf32> to vector<2x8x1xf32>
    %171 = vector.broadcast %170 : vector<2x8x1xf32> to vector<2x8x8xf32>
    %172 = arith.subf %168, %171 : vector<2x8x8xf32>
    %173 = math.exp %172 : vector<2x8x8xf32>
    %cst_76 = arith.constant dense<0.000000e+00> : vector<2x8xf32>
    %174 = vector.multi_reduction <add>, %173, %cst_76 [2] : vector<2x8x8xf32> to vector<2x8xf32>
    %175 = vector.shape_cast %174 : vector<2x8xf32> to vector<2x8x1xf32>
    %176 = tpu.reciprocal %175 {approx = true} : vector<2x8x1xf32> -> vector<2x8x1xf32>
    %177 = vector.broadcast %176 : vector<2x8x1xf32> to vector<2x8x8xf32>
    %178 = arith.mulf %173, %177 : vector<2x8x8xf32>
    "tpu.trace_start"() <{level = 10 : i32, message = "bst,btd->bsd"}> : () -> ()
    %cst_77 = arith.constant dense<0.000000e+00> : vector<2x8x8xf32>
    %179 = tpu.matmul %178, %167, %cst_77 {dimension_numbers = #tpu.dot_dimension_numbers<[2], [1], [1], [2], [0, 0, 0, 1, 1, 2], [0], [0]>} : vector<2x8x8xf32>, vector<2x8x8xf32>, vector<2x8x8xf32> -> vector<2x8x8xf32>
    "tpu.trace_stop"() : () -> ()
    %180 = vector.extract_strided_slice %160 {offsets = [0, 0, 8], sizes = [2, 8, 8], strides = [1, 1, 1]} : vector<2x8x32xf32> to vector<2x8x8xf32>
    %181 = vector.extract_strided_slice %162 {offsets = [0, 0, 8], sizes = [2, 8, 8], strides = [1, 1, 1]} : vector<2x8x32xf32> to vector<2x8x8xf32>
    %182 = vector.extract_strided_slice %164 {offsets = [0, 0, 8], sizes = [2, 8, 8], strides = [1, 1, 1]} : vector<2x8x32xf32> to vector<2x8x8xf32>
    "tpu.trace_start"() <{level = 10 : i32, message = "bsd,btd->bst"}> : () -> ()
    %cst_78 = arith.constant dense<0.000000e+00> : vector<2x8x8xf32>
    %183 = tpu.matmul %180, %181, %cst_78 {dimension_numbers = #tpu.dot_dimension_numbers<[2], [2], [1], [1], [0, 0, 0, 1, 1, 1], [0], [0]>} : vector<2x8x8xf32>, vector<2x8x8xf32>, vector<2x8x8xf32> -> vector<2x8x8xf32>
    "tpu.trace_stop"() : () -> ()
    %cst_79 = arith.constant dense<0xFF800000> : vector<2x8xf32>
    %184 = vector.multi_reduction <maximumf>, %183, %cst_79 [2] : vector<2x8x8xf32> to vector<2x8xf32>
    %185 = vector.shape_cast %184 : vector<2x8xf32> to vector<2x8x1xf32>
    %186 = vector.broadcast %185 : vector<2x8x1xf32> to vector<2x8x8xf32>
    %187 = arith.subf %183, %186 : vector<2x8x8xf32>
    %188 = math.exp %187 : vector<2x8x8xf32>
    %cst_80 = arith.constant dense<0.000000e+00> : vector<2x8xf32>
    %189 = vector.multi_reduction <add>, %188, %cst_80 [2] : vector<2x8x8xf32> to vector<2x8xf32>
    %190 = vector.shape_cast %189 : vector<2x8xf32> to vector<2x8x1xf32>
    %191 = tpu.reciprocal %190 {approx = true} : vector<2x8x1xf32> -> vector<2x8x1xf32>
    %192 = vector.broadcast %191 : vector<2x8x1xf32> to vector<2x8x8xf32>
    %193 = arith.mulf %188, %192 : vector<2x8x8xf32>
    "tpu.trace_start"() <{level = 10 : i32, message = "bst,btd->bsd"}> : () -> ()
    %cst_81 = arith.constant dense<0.000000e+00> : vector<2x8x8xf32>
    %194 = tpu.matmul %193, %182, %cst_81 {dimension_numbers = #tpu.dot_dimension_numbers<[2], [1], [1], [2], [0, 0, 0, 1, 1, 2], [0], [0]>} : vector<2x8x8xf32>, vector<2x8x8xf32>, vector<2x8x8xf32> -> vector<2x8x8xf32>
    "tpu.trace_stop"() : () -> ()
    %195 = vector.extract_strided_slice %160 {offsets = [0, 0, 16], sizes = [2, 8, 8], strides = [1, 1, 1]} : vector<2x8x32xf32> to vector<2x8x8xf32>
    %196 = vector.extract_strided_slice %162 {offsets = [0, 0, 16], sizes = [2, 8, 8], strides = [1, 1, 1]} : vector<2x8x32xf32> to vector<2x8x8xf32>
    %197 = vector.extract_strided_slice %164 {offsets = [0, 0, 16], sizes = [2, 8, 8], strides = [1, 1, 1]} : vector<2x8x32xf32> to vector<2x8x8xf32>
    "tpu.trace_start"() <{level = 10 : i32, message = "bsd,btd->bst"}> : () -> ()
    %cst_82 = arith.constant dense<0.000000e+00> : vector<2x8x8xf32>
    %198 = tpu.matmul %195, %196, %cst_82 {dimension_numbers = #tpu.dot_dimension_numbers<[2], [2], [1], [1], [0, 0, 0, 1, 1, 1], [0], [0]>} : vector<2x8x8xf32>, vector<2x8x8xf32>, vector<2x8x8xf32> -> vector<2x8x8xf32>
    "tpu.trace_stop"() : () -> ()
    %cst_83 = arith.constant dense<0xFF800000> : vector<2x8xf32>
    %199 = vector.multi_reduction <maximumf>, %198, %cst_83 [2] : vector<2x8x8xf32> to vector<2x8xf32>
    %200 = vector.shape_cast %199 : vector<2x8xf32> to vector<2x8x1xf32>
    %201 = vector.broadcast %200 : vector<2x8x1xf32> to vector<2x8x8xf32>
    %202 = arith.subf %198, %201 : vector<2x8x8xf32>
    %203 = math.exp %202 : vector<2x8x8xf32>
    %cst_84 = arith.constant dense<0.000000e+00> : vector<2x8xf32>
    %204 = vector.multi_reduction <add>, %203, %cst_84 [2] : vector<2x8x8xf32> to vector<2x8xf32>
    %205 = vector.shape_cast %204 : vector<2x8xf32> to vector<2x8x1xf32>
    %206 = tpu.reciprocal %205 {approx = true} : vector<2x8x1xf32> -> vector<2x8x1xf32>
    %207 = vector.broadcast %206 : vector<2x8x1xf32> to vector<2x8x8xf32>
    %208 = arith.mulf %203, %207 : vector<2x8x8xf32>
    "tpu.trace_start"() <{level = 10 : i32, message = "bst,btd->bsd"}> : () -> ()
    %cst_85 = arith.constant dense<0.000000e+00> : vector<2x8x8xf32>
    %209 = tpu.matmul %208, %197, %cst_85 {dimension_numbers = #tpu.dot_dimension_numbers<[2], [1], [1], [2], [0, 0, 0, 1, 1, 2], [0], [0]>} : vector<2x8x8xf32>, vector<2x8x8xf32>, vector<2x8x8xf32> -> vector<2x8x8xf32>
    "tpu.trace_stop"() : () -> ()
    %210 = vector.extract_strided_slice %160 {offsets = [0, 0, 24], sizes = [2, 8, 8], strides = [1, 1, 1]} : vector<2x8x32xf32> to vector<2x8x8xf32>
    %211 = vector.extract_strided_slice %162 {offsets = [0, 0, 24], sizes = [2, 8, 8], strides = [1, 1, 1]} : vector<2x8x32xf32> to vector<2x8x8xf32>
    %212 = vector.extract_strided_slice %164 {offsets = [0, 0, 24], sizes = [2, 8, 8], strides = [1, 1, 1]} : vector<2x8x32xf32> to vector<2x8x8xf32>
    "tpu.trace_start"() <{level = 10 : i32, message = "bsd,btd->bst"}> : () -> ()
    %cst_86 = arith.constant dense<0.000000e+00> : vector<2x8x8xf32>
    %213 = tpu.matmul %210, %211, %cst_86 {dimension_numbers = #tpu.dot_dimension_numbers<[2], [2], [1], [1], [0, 0, 0, 1, 1, 1], [0], [0]>} : vector<2x8x8xf32>, vector<2x8x8xf32>, vector<2x8x8xf32> -> vector<2x8x8xf32>
    "tpu.trace_stop"() : () -> ()
    %cst_87 = arith.constant dense<0xFF800000> : vector<2x8xf32>
    %214 = vector.multi_reduction <maximumf>, %213, %cst_87 [2] : vector<2x8x8xf32> to vector<2x8xf32>
    %215 = vector.shape_cast %214 : vector<2x8xf32> to vector<2x8x1xf32>
    %216 = vector.broadcast %215 : vector<2x8x1xf32> to vector<2x8x8xf32>
    %217 = arith.subf %213, %216 : vector<2x8x8xf32>
    %218 = math.exp %217 : vector<2x8x8xf32>
    %cst_88 = arith.constant dense<0.000000e+00> : vector<2x8xf32>
    %219 = vector.multi_reduction <add>, %218, %cst_88 [2] : vector<2x8x8xf32> to vector<2x8xf32>
    %220 = vector.shape_cast %219 : vector<2x8xf32> to vector<2x8x1xf32>
    %221 = tpu.reciprocal %220 {approx = true} : vector<2x8x1xf32> -> vector<2x8x1xf32>
    %222 = vector.broadcast %221 : vector<2x8x1xf32> to vector<2x8x8xf32>
    %223 = arith.mulf %218, %222 : vector<2x8x8xf32>
    "tpu.trace_start"() <{level = 10 : i32, message = "bst,btd->bsd"}> : () -> ()
    %cst_89 = arith.constant dense<0.000000e+00> : vector<2x8x8xf32>
    %224 = tpu.matmul %223, %212, %cst_89 {dimension_numbers = #tpu.dot_dimension_numbers<[2], [1], [1], [2], [0, 0, 0, 1, 1, 2], [0], [0]>} : vector<2x8x8xf32>, vector<2x8x8xf32>, vector<2x8x8xf32> -> vector<2x8x8xf32>
    "tpu.trace_stop"() : () -> ()
    %225 = tpu.concatenate %179, %194, %209, %224 in 2 : vector<2x8x8xf32>, vector<2x8x8xf32>, vector<2x8x8xf32>, vector<2x8x8xf32> -> vector<2x8x32xf32>
    %226 = vector.shape_cast %225 : vector<2x8x32xf32> to vector<16x32xf32>
    %c1_90 = arith.constant 1 : index
    %c0_91 = arith.constant 0 : index
    %c0_92 = arith.constant 0 : index
    %227 = vector.load %arg3[%c1_90, %c0_91, %c0_92] : memref<2x32x32xf32, #tpu.memory_space<vmem>>, vector<1x32x32xf32>
    %228 = vector.shape_cast %227 : vector<1x32x32xf32> to vector<32x32xf32>
    %cst_93 = arith.constant dense<0.000000e+00> : vector<16x32xf32>
    %229 = tpu.matmul %226, %228, %cst_93 {dimension_numbers = #tpu.dot_dimension_numbers<[1], [1], [0], [0], [0, 0, 1, 0], [], []>} : vector<16x32xf32>, vector<32x32xf32>, vector<16x32xf32> -> vector<16x32xf32>
    %c1_94 = arith.constant 1 : index
    %c0_95 = arith.constant 0 : index
    %c0_96 = arith.constant 0 : index
    %230 = vector.load %arg4[%c1_94, %c0_95, %c0_96] : memref<2x1x32xf32, #tpu.memory_space<vmem>>, vector<1x1x32xf32>
    %231 = vector.shape_cast %230 : vector<1x1x32xf32> to vector<1x32xf32>
    %232 = vector.broadcast %231 : vector<1x32xf32> to vector<16x32xf32>
    %233 = arith.addf %229, %232 : vector<16x32xf32>
    %234 = arith.addf %151, %233 : vector<16x32xf32>
    %c1_97 = arith.constant 1 : index
    %c0_98 = arith.constant 0 : index
    %c0_99 = arith.constant 0 : index
    %235 = vector.load %arg5[%c1_97, %c0_98, %c0_99] : memref<2x1x32xf32, #tpu.memory_space<vmem>>, vector<1x1x32xf32>
    %236 = vector.shape_cast %235 : vector<1x1x32xf32> to vector<1x32xf32>
    %c1_100 = arith.constant 1 : index
    %c0_101 = arith.constant 0 : index
    %c0_102 = arith.constant 0 : index
    %237 = vector.load %arg6[%c1_100, %c0_101, %c0_102] : memref<2x1x32xf32, #tpu.memory_space<vmem>>, vector<1x1x32xf32>
    %238 = vector.shape_cast %237 : vector<1x1x32xf32> to vector<1x32xf32>
    %cst_103 = arith.constant dense<0.000000e+00> : vector<16xf32>
    %239 = vector.multi_reduction <add>, %234, %cst_103 [1] : vector<16x32xf32> to vector<16xf32>
    %240 = vector.shape_cast %239 : vector<16xf32> to vector<16x1xf32>
    %cst_104 = arith.constant 3.200000e+01 : f32
    %241 = vector.broadcast %cst_104 : f32 to vector<16x1xf32>
    %242 = arith.divf %240, %241 : vector<16x1xf32>
    %243 = vector.broadcast %242 : vector<16x1xf32> to vector<16x32xf32>
    %244 = arith.subf %234, %243 : vector<16x32xf32>
    %245 = arith.mulf %244, %244 : vector<16x32xf32>
    %cst_105 = arith.constant dense<0.000000e+00> : vector<16xf32>
    %246 = vector.multi_reduction <add>, %245, %cst_105 [1] : vector<16x32xf32> to vector<16xf32>
    %247 = vector.shape_cast %246 : vector<16xf32> to vector<16x1xf32>
    %cst_106 = arith.constant 3.200000e+01 : f32
    %248 = vector.broadcast %cst_106 : f32 to vector<16x1xf32>
    %249 = arith.divf %247, %248 : vector<16x1xf32>
    %cst_107 = arith.constant 9.99999974E-6 : f32
    %250 = vector.broadcast %cst_107 : f32 to vector<16x1xf32>
    %251 = arith.addf %249, %250 : vector<16x1xf32>
    %252 = math.rsqrt %251 : vector<16x1xf32>
    %253 = vector.broadcast %252 : vector<16x1xf32> to vector<16x32xf32>
    %254 = arith.mulf %244, %253 : vector<16x32xf32>
    %255 = vector.broadcast %236 : vector<1x32xf32> to vector<16x32xf32>
    %256 = arith.mulf %254, %255 : vector<16x32xf32>
    %257 = vector.broadcast %238 : vector<1x32xf32> to vector<16x32xf32>
    %258 = arith.addf %256, %257 : vector<16x32xf32>
    %259 = arith.truncf %258 : vector<16x32xf32> to vector<16x32xbf16>
    %c1_108 = arith.constant 1 : index
    %c0_109 = arith.constant 0 : index
    %c0_110 = arith.constant 0 : index
    %260 = vector.load %arg7[%c1_108, %c0_109, %c0_110] : memref<2x2048x32xbf16, #tpu.memory_space<vmem>>, vector<1x2048x32xbf16>
    %261 = vector.shape_cast %260 : vector<1x2048x32xbf16> to vector<2048x32xbf16>
    %cst_111 = arith.constant dense<0.000000e+00> : vector<16x2048xf32>
    %262 = tpu.matmul %259, %261, %cst_111 {dimension_numbers = #tpu.dot_dimension_numbers<[1], [1], [0], [0], [0, 0, 1, 0], [], []>} : vector<16x32xbf16>, vector<2048x32xbf16>, vector<16x2048xf32> -> vector<16x2048xf32>
    %c1_112 = arith.constant 1 : index
    %c0_113 = arith.constant 0 : index
    %c0_114 = arith.constant 0 : index
    %263 = vector.load %arg8[%c1_112, %c0_113, %c0_114] : memref<2x1x2048xf32, #tpu.memory_space<vmem>>, vector<1x1x2048xf32>
    %264 = vector.shape_cast %263 : vector<1x1x2048xf32> to vector<1x2048xf32>
    %265 = vector.broadcast %264 : vector<1x2048xf32> to vector<16x2048xf32>
    %266 = arith.addf %262, %265 : vector<16x2048xf32>
    %cst_115 = arith.constant 0.000000e+00 : f32
    %267 = vector.broadcast %cst_115 : f32 to vector<16x2048xf32>
    %268 = arith.maximumf %266, %267 : vector<16x2048xf32>
    %269 = arith.truncf %268 : vector<16x2048xf32> to vector<16x2048xbf16>
    %c1_116 = arith.constant 1 : index
    %c0_117 = arith.constant 0 : index
    %c0_118 = arith.constant 0 : index
    %270 = vector.load %arg9[%c1_116, %c0_117, %c0_118] : memref<2x32x2048xbf16, #tpu.memory_space<vmem>>, vector<1x32x2048xbf16>
    %271 = vector.shape_cast %270 : vector<1x32x2048xbf16> to vector<32x2048xbf16>
    %cst_119 = arith.constant dense<0.000000e+00> : vector<16x32xf32>
    %272 = tpu.matmul %269, %271, %cst_119 {dimension_numbers = #tpu.dot_dimension_numbers<[1], [1], [0], [0], [0, 0, 1, 0], [], []>} : vector<16x2048xbf16>, vector<32x2048xbf16>, vector<16x32xf32> -> vector<16x32xf32>
    %c1_120 = arith.constant 1 : index
    %c0_121 = arith.constant 0 : index
    %c0_122 = arith.constant 0 : index
    %273 = vector.load %arg10[%c1_120, %c0_121, %c0_122] : memref<2x1x32xf32, #tpu.memory_space<vmem>>, vector<1x1x32xf32>
    %274 = vector.shape_cast %273 : vector<1x1x32xf32> to vector<1x32xf32>
    %275 = vector.broadcast %274 : vector<1x32xf32> to vector<16x32xf32>
    %276 = arith.addf %272, %275 : vector<16x32xf32>
    %277 = arith.addf %258, %276 : vector<16x32xf32>
    %c1_123 = arith.constant 1 : index
    %c0_124 = arith.constant 0 : index
    %c0_125 = arith.constant 0 : index
    %278 = vector.load %arg11[%c1_123, %c0_124, %c0_125] : memref<2x1x32xf32, #tpu.memory_space<vmem>>, vector<1x1x32xf32>
    %279 = vector.shape_cast %278 : vector<1x1x32xf32> to vector<1x32xf32>
    %c1_126 = arith.constant 1 : index
    %c0_127 = arith.constant 0 : index
    %c0_128 = arith.constant 0 : index
    %280 = vector.load %arg12[%c1_126, %c0_127, %c0_128] : memref<2x1x32xf32, #tpu.memory_space<vmem>>, vector<1x1x32xf32>
    %281 = vector.shape_cast %280 : vector<1x1x32xf32> to vector<1x32xf32>
    %cst_129 = arith.constant dense<0.000000e+00> : vector<16xf32>
    %282 = vector.multi_reduction <add>, %277, %cst_129 [1] : vector<16x32xf32> to vector<16xf32>
    %283 = vector.shape_cast %282 : vector<16xf32> to vector<16x1xf32>
    %cst_130 = arith.constant 3.200000e+01 : f32
    %284 = vector.broadcast %cst_130 : f32 to vector<16x1xf32>
    %285 = arith.divf %283, %284 : vector<16x1xf32>
    %286 = vector.broadcast %285 : vector<16x1xf32> to vector<16x32xf32>
    %287 = arith.subf %277, %286 : vector<16x32xf32>
    %288 = arith.mulf %287, %287 : vector<16x32xf32>
    %cst_131 = arith.constant dense<0.000000e+00> : vector<16xf32>
    %289 = vector.multi_reduction <add>, %288, %cst_131 [1] : vector<16x32xf32> to vector<16xf32>
    %290 = vector.shape_cast %289 : vector<16xf32> to vector<16x1xf32>
    %cst_132 = arith.constant 3.200000e+01 : f32
    %291 = vector.broadcast %cst_132 : f32 to vector<16x1xf32>
    %292 = arith.divf %290, %291 : vector<16x1xf32>
    %cst_133 = arith.constant 9.99999974E-6 : f32
    %293 = vector.broadcast %cst_133 : f32 to vector<16x1xf32>
    %294 = arith.addf %292, %293 : vector<16x1xf32>
    %295 = math.rsqrt %294 : vector<16x1xf32>
    %296 = vector.broadcast %295 : vector<16x1xf32> to vector<16x32xf32>
    %297 = arith.mulf %287, %296 : vector<16x32xf32>
    %298 = vector.broadcast %279 : vector<1x32xf32> to vector<16x32xf32>
    %299 = arith.mulf %297, %298 : vector<16x32xf32>
    %300 = vector.broadcast %281 : vector<1x32xf32> to vector<16x32xf32>
    %301 = arith.addf %299, %300 : vector<16x32xf32>
    %302 = vector.shape_cast %301 : vector<16x32xf32> to vector<2x8x32xf32>
    %cst_134 = arith.constant dense<0.000000e+00> : vector<2x32xf32>
    %303 = vector.multi_reduction <add>, %302, %cst_134 [1] : vector<2x8x32xf32> to vector<2x32xf32>
    %cst_135 = arith.constant 8.000000e+00 : f32
    %304 = vector.broadcast %cst_135 : f32 to vector<2x32xf32>
    %305 = arith.divf %303, %304 : vector<2x32xf32>
    %c0_136 = arith.constant 0 : index
    %c0_137 = arith.constant 0 : index
    %306 = vector.load %arg13[%c0_136, %c0_137] : memref<16x32xf32, #tpu.memory_space<vmem>>, vector<16x32xf32>
    %cst_138 = arith.constant dense<0.000000e+00> : vector<2x16xf32>
    %307 = tpu.matmul %305, %306, %cst_138 {dimension_numbers = #tpu.dot_dimension_numbers<[1], [1], [0], [0], [0, 0, 1, 0], [], []>} : vector<2x32xf32>, vector<16x32xf32>, vector<2x16xf32> -> vector<2x16xf32>
    %c0_139 = arith.constant 0 : index
    %c0_140 = arith.constant 0 : index
    %308 = vector.load %arg14[%c0_139, %c0_140] : memref<1x16xf32, #tpu.memory_space<vmem>>, vector<1x16xf32>
    %309 = vector.broadcast %308 : vector<1x16xf32> to vector<2x16xf32>
    %310 = arith.addf %307, %309 : vector<2x16xf32>
    %c0_141 = arith.constant 0 : index
    %c0_142 = arith.constant 0 : index
    %311 = vector.load %arg15[%c0_141, %c0_142] : memref<2x16xf32, #tpu.memory_space<vmem>>, vector<2x16xf32>
    tpu.vector_store %arg15[%c0_141, %c0_142], %310 {strides = array<i32>} : memref<2x16xf32, #tpu.memory_space<vmem>>, vector<2x16xf32>,
    return
  }
}

</mosaic_0001>

<llo_original>
// kernel: neural_ca_forward.1
$region0: #{neural_ca_forward.1}
  #allocation0 [shape = 'u32[]', space=smem, size = 0x4, offset = 0x4, fixed_abs, tag = 'smem constant byte address 0x4 - core index']
  #allocation1 [shape = 'u32[144,128]{1,0:T(1,128)}', space=vmem, size = 0x12000, scoped, tag = 'internal scratch']
  %s0 = inlined_call_operand.vmem [shape: f32[2,8,32], index: 0, kind: input, shape index: {}]
  %s1 = inlined_call_operand.vmem [shape: f32[2,96,32], index: 1, kind: input, shape index: {}]
  %s2 = inlined_call_operand.vmem [shape: f32[2,1,96], index: 2, kind: input, shape index: {}]
  %s3 = inlined_call_operand.vmem [shape: f32[2,32,32], index: 3, kind: input, shape index: {}]
  %s4 = inlined_call_operand.vmem [shape: f32[2,1,32], index: 4, kind: input, shape index: {}]
  %s5 = inlined_call_operand.vmem [shape: f32[2,1,32], index: 5, kind: input, shape index: {}]
  %s6 = inlined_call_operand.vmem [shape: f32[2,1,32], index: 6, kind: input, shape index: {}]
  %s7 = inlined_call_operand.vmem [shape: bf16[2,2048,32], index: 7, kind: input, shape index: {}]
  %s8 = inlined_call_operand.vmem [shape: f32[2,1,2048], index: 8, kind: input, shape index: {}]
  %s9 = inlined_call_operand.vmem [shape: bf16[2,32,2048], index: 9, kind: input, shape index: {}]
  %s10 = inlined_call_operand.vmem [shape: f32[2,1,32], index: 10, kind: input, shape index: {}]
  %s11 = inlined_call_operand.vmem [shape: f32[2,1,32], index: 11, kind: input, shape index: {}]
  %s12 = inlined_call_operand.vmem [shape: f32[2,1,32], index: 12, kind: input, shape index: {}]
  %s13 = inlined_call_operand.vmem [shape: f32[16,32], index: 13, kind: input, shape index: {}]
  %s14 = inlined_call_operand.vmem [shape: f32[1,16], index: 14, kind: input, shape index: {}]
  %s15 = inlined_call_operand.hbm [shape: f32[2,16], index: 15, kind: output, shape index: {}]
  %s16 = sld [smem:[#allocation0]]
  $region70: #{neural_ca_forward.1} parent=0
    _
  %s18 = ssub.s32 1, %s16
  %s19 = scalar_select 0, %s18, %s16
  $region1: #{neural_ca_forward.1} parent=0
    #allocation2 [shape = 'u8[1024]{0}', space=vmem, size = 0x400, scoped, tag = 'output window, operand 0, single buffered']
    #allocation3 [shape = 's32[1]{0}', space=sflag, size = 0x4, scoped, tag = 'scoped memory for neural_ca_forward.1']
    %20 = vsyncpa [#allocation3], 0
    // Predicated region
    $region2: #{neural_ca_forward.1} parent=1 // pred_check
      _
    $region3: #{neural_ca_forward.1} parent=1 // pred_check_branch
      %22 = sbr.rel (0) target = $region5
    $region4: #{neural_ca_forward.1} parent=1 // pred_region
      _
    $region5: #{neural_ca_forward.1} parent=1 // pred_fallthru
      _
    // Predicated region
    $region6: #{neural_ca_forward.1} parent=1 // pred_check
      _
    $region7: #{neural_ca_forward.1} parent=1 // pred_check_branch
      %24 = sbr.rel (0) target = $region9
    $region8: #{neural_ca_forward.1} parent=1 // pred_region
      _
    $region9: #{neural_ca_forward.1} parent=1 // pred_fallthru
      _
    // Predicated region
    $region10: #{neural_ca_forward.1} parent=1 // pred_check
      _
    $region11: #{neural_ca_forward.1} parent=1 // pred_check_branch
      %26 = sbr.rel (0) target = $region13
    $region12: #{neural_ca_forward.1} parent=1 // pred_region
      _
    $region13: #{neural_ca_forward.1} parent=1 // pred_fallthru
      _
    // Predicated region
    $region14: #{neural_ca_forward.1} parent=1 // pred_check
      _
    $region15: #{neural_ca_forward.1} parent=1 // pred_check_branch
      %28 = sbr.rel (0) target = $region17
    $region16: #{neural_ca_forward.1} parent=1 // pred_region
      _
    $region17: #{neural_ca_forward.1} parent=1 // pred_fallthru
      _
    // Predicated region
    $region18: #{neural_ca_forward.1} parent=1 // pred_check
      _
    $region19: #{neural_ca_forward.1} parent=1 // pred_check_branch
      %30 = sbr.rel (0) target = $region21
    $region20: #{neural_ca_forward.1} parent=1 // pred_region
      _
    $region21: #{neural_ca_forward.1} parent=1 // pred_fallthru
      _
    // Predicated region
    $region22: #{neural_ca_forward.1} parent=1 // pred_check
      _
    $region23: #{neural_ca_forward.1} parent=1 // pred_check_branch
      %32 = sbr.rel (0) target = $region25
    $region24: #{neural_ca_forward.1} parent=1 // pred_region
      _
    $region25: #{neural_ca_forward.1} parent=1 // pred_fallthru
      _
    // Predicated region
    $region26: #{neural_ca_forward.1} parent=1 // pred_check
      _
    $region27: #{neural_ca_forward.1} parent=1 // pred_check_branch
      %34 = sbr.rel (0) target = $region29
    $region28: #{neural_ca_forward.1} parent=1 // pred_region
      _
    $region29: #{neural_ca_forward.1} parent=1 // pred_fallthru
      _
    // Predicated region
    $region30: #{neural_ca_forward.1} parent=1 // pred_check
      _
    $region31: #{neural_ca_forward.1} parent=1 // pred_check_branch
      %36 = sbr.rel (0) target = $region33
    $region32: #{neural_ca_forward.1} parent=1 // pred_region
      _
    $region33: #{neural_ca_forward.1} parent=1 // pred_fallthru
      _
    // Predicated region
    $region34: #{neural_ca_forward.1} parent=1 // pred_check
      _
    $region35: #{neural_ca_forward.1} parent=1 // pred_check_branch
      %38 = sbr.rel (0) target = $region37
    $region36: #{neural_ca_forward.1} parent=1 // pred_region
      _
    $region37: #{neural_ca_forward.1} parent=1 // pred_fallthru
      _
    // Predicated region
    $region38: #{neural_ca_forward.1} parent=1 // pred_check
      _
    $region39: #{neural_ca_forward.1} parent=1 // pred_check_branch
      %40 = sbr.rel (0) target = $region41
    $region40: #{neural_ca_forward.1} parent=1 // pred_region
      _
    $region41: #{neural_ca_forward.1} parent=1 // pred_fallthru
      _
    // Predicated region
    $region42: #{neural_ca_forward.1} parent=1 // pred_check
      _
    $region43: #{neural_ca_forward.1} parent=1 // pred_check_branch
      %42 = sbr.rel (0) target = $region45
    $region44: #{neural_ca_forward.1} parent=1 // pred_region
      _
    $region45: #{neural_ca_forward.1} parent=1 // pred_fallthru
      _
    // Predicated region
    $region46: #{neural_ca_forward.1} parent=1 // pred_check
      _
    $region47: #{neural_ca_forward.1} parent=1 // pred_check_branch
      %44 = sbr.rel (0) target = $region49
    $region48: #{neural_ca_forward.1} parent=1 // pred_region
      _
    $region49: #{neural_ca_forward.1} parent=1 // pred_fallthru
      _
    // Predicated region
    $region50: #{neural_ca_forward.1} parent=1 // pred_check
      _
    $region51: #{neural_ca_forward.1} parent=1 // pred_check_branch
      %46 = sbr.rel (0) target = $region53
    $region52: #{neural_ca_forward.1} parent=1 // pred_region
      _
    $region53: #{neural_ca_forward.1} parent=1 // pred_fallthru
      _
    // Predicated region
    $region54: #{neural_ca_forward.1} parent=1 // pred_check
      _
    $region55: #{neural_ca_forward.1} parent=1 // pred_check_branch
      %48 = sbr.rel (0) target = $region57
    $region56: #{neural_ca_forward.1} parent=1 // pred_region
      _
    $region57: #{neural_ca_forward.1} parent=1 // pred_fallthru
      _
    // Predicated region
    $region58: #{neural_ca_forward.1} parent=1 // pred_check
      _
    $region59: #{neural_ca_forward.1} parent=1 // pred_check_branch
      %50 = sbr.rel (0) target = $region61
    $region60: #{neural_ca_forward.1} parent=1 // pred_region
      _
    $region61: #{neural_ca_forward.1} parent=1 // pred_fallthru
      _
    %v52 = vld [vmem:[%s0] sm:$0xff]
    %v53 = vld [vmem:[%s0 + $0x8] sm:$0xff]
    %v54 = vld [vmem:[%s1] sm:$0xff]
    %v55 = vld [vmem:[%s1 + $0x8] sm:$0xff]
    %v56 = vld [vmem:[%s1 + $0x10] sm:$0xff]
    %v57 = vld [vmem:[%s1 + $0x18] sm:$0xff]
    %v58 = vld [vmem:[%s1 + $0x20] sm:$0xff]
    %v59 = vld [vmem:[%s1 + $0x28] sm:$0xff]
    %v60 = vld [vmem:[%s1 + $0x30] sm:$0xff]
    %v61 = vld [vmem:[%s1 + $0x38] sm:$0xff]
    %v62 = vld [vmem:[%s1 + $0x40] sm:$0xff]
    %v63 = vld [vmem:[%s1 + $0x48] sm:$0xff]
    %v64 = vld [vmem:[%s1 + $0x50] sm:$0xff]
    %v65 = vld [vmem:[%s1 + $0x58] sm:$0xff]
    %v66 = vld [vmem:[%s2] sm:$0x1]
    %v68 = vlaneseq
    %v69 = vshrl.u32 %v68, 7
    %v70 = vsub.s32 0, %v69
    %v71 = vrot.slane %v66, %v70
    %vm73 = vcmask 261120
    %v75 = vsel %vm73, %v52, 0
    %v78 = vsel %vm73, %v53, 0
    %v81 = vsel %vm73, %v54, 0
    %v84 = vsel %vm73, %v55, 0
    %v87 = vsel %vm73, %v56, 0
    %v90 = vsel %vm73, %v57, 0
    %v93 = vsel %vm73, %v58, 0
    %v96 = vsel %vm73, %v59, 0
    %v99 = vsel %vm73, %v60, 0
    %v102 = vsel %vm73, %v61, 0
    %v105 = vsel %vm73, %v62, 0
    %v108 = vsel %vm73, %v63, 0
    %v111 = vsel %vm73, %v64, 0
    %v114 = vsel %vm73, %v65, 0
    %116 = vmatprep.subr.mxu0 0.0
    %117 = vmatpush1.xpose.msra.mxu0 0.0
    %118 = vmatprep.subr.mxu0 0.0
    %119 = vmatpush1.xpose.msra.mxu0 0.0
    %120 = vmatprep.subr.mxu0 0.0
    %121 = vmatpush1.xpose.msra.mxu0 0.0
    %122 = vmatprep.subr.mxu0 0.0
    %123 = vmatpush1.xpose.msra.mxu0 0.0
    %124 = vmatprep.subr.mxu0 0.0
    %125 = vmatpush1.xpose.msra.mxu0 %v114
    %126 = vmatprep.subr.mxu0 0.0
    %127 = vmatpush1.xpose.msra.mxu0 %v111
    %128 = vmatprep.subr.mxu0 0.0
    %129 = vmatpush1.xpose.msra.mxu0 %v108
    %130 = vmatprep.subr.mxu0 0.0
    %131 = vmatpush1.xpose.msra.mxu0 %v105
    %132 = vmatprep.subr.mxu0 0.0
    %133 = vmatpush1.xpose.msra.mxu0 %v102
    %134 = vmatprep.subr.mxu0 0.0
    %135 = vmatpush1.xpose.msra.mxu0 %v99
    %136 = vmatprep.subr.mxu0 0.0
    %137 = vmatpush1.xpose.msra.mxu0 %v96
    %138 = vmatprep.subr.mxu0 0.0
    %139 = vmatpush1.xpose.msra.mxu0 %v93
    %140 = vmatprep.subr.mxu0 0.0
    %141 = vmatpush1.xpose.msra.mxu0 %v90
    %142 = vmatprep.subr.mxu0 0.0
    %143 = vmatpush1.xpose.msra.mxu0 %v87
    %144 = vmatprep.subr.mxu0 0.0
    %145 = vmatpush1.xpose.msra.mxu0 %v84
    %146 = vmatprep.subr.mxu0 0.0
    %147 = vmatpush1.xpose.msra.mxu0 %v81
    %148 = vmatprep.subr.mxu0 0.0
    %149 = vmatpush2.xpose.msra.mxu0 0.0
    %150 = vmatprep.subr.mxu0 0.0
    %151 = vmatpush2.xpose.msra.mxu0 0.0
    %152 = vmatprep.subr.mxu0 0.0
    %153 = vmatpush2.xpose.msra.mxu0 0.0
    %154 = vmatprep.subr.mxu0 0.0
    %155 = vmatpush2.xpose.msra.mxu0 0.0
    %156 = vmatprep.subr.mxu0 0.0
    %157 = vmatpush2.xpose.msra.mxu0 0.0
    %158 = vmatprep.subr.mxu0 0.0
    %159 = vmatpush2.xpose.msra.mxu0 0.0
    %160 = vmatprep.subr.mxu0 0.0
    %161 = vmatpush2.xpose.msra.mxu0 0.0
    %162 = vmatprep.subr.mxu0 0.0
    %163 = vmatpush2.xpose.msra.mxu0 0.0
    %164 = vmatprep.subr.mxu0 0.0
    %165 = vmatpush2.xpose.msra.mxu0 0.0
    %166 = vmatprep.subr.mxu0 0.0
    %167 = vmatpush2.xpose.msra.mxu0 0.0
    %168 = vmatprep.subr.mxu0 0.0
    %169 = vmatpush2.xpose.msra.mxu0 0.0
    %170 = vmatprep.subr.mxu0 0.0
    %171 = vmatpush2.xpose.msra.mxu0 0.0
    %172 = vmatprep.subr.mxu0 0.0
    %173 = vmatpush2.xpose.msra.mxu0 0.0
    %174 = vmatprep.subr.mxu0 0.0
    %175 = vmatpush2.xpose.msra.mxu0 0.0
    %176 = vmatprep.subr.mxu0 0.0
    %177 = vmatpush2.xpose.msra.mxu0 0.0
    %178 = vmatprep.subr.mxu0 0.0
    %179 = vmatpush2.xpose.msra.mxu0 0.0
    %180 = vmatprep.mubr.f32.mxu0 0.0
    %181 = vmatmul.mubr.f32.gmra.mxu0 %v75
    %v182 = vpop.f32.mrf.mxu0
    %v183 = vadd.f32 %v71, %v182
    %v184 = vpop.f32.mrf.mxu0
    %185 = vmatprep.mubr.f32.mxu0 0.0
    %186 = vmatmul.mubr.f32.gmra.mxu0 %v78
    %v187 = vpop.f32.mrf.mxu0
    %v188 = vadd.f32 %v71, %v187
    %v189 = vpop.f32.mrf.mxu0
    %190 = vdwg.mxu0
    %192 = vrot.lane.b32.xlu0 %v183, 96
    %v193 = vpop.permute.xlu0 %192
    %vm194 = vcmask 64512
    %v195 = vsel %vm194, %v183, 0
    %v197 = vsel %vm194, %v193, 0
    %199 = vmatprep.subr.mxu0 0.0
    %200 = vmatpush1.xpose.msra.mxu0 0.0
    %201 = vmatprep.subr.mxu0 0.0
    %202 = vmatpush1.xpose.msra.mxu0 0.0
    %203 = vmatprep.subr.mxu0 0.0
    %204 = vmatpush1.xpose.msra.mxu0 0.0
    %205 = vmatprep.subr.mxu0 0.0
    %206 = vmatpush1.xpose.msra.mxu0 0.0
    %207 = vmatprep.subr.mxu0 0.0
    %208 = vmatpush1.xpose.msra.mxu0 0.0
    %209 = vmatprep.subr.mxu0 0.0
    %210 = vmatpush1.xpose.msra.mxu0 0.0
    %211 = vmatprep.subr.mxu0 0.0
    %212 = vmatpush1.xpose.msra.mxu0 0.0
    %213 = vmatprep.subr.mxu0 0.0
    %214 = vmatpush1.xpose.msra.mxu0 0.0
    %215 = vmatprep.subr.mxu0 0.0
    %216 = vmatpush1.xpose.msra.mxu0 0.0
    %217 = vmatprep.subr.mxu0 0.0
    %218 = vmatpush1.xpose.msra.mxu0 0.0
    %219 = vmatprep.subr.mxu0 0.0
    %220 = vmatpush1.xpose.msra.mxu0 0.0
    %221 = vmatprep.subr.mxu0 0.0
    %222 = vmatpush1.xpose.msra.mxu0 0.0
    %223 = vmatprep.subr.mxu0 0.0
    %224 = vmatpush1.xpose.msra.mxu0 0.0
    %225 = vmatprep.subr.mxu0 0.0
    %226 = vmatpush1.xpose.msra.mxu0 0.0
    %227 = vmatprep.subr.mxu0 0.0
    %228 = vmatpush1.xpose.msra.mxu0 0.0
    %229 = vmatprep.subr.mxu0 0.0
    %230 = vmatpush1.xpose.msra.mxu0 %v197
    %231 = vmatprep.subr.mxu0 0.0
    %232 = vmatpush2.xpose.msra.mxu0 0.0
    %233 = vmatprep.subr.mxu0 0.0
    %234 = vmatpush2.xpose.msra.mxu0 0.0
    %235 = vmatprep.subr.mxu0 0.0
    %236 = vmatpush2.xpose.msra.mxu0 0.0
    %237 = vmatprep.subr.mxu0 0.0
    %238 = vmatpush2.xpose.msra.mxu0 0.0
    %239 = vmatprep.subr.mxu0 0.0
    %240 = vmatpush2.xpose.msra.mxu0 0.0
    %241 = vmatprep.subr.mxu0 0.0
    %242 = vmatpush2.xpose.msra.mxu0 0.0
    %243 = vmatprep.subr.mxu0 0.0
    %244 = vmatpush2.xpose.msra.mxu0 0.0
    %245 = vmatprep.subr.mxu0 0.0
    %246 = vmatpush2.xpose.msra.mxu0 0.0
    %247 = vmatprep.subr.mxu0 0.0
    %248 = vmatpush2.xpose.msra.mxu0 0.0
    %249 = vmatprep.subr.mxu0 0.0
    %250 = vmatpush2.xpose.msra.mxu0 0.0
    %251 = vmatprep.subr.mxu0 0.0
    %252 = vmatpush2.xpose.msra.mxu0 0.0
    %253 = vmatprep.subr.mxu0 0.0
    %254 = vmatpush2.xpose.msra.mxu0 0.0
    %255 = vmatprep.subr.mxu0 0.0
    %256 = vmatpush2.xpose.msra.mxu0 0.0
    %257 = vmatprep.subr.mxu0 0.0
    %258 = vmatpush2.xpose.msra.mxu0 0.0
    %259 = vmatprep.subr.mxu0 0.0
    %260 = vmatpush2.xpose.msra.mxu0 0.0
    %261 = vmatprep.subr.mxu0 0.0
    %262 = vmatpush2.xpose.msra.mxu0 0.0
    %263 = vmatprep.mubr.f32.mxu0 0.0
    %264 = vmatmul.mubr.f32.gmra.mxu0 %v195
    %v265 = vpop.f32.mrf.mxu0
    %v266 = vadd.f32 0.0, %v265
    %v267 = vpop.f32.mrf.mxu0
    %268 = vdwg.mxu0
    %270 = vrot.lane.b32.xlu0 %v188, 96
    %v271 = vpop.permute.xlu0 %270
    %v272 = vsel %vm194, %v188, 0
    %v274 = vsel %vm194, %v271, 0
    %276 = vmatprep.subr.mxu0 0.0
    %277 = vmatpush1.xpose.msra.mxu0 0.0
    %278 = vmatprep.subr.mxu0 0.0
    %279 = vmatpush1.xpose.msra.mxu0 0.0
    %280 = vmatprep.subr.mxu0 0.0
    %281 = vmatpush1.xpose.msra.mxu0 0.0
    %282 = vmatprep.subr.mxu0 0.0
    %283 = vmatpush1.xpose.msra.mxu0 0.0
    %284 = vmatprep.subr.mxu0 0.0
    %285 = vmatpush1.xpose.msra.mxu0 0.0
    %286 = vmatprep.subr.mxu0 0.0
    %287 = vmatpush1.xpose.msra.mxu0 0.0
    %288 = vmatprep.subr.mxu0 0.0
    %289 = vmatpush1.xpose.msra.mxu0 0.0
    %290 = vmatprep.subr.mxu0 0.0
    %291 = vmatpush1.xpose.msra.mxu0 0.0
    %292 = vmatprep.subr.mxu0 0.0
    %293 = vmatpush1.xpose.msra.mxu0 0.0
    %294 = vmatprep.subr.mxu0 0.0
    %295 = vmatpush1.xpose.msra.mxu0 0.0
    %296 = vmatprep.subr.mxu0 0.0
    %297 = vmatpush1.xpose.msra.mxu0 0.0
    %298 = vmatprep.subr.mxu0 0.0
    %299 = vmatpush1.xpose.msra.mxu0 0.0
    %300 = vmatprep.subr.mxu0 0.0
    %301 = vmatpush1.xpose.msra.mxu0 0.0
    %302 = vmatprep.subr.mxu0 0.0
    %303 = vmatpush1.xpose.msra.mxu0 0.0
    %304 = vmatprep.subr.mxu0 0.0
    %305 = vmatpush1.xpose.msra.mxu0 0.0
    %306 = vmatprep.subr.mxu0 0.0
    %307 = vmatpush1.xpose.msra.mxu0 %v274
    %308 = vmatprep.subr.mxu0 0.0
    %309 = vmatpush2.xpose.msra.mxu0 0.0
    %310 = vmatprep.subr.mxu0 0.0
    %311 = vmatpush2.xpose.msra.mxu0 0.0
    %312 = vmatprep.subr.mxu0 0.0
    %313 = vmatpush2.xpose.msra.mxu0 0.0
    %314 = vmatprep.subr.mxu0 0.0
    %315 = vmatpush2.xpose.msra.mxu0 0.0
    %316 = vmatprep.subr.mxu0 0.0
    %317 = vmatpush2.xpose.msra.mxu0 0.0
    %318 = vmatprep.subr.mxu0 0.0
    %319 = vmatpush2.xpose.msra.mxu0 0.0
    %320 = vmatprep.subr.mxu0 0.0
    %321 = vmatpush2.xpose.msra.mxu0 0.0
    %322 = vmatprep.subr.mxu0 0.0
    %323 = vmatpush2.xpose.msra.mxu0 0.0
    %324 = vmatprep.subr.mxu0 0.0
    %325 = vmatpush2.xpose.msra.mxu0 0.0
    %326 = vmatprep.subr.mxu0 0.0
    %327 = vmatpush2.xpose.msra.mxu0 0.0
    %328 = vmatprep.subr.mxu0 0.0
    %329 = vmatpush2.xpose.msra.mxu0 0.0
    %330 = vmatprep.subr.mxu0 0.0
    %331 = vmatpush2.xpose.msra.mxu0 0.0
    %332 = vmatprep.subr.mxu0 0.0
    %333 = vmatpush2.xpose.msra.mxu0 0.0
    %334 = vmatprep.subr.mxu0 0.0
    %335 = vmatpush2.xpose.msra.mxu0 0.0
    %336 = vmatprep.subr.mxu0 0.0
    %337 = vmatpush2.xpose.msra.mxu0 0.0
    %338 = vmatprep.subr.mxu0 0.0
    %339 = vmatpush2.xpose.msra.mxu0 0.0
    %340 = vmatprep.mubr.f32.mxu0 0.0
    %341 = vmatmul.mubr.f32.gmra.mxu0 %v272
    %v342 = vpop.f32.mrf.mxu0
    %v343 = vadd.f32 0.0, %v342
    %v344 = vpop.f32.mrf.mxu0
    %345 = vdwg.mxu0
    %v346 = vsel %vm194, %v266, -inf
    %347 = vmax.xlane.f32.xlu0 %v346
    %v348 = vpop.xlane.xlu0 %347
    %v349 = vsel %vm194, %v343, -inf
    %350 = vmax.xlane.f32.xlu0 %v349
    %v351 = vpop.xlane.xlu0 %350
    %v352 = vsub.f32 %v266, %v348
    %v353 = vsub.f32 %v343, %v351
    %v354 = vmul.f32 %v352, 1.442695
    %v355 = vpow.pop %v354
    %v356 = vmul.f32 %v353, 1.442695
    %v357 = vpow.pop %v356
    %v358 = vsel %vm194, %v355, 0.0
    %359 = vadd.xlane.f32.xlu0 %v358
    %v360 = vpop.xlane.xlu0 %359
    %v361 = vsel %vm194, %v357, 0.0
    %362 = vadd.xlane.f32.xlu0 %v361
    %v363 = vpop.xlane.xlu0 %362
    %v364 = vrcp.pop %v360
    %v365 = vrcp.pop %v363
    %v366 = vmul.f32 %v355, %v364
    %v367 = vmul.f32 %v357, %v365
    %368 = vrot.lane.b32.xlu0 %v183, 64
    %v369 = vpop.permute.xlu0 %368
    %v372 = vsel %vm194, %v366, 0
    %374 = vmatprep.subr.mxu0 0.0
    %375 = vmatpush1.msra.mxu0 0.0
    %376 = vmatprep.subr.mxu0 0.0
    %377 = vmatpush1.msra.mxu0 0.0
    %378 = vmatprep.subr.mxu0 0.0
    %379 = vmatpush1.msra.mxu0 0.0
    %380 = vmatprep.subr.mxu0 0.0
    %381 = vmatpush1.msra.mxu0 0.0
    %382 = vmatprep.subr.mxu0 0.0
    %383 = vmatpush1.msra.mxu0 0.0
    %384 = vmatprep.subr.mxu0 0.0
    %385 = vmatpush1.msra.mxu0 0.0
    %386 = vmatprep.subr.mxu0 0.0
    %387 = vmatpush1.msra.mxu0 0.0
    %388 = vmatprep.subr.mxu0 0.0
    %389 = vmatpush1.msra.mxu0 0.0
    %390 = vmatprep.subr.mxu0 0.0
    %391 = vmatpush1.msra.mxu0 0.0
    %392 = vmatprep.subr.mxu0 0.0
    %393 = vmatpush1.msra.mxu0 0.0
    %394 = vmatprep.subr.mxu0 0.0
    %395 = vmatpush1.msra.mxu0 0.0
    %396 = vmatprep.subr.mxu0 0.0
    %397 = vmatpush1.msra.mxu0 0.0
    %398 = vmatprep.subr.mxu0 0.0
    %399 = vmatpush1.msra.mxu0 0.0
    %400 = vmatprep.subr.mxu0 0.0
    %401 = vmatpush1.msra.mxu0 0.0
    %402 = vmatprep.subr.mxu0 0.0
    %403 = vmatpush1.msra.mxu0 0.0
    %404 = vmatprep.subr.mxu0 0.0
    %405 = vmatpush1.msra.mxu0 %v369
    %406 = vmatprep.subr.mxu0 0.0
    %407 = vmatpush2.msra.mxu0 0.0
    %408 = vmatprep.subr.mxu0 0.0
    %409 = vmatpush2.msra.mxu0 0.0
    %410 = vmatprep.subr.mxu0 0.0
    %411 = vmatpush2.msra.mxu0 0.0
    %412 = vmatprep.subr.mxu0 0.0
    %413 = vmatpush2.msra.mxu0 0.0
    %414 = vmatprep.subr.mxu0 0.0
    %415 = vmatpush2.msra.mxu0 0.0
    %416 = vmatprep.subr.mxu0 0.0
    %417 = vmatpush2.msra.mxu0 0.0
    %418 = vmatprep.subr.mxu0 0.0
    %419 = vmatpush2.msra.mxu0 0.0
    %420 = vmatprep.subr.mxu0 0.0
    %421 = vmatpush2.msra.mxu0 0.0
    %422 = vmatprep.subr.mxu0 0.0
    %423 = vmatpush2.msra.mxu0 0.0
    %424 = vmatprep.subr.mxu0 0.0
    %425 = vmatpush2.msra.mxu0 0.0
    %426 = vmatprep.subr.mxu0 0.0
    %427 = vmatpush2.msra.mxu0 0.0
    %428 = vmatprep.subr.mxu0 0.0
    %429 = vmatpush2.msra.mxu0 0.0
    %430 = vmatprep.subr.mxu0 0.0
    %431 = vmatpush2.msra.mxu0 0.0
    %432 = vmatprep.subr.mxu0 0.0
    %433 = vmatpush2.msra.mxu0 0.0
    %434 = vmatprep.subr.mxu0 0.0
    %435 = vmatpush2.msra.mxu0 0.0
    %436 = vmatprep.subr.mxu0 0.0
    %437 = vmatpush2.msra.mxu0 0.0
    %438 = vmatprep.mubr.f32.mxu0 0.0
    %439 = vmatmul.mubr.f32.gmra.mxu0 %v372
    %v440 = vpop.f32.mrf.mxu0
    %v441 = vadd.f32 0.0, %v440
    %v442 = vpop.f32.mrf.mxu0
    %443 = vdwg.mxu0
    %444 = vrot.lane.b32.xlu0 %v188, 64
    %v445 = vpop.permute.xlu0 %444
    %v448 = vsel %vm194, %v367, 0
    %450 = vmatprep.subr.mxu0 0.0
    %451 = vmatpush1.msra.mxu0 0.0
    %452 = vmatprep.subr.mxu0 0.0
    %453 = vmatpush1.msra.mxu0 0.0
    %454 = vmatprep.subr.mxu0 0.0
    %455 = vmatpush1.msra.mxu0 0.0
    %456 = vmatprep.subr.mxu0 0.0
    %457 = vmatpush1.msra.mxu0 0.0
    %458 = vmatprep.subr.mxu0 0.0
    %459 = vmatpush1.msra.mxu0 0.0
    %460 = vmatprep.subr.mxu0 0.0
    %461 = vmatpush1.msra.mxu0 0.0
    %462 = vmatprep.subr.mxu0 0.0
    %463 = vmatpush1.msra.mxu0 0.0
    %464 = vmatprep.subr.mxu0 0.0
    %465 = vmatpush1.msra.mxu0 0.0
    %466 = vmatprep.subr.mxu0 0.0
    %467 = vmatpush1.msra.mxu0 0.0
    %468 = vmatprep.subr.mxu0 0.0
    %469 = vmatpush1.msra.mxu0 0.0
    %470 = vmatprep.subr.mxu0 0.0
    %471 = vmatpush1.msra.mxu0 0.0
    %472 = vmatprep.subr.mxu0 0.0
    %473 = vmatpush1.msra.mxu0 0.0
    %474 = vmatprep.subr.mxu0 0.0
    %475 = vmatpush1.msra.mxu0 0.0
    %476 = vmatprep.subr.mxu0 0.0
    %477 = vmatpush1.msra.mxu0 0.0
    %478 = vmatprep.subr.mxu0 0.0
    %479 = vmatpush1.msra.mxu0 0.0
    %480 = vmatprep.subr.mxu0 0.0
    %481 = vmatpush1.msra.mxu0 %v445
    %482 = vmatprep.subr.mxu0 0.0
    %483 = vmatpush2.msra.mxu0 0.0
    %484 = vmatprep.subr.mxu0 0.0
    %485 = vmatpush2.msra.mxu0 0.0
    %486 = vmatprep.subr.mxu0 0.0
    %487 = vmatpush2.msra.mxu0 0.0
    %488 = vmatprep.subr.mxu0 0.0
    %489 = vmatpush2.msra.mxu0 0.0
    %490 = vmatprep.subr.mxu0 0.0
    %491 = vmatpush2.msra.mxu0 0.0
    %492 = vmatprep.subr.mxu0 0.0
    %493 = vmatpush2.msra.mxu0 0.0
    %494 = vmatprep.subr.mxu0 0.0
    %495 = vmatpush2.msra.mxu0 0.0
    %496 = vmatprep.subr.mxu0 0.0
    %497 = vmatpush2.msra.mxu0 0.0
    %498 = vmatprep.subr.mxu0 0.0
    %499 = vmatpush2.msra.mxu0 0.0
    %500 = vmatprep.subr.mxu0 0.0
    %501 = vmatpush2.msra.mxu0 0.0
    %502 = vmatprep.subr.mxu0 0.0
    %503 = vmatpush2.msra.mxu0 0.0
    %504 = vmatprep.subr.mxu0 0.0
    %505 = vmatpush2.msra.mxu0 0.0
    %506 = vmatprep.subr.mxu0 0.0
    %507 = vmatpush2.msra.mxu0 0.0
    %508 = vmatprep.subr.mxu0 0.0
    %509 = vmatpush2.msra.mxu0 0.0
    %510 = vmatprep.subr.mxu0 0.0
    %511 = vmatpush2.msra.mxu0 0.0
    %512 = vmatprep.subr.mxu0 0.0
    %513 = vmatpush2.msra.mxu0 0.0
    %514 = vmatprep.mubr.f32.mxu0 0.0
    %515 = vmatmul.mubr.f32.gmra.mxu0 %v448
    %v516 = vpop.f32.mrf.mxu0
    %v517 = vadd.f32 0.0, %v516
    %v518 = vpop.f32.mrf.mxu0
    %519 = vdwg.mxu0
    %520 = vrot.lane.b32.xlu0 %v183, 120
    %v521 = vpop.permute.xlu0 %520
    %522 = vrot.lane.b32.xlu0 %v183, 88
    %v523 = vpop.permute.xlu0 %522
    %v524 = vsel %vm194, %v521, 0
    %v526 = vsel %vm194, %v523, 0
    %528 = vmatprep.subr.mxu0 0.0
    %529 = vmatpush1.xpose.msra.mxu0 0.0
    %530 = vmatprep.subr.mxu0 0.0
    %531 = vmatpush1.xpose.msra.mxu0 0.0
    %532 = vmatprep.subr.mxu0 0.0
    %533 = vmatpush1.xpose.msra.mxu0 0.0
    %534 = vmatprep.subr.mxu0 0.0
    %535 = vmatpush1.xpose.msra.mxu0 0.0
    %536 = vmatprep.subr.mxu0 0.0
    %537 = vmatpush1.xpose.msra.mxu0 0.0
    %538 = vmatprep.subr.mxu0 0.0
    %539 = vmatpush1.xpose.msra.mxu0 0.0
    %540 = vmatprep.subr.mxu0 0.0
    %541 = vmatpush1.xpose.msra.mxu0 0.0
    %542 = vmatprep.subr.mxu0 0.0
    %543 = vmatpush1.xpose.msra.mxu0 0.0
    %544 = vmatprep.subr.mxu0 0.0
    %545 = vmatpush1.xpose.msra.mxu0 0.0
    %546 = vmatprep.subr.mxu0 0.0
    %547 = vmatpush1.xpose.msra.mxu0 0.0
    %548 = vmatprep.subr.mxu0 0.0
    %549 = vmatpush1.xpose.msra.mxu0 0.0
    %550 = vmatprep.subr.mxu0 0.0
    %551 = vmatpush1.xpose.msra.mxu0 0.0
    %552 = vmatprep.subr.mxu0 0.0
    %553 = vmatpush1.xpose.msra.mxu0 0.0
    %554 = vmatprep.subr.mxu0 0.0
    %555 = vmatpush1.xpose.msra.mxu0 0.0
    %556 = vmatprep.subr.mxu0 0.0
    %557 = vmatpush1.xpose.msra.mxu0 0.0
    %558 = vmatprep.subr.mxu0 0.0
    %559 = vmatpush1.xpose.msra.mxu0 %v526
    %560 = vmatprep.subr.mxu0 0.0
    %561 = vmatpush2.xpose.msra.mxu0 0.0
    %562 = vmatprep.subr.mxu0 0.0
    %563 = vmatpush2.xpose.msra.mxu0 0.0
    %564 = vmatprep.subr.mxu0 0.0
    %565 = vmatpush2.xpose.msra.mxu0 0.0
    %566 = vmatprep.subr.mxu0 0.0
    %567 = vmatpush2.xpose.msra.mxu0 0.0
    %568 = vmatprep.subr.mxu0 0.0
    %569 = vmatpush2.xpose.msra.mxu0 0.0
    %570 = vmatprep.subr.mxu0 0.0
    %571 = vmatpush2.xpose.msra.mxu0 0.0
    %572 = vmatprep.subr.mxu0 0.0
    %573 = vmatpush2.xpose.msra.mxu0 0.0
    %574 = vmatprep.subr.mxu0 0.0
    %575 = vmatpush2.xpose.msra.mxu0 0.0
    %576 = vmatprep.subr.mxu0 0.0
    %577 = vmatpush2.xpose.msra.mxu0 0.0
    %578 = vmatprep.subr.mxu0 0.0
    %579 = vmatpush2.xpose.msra.mxu0 0.0
    %580 = vmatprep.subr.mxu0 0.0
    %581 = vmatpush2.xpose.msra.mxu0 0.0
    %582 = vmatprep.subr.mxu0 0.0
    %583 = vmatpush2.xpose.msra.mxu0 0.0
    %584 = vmatprep.subr.mxu0 0.0
    %585 = vmatpush2.xpose.msra.mxu0 0.0
    %586 = vmatprep.subr.mxu0 0.0
    %587 = vmatpush2.xpose.msra.mxu0 0.0
    %588 = vmatprep.subr.mxu0 0.0
    %589 = vmatpush2.xpose.msra.mxu0 0.0
    %590 = vmatprep.subr.mxu0 0.0
    %591 = vmatpush2.xpose.msra.mxu0 0.0
    %592 = vmatprep.mubr.f32.mxu0 0.0
    %593 = vmatmul.mubr.f32.gmra.mxu0 %v524
    %v594 = vpop.f32.mrf.mxu0
    %v595 = vadd.f32 0.0, %v594
    %v596 = vpop.f32.mrf.mxu0
    %597 = vdwg.mxu0
    %598 = vrot.lane.b32.xlu0 %v188, 120
    %v599 = vpop.permute.xlu0 %598
    %600 = vrot.lane.b32.xlu0 %v188, 88
    %v601 = vpop.permute.xlu0 %600
    %v602 = vsel %vm194, %v599, 0
    %v604 = vsel %vm194, %v601, 0
    %606 = vmatprep.subr.mxu0 0.0
    %607 = vmatpush1.xpose.msra.mxu0 0.0
    %608 = vmatprep.subr.mxu0 0.0
    %609 = vmatpush1.xpose.msra.mxu0 0.0
    %610 = vmatprep.subr.mxu0 0.0
    %611 = vmatpush1.xpose.msra.mxu0 0.0
    %612 = vmatprep.subr.mxu0 0.0
    %613 = vmatpush1.xpose.msra.mxu0 0.0
    %614 = vmatprep.subr.mxu0 0.0
    %615 = vmatpush1.xpose.msra.mxu0 0.0
    %616 = vmatprep.subr.mxu0 0.0
    %617 = vmatpush1.xpose.msra.mxu0 0.0
    %618 = vmatprep.subr.mxu0 0.0
    %619 = vmatpush1.xpose.msra.mxu0 0.0
    %620 = vmatprep.subr.mxu0 0.0
    %621 = vmatpush1.xpose.msra.mxu0 0.0
    %622 = vmatprep.subr.mxu0 0.0
    %623 = vmatpush1.xpose.msra.mxu0 0.0
    %624 = vmatprep.subr.mxu0 0.0
    %625 = vmatpush1.xpose.msra.mxu0 0.0
    %626 = vmatprep.subr.mxu0 0.0
    %627 = vmatpush1.xpose.msra.mxu0 0.0
    %628 = vmatprep.subr.mxu0 0.0
    %629 = vmatpush1.xpose.msra.mxu0 0.0
    %630 = vmatprep.subr.mxu0 0.0
    %631 = vmatpush1.xpose.msra.mxu0 0.0
    %632 = vmatprep.subr.mxu0 0.0
    %633 = vmatpush1.xpose.msra.mxu0 0.0
    %634 = vmatprep.subr.mxu0 0.0
    %635 = vmatpush1.xpose.msra.mxu0 0.0
    %636 = vmatprep.subr.mxu0 0.0
    %637 = vmatpush1.xpose.msra.mxu0 %v604
    %638 = vmatprep.subr.mxu0 0.0
    %639 = vmatpush2.xpose.msra.mxu0 0.0
    %640 = vmatprep.subr.mxu0 0.0
    %641 = vmatpush2.xpose.msra.mxu0 0.0
    %642 = vmatprep.subr.mxu0 0.0
    %643 = vmatpush2.xpose.msra.mxu0 0.0
    %644 = vmatprep.subr.mxu0 0.0
    %645 = vmatpush2.xpose.msra.mxu0 0.0
    %646 = vmatprep.subr.mxu0 0.0
    %647 = vmatpush2.xpose.msra.mxu0 0.0
    %648 = vmatprep.subr.mxu0 0.0
    %649 = vmatpush2.xpose.msra.mxu0 0.0
    %650 = vmatprep.subr.mxu0 0.0
    %651 = vmatpush2.xpose.msra.mxu0 0.0
    %652 = vmatprep.subr.mxu0 0.0
    %653 = vmatpush2.xpose.msra.mxu0 0.0
    %654 = vmatprep.subr.mxu0 0.0
    %655 = vmatpush2.xpose.msra.mxu0 0.0
    %656 = vmatprep.subr.mxu0 0.0
    %657 = vmatpush2.xpose.msra.mxu0 0.0
    %658 = vmatprep.subr.mxu0 0.0
    %659 = vmatpush2.xpose.msra.mxu0 0.0
    %660 = vmatprep.subr.mxu0 0.0
    %661 = vmatpush2.xpose.msra.mxu0 0.0
    %662 = vmatprep.subr.mxu0 0.0
    %663 = vmatpush2.xpose.msra.mxu0 0.0
    %664 = vmatprep.subr.mxu0 0.0
    %665 = vmatpush2.xpose.msra.mxu0 0.0
    %666 = vmatprep.subr.mxu0 0.0
    %667 = vmatpush2.xpose.msra.mxu0 0.0
    %668 = vmatprep.subr.mxu0 0.0
    %669 = vmatpush2.xpose.msra.mxu0 0.0
    %670 = vmatprep.mubr.f32.mxu0 0.0
    %671 = vmatmul.mubr.f32.gmra.mxu0 %v602
    %v672 = vpop.f32.mrf.mxu0
    %v673 = vadd.f32 0.0, %v672
    %v674 = vpop.f32.mrf.mxu0
    %675 = vdwg.mxu0
    %v676 = vsel %vm194, %v595, -inf
    %677 = vmax.xlane.f32.xlu0 %v676
    %v678 = vpop.xlane.xlu0 %677
    %v679 = vsel %vm194, %v673, -inf
    %680 = vmax.xlane.f32.xlu0 %v679
    %v681 = vpop.xlane.xlu0 %680
    %v682 = vsub.f32 %v595, %v678
    %v683 = vsub.f32 %v673, %v681
    %v684 = vmul.f32 %v682, 1.442695
    %v685 = vpow.pop %v684
    %v686 = vmul.f32 %v683, 1.442695
    %v687 = vpow.pop %v686
    %v688 = vsel %vm194, %v685, 0.0
    %689 = vadd.xlane.f32.xlu0 %v688
    %v690 = vpop.xlane.xlu0 %689
    %v691 = vsel %vm194, %v687, 0.0
    %692 = vadd.xlane.f32.xlu0 %v691
    %v693 = vpop.xlane.xlu0 %692
    %v694 = vrcp.pop %v690
    %v695 = vrcp.pop %v693
    %v696 = vmul.f32 %v685, %v694
    %v697 = vmul.f32 %v687, %v695
    %698 = vrot.lane.b32.xlu0 %v183, 56
    %v699 = vpop.permute.xlu0 %698
    %v702 = vsel %vm194, %v696, 0
    %704 = vmatprep.subr.mxu0 0.0
    %705 = vmatpush1.msra.mxu0 0.0
    %706 = vmatprep.subr.mxu0 0.0
    %707 = vmatpush1.msra.mxu0 0.0
    %708 = vmatprep.subr.mxu0 0.0
    %709 = vmatpush1.msra.mxu0 0.0
    %710 = vmatprep.subr.mxu0 0.0
    %711 = vmatpush1.msra.mxu0 0.0
    %712 = vmatprep.subr.mxu0 0.0
    %713 = vmatpush1.msra.mxu0 0.0
    %714 = vmatprep.subr.mxu0 0.0
    %715 = vmatpush1.msra.mxu0 0.0
    %716 = vmatprep.subr.mxu0 0.0
    %717 = vmatpush1.msra.mxu0 0.0
    %718 = vmatprep.subr.mxu0 0.0
    %719 = vmatpush1.msra.mxu0 0.0
    %720 = vmatprep.subr.mxu0 0.0
    %721 = vmatpush1.msra.mxu0 0.0
    %722 = vmatprep.subr.mxu0 0.0
    %723 = vmatpush1.msra.mxu0 0.0
    %724 = vmatprep.subr.mxu0 0.0
    %725 = vmatpush1.msra.mxu0 0.0
    %726 = vmatprep.subr.mxu0 0.0
    %727 = vmatpush1.msra.mxu0 0.0
    %728 = vmatprep.subr.mxu0 0.0
    %729 = vmatpush1.msra.mxu0 0.0
    %730 = vmatprep.subr.mxu0 0.0
    %731 = vmatpush1.msra.mxu0 0.0
    %732 = vmatprep.subr.mxu0 0.0
    %733 = vmatpush1.msra.mxu0 0.0
    %734 = vmatprep.subr.mxu0 0.0
    %735 = vmatpush1.msra.mxu0 %v699
    %736 = vmatprep.subr.mxu0 0.0
    %737 = vmatpush2.msra.mxu0 0.0
    %738 = vmatprep.subr.mxu0 0.0
    %739 = vmatpush2.msra.mxu0 0.0
    %740 = vmatprep.subr.mxu0 0.0
    %741 = vmatpush2.msra.mxu0 0.0
    %742 = vmatprep.subr.mxu0 0.0
    %743 = vmatpush2.msra.mxu0 0.0
    %744 = vmatprep.subr.mxu0 0.0
    %745 = vmatpush2.msra.mxu0 0.0
    %746 = vmatprep.subr.mxu0 0.0
    %747 = vmatpush2.msra.mxu0 0.0
    %748 = vmatprep.subr.mxu0 0.0
    %749 = vmatpush2.msra.mxu0 0.0
    %750 = vmatprep.subr.mxu0 0.0
    %751 = vmatpush2.msra.mxu0 0.0
    %752 = vmatprep.subr.mxu0 0.0
    %753 = vmatpush2.msra.mxu0 0.0
    %754 = vmatprep.subr.mxu0 0.0
    %755 = vmatpush2.msra.mxu0 0.0
    %756 = vmatprep.subr.mxu0 0.0
    %757 = vmatpush2.msra.mxu0 0.0
    %758 = vmatprep.subr.mxu0 0.0
    %759 = vmatpush2.msra.mxu0 0.0
    %760 = vmatprep.subr.mxu0 0.0
    %761 = vmatpush2.msra.mxu0 0.0
    %762 = vmatprep.subr.mxu0 0.0
    %763 = vmatpush2.msra.mxu0 0.0
    %764 = vmatprep.subr.mxu0 0.0
    %765 = vmatpush2.msra.mxu0 0.0
    %766 = vmatprep.subr.mxu0 0.0
    %767 = vmatpush2.msra.mxu0 0.0
    %768 = vmatprep.mubr.f32.mxu0 0.0
    %769 = vmatmul.mubr.f32.gmra.mxu0 %v702
    %v770 = vpop.f32.mrf.mxu0
    %v771 = vadd.f32 0.0, %v770
    %v772 = vpop.f32.mrf.mxu0
    %773 = vdwg.mxu0
    %774 = vrot.lane.b32.xlu0 %v188, 56
    %v775 = vpop.permute.xlu0 %774
    %v778 = vsel %vm194, %v697, 0
    %780 = vmatprep.subr.mxu0 0.0
    %781 = vmatpush1.msra.mxu0 0.0
    %782 = vmatprep.subr.mxu0 0.0
    %783 = vmatpush1.msra.mxu0 0.0
    %784 = vmatprep.subr.mxu0 0.0
    %785 = vmatpush1.msra.mxu0 0.0
    %786 = vmatprep.subr.mxu0 0.0
    %787 = vmatpush1.msra.mxu0 0.0
    %788 = vmatprep.subr.mxu0 0.0
    %789 = vmatpush1.msra.mxu0 0.0
    %790 = vmatprep.subr.mxu0 0.0
    %791 = vmatpush1.msra.mxu0 0.0
    %792 = vmatprep.subr.mxu0 0.0
    %793 = vmatpush1.msra.mxu0 0.0
    %794 = vmatprep.subr.mxu0 0.0
    %795 = vmatpush1.msra.mxu0 0.0
    %796 = vmatprep.subr.mxu0 0.0
    %797 = vmatpush1.msra.mxu0 0.0
    %798 = vmatprep.subr.mxu0 0.0
    %799 = vmatpush1.msra.mxu0 0.0
    %800 = vmatprep.subr.mxu0 0.0
    %801 = vmatpush1.msra.mxu0 0.0
    %802 = vmatprep.subr.mxu0 0.0
    %803 = vmatpush1.msra.mxu0 0.0
    %804 = vmatprep.subr.mxu0 0.0
    %805 = vmatpush1.msra.mxu0 0.0
    %806 = vmatprep.subr.mxu0 0.0
    %807 = vmatpush1.msra.mxu0 0.0
    %808 = vmatprep.subr.mxu0 0.0
    %809 = vmatpush1.msra.mxu0 0.0
    %810 = vmatprep.subr.mxu0 0.0
    %811 = vmatpush1.msra.mxu0 %v775
    %812 = vmatprep.subr.mxu0 0.0
    %813 = vmatpush2.msra.mxu0 0.0
    %814 = vmatprep.subr.mxu0 0.0
    %815 = vmatpush2.msra.mxu0 0.0
    %816 = vmatprep.subr.mxu0 0.0
    %817 = vmatpush2.msra.mxu0 0.0
    %818 = vmatprep.subr.mxu0 0.0
    %819 = vmatpush2.msra.mxu0 0.0
    %820 = vmatprep.subr.mxu0 0.0
    %821 = vmatpush2.msra.mxu0 0.0
    %822 = vmatprep.subr.mxu0 0.0
    %823 = vmatpush2.msra.mxu0 0.0
    %824 = vmatprep.subr.mxu0 0.0
    %825 = vmatpush2.msra.mxu0 0.0
    %826 = vmatprep.subr.mxu0 0.0
    %827 = vmatpush2.msra.mxu0 0.0
    %828 = vmatprep.subr.mxu0 0.0
    %829 = vmatpush2.msra.mxu0 0.0
    %830 = vmatprep.subr.mxu0 0.0
    %831 = vmatpush2.msra.mxu0 0.0
    %832 = vmatprep.subr.mxu0 0.0
    %833 = vmatpush2.msra.mxu0 0.0
    %834 = vmatprep.subr.mxu0 0.0
    %835 = vmatpush2.msra.mxu0 0.0
    %836 = vmatprep.subr.mxu0 0.0
    %837 = vmatpush2.msra.mxu0 0.0
    %838 = vmatprep.subr.mxu0 0.0
    %839 = vmatpush2.msra.mxu0 0.0
    %840 = vmatprep.subr.mxu0 0.0
    %841 = vmatpush2.msra.mxu0 0.0
    %842 = vmatprep.subr.mxu0 0.0
    %843 = vmatpush2.msra.mxu0 0.0
    %844 = vmatprep.mubr.f32.mxu0 0.0
    %845 = vmatmul.mubr.f32.gmra.mxu0 %v778
    %v846 = vpop.f32.mrf.mxu0
    %v847 = vadd.f32 0.0, %v846
    %v848 = vpop.f32.mrf.mxu0
    %849 = vdwg.mxu0
    %850 = vrot.lane.b32.xlu0 %v183, 112
    %v851 = vpop.permute.xlu0 %850
    %852 = vrot.lane.b32.xlu0 %v183, 80
    %v853 = vpop.permute.xlu0 %852
    %v854 = vsel %vm194, %v851, 0
    %v856 = vsel %vm194, %v853, 0
    %858 = vmatprep.subr.mxu0 0.0
    %859 = vmatpush1.xpose.msra.mxu0 0.0
    %860 = vmatprep.subr.mxu0 0.0
    %861 = vmatpush1.xpose.msra.mxu0 0.0
    %862 = vmatprep.subr.mxu0 0.0
    %863 = vmatpush1.xpose.msra.mxu0 0.0
    %864 = vmatprep.subr.mxu0 0.0
    %865 = vmatpush1.xpose.msra.mxu0 0.0
    %866 = vmatprep.subr.mxu0 0.0
    %867 = vmatpush1.xpose.msra.mxu0 0.0
    %868 = vmatprep.subr.mxu0 0.0
    %869 = vmatpush1.xpose.msra.mxu0 0.0
    %870 = vmatprep.subr.mxu0 0.0
    %871 = vmatpush1.xpose.msra.mxu0 0.0
    %872 = vmatprep.subr.mxu0 0.0
    %873 = vmatpush1.xpose.msra.mxu0 0.0
    %874 = vmatprep.subr.mxu0 0.0
    %875 = vmatpush1.xpose.msra.mxu0 0.0
    %876 = vmatprep.subr.mxu0 0.0
    %877 = vmatpush1.xpose.msra.mxu0 0.0
    %878 = vmatprep.subr.mxu0 0.0
    %879 = vmatpush1.xpose.msra.mxu0 0.0
    %880 = vmatprep.subr.mxu0 0.0
    %881 = vmatpush1.xpose.msra.mxu0 0.0
    %882 = vmatprep.subr.mxu0 0.0
    %883 = vmatpush1.xpose.msra.mxu0 0.0
    %884 = vmatprep.subr.mxu0 0.0
    %885 = vmatpush1.xpose.msra.mxu0 0.0
    %886 = vmatprep.subr.mxu0 0.0
    %887 = vmatpush1.xpose.msra.mxu0 0.0
    %888 = vmatprep.subr.mxu0 0.0
    %889 = vmatpush1.xpose.msra.mxu0 %v856
    %890 = vmatprep.subr.mxu0 0.0
    %891 = vmatpush2.xpose.msra.mxu0 0.0
    %892 = vmatprep.subr.mxu0 0.0
    %893 = vmatpush2.xpose.msra.mxu0 0.0
    %894 = vmatprep.subr.mxu0 0.0
    %895 = vmatpush2.xpose.msra.mxu0 0.0
    %896 = vmatprep.subr.mxu0 0.0
    %897 = vmatpush2.xpose.msra.mxu0 0.0
    %898 = vmatprep.subr.mxu0 0.0
    %899 = vmatpush2.xpose.msra.mxu0 0.0
    %900 = vmatprep.subr.mxu0 0.0
    %901 = vmatpush2.xpose.msra.mxu0 0.0
    %902 = vmatprep.subr.mxu0 0.0
    %903 = vmatpush2.xpose.msra.mxu0 0.0
    %904 = vmatprep.subr.mxu0 0.0
    %905 = vmatpush2.xpose.msra.mxu0 0.0
    %906 = vmatprep.subr.mxu0 0.0
    %907 = vmatpush2.xpose.msra.mxu0 0.0
    %908 = vmatprep.subr.mxu0 0.0
    %909 = vmatpush2.xpose.msra.mxu0 0.0
    %910 = vmatprep.subr.mxu0 0.0
    %911 = vmatpush2.xpose.msra.mxu0 0.0
    %912 = vmatprep.subr.mxu0 0.0
    %913 = vmatpush2.xpose.msra.mxu0 0.0
    %914 = vmatprep.subr.mxu0 0.0
    %915 = vmatpush2.xpose.msra.mxu0 0.0
    %916 = vmatprep.subr.mxu0 0.0
    %917 = vmatpush2.xpose.msra.mxu0 0.0
    %918 = vmatprep.subr.mxu0 0.0
    %919 = vmatpush2.xpose.msra.mxu0 0.0
    %920 = vmatprep.subr.mxu0 0.0
    %921 = vmatpush2.xpose.msra.mxu0 0.0
    %922 = vmatprep.mubr.f32.mxu0 0.0
    %923 = vmatmul.mubr.f32.gmra.mxu0 %v854
    %v924 = vpop.f32.mrf.mxu0
    %v925 = vadd.f32 0.0, %v924
    %v926 = vpop.f32.mrf.mxu0
    %927 = vdwg.mxu0
    %928 = vrot.lane.b32.xlu0 %v188, 112
    %v929 = vpop.permute.xlu0 %928
    %930 = vrot.lane.b32.xlu0 %v188, 80
    %v931 = vpop.permute.xlu0 %930
    %v932 = vsel %vm194, %v929, 0
    %v934 = vsel %vm194, %v931, 0
    %936 = vmatprep.subr.mxu0 0.0
    %937 = vmatpush1.xpose.msra.mxu0 0.0
    %938 = vmatprep.subr.mxu0 0.0
    %939 = vmatpush1.xpose.msra.mxu0 0.0
    %940 = vmatprep.subr.mxu0 0.0
    %941 = vmatpush1.xpose.msra.mxu0 0.0
    %942 = vmatprep.subr.mxu0 0.0
    %943 = vmatpush1.xpose.msra.mxu0 0.0
    %944 = vmatprep.subr.mxu0 0.0
    %945 = vmatpush1.xpose.msra.mxu0 0.0
    %946 = vmatprep.subr.mxu0 0.0
    %947 = vmatpush1.xpose.msra.mxu0 0.0
    %948 = vmatprep.subr.mxu0 0.0
    %949 = vmatpush1.xpose.msra.mxu0 0.0
    %950 = vmatprep.subr.mxu0 0.0
    %951 = vmatpush1.xpose.msra.mxu0 0.0
    %952 = vmatprep.subr.mxu0 0.0
    %953 = vmatpush1.xpose.msra.mxu0 0.0
    %954 = vmatprep.subr.mxu0 0.0
    %955 = vmatpush1.xpose.msra.mxu0 0.0
    %956 = vmatprep.subr.mxu0 0.0
    %957 = vmatpush1.xpose.msra.mxu0 0.0
    %958 = vmatprep.subr.mxu0 0.0
    %959 = vmatpush1.xpose.msra.mxu0 0.0
    %960 = vmatprep.subr.mxu0 0.0
    %961 = vmatpush1.xpose.msra.mxu0 0.0
    %962 = vmatprep.subr.mxu0 0.0
    %963 = vmatpush1.xpose.msra.mxu0 0.0
    %964 = vmatprep.subr.mxu0 0.0
    %965 = vmatpush1.xpose.msra.mxu0 0.0
    %966 = vmatprep.subr.mxu0 0.0
    %967 = vmatpush1.xpose.msra.mxu0 %v934
    %968 = vmatprep.subr.mxu0 0.0
    %969 = vmatpush2.xpose.msra.mxu0 0.0
    %970 = vmatprep.subr.mxu0 0.0
    %971 = vmatpush2.xpose.msra.mxu0 0.0
    %972 = vmatprep.subr.mxu0 0.0
    %973 = vmatpush2.xpose.msra.mxu0 0.0
    %974 = vmatprep.subr.mxu0 0.0
    %975 = vmatpush2.xpose.msra.mxu0 0.0
    %976 = vmatprep.subr.mxu0 0.0
    %977 = vmatpush2.xpose.msra.mxu0 0.0
    %978 = vmatprep.subr.mxu0 0.0
    %979 = vmatpush2.xpose.msra.mxu0 0.0
    %980 = vmatprep.subr.mxu0 0.0
    %981 = vmatpush2.xpose.msra.mxu0 0.0
    %982 = vmatprep.subr.mxu0 0.0
    %983 = vmatpush2.xpose.msra.mxu0 0.0
    %984 = vmatprep.subr.mxu0 0.0
    %985 = vmatpush2.xpose.msra.mxu0 0.0
    %986 = vmatprep.subr.mxu0 0.0
    %987 = vmatpush2.xpose.msra.mxu0 0.0
    %988 = vmatprep.subr.mxu0 0.0
    %989 = vmatpush2.xpose.msra.mxu0 0.0
    %990 = vmatprep.subr.mxu0 0.0
    %991 = vmatpush2.xpose.msra.mxu0 0.0
    %992 = vmatprep.subr.mxu0 0.0
    %993 = vmatpush2.xpose.msra.mxu0 0.0
    %994 = vmatprep.subr.mxu0 0.0
    %995 = vmatpush2.xpose.msra.mxu0 0.0
    %996 = vmatprep.subr.mxu0 0.0
    %997 = vmatpush2.xpose.msra.mxu0 0.0
    %998 = vmatprep.subr.mxu0 0.0
    %999 = vmatpush2.xpose.msra.mxu0 0.0
    %1000 = vmatprep.mubr.f32.mxu0 0.0
    %1001 = vmatmul.mubr.f32.gmra.mxu0 %v932
    %v1002 = vpop.f32.mrf.mxu0
    %v1003 = vadd.f32 0.0, %v1002
    %v1004 = vpop.f32.mrf.mxu0
    %1005 = vdwg.mxu0
    %v1006 = vsel %vm194, %v925, -inf
    %1007 = vmax.xlane.f32.xlu0 %v1006
    %v1008 = vpop.xlane.xlu0 %1007
    %v1009 = vsel %vm194, %v1003, -inf
    %1010 = vmax.xlane.f32.xlu0 %v1009
    %v1011 = vpop.xlane.xlu0 %1010
    %v1012 = vsub.f32 %v925, %v1008
    %v1013 = vsub.f32 %v1003, %v1011
    %v1014 = vmul.f32 %v1012, 1.442695
    %v1015 = vpow.pop %v1014
    %v1016 = vmul.f32 %v1013, 1.442695
    %v1017 = vpow.pop %v1016
    %v1018 = vsel %vm194, %v1015, 0.0
    %1019 = vadd.xlane.f32.xlu0 %v1018
    %v1020 = vpop.xlane.xlu0 %1019
    %v1021 = vsel %vm194, %v1017, 0.0
    %1022 = vadd.xlane.f32.xlu0 %v1021
    %v1023 = vpop.xlane.xlu0 %1022
    %v1024 = vrcp.pop %v1020
    %v1025 = vrcp.pop %v1023
    %v1026 = vmul.f32 %v1015, %v1024
    %v1027 = vmul.f32 %v1017, %v1025
    %1028 = vrot.lane.b32.xlu0 %v183, 48
    %v1029 = vpop.permute.xlu0 %1028
    %v1032 = vsel %vm194, %v1026, 0
    %1034 = vmatprep.subr.mxu0 0.0
    %1035 = vmatpush1.msra.mxu0 0.0
    %1036 = vmatprep.subr.mxu0 0.0
    %1037 = vmatpush1.msra.mxu0 0.0
    %1038 = vmatprep.subr.mxu0 0.0
    %1039 = vmatpush1.msra.mxu0 0.0
    %1040 = vmatprep.subr.mxu0 0.0
    %1041 = vmatpush1.msra.mxu0 0.0
    %1042 = vmatprep.subr.mxu0 0.0
    %1043 = vmatpush1.msra.mxu0 0.0
    %1044 = vmatprep.subr.mxu0 0.0
    %1045 = vmatpush1.msra.mxu0 0.0
    %1046 = vmatprep.subr.mxu0 0.0
    %1047 = vmatpush1.msra.mxu0 0.0
    %1048 = vmatprep.subr.mxu0 0.0
    %1049 = vmatpush1.msra.mxu0 0.0
    %1050 = vmatprep.subr.mxu0 0.0
    %1051 = vmatpush1.msra.mxu0 0.0
    %1052 = vmatprep.subr.mxu0 0.0
    %1053 = vmatpush1.msra.mxu0 0.0
    %1054 = vmatprep.subr.mxu0 0.0
    %1055 = vmatpush1.msra.mxu0 0.0
    %1056 = vmatprep.subr.mxu0 0.0
    %1057 = vmatpush1.msra.mxu0 0.0
    %1058 = vmatprep.subr.mxu0 0.0
    %1059 = vmatpush1.msra.mxu0 0.0
    %1060 = vmatprep.subr.mxu0 0.0
    %1061 = vmatpush1.msra.mxu0 0.0
    %1062 = vmatprep.subr.mxu0 0.0
    %1063 = vmatpush1.msra.mxu0 0.0
    %1064 = vmatprep.subr.mxu0 0.0
    %1065 = vmatpush1.msra.mxu0 %v1029
    %1066 = vmatprep.subr.mxu0 0.0
    %1067 = vmatpush2.msra.mxu0 0.0
    %1068 = vmatprep.subr.mxu0 0.0
    %1069 = vmatpush2.msra.mxu0 0.0
    %1070 = vmatprep.subr.mxu0 0.0
    %1071 = vmatpush2.msra.mxu0 0.0
    %1072 = vmatprep.subr.mxu0 0.0
    %1073 = vmatpush2.msra.mxu0 0.0
    %1074 = vmatprep.subr.mxu0 0.0
    %1075 = vmatpush2.msra.mxu0 0.0
    %1076 = vmatprep.subr.mxu0 0.0
    %1077 = vmatpush2.msra.mxu0 0.0
    %1078 = vmatprep.subr.mxu0 0.0
    %1079 = vmatpush2.msra.mxu0 0.0
    %1080 = vmatprep.subr.mxu0 0.0
    %1081 = vmatpush2.msra.mxu0 0.0
    %1082 = vmatprep.subr.mxu0 0.0
    %1083 = vmatpush2.msra.mxu0 0.0
    %1084 = vmatprep.subr.mxu0 0.0
    %1085 = vmatpush2.msra.mxu0 0.0
    %1086 = vmatprep.subr.mxu0 0.0
    %1087 = vmatpush2.msra.mxu0 0.0
    %1088 = vmatprep.subr.mxu0 0.0
    %1089 = vmatpush2.msra.mxu0 0.0
    %1090 = vmatprep.subr.mxu0 0.0
    %1091 = vmatpush2.msra.mxu0 0.0
    %1092 = vmatprep.subr.mxu0 0.0
    %1093 = vmatpush2.msra.mxu0 0.0
    %1094 = vmatprep.subr.mxu0 0.0
    %1095 = vmatpush2.msra.mxu0 0.0
    %1096 = vmatprep.subr.mxu0 0.0
    %1097 = vmatpush2.msra.mxu0 0.0
    %1098 = vmatprep.mubr.f32.mxu0 0.0
    %1099 = vmatmul.mubr.f32.gmra.mxu0 %v1032
    %v1100 = vpop.f32.mrf.mxu0
    %v1101 = vadd.f32 0.0, %v1100
    %v1102 = vpop.f32.mrf.mxu0
    %1103 = vdwg.mxu0
    %1104 = vrot.lane.b32.xlu0 %v188, 48
    %v1105 = vpop.permute.xlu0 %1104
    %v1108 = vsel %vm194, %v1027, 0
    %1110 = vmatprep.subr.mxu0 0.0
    %1111 = vmatpush1.msra.mxu0 0.0
    %1112 = vmatprep.subr.mxu0 0.0
    %1113 = vmatpush1.msra.mxu0 0.0
    %1114 = vmatprep.subr.mxu0 0.0
    %1115 = vmatpush1.msra.mxu0 0.0
    %1116 = vmatprep.subr.mxu0 0.0
    %1117 = vmatpush1.msra.mxu0 0.0
    %1118 = vmatprep.subr.mxu0 0.0
    %1119 = vmatpush1.msra.mxu0 0.0
    %1120 = vmatprep.subr.mxu0 0.0
    %1121 = vmatpush1.msra.mxu0 0.0
    %1122 = vmatprep.subr.mxu0 0.0
    %1123 = vmatpush1.msra.mxu0 0.0
    %1124 = vmatprep.subr.mxu0 0.0
    %1125 = vmatpush1.msra.mxu0 0.0
    %1126 = vmatprep.subr.mxu0 0.0
    %1127 = vmatpush1.msra.mxu0 0.0
    %1128 = vmatprep.subr.mxu0 0.0
    %1129 = vmatpush1.msra.mxu0 0.0
    %1130 = vmatprep.subr.mxu0 0.0
    %1131 = vmatpush1.msra.mxu0 0.0
    %1132 = vmatprep.subr.mxu0 0.0
    %1133 = vmatpush1.msra.mxu0 0.0
    %1134 = vmatprep.subr.mxu0 0.0
    %1135 = vmatpush1.msra.mxu0 0.0
    %1136 = vmatprep.subr.mxu0 0.0
    %1137 = vmatpush1.msra.mxu0 0.0
    %1138 = vmatprep.subr.mxu0 0.0
    %1139 = vmatpush1.msra.mxu0 0.0
    %1140 = vmatprep.subr.mxu0 0.0
    %1141 = vmatpush1.msra.mxu0 %v1105
    %1142 = vmatprep.subr.mxu0 0.0
    %1143 = vmatpush2.msra.mxu0 0.0
    %1144 = vmatprep.subr.mxu0 0.0
    %1145 = vmatpush2.msra.mxu0 0.0
    %1146 = vmatprep.subr.mxu0 0.0
    %1147 = vmatpush2.msra.mxu0 0.0
    %1148 = vmatprep.subr.mxu0 0.0
    %1149 = vmatpush2.msra.mxu0 0.0
    %1150 = vmatprep.subr.mxu0 0.0
    %1151 = vmatpush2.msra.mxu0 0.0
    %1152 = vmatprep.subr.mxu0 0.0
    %1153 = vmatpush2.msra.mxu0 0.0
    %1154 = vmatprep.subr.mxu0 0.0
    %1155 = vmatpush2.msra.mxu0 0.0
    %1156 = vmatprep.subr.mxu0 0.0
    %1157 = vmatpush2.msra.mxu0 0.0
    %1158 = vmatprep.subr.mxu0 0.0
    %1159 = vmatpush2.msra.mxu0 0.0
    %1160 = vmatprep.subr.mxu0 0.0
    %1161 = vmatpush2.msra.mxu0 0.0
    %1162 = vmatprep.subr.mxu0 0.0
    %1163 = vmatpush2.msra.mxu0 0.0
    %1164 = vmatprep.subr.mxu0 0.0
    %1165 = vmatpush2.msra.mxu0 0.0
    %1166 = vmatprep.subr.mxu0 0.0
    %1167 = vmatpush2.msra.mxu0 0.0
    %1168 = vmatprep.subr.mxu0 0.0
    %1169 = vmatpush2.msra.mxu0 0.0
    %1170 = vmatprep.subr.mxu0 0.0
    %1171 = vmatpush2.msra.mxu0 0.0
    %1172 = vmatprep.subr.mxu0 0.0
    %1173 = vmatpush2.msra.mxu0 0.0
    %1174 = vmatprep.mubr.f32.mxu0 0.0
    %1175 = vmatmul.mubr.f32.gmra.mxu0 %v1108
    %v1176 = vpop.f32.mrf.mxu0
    %v1177 = vadd.f32 0.0, %v1176
    %v1178 = vpop.f32.mrf.mxu0
    %1179 = vdwg.mxu0
    %1180 = vrot.lane.b32.xlu0 %v183, 104
    %v1181 = vpop.permute.xlu0 %1180
    %1182 = vrot.lane.b32.xlu0 %v183, 72
    %v1183 = vpop.permute.xlu0 %1182
    %v1184 = vsel %vm194, %v1181, 0
    %v1186 = vsel %vm194, %v1183, 0
    %1188 = vmatprep.subr.mxu0 0.0
    %1189 = vmatpush1.xpose.msra.mxu0 0.0
    %1190 = vmatprep.subr.mxu0 0.0
    %1191 = vmatpush1.xpose.msra.mxu0 0.0
    %1192 = vmatprep.subr.mxu0 0.0
    %1193 = vmatpush1.xpose.msra.mxu0 0.0
    %1194 = vmatprep.subr.mxu0 0.0
    %1195 = vmatpush1.xpose.msra.mxu0 0.0
    %1196 = vmatprep.subr.mxu0 0.0
    %1197 = vmatpush1.xpose.msra.mxu0 0.0
    %1198 = vmatprep.subr.mxu0 0.0
    %1199 = vmatpush1.xpose.msra.mxu0 0.0
    %1200 = vmatprep.subr.mxu0 0.0
    %1201 = vmatpush1.xpose.msra.mxu0 0.0
    %1202 = vmatprep.subr.mxu0 0.0
    %1203 = vmatpush1.xpose.msra.mxu0 0.0
    %1204 = vmatprep.subr.mxu0 0.0
    %1205 = vmatpush1.xpose.msra.mxu0 0.0
    %1206 = vmatprep.subr.mxu0 0.0
    %1207 = vmatpush1.xpose.msra.mxu0 0.0
    %1208 = vmatprep.subr.mxu0 0.0
    %1209 = vmatpush1.xpose.msra.mxu0 0.0
    %1210 = vmatprep.subr.mxu0 0.0
    %1211 = vmatpush1.xpose.msra.mxu0 0.0
    %1212 = vmatprep.subr.mxu0 0.0
    %1213 = vmatpush1.xpose.msra.mxu0 0.0
    %1214 = vmatprep.subr.mxu0 0.0
    %1215 = vmatpush1.xpose.msra.mxu0 0.0
    %1216 = vmatprep.subr.mxu0 0.0
    %1217 = vmatpush1.xpose.msra.mxu0 0.0
    %1218 = vmatprep.subr.mxu0 0.0
    %1219 = vmatpush1.xpose.msra.mxu0 %v1186
    %1220 = vmatprep.subr.mxu0 0.0
    %1221 = vmatpush2.xpose.msra.mxu0 0.0
    %1222 = vmatprep.subr.mxu0 0.0
    %1223 = vmatpush2.xpose.msra.mxu0 0.0
    %1224 = vmatprep.subr.mxu0 0.0
    %1225 = vmatpush2.xpose.msra.mxu0 0.0
    %1226 = vmatprep.subr.mxu0 0.0
    %1227 = vmatpush2.xpose.msra.mxu0 0.0
    %1228 = vmatprep.subr.mxu0 0.0
    %1229 = vmatpush2.xpose.msra.mxu0 0.0
    %1230 = vmatprep.subr.mxu0 0.0
    %1231 = vmatpush2.xpose.msra.mxu0 0.0
    %1232 = vmatprep.subr.mxu0 0.0
    %1233 = vmatpush2.xpose.msra.mxu0 0.0
    %1234 = vmatprep.subr.mxu0 0.0
    %1235 = vmatpush2.xpose.msra.mxu0 0.0
    %1236 = vmatprep.subr.mxu0 0.0
    %1237 = vmatpush2.xpose.msra.mxu0 0.0
    %1238 = vmatprep.subr.mxu0 0.0
    %1239 = vmatpush2.xpose.msra.mxu0 0.0
    %1240 = vmatprep.subr.mxu0 0.0
    %1241 = vmatpush2.xpose.msra.mxu0 0.0
    %1242 = vmatprep.subr.mxu0 0.0
    %1243 = vmatpush2.xpose.msra.mxu0 0.0
    %1244 = vmatprep.subr.mxu0 0.0
    %1245 = vmatpush2.xpose.msra.mxu0 0.0
    %1246 = vmatprep.subr.mxu0 0.0
    %1247 = vmatpush2.xpose.msra.mxu0 0.0
    %1248 = vmatprep.subr.mxu0 0.0
    %1249 = vmatpush2.xpose.msra.mxu0 0.0
    %1250 = vmatprep.subr.mxu0 0.0
    %1251 = vmatpush2.xpose.msra.mxu0 0.0
    %1252 = vmatprep.mubr.f32.mxu0 0.0
    %1253 = vmatmul.mubr.f32.gmra.mxu0 %v1184
    %v1254 = vpop.f32.mrf.mxu0
    %v1255 = vadd.f32 0.0, %v1254
    %v1256 = vpop.f32.mrf.mxu0
    %1257 = vdwg.mxu0
    %1258 = vrot.lane.b32.xlu0 %v188, 104
    %v1259 = vpop.permute.xlu0 %1258
    %1260 = vrot.lane.b32.xlu0 %v188, 72
    %v1261 = vpop.permute.xlu0 %1260
    %v1262 = vsel %vm194, %v1259, 0
    %v1264 = vsel %vm194, %v1261, 0
    %1266 = vmatprep.subr.mxu0 0.0
    %1267 = vmatpush1.xpose.msra.mxu0 0.0
    %1268 = vmatprep.subr.mxu0 0.0
    %1269 = vmatpush1.xpose.msra.mxu0 0.0
    %1270 = vmatprep.subr.mxu0 0.0
    %1271 = vmatpush1.xpose.msra.mxu0 0.0
    %1272 = vmatprep.subr.mxu0 0.0
    %1273 = vmatpush1.xpose.msra.mxu0 0.0
    %1274 = vmatprep.subr.mxu0 0.0
    %1275 = vmatpush1.xpose.msra.mxu0 0.0
    %1276 = vmatprep.subr.mxu0 0.0
    %1277 = vmatpush1.xpose.msra.mxu0 0.0
    %1278 = vmatprep.subr.mxu0 0.0
    %1279 = vmatpush1.xpose.msra.mxu0 0.0
    %1280 = vmatprep.subr.mxu0 0.0
    %1281 = vmatpush1.xpose.msra.mxu0 0.0
    %1282 = vmatprep.subr.mxu0 0.0
    %1283 = vmatpush1.xpose.msra.mxu0 0.0
    %1284 = vmatprep.subr.mxu0 0.0
    %1285 = vmatpush1.xpose.msra.mxu0 0.0
    %1286 = vmatprep.subr.mxu0 0.0
    %1287 = vmatpush1.xpose.msra.mxu0 0.0
    %1288 = vmatprep.subr.mxu0 0.0
    %1289 = vmatpush1.xpose.msra.mxu0 0.0
    %1290 = vmatprep.subr.mxu0 0.0
    %1291 = vmatpush1.xpose.msra.mxu0 0.0
    %1292 = vmatprep.subr.mxu0 0.0
    %1293 = vmatpush1.xpose.msra.mxu0 0.0
    %1294 = vmatprep.subr.mxu0 0.0
    %1295 = vmatpush1.xpose.msra.mxu0 0.0
    %1296 = vmatprep.subr.mxu0 0.0
    %1297 = vmatpush1.xpose.msra.mxu0 %v1264
    %1298 = vmatprep.subr.mxu0 0.0
    %1299 = vmatpush2.xpose.msra.mxu0 0.0
    %1300 = vmatprep.subr.mxu0 0.0
    %1301 = vmatpush2.xpose.msra.mxu0 0.0
    %1302 = vmatprep.subr.mxu0 0.0
    %1303 = vmatpush2.xpose.msra.mxu0 0.0
    %1304 = vmatprep.subr.mxu0 0.0
    %1305 = vmatpush2.xpose.msra.mxu0 0.0
    %1306 = vmatprep.subr.mxu0 0.0
    %1307 = vmatpush2.xpose.msra.mxu0 0.0
    %1308 = vmatprep.subr.mxu0 0.0
    %1309 = vmatpush2.xpose.msra.mxu0 0.0
    %1310 = vmatprep.subr.mxu0 0.0
    %1311 = vmatpush2.xpose.msra.mxu0 0.0
    %1312 = vmatprep.subr.mxu0 0.0
    %1313 = vmatpush2.xpose.msra.mxu0 0.0
    %1314 = vmatprep.subr.mxu0 0.0
    %1315 = vmatpush2.xpose.msra.mxu0 0.0
    %1316 = vmatprep.subr.mxu0 0.0
    %1317 = vmatpush2.xpose.msra.mxu0 0.0
    %1318 = vmatprep.subr.mxu0 0.0
    %1319 = vmatpush2.xpose.msra.mxu0 0.0
    %1320 = vmatprep.subr.mxu0 0.0
    %1321 = vmatpush2.xpose.msra.mxu0 0.0
    %1322 = vmatprep.subr.mxu0 0.0
    %1323 = vmatpush2.xpose.msra.mxu0 0.0
    %1324 = vmatprep.subr.mxu0 0.0
    %1325 = vmatpush2.xpose.msra.mxu0 0.0
    %1326 = vmatprep.subr.mxu0 0.0
    %1327 = vmatpush2.xpose.msra.mxu0 0.0
    %1328 = vmatprep.subr.mxu0 0.0
    %1329 = vmatpush2.xpose.msra.mxu0 0.0
    %1330 = vmatprep.mubr.f32.mxu0 0.0
    %1331 = vmatmul.mubr.f32.gmra.mxu0 %v1262
    %v1332 = vpop.f32.mrf.mxu0
    %v1333 = vadd.f32 0.0, %v1332
    %v1334 = vpop.f32.mrf.mxu0
    %1335 = vdwg.mxu0
    %v1336 = vsel %vm194, %v1255, -inf
    %1337 = vmax.xlane.f32.xlu0 %v1336
    %v1338 = vpop.xlane.xlu0 %1337
    %v1339 = vsel %vm194, %v1333, -inf
    %1340 = vmax.xlane.f32.xlu0 %v1339
    %v1341 = vpop.xlane.xlu0 %1340
    %v1342 = vsub.f32 %v1255, %v1338
    %v1343 = vsub.f32 %v1333, %v1341
    %v1344 = vmul.f32 %v1342, 1.442695
    %v1345 = vpow.pop %v1344
    %v1346 = vmul.f32 %v1343, 1.442695
    %v1347 = vpow.pop %v1346
    %v1348 = vsel %vm194, %v1345, 0.0
    %1349 = vadd.xlane.f32.xlu0 %v1348
    %v1350 = vpop.xlane.xlu0 %1349
    %v1351 = vsel %vm194, %v1347, 0.0
    %1352 = vadd.xlane.f32.xlu0 %v1351
    %v1353 = vpop.xlane.xlu0 %1352
    %v1354 = vrcp.pop %v1350
    %v1355 = vrcp.pop %v1353
    %v1356 = vmul.f32 %v1345, %v1354
    %v1357 = vmul.f32 %v1347, %v1355
    %1358 = vrot.lane.b32.xlu0 %v183, 40
    %v1359 = vpop.permute.xlu0 %1358
    %v1362 = vsel %vm194, %v1356, 0
    %1364 = vmatprep.subr.mxu0 0.0
    %1365 = vmatpush1.msra.mxu0 0.0
    %1366 = vmatprep.subr.mxu0 0.0
    %1367 = vmatpush1.msra.mxu0 0.0
    %1368 = vmatprep.subr.mxu0 0.0
    %1369 = vmatpush1.msra.mxu0 0.0
    %1370 = vmatprep.subr.mxu0 0.0
    %1371 = vmatpush1.msra.mxu0 0.0
    %1372 = vmatprep.subr.mxu0 0.0
    %1373 = vmatpush1.msra.mxu0 0.0
    %1374 = vmatprep.subr.mxu0 0.0
    %1375 = vmatpush1.msra.mxu0 0.0
    %1376 = vmatprep.subr.mxu0 0.0
    %1377 = vmatpush1.msra.mxu0 0.0
    %1378 = vmatprep.subr.mxu0 0.0
    %1379 = vmatpush1.msra.mxu0 0.0
    %1380 = vmatprep.subr.mxu0 0.0
    %1381 = vmatpush1.msra.mxu0 0.0
    %1382 = vmatprep.subr.mxu0 0.0
    %1383 = vmatpush1.msra.mxu0 0.0
    %1384 = vmatprep.subr.mxu0 0.0
    %1385 = vmatpush1.msra.mxu0 0.0
    %1386 = vmatprep.subr.mxu0 0.0
    %1387 = vmatpush1.msra.mxu0 0.0
    %1388 = vmatprep.subr.mxu0 0.0
    %1389 = vmatpush1.msra.mxu0 0.0
    %1390 = vmatprep.subr.mxu0 0.0
    %1391 = vmatpush1.msra.mxu0 0.0
    %1392 = vmatprep.subr.mxu0 0.0
    %1393 = vmatpush1.msra.mxu0 0.0
    %1394 = vmatprep.subr.mxu0 0.0
    %1395 = vmatpush1.msra.mxu0 %v1359
    %1396 = vmatprep.subr.mxu0 0.0
    %1397 = vmatpush2.msra.mxu0 0.0
    %1398 = vmatprep.subr.mxu0 0.0
    %1399 = vmatpush2.msra.mxu0 0.0
    %1400 = vmatprep.subr.mxu0 0.0
    %1401 = vmatpush2.msra.mxu0 0.0
    %1402 = vmatprep.subr.mxu0 0.0
    %1403 = vmatpush2.msra.mxu0 0.0
    %1404 = vmatprep.subr.mxu0 0.0
    %1405 = vmatpush2.msra.mxu0 0.0
    %1406 = vmatprep.subr.mxu0 0.0
    %1407 = vmatpush2.msra.mxu0 0.0
    %1408 = vmatprep.subr.mxu0 0.0
    %1409 = vmatpush2.msra.mxu0 0.0
    %1410 = vmatprep.subr.mxu0 0.0
    %1411 = vmatpush2.msra.mxu0 0.0
    %1412 = vmatprep.subr.mxu0 0.0
    %1413 = vmatpush2.msra.mxu0 0.0
    %1414 = vmatprep.subr.mxu0 0.0
    %1415 = vmatpush2.msra.mxu0 0.0
    %1416 = vmatprep.subr.mxu0 0.0
    %1417 = vmatpush2.msra.mxu0 0.0
    %1418 = vmatprep.subr.mxu0 0.0
    %1419 = vmatpush2.msra.mxu0 0.0
    %1420 = vmatprep.subr.mxu0 0.0
    %1421 = vmatpush2.msra.mxu0 0.0
    %1422 = vmatprep.subr.mxu0 0.0
    %1423 = vmatpush2.msra.mxu0 0.0
    %1424 = vmatprep.subr.mxu0 0.0
    %1425 = vmatpush2.msra.mxu0 0.0
    %1426 = vmatprep.subr.mxu0 0.0
    %1427 = vmatpush2.msra.mxu0 0.0
    %1428 = vmatprep.mubr.f32.mxu0 0.0
    %1429 = vmatmul.mubr.f32.gmra.mxu0 %v1362
    %v1430 = vpop.f32.mrf.mxu0
    %v1431 = vadd.f32 0.0, %v1430
    %v1432 = vpop.f32.mrf.mxu0
    %1433 = vdwg.mxu0
    %1434 = vrot.lane.b32.xlu0 %v188, 40
    %v1435 = vpop.permute.xlu0 %1434
    %v1438 = vsel %vm194, %v1357, 0
    %1440 = vmatprep.subr.mxu0 0.0
    %1441 = vmatpush1.msra.mxu0 0.0
    %1442 = vmatprep.subr.mxu0 0.0
    %1443 = vmatpush1.msra.mxu0 0.0
    %1444 = vmatprep.subr.mxu0 0.0
    %1445 = vmatpush1.msra.mxu0 0.0
    %1446 = vmatprep.subr.mxu0 0.0
    %1447 = vmatpush1.msra.mxu0 0.0
    %1448 = vmatprep.subr.mxu0 0.0
    %1449 = vmatpush1.msra.mxu0 0.0
    %1450 = vmatprep.subr.mxu0 0.0
    %1451 = vmatpush1.msra.mxu0 0.0
    %1452 = vmatprep.subr.mxu0 0.0
    %1453 = vmatpush1.msra.mxu0 0.0
    %1454 = vmatprep.subr.mxu0 0.0
    %1455 = vmatpush1.msra.mxu0 0.0
    %1456 = vmatprep.subr.mxu0 0.0
    %1457 = vmatpush1.msra.mxu0 0.0
    %1458 = vmatprep.subr.mxu0 0.0
    %1459 = vmatpush1.msra.mxu0 0.0
    %1460 = vmatprep.subr.mxu0 0.0
    %1461 = vmatpush1.msra.mxu0 0.0
    %1462 = vmatprep.subr.mxu0 0.0
    %1463 = vmatpush1.msra.mxu0 0.0
    %1464 = vmatprep.subr.mxu0 0.0
    %1465 = vmatpush1.msra.mxu0 0.0
    %1466 = vmatprep.subr.mxu0 0.0
    %1467 = vmatpush1.msra.mxu0 0.0
    %1468 = vmatprep.subr.mxu0 0.0
    %1469 = vmatpush1.msra.mxu0 0.0
    %1470 = vmatprep.subr.mxu0 0.0
    %1471 = vmatpush1.msra.mxu0 %v1435
    %1472 = vmatprep.subr.mxu0 0.0
    %1473 = vmatpush2.msra.mxu0 0.0
    %1474 = vmatprep.subr.mxu0 0.0
    %1475 = vmatpush2.msra.mxu0 0.0
    %1476 = vmatprep.subr.mxu0 0.0
    %1477 = vmatpush2.msra.mxu0 0.0
    %1478 = vmatprep.subr.mxu0 0.0
    %1479 = vmatpush2.msra.mxu0 0.0
    %1480 = vmatprep.subr.mxu0 0.0
    %1481 = vmatpush2.msra.mxu0 0.0
    %1482 = vmatprep.subr.mxu0 0.0
    %1483 = vmatpush2.msra.mxu0 0.0
    %1484 = vmatprep.subr.mxu0 0.0
    %1485 = vmatpush2.msra.mxu0 0.0
    %1486 = vmatprep.subr.mxu0 0.0
    %1487 = vmatpush2.msra.mxu0 0.0
    %1488 = vmatprep.subr.mxu0 0.0
    %1489 = vmatpush2.msra.mxu0 0.0
    %1490 = vmatprep.subr.mxu0 0.0
    %1491 = vmatpush2.msra.mxu0 0.0
    %1492 = vmatprep.subr.mxu0 0.0
    %1493 = vmatpush2.msra.mxu0 0.0
    %1494 = vmatprep.subr.mxu0 0.0
    %1495 = vmatpush2.msra.mxu0 0.0
    %1496 = vmatprep.subr.mxu0 0.0
    %1497 = vmatpush2.msra.mxu0 0.0
    %1498 = vmatprep.subr.mxu0 0.0
    %1499 = vmatpush2.msra.mxu0 0.0
    %1500 = vmatprep.subr.mxu0 0.0
    %1501 = vmatpush2.msra.mxu0 0.0
    %1502 = vmatprep.subr.mxu0 0.0
    %1503 = vmatpush2.msra.mxu0 0.0
    %1504 = vmatprep.mubr.f32.mxu0 0.0
    %1505 = vmatmul.mubr.f32.gmra.mxu0 %v1438
    %v1506 = vpop.f32.mrf.mxu0
    %v1507 = vadd.f32 0.0, %v1506
    %v1508 = vpop.f32.mrf.mxu0
    %1509 = vdwg.mxu0
    %1512 = vrot.lane.b32.xlu0 %v771, 8
    %v1513 = vpop.permute.xlu0 %1512
    %1514 = vrot.lane.b32.xlu0 %v847, 8
    %v1515 = vpop.permute.xlu0 %1514
    %1520 = vrot.lane.b32.xlu0 %v1101, 16
    %v1521 = vpop.permute.xlu0 %1520
    %1522 = vrot.lane.b32.xlu0 %v1177, 16
    %v1523 = vpop.permute.xlu0 %1522
    %1528 = vrot.lane.b32.xlu0 %v1431, 24
    %v1529 = vpop.permute.xlu0 %1528
    %1530 = vrot.lane.b32.xlu0 %v1507, 24
    %v1531 = vpop.permute.xlu0 %1530
    %v1534 = vsel %vm194, %v441, %v1513
    %v1535 = vsel %vm194, %v517, %v1515
    %vm1536 = vcmask 130048
    %v1537 = vsel %vm1536, %v1534, %v1521
    %v1538 = vsel %vm1536, %v1535, %v1523
    %vm1539 = vcmask 195584
    %v1540 = vsel %vm1539, %v1537, %v1529
    %v1541 = vsel %vm1539, %v1538, %v1531
    %v1542 = vld [vmem:[%s3] sm:$0xff]
    %v1543 = vld [vmem:[%s3 + $0x8] sm:$0xff]
    %v1544 = vld [vmem:[%s3 + $0x10] sm:$0xff]
    %v1545 = vld [vmem:[%s3 + $0x18] sm:$0xff]
    %v1546 = vld [vmem:[%s4] sm:$0x1]
    %v1548 = vlaneseq
    %v1549 = vshrl.u32 %v1548, 7
    %v1550 = vsub.s32 0, %v1549
    %v1551 = vrot.slane %v1546, %v1550
    %v1554 = vsel %vm73, %v1540, 0
    %v1557 = vsel %vm73, %v1541, 0
    %v1560 = vsel %vm73, %v1542, 0
    %v1563 = vsel %vm73, %v1543, 0
    %v1566 = vsel %vm73, %v1544, 0
    %v1569 = vsel %vm73, %v1545, 0
    %1571 = vmatprep.subr.mxu0 0.0
    %1572 = vmatpush1.xpose.msra.mxu0 0.0
    %1573 = vmatprep.subr.mxu0 0.0
    %1574 = vmatpush1.xpose.msra.mxu0 0.0
    %1575 = vmatprep.subr.mxu0 0.0
    %1576 = vmatpush1.xpose.msra.mxu0 0.0
    %1577 = vmatprep.subr.mxu0 0.0
    %1578 = vmatpush1.xpose.msra.mxu0 0.0
    %1579 = vmatprep.subr.mxu0 0.0
    %1580 = vmatpush1.xpose.msra.mxu0 0.0
    %1581 = vmatprep.subr.mxu0 0.0
    %1582 = vmatpush1.xpose.msra.mxu0 0.0
    %1583 = vmatprep.subr.mxu0 0.0
    %1584 = vmatpush1.xpose.msra.mxu0 0.0
    %1585 = vmatprep.subr.mxu0 0.0
    %1586 = vmatpush1.xpose.msra.mxu0 0.0
    %1587 = vmatprep.subr.mxu0 0.0
    %1588 = vmatpush1.xpose.msra.mxu0 0.0
    %1589 = vmatprep.subr.mxu0 0.0
    %1590 = vmatpush1.xpose.msra.mxu0 0.0
    %1591 = vmatprep.subr.mxu0 0.0
    %1592 = vmatpush1.xpose.msra.mxu0 0.0
    %1593 = vmatprep.subr.mxu0 0.0
    %1594 = vmatpush1.xpose.msra.mxu0 0.0
    %1595 = vmatprep.subr.mxu0 0.0
    %1596 = vmatpush1.xpose.msra.mxu0 %v1569
    %1597 = vmatprep.subr.mxu0 0.0
    %1598 = vmatpush1.xpose.msra.mxu0 %v1566
    %1599 = vmatprep.subr.mxu0 0.0
    %1600 = vmatpush1.xpose.msra.mxu0 %v1563
    %1601 = vmatprep.subr.mxu0 0.0
    %1602 = vmatpush1.xpose.msra.mxu0 %v1560
    %1603 = vmatprep.subr.mxu0 0.0
    %1604 = vmatpush2.xpose.msra.mxu0 0.0
    %1605 = vmatprep.subr.mxu0 0.0
    %1606 = vmatpush2.xpose.msra.mxu0 0.0
    %1607 = vmatprep.subr.mxu0 0.0
    %1608 = vmatpush2.xpose.msra.mxu0 0.0
    %1609 = vmatprep.subr.mxu0 0.0
    %1610 = vmatpush2.xpose.msra.mxu0 0.0
    %1611 = vmatprep.subr.mxu0 0.0
    %1612 = vmatpush2.xpose.msra.mxu0 0.0
    %1613 = vmatprep.subr.mxu0 0.0
    %1614 = vmatpush2.xpose.msra.mxu0 0.0
    %1615 = vmatprep.subr.mxu0 0.0
    %1616 = vmatpush2.xpose.msra.mxu0 0.0
    %1617 = vmatprep.subr.mxu0 0.0
    %1618 = vmatpush2.xpose.msra.mxu0 0.0
    %1619 = vmatprep.subr.mxu0 0.0
    %1620 = vmatpush2.xpose.msra.mxu0 0.0
    %1621 = vmatprep.subr.mxu0 0.0
    %1622 = vmatpush2.xpose.msra.mxu0 0.0
    %1623 = vmatprep.subr.mxu0 0.0
    %1624 = vmatpush2.xpose.msra.mxu0 0.0
    %1625 = vmatprep.subr.mxu0 0.0
    %1626 = vmatpush2.xpose.msra.mxu0 0.0
    %1627 = vmatprep.subr.mxu0 0.0
    %1628 = vmatpush2.xpose.msra.mxu0 0.0
    %1629 = vmatprep.subr.mxu0 0.0
    %1630 = vmatpush2.xpose.msra.mxu0 0.0
    %1631 = vmatprep.subr.mxu0 0.0
    %1632 = vmatpush2.xpose.msra.mxu0 0.0
    %1633 = vmatprep.subr.mxu0 0.0
    %1634 = vmatpush2.xpose.msra.mxu0 0.0
    %1635 = vmatprep.mubr.f32.mxu0 0.0
    %1636 = vmatmul.mubr.f32.gmra.mxu0 %v1554
    %v1637 = vpop.f32.mrf.mxu0
    %v1638 = vadd.f32 %v1551, %v1637
    %v1639 = vpop.f32.mrf.mxu0
    %1640 = vmatprep.mubr.f32.mxu0 0.0
    %1641 = vmatmul.mubr.f32.gmra.mxu0 %v1557
    %v1642 = vpop.f32.mrf.mxu0
    %v1643 = vadd.f32 %v1551, %v1642
    %v1644 = vpop.f32.mrf.mxu0
    %1645 = vdwg.mxu0
    %v1646 = vadd.f32 %v52, %v1638
    %v1647 = vadd.f32 %v53, %v1643
    %v1648 = vld [vmem:[%s5] sm:$0x1]
    %v1649 = vld [vmem:[%s6] sm:$0x1]
    %v1650 = vsel %vm73, %v1646, 0.0
    %1651 = vadd.xlane.f32.xlu0 %v1650
    %v1652 = vpop.xlane.xlu0 %1651
    %v1653 = vsel %vm73, %v1647, 0.0
    %1654 = vadd.xlane.f32.xlu0 %v1653
    %v1655 = vpop.xlane.xlu0 %1654
    %v1656 = vrcp.pop 32.0
    %v1657 = vmul.f32 %v1652, %v1656
    %v1658 = vmul.f32 %v1655, %v1656
    %v1659 = vsub.f32 %v1646, %v1657
    %v1660 = vsub.f32 %v1647, %v1658
    %v1661 = vmul.f32 %v1659, %v1659
    %v1662 = vmul.f32 %v1660, %v1660
    %v1663 = vsel %vm73, %v1661, 0.0
    %1664 = vadd.xlane.f32.xlu0 %v1663
    %v1665 = vpop.xlane.xlu0 %1664
    %v1666 = vsel %vm73, %v1662, 0.0
    %1667 = vadd.xlane.f32.xlu0 %v1666
    %v1668 = vpop.xlane.xlu0 %1667
    %v1669 = vmul.f32 %v1665, %v1656
    %v1670 = vmul.f32 %v1668, %v1656
    %v1671 = vadd.f32 %v1669, 1e-05
    %v1672 = vadd.f32 %v1670, 1e-05
    %v1673 = vrsqrt.pop %v1671
    %v1674 = vrsqrt.pop %v1672
    %v1675 = vmul.f32 %v1659, %v1673
    %v1676 = vmul.f32 %v1660, %v1674
    %v1678 = vlaneseq
    %v1679 = vshrl.u32 %v1678, 7
    %v1680 = vsub.s32 0, %v1679
    %v1681 = vrot.slane %v1648, %v1680
    %v1683 = vmul.f32 %v1675, %v1681
    %v1684 = vmul.f32 %v1676, %v1681
    %v1686 = vlaneseq
    %v1687 = vshrl.u32 %v1686, 7
    %v1688 = vsub.s32 0, %v1687
    %v1689 = vrot.slane %v1649, %v1688
    %v1691 = vadd.f32 %v1683, %v1689
    %v1692 = vadd.f32 %v1684, %v1689
    %v1693 = vpack.c.bf16 %v1692, %v1691
    %v1694 = vld [vmem:[%s7] sm:$0xf]
    %v1695 = vld [vmem:[%s7 + $0x4] sm:$0xf]
    %v1696 = vld [vmem:[%s7 + $0x8] sm:$0xf]
    %v1697 = vld [vmem:[%s7 + $0xc] sm:$0xf]
    %v1698 = vld [vmem:[%s7 + $0x10] sm:$0xf]
    %v1699 = vld [vmem:[%s7 + $0x14] sm:$0xf]
    %v1700 = vld [vmem:[%s7 + $0x18] sm:$0xf]
    %v1701 = vld [vmem:[%s7 + $0x1c] sm:$0xf]
    %v1702 = vld [vmem:[%s7 + $0x20] sm:$0xf]
    %v1703 = vld [vmem:[%s7 + $0x24] sm:$0xf]
    %v1704 = vld [vmem:[%s7 + $0x28] sm:$0xf]
    %v1705 = vld [vmem:[%s7 + $0x2c] sm:$0xf]
    %v1706 = vld [vmem:[%s7 + $0x30] sm:$0xf]
    %v1707 = vld [vmem:[%s7 + $0x34] sm:$0xf]
    %v1708 = vld [vmem:[%s7 + $0x38] sm:$0xf]
    %v1709 = vld [vmem:[%s7 + $0x3c] sm:$0xf]
    %v1710 = vld [vmem:[%s7 + $0x40] sm:$0xf]
    %v1711 = vld [vmem:[%s7 + $0x44] sm:$0xf]
    %v1712 = vld [vmem:[%s7 + $0x48] sm:$0xf]
    %v1713 = vld [vmem:[%s7 + $0x4c] sm:$0xf]
    %v1714 = vld [vmem:[%s7 + $0x50] sm:$0xf]
    %v1715 = vld [vmem:[%s7 + $0x54] sm:$0xf]
    %v1716 = vld [vmem:[%s7 + $0x58] sm:$0xf]
    %v1717 = vld [vmem:[%s7 + $0x5c] sm:$0xf]
    %v1718 = vld [vmem:[%s7 + $0x60] sm:$0xf]
    %v1719 = vld [vmem:[%s7 + $0x64] sm:$0xf]
    %v1720 = vld [vmem:[%s7 + $0x68] sm:$0xf]
    %v1721 = vld [vmem:[%s7 + $0x6c] sm:$0xf]
    %v1722 = vld [vmem:[%s7 + $0x70] sm:$0xf]
    %v1723 = vld [vmem:[%s7 + $0x74] sm:$0xf]
    %v1724 = vld [vmem:[%s7 + $0x78] sm:$0xf]
    %v1725 = vld [vmem:[%s7 + $0x7c] sm:$0xf]
    %v1726 = vld [vmem:[%s7 + $0x80] sm:$0xf]
    %v1727 = vld [vmem:[%s7 + $0x84] sm:$0xf]
    %v1728 = vld [vmem:[%s7 + $0x88] sm:$0xf]
    %v1729 = vld [vmem:[%s7 + $0x8c] sm:$0xf]
    %v1730 = vld [vmem:[%s7 + $0x90] sm:$0xf]
    %v1731 = vld [vmem:[%s7 + $0x94] sm:$0xf]
    %v1732 = vld [vmem:[%s7 + $0x98] sm:$0xf]
    %v1733 = vld [vmem:[%s7 + $0x9c] sm:$0xf]
    %v1734 = vld [vmem:[%s7 + $0xa0] sm:$0xf]
    %v1735 = vld [vmem:[%s7 + $0xa4] sm:$0xf]
    %v1736 = vld [vmem:[%s7 + $0xa8] sm:$0xf]
    %v1737 = vld [vmem:[%s7 + $0xac] sm:$0xf]
    %v1738 = vld [vmem:[%s7 + $0xb0] sm:$0xf]
    %v1739 = vld [vmem:[%s7 + $0xb4] sm:$0xf]
    %v1740 = vld [vmem:[%s7 + $0xb8] sm:$0xf]
    %v1741 = vld [vmem:[%s7 + $0xbc] sm:$0xf]
    %v1742 = vld [vmem:[%s7 + $0xc0] sm:$0xf]
    %v1743 = vld [vmem:[%s7 + $0xc4] sm:$0xf]
    %v1744 = vld [vmem:[%s7 + $0xc8] sm:$0xf]
    %v1745 = vld [vmem:[%s7 + $0xcc] sm:$0xf]
    %v1746 = vld [vmem:[%s7 + $0xd0] sm:$0xf]
    %v1747 = vld [vmem:[%s7 + $0xd4] sm:$0xf]
    %v1748 = vld [vmem:[%s7 + $0xd8] sm:$0xf]
    %v1749 = vld [vmem:[%s7 + $0xdc] sm:$0xf]
    %v1750 = vld [vmem:[%s7 + $0xe0] sm:$0xf]
    %v1751 = vld [vmem:[%s7 + $0xe4] sm:$0xf]
    %v1752 = vld [vmem:[%s7 + $0xe8] sm:$0xf]
    %v1753 = vld [vmem:[%s7 + $0xec] sm:$0xf]
    %v1754 = vld [vmem:[%s7 + $0xf0] sm:$0xf]
    %v1755 = vld [vmem:[%s7 + $0xf4] sm:$0xf]
    %v1756 = vld [vmem:[%s7 + $0xf8] sm:$0xf]
    %v1757 = vld [vmem:[%s7 + $0xfc] sm:$0xf]
    %v1758 = vld [vmem:[%s7 + $0x100] sm:$0xf]
    %v1759 = vld [vmem:[%s7 + $0x104] sm:$0xf]
    %v1760 = vld [vmem:[%s7 + $0x108] sm:$0xf]
    %v1761 = vld [vmem:[%s7 + $0x10c] sm:$0xf]
    %v1762 = vld [vmem:[%s7 + $0x110] sm:$0xf]
    %v1763 = vld [vmem:[%s7 + $0x114] sm:$0xf]
    %v1764 = vld [vmem:[%s7 + $0x118] sm:$0xf]
    %v1765 = vld [vmem:[%s7 + $0x11c] sm:$0xf]
    %v1766 = vld [vmem:[%s7 + $0x120] sm:$0xf]
    %v1767 = vld [vmem:[%s7 + $0x124] sm:$0xf]
    %v1768 = vld [vmem:[%s7 + $0x128] sm:$0xf]
    %v1769 = vld [vmem:[%s7 + $0x12c] sm:$0xf]
    %v1770 = vld [vmem:[%s7 + $0x130] sm:$0xf]
    %v1771 = vld [vmem:[%s7 + $0x134] sm:$0xf]
    %v1772 = vld [vmem:[%s7 + $0x138] sm:$0xf]
    %v1773 = vld [vmem:[%s7 + $0x13c] sm:$0xf]
    %v1774 = vld [vmem:[%s7 + $0x140] sm:$0xf]
    %v1775 = vld [vmem:[%s7 + $0x144] sm:$0xf]
    %v1776 = vld [vmem:[%s7 + $0x148] sm:$0xf]
    %v1777 = vld [vmem:[%s7 + $0x14c] sm:$0xf]
    %v1778 = vld [vmem:[%s7 + $0x150] sm:$0xf]
    %v1779 = vld [vmem:[%s7 + $0x154] sm:$0xf]
    %v1780 = vld [vmem:[%s7 + $0x158] sm:$0xf]
    %v1781 = vld [vmem:[%s7 + $0x15c] sm:$0xf]
    %v1782 = vld [vmem:[%s7 + $0x160] sm:$0xf]
    %v1783 = vld [vmem:[%s7 + $0x164] sm:$0xf]
    %v1784 = vld [vmem:[%s7 + $0x168] sm:$0xf]
    %v1785 = vld [vmem:[%s7 + $0x16c] sm:$0xf]
    %v1786 = vld [vmem:[%s7 + $0x170] sm:$0xf]
    %v1787 = vld [vmem:[%s7 + $0x174] sm:$0xf]
    %v1788 = vld [vmem:[%s7 + $0x178] sm:$0xf]
    %v1789 = vld [vmem:[%s7 + $0x17c] sm:$0xf]
    %v1790 = vld [vmem:[%s7 + $0x180] sm:$0xf]
    %v1791 = vld [vmem:[%s7 + $0x184] sm:$0xf]
    %v1792 = vld [vmem:[%s7 + $0x188] sm:$0xf]
    %v1793 = vld [vmem:[%s7 + $0x18c] sm:$0xf]
    %v1794 = vld [vmem:[%s7 + $0x190] sm:$0xf]
    %v1795 = vld [vmem:[%s7 + $0x194] sm:$0xf]
    %v1796 = vld [vmem:[%s7 + $0x198] sm:$0xf]
    %v1797 = vld [vmem:[%s7 + $0x19c] sm:$0xf]
    %v1798 = vld [vmem:[%s7 + $0x1a0] sm:$0xf]
    %v1799 = vld [vmem:[%s7 + $0x1a4] sm:$0xf]
    %v1800 = vld [vmem:[%s7 + $0x1a8] sm:$0xf]
    %v1801 = vld [vmem:[%s7 + $0x1ac] sm:$0xf]
    %v1802 = vld [vmem:[%s7 + $0x1b0] sm:$0xf]
    %v1803 = vld [vmem:[%s7 + $0x1b4] sm:$0xf]
    %v1804 = vld [vmem:[%s7 + $0x1b8] sm:$0xf]
    %v1805 = vld [vmem:[%s7 + $0x1bc] sm:$0xf]
    %v1806 = vld [vmem:[%s7 + $0x1c0] sm:$0xf]
    %v1807 = vld [vmem:[%s7 + $0x1c4] sm:$0xf]
    %v1808 = vld [vmem:[%s7 + $0x1c8] sm:$0xf]
    %v1809 = vld [vmem:[%s7 + $0x1cc] sm:$0xf]
    %v1810 = vld [vmem:[%s7 + $0x1d0] sm:$0xf]
    %v1811 = vld [vmem:[%s7 + $0x1d4] sm:$0xf]
    %v1812 = vld [vmem:[%s7 + $0x1d8] sm:$0xf]
    %v1813 = vld [vmem:[%s7 + $0x1dc] sm:$0xf]
    %v1814 = vld [vmem:[%s7 + $0x1e0] sm:$0xf]
    %v1815 = vld [vmem:[%s7 + $0x1e4] sm:$0xf]
    %v1816 = vld [vmem:[%s7 + $0x1e8] sm:$0xf]
    %v1817 = vld [vmem:[%s7 + $0x1ec] sm:$0xf]
    %v1818 = vld [vmem:[%s7 + $0x1f0] sm:$0xf]
    %v1819 = vld [vmem:[%s7 + $0x1f4] sm:$0xf]
    %v1820 = vld [vmem:[%s7 + $0x1f8] sm:$0xf]
    %v1821 = vld [vmem:[%s7 + $0x1fc] sm:$0xf]
    %v1822 = vld [vmem:[%s7 + $0x200] sm:$0xf]
    %v1823 = vld [vmem:[%s7 + $0x204] sm:$0xf]
    %v1824 = vld [vmem:[%s7 + $0x208] sm:$0xf]
    %v1825 = vld [vmem:[%s7 + $0x20c] sm:$0xf]
    %v1826 = vld [vmem:[%s7 + $0x210] sm:$0xf]
    %v1827 = vld [vmem:[%s7 + $0x214] sm:$0xf]
    %v1828 = vld [vmem:[%s7 + $0x218] sm:$0xf]
    %v1829 = vld [vmem:[%s7 + $0x21c] sm:$0xf]
    %v1830 = vld [vmem:[%s7 + $0x220] sm:$0xf]
    %v1831 = vld [vmem:[%s7 + $0x224] sm:$0xf]
    %v1832 = vld [vmem:[%s7 + $0x228] sm:$0xf]
    %v1833 = vld [vmem:[%s7 + $0x22c] sm:$0xf]
    %v1834 = vld [vmem:[%s7 + $0x230] sm:$0xf]
    %v1835 = vld [vmem:[%s7 + $0x234] sm:$0xf]
    %v1836 = vld [vmem:[%s7 + $0x238] sm:$0xf]
    %v1837 = vld [vmem:[%s7 + $0x23c] sm:$0xf]
    %v1838 = vld [vmem:[%s7 + $0x240] sm:$0xf]
    %v1839 = vld [vmem:[%s7 + $0x244] sm:$0xf]
    %v1840 = vld [vmem:[%s7 + $0x248] sm:$0xf]
    %v1841 = vld [vmem:[%s7 + $0x24c] sm:$0xf]
    %v1842 = vld [vmem:[%s7 + $0x250] sm:$0xf]
    %v1843 = vld [vmem:[%s7 + $0x254] sm:$0xf]
    %v1844 = vld [vmem:[%s7 + $0x258] sm:$0xf]
    %v1845 = vld [vmem:[%s7 + $0x25c] sm:$0xf]
    %v1846 = vld [vmem:[%s7 + $0x260] sm:$0xf]
    %v1847 = vld [vmem:[%s7 + $0x264] sm:$0xf]
    %v1848 = vld [vmem:[%s7 + $0x268] sm:$0xf]
    %v1849 = vld [vmem:[%s7 + $0x26c] sm:$0xf]
    %v1850 = vld [vmem:[%s7 + $0x270] sm:$0xf]
    %v1851 = vld [vmem:[%s7 + $0x274] sm:$0xf]
    %v1852 = vld [vmem:[%s7 + $0x278] sm:$0xf]
    %v1853 = vld [vmem:[%s7 + $0x27c] sm:$0xf]
    %v1854 = vld [vmem:[%s7 + $0x280] sm:$0xf]
    %v1855 = vld [vmem:[%s7 + $0x284] sm:$0xf]
    %v1856 = vld [vmem:[%s7 + $0x288] sm:$0xf]
    %v1857 = vld [vmem:[%s7 + $0x28c] sm:$0xf]
    %v1858 = vld [vmem:[%s7 + $0x290] sm:$0xf]
    %v1859 = vld [vmem:[%s7 + $0x294] sm:$0xf]
    %v1860 = vld [vmem:[%s7 + $0x298] sm:$0xf]
    %v1861 = vld [vmem:[%s7 + $0x29c] sm:$0xf]
    %v1862 = vld [vmem:[%s7 + $0x2a0] sm:$0xf]
    %v1863 = vld [vmem:[%s7 + $0x2a4] sm:$0xf]
    %v1864 = vld [vmem:[%s7 + $0x2a8] sm:$0xf]
    %v1865 = vld [vmem:[%s7 + $0x2ac] sm:$0xf]
    %v1866 = vld [vmem:[%s7 + $0x2b0] sm:$0xf]
    %v1867 = vld [vmem:[%s7 + $0x2b4] sm:$0xf]
    %v1868 = vld [vmem:[%s7 + $0x2b8] sm:$0xf]
    %v1869 = vld [vmem:[%s7 + $0x2bc] sm:$0xf]
    %v1870 = vld [vmem:[%s7 + $0x2c0] sm:$0xf]
    %v1871 = vld [vmem:[%s7 + $0x2c4] sm:$0xf]
    %v1872 = vld [vmem:[%s7 + $0x2c8] sm:$0xf]
    %v1873 = vld [vmem:[%s7 + $0x2cc] sm:$0xf]
    %v1874 = vld [vmem:[%s7 + $0x2d0] sm:$0xf]
    %v1875 = vld [vmem:[%s7 + $0x2d4] sm:$0xf]
    %v1876 = vld [vmem:[%s7 + $0x2d8] sm:$0xf]
    %v1877 = vld [vmem:[%s7 + $0x2dc] sm:$0xf]
    %v1878 = vld [vmem:[%s7 + $0x2e0] sm:$0xf]
    %v1879 = vld [vmem:[%s7 + $0x2e4] sm:$0xf]
    %v1880 = vld [vmem:[%s7 + $0x2e8] sm:$0xf]
    %v1881 = vld [vmem:[%s7 + $0x2ec] sm:$0xf]
    %v1882 = vld [vmem:[%s7 + $0x2f0] sm:$0xf]
    %v1883 = vld [vmem:[%s7 + $0x2f4] sm:$0xf]
    %v1884 = vld [vmem:[%s7 + $0x2f8] sm:$0xf]
    %v1885 = vld [vmem:[%s7 + $0x2fc] sm:$0xf]
    %v1886 = vld [vmem:[%s7 + $0x300] sm:$0xf]
    %v1887 = vld [vmem:[%s7 + $0x304] sm:$0xf]
    %v1888 = vld [vmem:[%s7 + $0x308] sm:$0xf]
    %v1889 = vld [vmem:[%s7 + $0x30c] sm:$0xf]
    %v1890 = vld [vmem:[%s7 + $0x310] sm:$0xf]
    %v1891 = vld [vmem:[%s7 + $0x314] sm:$0xf]
    %v1892 = vld [vmem:[%s7 + $0x318] sm:$0xf]
    %v1893 = vld [vmem:[%s7 + $0x31c] sm:$0xf]
    %v1894 = vld [vmem:[%s7 + $0x320] sm:$0xf]
    %v1895 = vld [vmem:[%s7 + $0x324] sm:$0xf]
    %v1896 = vld [vmem:[%s7 + $0x328] sm:$0xf]
    %v1897 = vld [vmem:[%s7 + $0x32c] sm:$0xf]
    %v1898 = vld [vmem:[%s7 + $0x330] sm:$0xf]
    %v1899 = vld [vmem:[%s7 + $0x334] sm:$0xf]
    %v1900 = vld [vmem:[%s7 + $0x338] sm:$0xf]
    %v1901 = vld [vmem:[%s7 + $0x33c] sm:$0xf]
    %v1902 = vld [vmem:[%s7 + $0x340] sm:$0xf]
    %v1903 = vld [vmem:[%s7 + $0x344] sm:$0xf]
    %v1904 = vld [vmem:[%s7 + $0x348] sm:$0xf]
    %v1905 = vld [vmem:[%s7 + $0x34c] sm:$0xf]
    %v1906 = vld [vmem:[%s7 + $0x350] sm:$0xf]
    %v1907 = vld [vmem:[%s7 + $0x354] sm:$0xf]
    %v1908 = vld [vmem:[%s7 + $0x358] sm:$0xf]
    %v1909 = vld [vmem:[%s7 + $0x35c] sm:$0xf]
    %v1910 = vld [vmem:[%s7 + $0x360] sm:$0xf]
    %v1911 = vld [vmem:[%s7 + $0x364] sm:$0xf]
    %v1912 = vld [vmem:[%s7 + $0x368] sm:$0xf]
    %v1913 = vld [vmem:[%s7 + $0x36c] sm:$0xf]
    %v1914 = vld [vmem:[%s7 + $0x370] sm:$0xf]
    %v1915 = vld [vmem:[%s7 + $0x374] sm:$0xf]
    %v1916 = vld [vmem:[%s7 + $0x378] sm:$0xf]
    %v1917 = vld [vmem:[%s7 + $0x37c] sm:$0xf]
    %v1918 = vld [vmem:[%s7 + $0x380] sm:$0xf]
    %v1919 = vld [vmem:[%s7 + $0x384] sm:$0xf]
    %v1920 = vld [vmem:[%s7 + $0x388] sm:$0xf]
    %v1921 = vld [vmem:[%s7 + $0x38c] sm:$0xf]
    %v1922 = vld [vmem:[%s7 + $0x390] sm:$0xf]
    %v1923 = vld [vmem:[%s7 + $0x394] sm:$0xf]
    %v1924 = vld [vmem:[%s7 + $0x398] sm:$0xf]
    %v1925 = vld [vmem:[%s7 + $0x39c] sm:$0xf]
    %v1926 = vld [vmem:[%s7 + $0x3a0] sm:$0xf]
    %v1927 = vld [vmem:[%s7 + $0x3a4] sm:$0xf]
    %v1928 = vld [vmem:[%s7 + $0x3a8] sm:$0xf]
    %v1929 = vld [vmem:[%s7 + $0x3ac] sm:$0xf]
    %v1930 = vld [vmem:[%s7 + $0x3b0] sm:$0xf]
    %v1931 = vld [vmem:[%s7 + $0x3b4] sm:$0xf]
    %v1932 = vld [vmem:[%s7 + $0x3b8] sm:$0xf]
    %v1933 = vld [vmem:[%s7 + $0x3bc] sm:$0xf]
    %v1934 = vld [vmem:[%s7 + $0x3c0] sm:$0xf]
    %v1935 = vld [vmem:[%s7 + $0x3c4] sm:$0xf]
    %v1936 = vld [vmem:[%s7 + $0x3c8] sm:$0xf]
    %v1937 = vld [vmem:[%s7 + $0x3cc] sm:$0xf]
    %v1938 = vld [vmem:[%s7 + $0x3d0] sm:$0xf]
    %v1939 = vld [vmem:[%s7 + $0x3d4] sm:$0xf]
    %v1940 = vld [vmem:[%s7 + $0x3d8] sm:$0xf]
    %v1941 = vld [vmem:[%s7 + $0x3dc] sm:$0xf]
    %v1942 = vld [vmem:[%s7 + $0x3e0] sm:$0xf]
    %v1943 = vld [vmem:[%s7 + $0x3e4] sm:$0xf]
    %v1944 = vld [vmem:[%s7 + $0x3e8] sm:$0xf]
    %v1945 = vld [vmem:[%s7 + $0x3ec] sm:$0xf]
    %v1946 = vld [vmem:[%s7 + $0x3f0] sm:$0xf]
    %v1947 = vld [vmem:[%s7 + $0x3f4] sm:$0xf]
    %v1948 = vld [vmem:[%s7 + $0x3f8] sm:$0xf]
    %v1949 = vld [vmem:[%s7 + $0x3fc] sm:$0xf]
    %v1950 = vld [vmem:[%s8] sm:$0xff]
    %v1951 = vld [vmem:[%s8 + $0x8] sm:$0xff]
    %v1954 = vlaneseq
    %v1955 = vshrl.u32 %v1954, 7
    %v1956 = vsub.s32 0, %v1955
    %v1957 = vrot.slane %v1950, %v1956
    %v1958 = vlaneseq
    %v1959 = vshrl.u32 %v1958, 7
    %v1960 = vsub.s32 1, %v1959
    %v1961 = vrot.slane %v1950, %v1960
    %v1962 = vlaneseq
    %v1963 = vshrl.u32 %v1962, 7
    %v1964 = vsub.s32 2, %v1963
    %v1965 = vrot.slane %v1950, %v1964
    %v1966 = vlaneseq
    %v1967 = vshrl.u32 %v1966, 7
    %v1968 = vsub.s32 3, %v1967
    %v1969 = vrot.slane %v1950, %v1968
    %v1970 = vlaneseq
    %v1971 = vshrl.u32 %v1970, 7
    %v1972 = vsub.s32 4, %v1971
    %v1973 = vrot.slane %v1950, %v1972
    %v1974 = vlaneseq
    %v1975 = vshrl.u32 %v1974, 7
    %v1976 = vsub.s32 5, %v1975
    %v1977 = vrot.slane %v1950, %v1976
    %v1978 = vlaneseq
    %v1979 = vshrl.u32 %v1978, 7
    %v1980 = vsub.s32 6, %v1979
    %v1981 = vrot.slane %v1950, %v1980
    %v1982 = vlaneseq
    %v1983 = vshrl.u32 %v1982, 7
    %v1984 = vsub.s32 7, %v1983
    %v1985 = vrot.slane %v1950, %v1984
    %v1986 = vlaneseq
    %v1987 = vshrl.u32 %v1986, 7
    %v1988 = vsub.s32 0, %v1987
    %v1989 = vrot.slane %v1951, %v1988
    %v1990 = vlaneseq
    %v1991 = vshrl.u32 %v1990, 7
    %v1992 = vsub.s32 1, %v1991
    %v1993 = vrot.slane %v1951, %v1992
    %v1994 = vlaneseq
    %v1995 = vshrl.u32 %v1994, 7
    %v1996 = vsub.s32 2, %v1995
    %v1997 = vrot.slane %v1951, %v1996
    %v1998 = vlaneseq
    %v1999 = vshrl.u32 %v1998, 7
    %v2000 = vsub.s32 3, %v1999
    %v2001 = vrot.slane %v1951, %v2000
    %v2002 = vlaneseq
    %v2003 = vshrl.u32 %v2002, 7
    %v2004 = vsub.s32 4, %v2003
    %v2005 = vrot.slane %v1951, %v2004
    %v2006 = vlaneseq
    %v2007 = vshrl.u32 %v2006, 7
    %v2008 = vsub.s32 5, %v2007
    %v2009 = vrot.slane %v1951, %v2008
    %v2010 = vlaneseq
    %v2011 = vshrl.u32 %v2010, 7
    %v2012 = vsub.s32 6, %v2011
    %v2013 = vrot.slane %v1951, %v2012
    %v2014 = vlaneseq
    %v2015 = vshrl.u32 %v2014, 7
    %v2016 = vsub.s32 7, %v2015
    %v2017 = vrot.slane %v1951, %v2016
    %v2290 = vunpack.c.l.b16 %v1694
    %v2291 = vunpack.c.l.b16 %v1695
    %v2292 = vunpack.c.l.b16 %v1696
    %v2293 = vunpack.c.l.b16 %v1697
    %v2294 = vunpack.c.l.b16 %v1698
    %v2295 = vunpack.c.l.b16 %v1699
    %v2296 = vunpack.c.l.b16 %v1700
    %v2297 = vunpack.c.l.b16 %v1701
    %v2298 = vunpack.c.l.b16 %v1702
    %v2299 = vunpack.c.l.b16 %v1703
    %v2300 = vunpack.c.l.b16 %v1704
    %v2301 = vunpack.c.l.b16 %v1705
    %v2302 = vunpack.c.l.b16 %v1706
    %v2303 = vunpack.c.l.b16 %v1707
    %v2304 = vunpack.c.l.b16 %v1708
    %v2305 = vunpack.c.l.b16 %v1709
    %v2306 = vunpack.c.l.b16 %v1710
    %v2307 = vunpack.c.l.b16 %v1711
    %v2308 = vunpack.c.l.b16 %v1712
    %v2309 = vunpack.c.l.b16 %v1713
    %v2310 = vunpack.c.l.b16 %v1714
    %v2311 = vunpack.c.l.b16 %v1715
    %v2312 = vunpack.c.l.b16 %v1716
    %v2313 = vunpack.c.l.b16 %v1717
    %v2314 = vunpack.c.l.b16 %v1718
    %v2315 = vunpack.c.l.b16 %v1719
    %v2316 = vunpack.c.l.b16 %v1720
    %v2317 = vunpack.c.l.b16 %v1721
    %v2318 = vunpack.c.l.b16 %v1722
    %v2319 = vunpack.c.l.b16 %v1723
    %v2320 = vunpack.c.l.b16 %v1724
    %v2321 = vunpack.c.l.b16 %v1725
    %v2322 = vunpack.c.l.b16 %v1726
    %v2323 = vunpack.c.l.b16 %v1727
    %v2324 = vunpack.c.l.b16 %v1728
    %v2325 = vunpack.c.l.b16 %v1729
    %v2326 = vunpack.c.l.b16 %v1730
    %v2327 = vunpack.c.l.b16 %v1731
    %v2328 = vunpack.c.l.b16 %v1732
    %v2329 = vunpack.c.l.b16 %v1733
    %v2330 = vunpack.c.l.b16 %v1734
    %v2331 = vunpack.c.l.b16 %v1735
    %v2332 = vunpack.c.l.b16 %v1736
    %v2333 = vunpack.c.l.b16 %v1737
    %v2334 = vunpack.c.l.b16 %v1738
    %v2335 = vunpack.c.l.b16 %v1739
    %v2336 = vunpack.c.l.b16 %v1740
    %v2337 = vunpack.c.l.b16 %v1741
    %v2338 = vunpack.c.l.b16 %v1742
    %v2339 = vunpack.c.l.b16 %v1743
    %v2340 = vunpack.c.l.b16 %v1744
    %v2341 = vunpack.c.l.b16 %v1745
    %v2342 = vunpack.c.l.b16 %v1746
    %v2343 = vunpack.c.l.b16 %v1747
    %v2344 = vunpack.c.l.b16 %v1748
    %v2345 = vunpack.c.l.b16 %v1749
    %v2346 = vunpack.c.l.b16 %v1750
    %v2347 = vunpack.c.l.b16 %v1751
    %v2348 = vunpack.c.l.b16 %v1752
    %v2349 = vunpack.c.l.b16 %v1753
    %v2350 = vunpack.c.l.b16 %v1754
    %v2351 = vunpack.c.l.b16 %v1755
    %v2352 = vunpack.c.l.b16 %v1756
    %v2353 = vunpack.c.l.b16 %v1757
    %v2354 = vunpack.c.l.b16 %v1758
    %v2355 = vunpack.c.l.b16 %v1759
    %v2356 = vunpack.c.l.b16 %v1760
    %v2357 = vunpack.c.l.b16 %v1761
    %v2358 = vunpack.c.l.b16 %v1762
    %v2359 = vunpack.c.l.b16 %v1763
    %v2360 = vunpack.c.l.b16 %v1764
    %v2361 = vunpack.c.l.b16 %v1765
    %v2362 = vunpack.c.l.b16 %v1766
    %v2363 = vunpack.c.l.b16 %v1767
    %v2364 = vunpack.c.l.b16 %v1768
    %v2365 = vunpack.c.l.b16 %v1769
    %v2366 = vunpack.c.l.b16 %v1770
    %v2367 = vunpack.c.l.b16 %v1771
    %v2368 = vunpack.c.l.b16 %v1772
    %v2369 = vunpack.c.l.b16 %v1773
    %v2370 = vunpack.c.l.b16 %v1774
    %v2371 = vunpack.c.l.b16 %v1775
    %v2372 = vunpack.c.l.b16 %v1776
    %v2373 = vunpack.c.l.b16 %v1777
    %v2374 = vunpack.c.l.b16 %v1778
    %v2375 = vunpack.c.l.b16 %v1779
    %v2376 = vunpack.c.l.b16 %v1780
    %v2377 = vunpack.c.l.b16 %v1781
    %v2378 = vunpack.c.l.b16 %v1782
    %v2379 = vunpack.c.l.b16 %v1783
    %v2380 = vunpack.c.l.b16 %v1784
    %v2381 = vunpack.c.l.b16 %v1785
    %v2382 = vunpack.c.l.b16 %v1786
    %v2383 = vunpack.c.l.b16 %v1787
    %v2384 = vunpack.c.l.b16 %v1788
    %v2385 = vunpack.c.l.b16 %v1789
    %v2386 = vunpack.c.l.b16 %v1790
    %v2387 = vunpack.c.l.b16 %v1791
    %v2388 = vunpack.c.l.b16 %v1792
    %v2389 = vunpack.c.l.b16 %v1793
    %v2390 = vunpack.c.l.b16 %v1794
    %v2391 = vunpack.c.l.b16 %v1795
    %v2392 = vunpack.c.l.b16 %v1796
    %v2393 = vunpack.c.l.b16 %v1797
    %v2394 = vunpack.c.l.b16 %v1798
    %v2395 = vunpack.c.l.b16 %v1799
    %v2396 = vunpack.c.l.b16 %v1800
    %v2397 = vunpack.c.l.b16 %v1801
    %v2398 = vunpack.c.l.b16 %v1802
    %v2399 = vunpack.c.l.b16 %v1803
    %v2400 = vunpack.c.l.b16 %v1804
    %v2401 = vunpack.c.l.b16 %v1805
    %v2402 = vunpack.c.l.b16 %v1806
    %v2403 = vunpack.c.l.b16 %v1807
    %v2404 = vunpack.c.l.b16 %v1808
    %v2405 = vunpack.c.l.b16 %v1809
    %v2406 = vunpack.c.l.b16 %v1810
    %v2407 = vunpack.c.l.b16 %v1811
    %v2408 = vunpack.c.l.b16 %v1812
    %v2409 = vunpack.c.l.b16 %v1813
    %v2410 = vunpack.c.l.b16 %v1814
    %v2411 = vunpack.c.l.b16 %v1815
    %v2412 = vunpack.c.l.b16 %v1816
    %v2413 = vunpack.c.l.b16 %v1817
    %v2414 = vunpack.c.l.b16 %v1818
    %v2415 = vunpack.c.l.b16 %v1819
    %v2416 = vunpack.c.l.b16 %v1820
    %v2417 = vunpack.c.l.b16 %v1821
    %v2418 = vunpack.c.l.b16 %v1822
    %v2419 = vunpack.c.l.b16 %v1823
    %v2420 = vunpack.c.l.b16 %v1824
    %v2421 = vunpack.c.l.b16 %v1825
    %v2422 = vunpack.c.l.b16 %v1826
    %v2423 = vunpack.c.l.b16 %v1827
    %v2424 = vunpack.c.l.b16 %v1828
    %v2425 = vunpack.c.l.b16 %v1829
    %v2426 = vunpack.c.l.b16 %v1830
    %v2427 = vunpack.c.l.b16 %v1831
    %v2428 = vunpack.c.l.b16 %v1832
    %v2429 = vunpack.c.l.b16 %v1833
    %v2430 = vunpack.c.l.b16 %v1834
    %v2431 = vunpack.c.l.b16 %v1835
    %v2432 = vunpack.c.l.b16 %v1836
    %v2433 = vunpack.c.l.b16 %v1837
    %v2434 = vunpack.c.l.b16 %v1838
    %v2435 = vunpack.c.l.b16 %v1839
    %v2436 = vunpack.c.l.b16 %v1840
    %v2437 = vunpack.c.l.b16 %v1841
    %v2438 = vunpack.c.l.b16 %v1842
    %v2439 = vunpack.c.l.b16 %v1843
    %v2440 = vunpack.c.l.b16 %v1844
    %v2441 = vunpack.c.l.b16 %v1845
    %v2442 = vunpack.c.l.b16 %v1846
    %v2443 = vunpack.c.l.b16 %v1847
    %v2444 = vunpack.c.l.b16 %v1848
    %v2445 = vunpack.c.l.b16 %v1849
    %v2446 = vunpack.c.l.b16 %v1850
    %v2447 = vunpack.c.l.b16 %v1851
    %v2448 = vunpack.c.l.b16 %v1852
    %v2449 = vunpack.c.l.b16 %v1853
    %v2450 = vunpack.c.l.b16 %v1854
    %v2451 = vunpack.c.l.b16 %v1855
    %v2452 = vunpack.c.l.b16 %v1856
    %v2453 = vunpack.c.l.b16 %v1857
    %v2454 = vunpack.c.l.b16 %v1858
    %v2455 = vunpack.c.l.b16 %v1859
    %v2456 = vunpack.c.l.b16 %v1860
    %v2457 = vunpack.c.l.b16 %v1861
    %v2458 = vunpack.c.l.b16 %v1862
    %v2459 = vunpack.c.l.b16 %v1863
    %v2460 = vunpack.c.l.b16 %v1864
    %v2461 = vunpack.c.l.b16 %v1865
    %v2462 = vunpack.c.l.b16 %v1866
    %v2463 = vunpack.c.l.b16 %v1867
    %v2464 = vunpack.c.l.b16 %v1868
    %v2465 = vunpack.c.l.b16 %v1869
    %v2466 = vunpack.c.l.b16 %v1870
    %v2467 = vunpack.c.l.b16 %v1871
    %v2468 = vunpack.c.l.b16 %v1872
    %v2469 = vunpack.c.l.b16 %v1873
    %v2470 = vunpack.c.l.b16 %v1874
    %v2471 = vunpack.c.l.b16 %v1875
    %v2472 = vunpack.c.l.b16 %v1876
    %v2473 = vunpack.c.l.b16 %v1877
    %v2474 = vunpack.c.l.b16 %v1878
    %v2475 = vunpack.c.l.b16 %v1879
    %v2476 = vunpack.c.l.b16 %v1880
    %v2477 = vunpack.c.l.b16 %v1881
    %v2478 = vunpack.c.l.b16 %v1882
    %v2479 = vunpack.c.l.b16 %v1883
    %v2480 = vunpack.c.l.b16 %v1884
    %v2481 = vunpack.c.l.b16 %v1885
    %v2482 = vunpack.c.l.b16 %v1886
    %v2483 = vunpack.c.l.b16 %v1887
    %v2484 = vunpack.c.l.b16 %v1888
    %v2485 = vunpack.c.l.b16 %v1889
    %v2486 = vunpack.c.l.b16 %v1890
    %v2487 = vunpack.c.l.b16 %v1891
    %v2488 = vunpack.c.l.b16 %v1892
    %v2489 = vunpack.c.l.b16 %v1893
    %v2490 = vunpack.c.l.b16 %v1894
    %v2491 = vunpack.c.l.b16 %v1895
    %v2492 = vunpack.c.l.b16 %v1896
    %v2493 = vunpack.c.l.b16 %v1897
    %v2494 = vunpack.c.l.b16 %v1898
    %v2495 = vunpack.c.l.b16 %v1899
    %v2496 = vunpack.c.l.b16 %v1900
    %v2497 = vunpack.c.l.b16 %v1901
    %v2498 = vunpack.c.l.b16 %v1902
    %v2499 = vunpack.c.l.b16 %v1903
    %v2500 = vunpack.c.l.b16 %v1904
    %v2501 = vunpack.c.l.b16 %v1905
    %v2502 = vunpack.c.l.b16 %v1906
    %v2503 = vunpack.c.l.b16 %v1907
    %v2504 = vunpack.c.l.b16 %v1908
    %v2505 = vunpack.c.l.b16 %v1909
    %v2506 = vunpack.c.l.b16 %v1910
    %v2507 = vunpack.c.l.b16 %v1911
    %v2508 = vunpack.c.l.b16 %v1912
    %v2509 = vunpack.c.l.b16 %v1913
    %v2510 = vunpack.c.l.b16 %v1914
    %v2511 = vunpack.c.l.b16 %v1915
    %v2512 = vunpack.c.l.b16 %v1916
    %v2513 = vunpack.c.l.b16 %v1917
    %v2514 = vunpack.c.l.b16 %v1918
    %v2515 = vunpack.c.l.b16 %v1919
    %v2516 = vunpack.c.l.b16 %v1920
    %v2517 = vunpack.c.l.b16 %v1921
    %v2518 = vunpack.c.l.b16 %v1922
    %v2519 = vunpack.c.l.b16 %v1923
    %v2520 = vunpack.c.l.b16 %v1924
    %v2521 = vunpack.c.l.b16 %v1925
    %v2522 = vunpack.c.l.b16 %v1926
    %v2523 = vunpack.c.l.b16 %v1927
    %v2524 = vunpack.c.l.b16 %v1928
    %v2525 = vunpack.c.l.b16 %v1929
    %v2526 = vunpack.c.l.b16 %v1930
    %v2527 = vunpack.c.l.b16 %v1931
    %v2528 = vunpack.c.l.b16 %v1932
    %v2529 = vunpack.c.l.b16 %v1933
    %v2530 = vunpack.c.l.b16 %v1934
    %v2531 = vunpack.c.l.b16 %v1935
    %v2532 = vunpack.c.l.b16 %v1936
    %v2533 = vunpack.c.l.b16 %v1937
    %v2534 = vunpack.c.l.b16 %v1938
    %v2535 = vunpack.c.l.b16 %v1939
    %v2536 = vunpack.c.l.b16 %v1940
    %v2537 = vunpack.c.l.b16 %v1941
    %v2538 = vunpack.c.l.b16 %v1942
    %v2539 = vunpack.c.l.b16 %v1943
    %v2540 = vunpack.c.l.b16 %v1944
    %v2541 = vunpack.c.l.b16 %v1945
    %v2542 = vunpack.c.l.b16 %v1946
    %v2543 = vunpack.c.l.b16 %v1947
    %v2544 = vunpack.c.l.b16 %v1948
    %v2545 = vunpack.c.l.b16 %v1949
    %v2546 = vpack.c.b16 %v2291, %v2290
    %v2547 = vpack.c.b16 %v2293, %v2292
    %v2548 = vpack.c.b16 %v2295, %v2294
    %v2549 = vpack.c.b16 %v2297, %v2296
    %v2550 = vpack.c.b16 %v2299, %v2298
    %v2551 = vpack.c.b16 %v2301, %v2300
    %v2552 = vpack.c.b16 %v2303, %v2302
    %v2553 = vpack.c.b16 %v2305, %v2304
    %v2554 = vpack.c.b16 %v2307, %v2306
    %v2555 = vpack.c.b16 %v2309, %v2308
    %v2556 = vpack.c.b16 %v2311, %v2310
    %v2557 = vpack.c.b16 %v2313, %v2312
    %v2558 = vpack.c.b16 %v2315, %v2314
    %v2559 = vpack.c.b16 %v2317, %v2316
    %v2560 = vpack.c.b16 %v2319, %v2318
    %v2561 = vpack.c.b16 %v2321, %v2320
    %v2562 = vpack.c.b16 %v2323, %v2322
    %v2563 = vpack.c.b16 %v2325, %v2324
    %v2564 = vpack.c.b16 %v2327, %v2326
    %v2565 = vpack.c.b16 %v2329, %v2328
    %v2566 = vpack.c.b16 %v2331, %v2330
    %v2567 = vpack.c.b16 %v2333, %v2332
    %v2568 = vpack.c.b16 %v2335, %v2334
    %v2569 = vpack.c.b16 %v2337, %v2336
    %v2570 = vpack.c.b16 %v2339, %v2338
    %v2571 = vpack.c.b16 %v2341, %v2340
    %v2572 = vpack.c.b16 %v2343, %v2342
    %v2573 = vpack.c.b16 %v2345, %v2344
    %v2574 = vpack.c.b16 %v2347, %v2346
    %v2575 = vpack.c.b16 %v2349, %v2348
    %v2576 = vpack.c.b16 %v2351, %v2350
    %v2577 = vpack.c.b16 %v2353, %v2352
    %v2578 = vpack.c.b16 %v2355, %v2354
    %v2579 = vpack.c.b16 %v2357, %v2356
    %v2580 = vpack.c.b16 %v2359, %v2358
    %v2581 = vpack.c.b16 %v2361, %v2360
    %v2582 = vpack.c.b16 %v2363, %v2362
    %v2583 = vpack.c.b16 %v2365, %v2364
    %v2584 = vpack.c.b16 %v2367, %v2366
    %v2585 = vpack.c.b16 %v2369, %v2368
    %v2586 = vpack.c.b16 %v2371, %v2370
    %v2587 = vpack.c.b16 %v2373, %v2372
    %v2588 = vpack.c.b16 %v2375, %v2374
    %v2589 = vpack.c.b16 %v2377, %v2376
    %v2590 = vpack.c.b16 %v2379, %v2378
    %v2591 = vpack.c.b16 %v2381, %v2380
    %v2592 = vpack.c.b16 %v2383, %v2382
    %v2593 = vpack.c.b16 %v2385, %v2384
    %v2594 = vpack.c.b16 %v2387, %v2386
    %v2595 = vpack.c.b16 %v2389, %v2388
    %v2596 = vpack.c.b16 %v2391, %v2390
    %v2597 = vpack.c.b16 %v2393, %v2392
    %v2598 = vpack.c.b16 %v2395, %v2394
    %v2599 = vpack.c.b16 %v2397, %v2396
    %v2600 = vpack.c.b16 %v2399, %v2398
    %v2601 = vpack.c.b16 %v2401, %v2400
    %v2602 = vpack.c.b16 %v2403, %v2402
    %v2603 = vpack.c.b16 %v2405, %v2404
    %v2604 = vpack.c.b16 %v2407, %v2406
    %v2605 = vpack.c.b16 %v2409, %v2408
    %v2606 = vpack.c.b16 %v2411, %v2410
    %v2607 = vpack.c.b16 %v2413, %v2412
    %v2608 = vpack.c.b16 %v2415, %v2414
    %v2609 = vpack.c.b16 %v2417, %v2416
    %v2610 = vpack.c.b16 %v2419, %v2418
    %v2611 = vpack.c.b16 %v2421, %v2420
    %v2612 = vpack.c.b16 %v2423, %v2422
    %v2613 = vpack.c.b16 %v2425, %v2424
    %v2614 = vpack.c.b16 %v2427, %v2426
    %v2615 = vpack.c.b16 %v2429, %v2428
    %v2616 = vpack.c.b16 %v2431, %v2430
    %v2617 = vpack.c.b16 %v2433, %v2432
    %v2618 = vpack.c.b16 %v2435, %v2434
    %v2619 = vpack.c.b16 %v2437, %v2436
    %v2620 = vpack.c.b16 %v2439, %v2438
    %v2621 = vpack.c.b16 %v2441, %v2440
    %v2622 = vpack.c.b16 %v2443, %v2442
    %v2623 = vpack.c.b16 %v2445, %v2444
    %v2624 = vpack.c.b16 %v2447, %v2446
    %v2625 = vpack.c.b16 %v2449, %v2448
    %v2626 = vpack.c.b16 %v2451, %v2450
    %v2627 = vpack.c.b16 %v2453, %v2452
    %v2628 = vpack.c.b16 %v2455, %v2454
    %v2629 = vpack.c.b16 %v2457, %v2456
    %v2630 = vpack.c.b16 %v2459, %v2458
    %v2631 = vpack.c.b16 %v2461, %v2460
    %v2632 = vpack.c.b16 %v2463, %v2462
    %v2633 = vpack.c.b16 %v2465, %v2464
    %v2634 = vpack.c.b16 %v2467, %v2466
    %v2635 = vpack.c.b16 %v2469, %v2468
    %v2636 = vpack.c.b16 %v2471, %v2470
    %v2637 = vpack.c.b16 %v2473, %v2472
    %v2638 = vpack.c.b16 %v2475, %v2474
    %v2639 = vpack.c.b16 %v2477, %v2476
    %v2640 = vpack.c.b16 %v2479, %v2478
    %v2641 = vpack.c.b16 %v2481, %v2480
    %v2642 = vpack.c.b16 %v2483, %v2482
    %v2643 = vpack.c.b16 %v2485, %v2484
    %v2644 = vpack.c.b16 %v2487, %v2486
    %v2645 = vpack.c.b16 %v2489, %v2488
    %v2646 = vpack.c.b16 %v2491, %v2490
    %v2647 = vpack.c.b16 %v2493, %v2492
    %v2648 = vpack.c.b16 %v2495, %v2494
    %v2649 = vpack.c.b16 %v2497, %v2496
    %v2650 = vpack.c.b16 %v2499, %v2498
    %v2651 = vpack.c.b16 %v2501, %v2500
    %v2652 = vpack.c.b16 %v2503, %v2502
    %v2653 = vpack.c.b16 %v2505, %v2504
    %v2654 = vpack.c.b16 %v2507, %v2506
    %v2655 = vpack.c.b16 %v2509, %v2508
    %v2656 = vpack.c.b16 %v2511, %v2510
    %v2657 = vpack.c.b16 %v2513, %v2512
    %v2658 = vpack.c.b16 %v2515, %v2514
    %v2659 = vpack.c.b16 %v2517, %v2516
    %v2660 = vpack.c.b16 %v2519, %v2518
    %v2661 = vpack.c.b16 %v2521, %v2520
    %v2662 = vpack.c.b16 %v2523, %v2522
    %v2663 = vpack.c.b16 %v2525, %v2524
    %v2664 = vpack.c.b16 %v2527, %v2526
    %v2665 = vpack.c.b16 %v2529, %v2528
    %v2666 = vpack.c.b16 %v2531, %v2530
    %v2667 = vpack.c.b16 %v2533, %v2532
    %v2668 = vpack.c.b16 %v2535, %v2534
    %v2669 = vpack.c.b16 %v2537, %v2536
    %v2670 = vpack.c.b16 %v2539, %v2538
    %v2671 = vpack.c.b16 %v2541, %v2540
    %v2672 = vpack.c.b16 %v2543, %v2542
    %v2673 = vpack.c.b16 %v2545, %v2544
    %v2675 = vsel %vm73, %v1693, 0
    %v2678 = vsel %vm73, %v2546, 0
    %v2681 = vsel %vm73, %v2547, 0
    %v2684 = vsel %vm73, %v2548, 0
    %v2687 = vsel %vm73, %v2549, 0
    %v2690 = vsel %vm73, %v2550, 0
    %v2693 = vsel %vm73, %v2551, 0
    %v2696 = vsel %vm73, %v2552, 0
    %v2699 = vsel %vm73, %v2553, 0
    %v2702 = vsel %vm73, %v2554, 0
    %v2705 = vsel %vm73, %v2555, 0
    %v2708 = vsel %vm73, %v2556, 0
    %v2711 = vsel %vm73, %v2557, 0
    %v2714 = vsel %vm73, %v2558, 0
    %v2717 = vsel %vm73, %v2559, 0
    %v2720 = vsel %vm73, %v2560, 0
    %v2723 = vsel %vm73, %v2561, 0
    %v2726 = vsel %vm73, %v2562, 0
    %v2729 = vsel %vm73, %v2563, 0
    %v2732 = vsel %vm73, %v2564, 0
    %v2735 = vsel %vm73, %v2565, 0
    %v2738 = vsel %vm73, %v2566, 0
    %v2741 = vsel %vm73, %v2567, 0
    %v2744 = vsel %vm73, %v2568, 0
    %v2747 = vsel %vm73, %v2569, 0
    %v2750 = vsel %vm73, %v2570, 0
    %v2753 = vsel %vm73, %v2571, 0
    %v2756 = vsel %vm73, %v2572, 0
    %v2759 = vsel %vm73, %v2573, 0
    %v2762 = vsel %vm73, %v2574, 0
    %v2765 = vsel %vm73, %v2575, 0
    %v2768 = vsel %vm73, %v2576, 0
    %v2771 = vsel %vm73, %v2577, 0
    %v2774 = vsel %vm73, %v2578, 0
    %v2777 = vsel %vm73, %v2579, 0
    %v2780 = vsel %vm73, %v2580, 0
    %v2783 = vsel %vm73, %v2581, 0
    %v2786 = vsel %vm73, %v2582, 0
    %v2789 = vsel %vm73, %v2583, 0
    %v2792 = vsel %vm73, %v2584, 0
    %v2795 = vsel %vm73, %v2585, 0
    %v2798 = vsel %vm73, %v2586, 0
    %v2801 = vsel %vm73, %v2587, 0
    %v2804 = vsel %vm73, %v2588, 0
    %v2807 = vsel %vm73, %v2589, 0
    %v2810 = vsel %vm73, %v2590, 0
    %v2813 = vsel %vm73, %v2591, 0
    %v2816 = vsel %vm73, %v2592, 0
    %v2819 = vsel %vm73, %v2593, 0
    %v2822 = vsel %vm73, %v2594, 0
    %v2825 = vsel %vm73, %v2595, 0
    %v2828 = vsel %vm73, %v2596, 0
    %v2831 = vsel %vm73, %v2597, 0
    %v2834 = vsel %vm73, %v2598, 0
    %v2837 = vsel %vm73, %v2599, 0
    %v2840 = vsel %vm73, %v2600, 0
    %v2843 = vsel %vm73, %v2601, 0
    %v2846 = vsel %vm73, %v2602, 0
    %v2849 = vsel %vm73, %v2603, 0
    %v2852 = vsel %vm73, %v2604, 0
    %v2855 = vsel %vm73, %v2605, 0
    %v2858 = vsel %vm73, %v2606, 0
    %v2861 = vsel %vm73, %v2607, 0
    %v2864 = vsel %vm73, %v2608, 0
    %v2867 = vsel %vm73, %v2609, 0
    %v2870 = vsel %vm73, %v2610, 0
    %v2873 = vsel %vm73, %v2611, 0
    %v2876 = vsel %vm73, %v2612, 0
    %v2879 = vsel %vm73, %v2613, 0
    %v2882 = vsel %vm73, %v2614, 0
    %v2885 = vsel %vm73, %v2615, 0
    %v2888 = vsel %vm73, %v2616, 0
    %v2891 = vsel %vm73, %v2617, 0
    %v2894 = vsel %vm73, %v2618, 0
    %v2897 = vsel %vm73, %v2619, 0
    %v2900 = vsel %vm73, %v2620, 0
    %v2903 = vsel %vm73, %v2621, 0
    %v2906 = vsel %vm73, %v2622, 0
    %v2909 = vsel %vm73, %v2623, 0
    %v2912 = vsel %vm73, %v2624, 0
    %v2915 = vsel %vm73, %v2625, 0
    %v2918 = vsel %vm73, %v2626, 0
    %v2921 = vsel %vm73, %v2627, 0
    %v2924 = vsel %vm73, %v2628, 0
    %v2927 = vsel %vm73, %v2629, 0
    %v2930 = vsel %vm73, %v2630, 0
    %v2933 = vsel %vm73, %v2631, 0
    %v2936 = vsel %vm73, %v2632, 0
    %v2939 = vsel %vm73, %v2633, 0
    %v2942 = vsel %vm73, %v2634, 0
    %v2945 = vsel %vm73, %v2635, 0
    %v2948 = vsel %vm73, %v2636, 0
    %v2951 = vsel %vm73, %v2637, 0
    %v2954 = vsel %vm73, %v2638, 0
    %v2957 = vsel %vm73, %v2639, 0
    %v2960 = vsel %vm73, %v2640, 0
    %v2963 = vsel %vm73, %v2641, 0
    %v2966 = vsel %vm73, %v2642, 0
    %v2969 = vsel %vm73, %v2643, 0
    %v2972 = vsel %vm73, %v2644, 0
    %v2975 = vsel %vm73, %v2645, 0
    %v2978 = vsel %vm73, %v2646, 0
    %v2981 = vsel %vm73, %v2647, 0
    %v2984 = vsel %vm73, %v2648, 0
    %v2987 = vsel %vm73, %v2649, 0
    %v2990 = vsel %vm73, %v2650, 0
    %v2993 = vsel %vm73, %v2651, 0
    %v2996 = vsel %vm73, %v2652, 0
    %v2999 = vsel %vm73, %v2653, 0
    %v3002 = vsel %vm73, %v2654, 0
    %v3005 = vsel %vm73, %v2655, 0
    %v3008 = vsel %vm73, %v2656, 0
    %v3011 = vsel %vm73, %v2657, 0
    %v3014 = vsel %vm73, %v2658, 0
    %v3017 = vsel %vm73, %v2659, 0
    %v3020 = vsel %vm73, %v2660, 0
    %v3023 = vsel %vm73, %v2661, 0
    %v3026 = vsel %vm73, %v2662, 0
    %v3029 = vsel %vm73, %v2663, 0
    %v3032 = vsel %vm73, %v2664, 0
    %v3035 = vsel %vm73, %v2665, 0
    %v3038 = vsel %vm73, %v2666, 0
    %v3041 = vsel %vm73, %v2667, 0
    %v3044 = vsel %vm73, %v2668, 0
    %v3047 = vsel %vm73, %v2669, 0
    %v3050 = vsel %vm73, %v2670, 0
    %v3053 = vsel %vm73, %v2671, 0
    %v3056 = vsel %vm73, %v2672, 0
    %v3059 = vsel %vm73, %v2673, 0
    %3061 = vmatprep.subr.bf16.mxu0 0
    %3062 = vmatpush1.bf16.xpose.msra.mxu0 %v2699
    %3063 = vmatprep.subr.bf16.mxu0 0
    %3064 = vmatpush1.bf16.xpose.msra.mxu0 %v2696
    %3065 = vmatprep.subr.bf16.mxu0 0
    %3066 = vmatpush1.bf16.xpose.msra.mxu0 %v2693
    %3067 = vmatprep.subr.bf16.mxu0 0
    %3068 = vmatpush1.bf16.xpose.msra.mxu0 %v2690
    %3069 = vmatprep.subr.bf16.mxu0 0
    %3070 = vmatpush1.bf16.xpose.msra.mxu0 %v2687
    %3071 = vmatprep.subr.bf16.mxu0 0
    %3072 = vmatpush1.bf16.xpose.msra.mxu0 %v2684
    %3073 = vmatprep.subr.bf16.mxu0 0
    %3074 = vmatpush1.bf16.xpose.msra.mxu0 %v2681
    %3075 = vmatprep.subr.bf16.mxu0 0
    %3076 = vmatpush1.bf16.xpose.msra.mxu0 %v2678
    %3077 = vmatprep.subr.bf16.mxu0 0
    %3078 = vmatpush2.bf16.xpose.msra.mxu0 %v2723
    %3079 = vmatprep.subr.bf16.mxu0 0
    %3080 = vmatpush2.bf16.xpose.msra.mxu0 %v2720
    %3081 = vmatprep.subr.bf16.mxu0 0
    %3082 = vmatpush2.bf16.xpose.msra.mxu0 %v2717
    %3083 = vmatprep.subr.bf16.mxu0 0
    %3084 = vmatpush2.bf16.xpose.msra.mxu0 %v2714
    %3085 = vmatprep.subr.bf16.mxu0 0
    %3086 = vmatpush2.bf16.xpose.msra.mxu0 %v2711
    %3087 = vmatprep.subr.bf16.mxu0 0
    %3088 = vmatpush2.bf16.xpose.msra.mxu0 %v2708
    %3089 = vmatprep.subr.bf16.mxu0 0
    %3090 = vmatpush2.bf16.xpose.msra.mxu0 %v2705
    %3091 = vmatprep.subr.bf16.mxu0 0
    %3092 = vmatpush2.bf16.xpose.msra.mxu0 %v2702
    %3093 = vmatprep.mubr.bf16.mxu0 0
    %3094 = vmatmul.mubr.bf16.gmra.mxu0 %v2675
    %v3095 = vpop.f32.mrf.mxu0
    %v3096 = vadd.f32 %v1957, %v3095
    %v3097 = vpop.f32.mrf.mxu0
    %v3098 = vadd.f32 %v1961, %v3097
    %v3099 = vpop.f32.mrf.mxu0
    %v3100 = vadd.f32 %v1957, %v3099
    %v3101 = vpop.f32.mrf.mxu0
    %v3102 = vadd.f32 %v1961, %v3101
    %3103 = vdwg.mxu0
    %3104 = vmatprep.subr.bf16.mxu0 0
    %3105 = vmatpush1.bf16.xpose.msra.mxu0 %v2747
    %3106 = vmatprep.subr.bf16.mxu0 0
    %3107 = vmatpush1.bf16.xpose.msra.mxu0 %v2744
    %3108 = vmatprep.subr.bf16.mxu0 0
    %3109 = vmatpush1.bf16.xpose.msra.mxu0 %v2741
    %3110 = vmatprep.subr.bf16.mxu0 0
    %3111 = vmatpush1.bf16.xpose.msra.mxu0 %v2738
    %3112 = vmatprep.subr.bf16.mxu0 0
    %3113 = vmatpush1.bf16.xpose.msra.mxu0 %v2735
    %3114 = vmatprep.subr.bf16.mxu0 0
    %3115 = vmatpush1.bf16.xpose.msra.mxu0 %v2732
    %3116 = vmatprep.subr.bf16.mxu0 0
    %3117 = vmatpush1.bf16.xpose.msra.mxu0 %v2729
    %3118 = vmatprep.subr.bf16.mxu0 0
    %3119 = vmatpush1.bf16.xpose.msra.mxu0 %v2726
    %3120 = vmatprep.subr.bf16.mxu0 0
    %3121 = vmatpush2.bf16.xpose.msra.mxu0 %v2771
    %3122 = vmatprep.subr.bf16.mxu0 0
    %3123 = vmatpush2.bf16.xpose.msra.mxu0 %v2768
    %3124 = vmatprep.subr.bf16.mxu0 0
    %3125 = vmatpush2.bf16.xpose.msra.mxu0 %v2765
    %3126 = vmatprep.subr.bf16.mxu0 0
    %3127 = vmatpush2.bf16.xpose.msra.mxu0 %v2762
    %3128 = vmatprep.subr.bf16.mxu0 0
    %3129 = vmatpush2.bf16.xpose.msra.mxu0 %v2759
    %3130 = vmatprep.subr.bf16.mxu0 0
    %3131 = vmatpush2.bf16.xpose.msra.mxu0 %v2756
    %3132 = vmatprep.subr.bf16.mxu0 0
    %3133 = vmatpush2.bf16.xpose.msra.mxu0 %v2753
    %3134 = vmatprep.subr.bf16.mxu0 0
    %3135 = vmatpush2.bf16.xpose.msra.mxu0 %v2750
    %3136 = vmatprep.mubr.bf16.mxu0 0
    %3137 = vmatmul.mubr.bf16.gmra.mxu0 %v2675
    %v3138 = vpop.f32.mrf.mxu0
    %v3139 = vadd.f32 %v1965, %v3138
    %v3140 = vpop.f32.mrf.mxu0
    %v3141 = vadd.f32 %v1969, %v3140
    %v3142 = vpop.f32.mrf.mxu0
    %v3143 = vadd.f32 %v1965, %v3142
    %v3144 = vpop.f32.mrf.mxu0
    %v3145 = vadd.f32 %v1969, %v3144
    %3146 = vdwg.mxu0
    %3147 = vmatprep.subr.bf16.mxu0 0
    %3148 = vmatpush1.bf16.xpose.msra.mxu0 %v2795
    %3149 = vmatprep.subr.bf16.mxu0 0
    %3150 = vmatpush1.bf16.xpose.msra.mxu0 %v2792
    %3151 = vmatprep.subr.bf16.mxu0 0
    %3152 = vmatpush1.bf16.xpose.msra.mxu0 %v2789
    %3153 = vmatprep.subr.bf16.mxu0 0
    %3154 = vmatpush1.bf16.xpose.msra.mxu0 %v2786
    %3155 = vmatprep.subr.bf16.mxu0 0
    %3156 = vmatpush1.bf16.xpose.msra.mxu0 %v2783
    %3157 = vmatprep.subr.bf16.mxu0 0
    %3158 = vmatpush1.bf16.xpose.msra.mxu0 %v2780
    %3159 = vmatprep.subr.bf16.mxu0 0
    %3160 = vmatpush1.bf16.xpose.msra.mxu0 %v2777
    %3161 = vmatprep.subr.bf16.mxu0 0
    %3162 = vmatpush1.bf16.xpose.msra.mxu0 %v2774
    %3163 = vmatprep.subr.bf16.mxu0 0
    %3164 = vmatpush2.bf16.xpose.msra.mxu0 %v2819
    %3165 = vmatprep.subr.bf16.mxu0 0
    %3166 = vmatpush2.bf16.xpose.msra.mxu0 %v2816
    %3167 = vmatprep.subr.bf16.mxu0 0
    %3168 = vmatpush2.bf16.xpose.msra.mxu0 %v2813
    %3169 = vmatprep.subr.bf16.mxu0 0
    %3170 = vmatpush2.bf16.xpose.msra.mxu0 %v2810
    %3171 = vmatprep.subr.bf16.mxu0 0
    %3172 = vmatpush2.bf16.xpose.msra.mxu0 %v2807
    %3173 = vmatprep.subr.bf16.mxu0 0
    %3174 = vmatpush2.bf16.xpose.msra.mxu0 %v2804
    %3175 = vmatprep.subr.bf16.mxu0 0
    %3176 = vmatpush2.bf16.xpose.msra.mxu0 %v2801
    %3177 = vmatprep.subr.bf16.mxu0 0
    %3178 = vmatpush2.bf16.xpose.msra.mxu0 %v2798
    %3179 = vmatprep.mubr.bf16.mxu0 0
    %3180 = vmatmul.mubr.bf16.gmra.mxu0 %v2675
    %v3181 = vpop.f32.mrf.mxu0
    %v3182 = vadd.f32 %v1973, %v3181
    %v3183 = vpop.f32.mrf.mxu0
    %v3184 = vadd.f32 %v1977, %v3183
    %v3185 = vpop.f32.mrf.mxu0
    %v3186 = vadd.f32 %v1973, %v3185
    %v3187 = vpop.f32.mrf.mxu0
    %v3188 = vadd.f32 %v1977, %v3187
    %3189 = vdwg.mxu0
    %3190 = vmatprep.subr.bf16.mxu0 0
    %3191 = vmatpush1.bf16.xpose.msra.mxu0 %v2843
    %3192 = vmatprep.subr.bf16.mxu0 0
    %3193 = vmatpush1.bf16.xpose.msra.mxu0 %v2840
    %3194 = vmatprep.subr.bf16.mxu0 0
    %3195 = vmatpush1.bf16.xpose.msra.mxu0 %v2837
    %3196 = vmatprep.subr.bf16.mxu0 0
    %3197 = vmatpush1.bf16.xpose.msra.mxu0 %v2834
    %3198 = vmatprep.subr.bf16.mxu0 0
    %3199 = vmatpush1.bf16.xpose.msra.mxu0 %v2831
    %3200 = vmatprep.subr.bf16.mxu0 0
    %3201 = vmatpush1.bf16.xpose.msra.mxu0 %v2828
    %3202 = vmatprep.subr.bf16.mxu0 0
    %3203 = vmatpush1.bf16.xpose.msra.mxu0 %v2825
    %3204 = vmatprep.subr.bf16.mxu0 0
    %3205 = vmatpush1.bf16.xpose.msra.mxu0 %v2822
    %3206 = vmatprep.subr.bf16.mxu0 0
    %3207 = vmatpush2.bf16.xpose.msra.mxu0 %v2867
    %3208 = vmatprep.subr.bf16.mxu0 0
    %3209 = vmatpush2.bf16.xpose.msra.mxu0 %v2864
    %3210 = vmatprep.subr.bf16.mxu0 0
    %3211 = vmatpush2.bf16.xpose.msra.mxu0 %v2861
    %3212 = vmatprep.subr.bf16.mxu0 0
    %3213 = vmatpush2.bf16.xpose.msra.mxu0 %v2858
    %3214 = vmatprep.subr.bf16.mxu0 0
    %3215 = vmatpush2.bf16.xpose.msra.mxu0 %v2855
    %3216 = vmatprep.subr.bf16.mxu0 0
    %3217 = vmatpush2.bf16.xpose.msra.mxu0 %v2852
    %3218 = vmatprep.subr.bf16.mxu0 0
    %3219 = vmatpush2.bf16.xpose.msra.mxu0 %v2849
    %3220 = vmatprep.subr.bf16.mxu0 0
    %3221 = vmatpush2.bf16.xpose.msra.mxu0 %v2846
    %3222 = vmatprep.mubr.bf16.mxu0 0
    %3223 = vmatmul.mubr.bf16.gmra.mxu0 %v2675
    %v3224 = vpop.f32.mrf.mxu0
    %v3225 = vadd.f32 %v1981, %v3224
    %v3226 = vpop.f32.mrf.mxu0
    %v3227 = vadd.f32 %v1985, %v3226
    %v3228 = vpop.f32.mrf.mxu0
    %v3229 = vadd.f32 %v1981, %v3228
    %v3230 = vpop.f32.mrf.mxu0
    %v3231 = vadd.f32 %v1985, %v3230
    %3232 = vdwg.mxu0
    %3233 = vmatprep.subr.bf16.mxu0 0
    %3234 = vmatpush1.bf16.xpose.msra.mxu0 %v2891
    %3235 = vmatprep.subr.bf16.mxu0 0
    %3236 = vmatpush1.bf16.xpose.msra.mxu0 %v2888
    %3237 = vmatprep.subr.bf16.mxu0 0
    %3238 = vmatpush1.bf16.xpose.msra.mxu0 %v2885
    %3239 = vmatprep.subr.bf16.mxu0 0
    %3240 = vmatpush1.bf16.xpose.msra.mxu0 %v2882
    %3241 = vmatprep.subr.bf16.mxu0 0
    %3242 = vmatpush1.bf16.xpose.msra.mxu0 %v2879
    %3243 = vmatprep.subr.bf16.mxu0 0
    %3244 = vmatpush1.bf16.xpose.msra.mxu0 %v2876
    %3245 = vmatprep.subr.bf16.mxu0 0
    %3246 = vmatpush1.bf16.xpose.msra.mxu0 %v2873
    %3247 = vmatprep.subr.bf16.mxu0 0
    %3248 = vmatpush1.bf16.xpose.msra.mxu0 %v2870
    %3249 = vmatprep.subr.bf16.mxu0 0
    %3250 = vmatpush2.bf16.xpose.msra.mxu0 %v2915
    %3251 = vmatprep.subr.bf16.mxu0 0
    %3252 = vmatpush2.bf16.xpose.msra.mxu0 %v2912
    %3253 = vmatprep.subr.bf16.mxu0 0
    %3254 = vmatpush2.bf16.xpose.msra.mxu0 %v2909
    %3255 = vmatprep.subr.bf16.mxu0 0
    %3256 = vmatpush2.bf16.xpose.msra.mxu0 %v2906
    %3257 = vmatprep.subr.bf16.mxu0 0
    %3258 = vmatpush2.bf16.xpose.msra.mxu0 %v2903
    %3259 = vmatprep.subr.bf16.mxu0 0
    %3260 = vmatpush2.bf16.xpose.msra.mxu0 %v2900
    %3261 = vmatprep.subr.bf16.mxu0 0
    %3262 = vmatpush2.bf16.xpose.msra.mxu0 %v2897
    %3263 = vmatprep.subr.bf16.mxu0 0
    %3264 = vmatpush2.bf16.xpose.msra.mxu0 %v2894
    %3265 = vmatprep.mubr.bf16.mxu0 0
    %3266 = vmatmul.mubr.bf16.gmra.mxu0 %v2675
    %v3267 = vpop.f32.mrf.mxu0
    %v3268 = vadd.f32 %v1989, %v3267
    %v3269 = vpop.f32.mrf.mxu0
    %v3270 = vadd.f32 %v1993, %v3269
    %v3271 = vpop.f32.mrf.mxu0
    %v3272 = vadd.f32 %v1989, %v3271
    %v3273 = vpop.f32.mrf.mxu0
    %v3274 = vadd.f32 %v1993, %v3273
    %3275 = vdwg.mxu0
    %3276 = vmatprep.subr.bf16.mxu0 0
    %3277 = vmatpush1.bf16.xpose.msra.mxu0 %v2939
    %3278 = vmatprep.subr.bf16.mxu0 0
    %3279 = vmatpush1.bf16.xpose.msra.mxu0 %v2936
    %3280 = vmatprep.subr.bf16.mxu0 0
    %3281 = vmatpush1.bf16.xpose.msra.mxu0 %v2933
    %3282 = vmatprep.subr.bf16.mxu0 0
    %3283 = vmatpush1.bf16.xpose.msra.mxu0 %v2930
    %3284 = vmatprep.subr.bf16.mxu0 0
    %3285 = vmatpush1.bf16.xpose.msra.mxu0 %v2927
    %3286 = vmatprep.subr.bf16.mxu0 0
    %3287 = vmatpush1.bf16.xpose.msra.mxu0 %v2924
    %3288 = vmatprep.subr.bf16.mxu0 0
    %3289 = vmatpush1.bf16.xpose.msra.mxu0 %v2921
    %3290 = vmatprep.subr.bf16.mxu0 0
    %3291 = vmatpush1.bf16.xpose.msra.mxu0 %v2918
    %3292 = vmatprep.subr.bf16.mxu0 0
    %3293 = vmatpush2.bf16.xpose.msra.mxu0 %v2963
    %3294 = vmatprep.subr.bf16.mxu0 0
    %3295 = vmatpush2.bf16.xpose.msra.mxu0 %v2960
    %3296 = vmatprep.subr.bf16.mxu0 0
    %3297 = vmatpush2.bf16.xpose.msra.mxu0 %v2957
    %3298 = vmatprep.subr.bf16.mxu0 0
    %3299 = vmatpush2.bf16.xpose.msra.mxu0 %v2954
    %3300 = vmatprep.subr.bf16.mxu0 0
    %3301 = vmatpush2.bf16.xpose.msra.mxu0 %v2951
    %3302 = vmatprep.subr.bf16.mxu0 0
    %3303 = vmatpush2.bf16.xpose.msra.mxu0 %v2948
    %3304 = vmatprep.subr.bf16.mxu0 0
    %3305 = vmatpush2.bf16.xpose.msra.mxu0 %v2945
    %3306 = vmatprep.subr.bf16.mxu0 0
    %3307 = vmatpush2.bf16.xpose.msra.mxu0 %v2942
    %3308 = vmatprep.mubr.bf16.mxu0 0
    %3309 = vmatmul.mubr.bf16.gmra.mxu0 %v2675
    %v3310 = vpop.f32.mrf.mxu0
    %v3311 = vadd.f32 %v1997, %v3310
    %v3312 = vpop.f32.mrf.mxu0
    %v3313 = vadd.f32 %v2001, %v3312
    %v3314 = vpop.f32.mrf.mxu0
    %v3315 = vadd.f32 %v1997, %v3314
    %v3316 = vpop.f32.mrf.mxu0
    %v3317 = vadd.f32 %v2001, %v3316
    %3318 = vdwg.mxu0
    %3319 = vmatprep.subr.bf16.mxu0 0
    %3320 = vmatpush1.bf16.xpose.msra.mxu0 %v2987
    %3321 = vmatprep.subr.bf16.mxu0 0
    %3322 = vmatpush1.bf16.xpose.msra.mxu0 %v2984
    %3323 = vmatprep.subr.bf16.mxu0 0
    %3324 = vmatpush1.bf16.xpose.msra.mxu0 %v2981
    %3325 = vmatprep.subr.bf16.mxu0 0
    %3326 = vmatpush1.bf16.xpose.msra.mxu0 %v2978
    %3327 = vmatprep.subr.bf16.mxu0 0
    %3328 = vmatpush1.bf16.xpose.msra.mxu0 %v2975
    %3329 = vmatprep.subr.bf16.mxu0 0
    %3330 = vmatpush1.bf16.xpose.msra.mxu0 %v2972
    %3331 = vmatprep.subr.bf16.mxu0 0
    %3332 = vmatpush1.bf16.xpose.msra.mxu0 %v2969
    %3333 = vmatprep.subr.bf16.mxu0 0
    %3334 = vmatpush1.bf16.xpose.msra.mxu0 %v2966
    %3335 = vmatprep.subr.bf16.mxu0 0
    %3336 = vmatpush2.bf16.xpose.msra.mxu0 %v3011
    %3337 = vmatprep.subr.bf16.mxu0 0
    %3338 = vmatpush2.bf16.xpose.msra.mxu0 %v3008
    %3339 = vmatprep.subr.bf16.mxu0 0
    %3340 = vmatpush2.bf16.xpose.msra.mxu0 %v3005
    %3341 = vmatprep.subr.bf16.mxu0 0
    %3342 = vmatpush2.bf16.xpose.msra.mxu0 %v3002
    %3343 = vmatprep.subr.bf16.mxu0 0
    %3344 = vmatpush2.bf16.xpose.msra.mxu0 %v2999
    %3345 = vmatprep.subr.bf16.mxu0 0
    %3346 = vmatpush2.bf16.xpose.msra.mxu0 %v2996
    %3347 = vmatprep.subr.bf16.mxu0 0
    %3348 = vmatpush2.bf16.xpose.msra.mxu0 %v2993
    %3349 = vmatprep.subr.bf16.mxu0 0
    %3350 = vmatpush2.bf16.xpose.msra.mxu0 %v2990
    %3351 = vmatprep.mubr.bf16.mxu0 0
    %3352 = vmatmul.mubr.bf16.gmra.mxu0 %v2675
    %v3353 = vpop.f32.mrf.mxu0
    %v3354 = vadd.f32 %v2005, %v3353
    %v3355 = vpop.f32.mrf.mxu0
    %v3356 = vadd.f32 %v2009, %v3355
    %v3357 = vpop.f32.mrf.mxu0
    %v3358 = vadd.f32 %v2005, %v3357
    %v3359 = vpop.f32.mrf.mxu0
    %v3360 = vadd.f32 %v2009, %v3359
    %3361 = vdwg.mxu0
    %3362 = vmatprep.subr.bf16.mxu0 0
    %3363 = vmatpush1.bf16.xpose.msra.mxu0 %v3035
    %3364 = vmatprep.subr.bf16.mxu0 0
    %3365 = vmatpush1.bf16.xpose.msra.mxu0 %v3032
    %3366 = vmatprep.subr.bf16.mxu0 0
    %3367 = vmatpush1.bf16.xpose.msra.mxu0 %v3029
    %3368 = vmatprep.subr.bf16.mxu0 0
    %3369 = vmatpush1.bf16.xpose.msra.mxu0 %v3026
    %3370 = vmatprep.subr.bf16.mxu0 0
    %3371 = vmatpush1.bf16.xpose.msra.mxu0 %v3023
    %3372 = vmatprep.subr.bf16.mxu0 0
    %3373 = vmatpush1.bf16.xpose.msra.mxu0 %v3020
    %3374 = vmatprep.subr.bf16.mxu0 0
    %3375 = vmatpush1.bf16.xpose.msra.mxu0 %v3017
    %3376 = vmatprep.subr.bf16.mxu0 0
    %3377 = vmatpush1.bf16.xpose.msra.mxu0 %v3014
    %3378 = vmatprep.subr.bf16.mxu0 0
    %3379 = vmatpush2.bf16.xpose.msra.mxu0 %v3059
    %3380 = vmatprep.subr.bf16.mxu0 0
    %3381 = vmatpush2.bf16.xpose.msra.mxu0 %v3056
    %3382 = vmatprep.subr.bf16.mxu0 0
    %3383 = vmatpush2.bf16.xpose.msra.mxu0 %v3053
    %3384 = vmatprep.subr.bf16.mxu0 0
    %3385 = vmatpush2.bf16.xpose.msra.mxu0 %v3050
    %3386 = vmatprep.subr.bf16.mxu0 0
    %3387 = vmatpush2.bf16.xpose.msra.mxu0 %v3047
    %3388 = vmatprep.subr.bf16.mxu0 0
    %3389 = vmatpush2.bf16.xpose.msra.mxu0 %v3044
    %3390 = vmatprep.subr.bf16.mxu0 0
    %3391 = vmatpush2.bf16.xpose.msra.mxu0 %v3041
    %3392 = vmatprep.subr.bf16.mxu0 0
    %3393 = vmatpush2.bf16.xpose.msra.mxu0 %v3038
    %3394 = vmatprep.mubr.bf16.mxu0 0
    %3395 = vmatmul.mubr.bf16.gmra.mxu0 %v2675
    %v3396 = vpop.f32.mrf.mxu0
    %v3397 = vadd.f32 %v2013, %v3396
    %v3398 = vpop.f32.mrf.mxu0
    %v3399 = vadd.f32 %v2017, %v3398
    %v3400 = vpop.f32.mrf.mxu0
    %v3401 = vadd.f32 %v2013, %v3400
    %v3402 = vpop.f32.mrf.mxu0
    %v3403 = vadd.f32 %v2017, %v3402
    %3404 = vdwg.mxu0
    %v3405 = vmax.f32 %v3096, 0.0
    %v3406 = vmax.f32 %v3098, 0.0
    %v3407 = vmax.f32 %v3139, 0.0
    %v3408 = vmax.f32 %v3141, 0.0
    %v3409 = vmax.f32 %v3182, 0.0
    %v3410 = vmax.f32 %v3184, 0.0
    %v3411 = vmax.f32 %v3225, 0.0
    %v3412 = vmax.f32 %v3227, 0.0
    %v3413 = vmax.f32 %v3268, 0.0
    %v3414 = vmax.f32 %v3270, 0.0
    %v3415 = vmax.f32 %v3311, 0.0
    %v3416 = vmax.f32 %v3313, 0.0
    %v3417 = vmax.f32 %v3354, 0.0
    %v3418 = vmax.f32 %v3356, 0.0
    %v3419 = vmax.f32 %v3397, 0.0
    %v3420 = vmax.f32 %v3399, 0.0
    %v3421 = vmax.f32 %v3100, 0.0
    %v3422 = vmax.f32 %v3102, 0.0
    %v3423 = vmax.f32 %v3143, 0.0
    %v3424 = vmax.f32 %v3145, 0.0
    %v3425 = vmax.f32 %v3186, 0.0
    %v3426 = vmax.f32 %v3188, 0.0
    %v3427 = vmax.f32 %v3229, 0.0
    %v3428 = vmax.f32 %v3231, 0.0
    %v3429 = vmax.f32 %v3272, 0.0
    %v3430 = vmax.f32 %v3274, 0.0
    %v3431 = vmax.f32 %v3315, 0.0
    %v3432 = vmax.f32 %v3317, 0.0
    %v3433 = vmax.f32 %v3358, 0.0
    %v3434 = vmax.f32 %v3360, 0.0
    %v3435 = vmax.f32 %v3401, 0.0
    %v3436 = vmax.f32 %v3403, 0.0
    %v3437 = vpack.c.bf16 %v3421, %v3405
    %v3438 = vpack.c.bf16 %v3422, %v3406
    %v3439 = vpack.c.bf16 %v3423, %v3407
    %v3440 = vpack.c.bf16 %v3424, %v3408
    %v3441 = vpack.c.bf16 %v3425, %v3409
    %v3442 = vpack.c.bf16 %v3426, %v3410
    %v3443 = vpack.c.bf16 %v3427, %v3411
    %v3444 = vpack.c.bf16 %v3428, %v3412
    %v3445 = vpack.c.bf16 %v3429, %v3413
    %v3446 = vpack.c.bf16 %v3430, %v3414
    %v3447 = vpack.c.bf16 %v3431, %v3415
    %v3448 = vpack.c.bf16 %v3432, %v3416
    %v3449 = vpack.c.bf16 %v3433, %v3417
    %v3450 = vpack.c.bf16 %v3434, %v3418
    %v3451 = vpack.c.bf16 %v3435, %v3419
    %v3452 = vpack.c.bf16 %v3436, %v3420
    %v3453 = vld [vmem:[%s9] sm:$0xff]
    %v3454 = vld [vmem:[%s9 + $0x8] sm:$0xff]
    %v3455 = vld [vmem:[%s9 + $0x10] sm:$0xff]
    %v3456 = vld [vmem:[%s9 + $0x18] sm:$0xff]
    %v3457 = vld [vmem:[%s9 + $0x20] sm:$0xff]
    %v3458 = vld [vmem:[%s9 + $0x28] sm:$0xff]
    %v3459 = vld [vmem:[%s9 + $0x30] sm:$0xff]
    %v3460 = vld [vmem:[%s9 + $0x38] sm:$0xff]
    %v3461 = vld [vmem:[%s9 + $0x40] sm:$0xff]
    %v3462 = vld [vmem:[%s9 + $0x48] sm:$0xff]
    %v3463 = vld [vmem:[%s9 + $0x50] sm:$0xff]
    %v3464 = vld [vmem:[%s9 + $0x58] sm:$0xff]
    %v3465 = vld [vmem:[%s9 + $0x60] sm:$0xff]
    %v3466 = vld [vmem:[%s9 + $0x68] sm:$0xff]
    %v3467 = vld [vmem:[%s9 + $0x70] sm:$0xff]
    %v3468 = vld [vmem:[%s9 + $0x78] sm:$0xff]
    %v3469 = vld [vmem:[%s9 + $0x80] sm:$0xff]
    %v3470 = vld [vmem:[%s9 + $0x88] sm:$0xff]
    %v3471 = vld [vmem:[%s9 + $0x90] sm:$0xff]
    %v3472 = vld [vmem:[%s9 + $0x98] sm:$0xff]
    %v3473 = vld [vmem:[%s9 + $0xa0] sm:$0xff]
    %v3474 = vld [vmem:[%s9 + $0xa8] sm:$0xff]
    %v3475 = vld [vmem:[%s9 + $0xb0] sm:$0xff]
    %v3476 = vld [vmem:[%s9 + $0xb8] sm:$0xff]
    %v3477 = vld [vmem:[%s9 + $0xc0] sm:$0xff]
    %v3478 = vld [vmem:[%s9 + $0xc8] sm:$0xff]
    %v3479 = vld [vmem:[%s9 + $0xd0] sm:$0xff]
    %v3480 = vld [vmem:[%s9 + $0xd8] sm:$0xff]
    %v3481 = vld [vmem:[%s9 + $0xe0] sm:$0xff]
    %v3482 = vld [vmem:[%s9 + $0xe8] sm:$0xff]
    %v3483 = vld [vmem:[%s9 + $0xf0] sm:$0xff]
    %v3484 = vld [vmem:[%s9 + $0xf8] sm:$0xff]
    %v3485 = vld [vmem:[%s10] sm:$0x1]
    %v3487 = vlaneseq
    %v3488 = vshrl.u32 %v3487, 7
    %v3489 = vsub.s32 0, %v3488
    %v3490 = vrot.slane %v3485, %v3489
    %v3524 = vunpack.c.l.b16 %v3453
    %v3525 = vunpack.c.h.b16 %v3453
    %v3526 = vunpack.c.l.b16 %v3454
    %v3527 = vunpack.c.h.b16 %v3454
    %v3528 = vunpack.c.l.b16 %v3455
    %v3529 = vunpack.c.h.b16 %v3455
    %v3530 = vunpack.c.l.b16 %v3456
    %v3531 = vunpack.c.h.b16 %v3456
    %v3532 = vunpack.c.l.b16 %v3457
    %v3533 = vunpack.c.h.b16 %v3457
    %v3534 = vunpack.c.l.b16 %v3458
    %v3535 = vunpack.c.h.b16 %v3458
    %v3536 = vunpack.c.l.b16 %v3459
    %v3537 = vunpack.c.h.b16 %v3459
    %v3538 = vunpack.c.l.b16 %v3460
    %v3539 = vunpack.c.h.b16 %v3460
    %v3540 = vunpack.c.l.b16 %v3461
    %v3541 = vunpack.c.h.b16 %v3461
    %v3542 = vunpack.c.l.b16 %v3462
    %v3543 = vunpack.c.h.b16 %v3462
    %v3544 = vunpack.c.l.b16 %v3463
    %v3545 = vunpack.c.h.b16 %v3463
    %v3546 = vunpack.c.l.b16 %v3464
    %v3547 = vunpack.c.h.b16 %v3464
    %v3548 = vunpack.c.l.b16 %v3465
    %v3549 = vunpack.c.h.b16 %v3465
    %v3550 = vunpack.c.l.b16 %v3466
    %v3551 = vunpack.c.h.b16 %v3466
    %v3552 = vunpack.c.l.b16 %v3467
    %v3553 = vunpack.c.h.b16 %v3467
    %v3554 = vunpack.c.l.b16 %v3468
    %v3555 = vunpack.c.h.b16 %v3468
    %v3556 = vunpack.c.l.b16 %v3469
    %v3557 = vunpack.c.h.b16 %v3469
    %v3558 = vunpack.c.l.b16 %v3470
    %v3559 = vunpack.c.h.b16 %v3470
    %v3560 = vunpack.c.l.b16 %v3471
    %v3561 = vunpack.c.h.b16 %v3471
    %v3562 = vunpack.c.l.b16 %v3472
    %v3563 = vunpack.c.h.b16 %v3472
    %v3564 = vunpack.c.l.b16 %v3473
    %v3565 = vunpack.c.h.b16 %v3473
    %v3566 = vunpack.c.l.b16 %v3474
    %v3567 = vunpack.c.h.b16 %v3474
    %v3568 = vunpack.c.l.b16 %v3475
    %v3569 = vunpack.c.h.b16 %v3475
    %v3570 = vunpack.c.l.b16 %v3476
    %v3571 = vunpack.c.h.b16 %v3476
    %v3572 = vunpack.c.l.b16 %v3477
    %v3573 = vunpack.c.h.b16 %v3477
    %v3574 = vunpack.c.l.b16 %v3478
    %v3575 = vunpack.c.h.b16 %v3478
    %v3576 = vunpack.c.l.b16 %v3479
    %v3577 = vunpack.c.h.b16 %v3479
    %v3578 = vunpack.c.l.b16 %v3480
    %v3579 = vunpack.c.h.b16 %v3480
    %v3580 = vunpack.c.l.b16 %v3481
    %v3581 = vunpack.c.h.b16 %v3481
    %v3582 = vunpack.c.l.b16 %v3482
    %v3583 = vunpack.c.h.b16 %v3482
    %v3584 = vunpack.c.l.b16 %v3483
    %v3585 = vunpack.c.h.b16 %v3483
    %v3586 = vunpack.c.l.b16 %v3484
    %v3587 = vunpack.c.h.b16 %v3484
    %v3588 = vpack.c.b16 %v3540, %v3524
    %v3589 = vpack.c.b16 %v3541, %v3525
    %v3590 = vpack.c.b16 %v3542, %v3526
    %v3591 = vpack.c.b16 %v3543, %v3527
    %v3592 = vpack.c.b16 %v3544, %v3528
    %v3593 = vpack.c.b16 %v3545, %v3529
    %v3594 = vpack.c.b16 %v3546, %v3530
    %v3595 = vpack.c.b16 %v3547, %v3531
    %v3596 = vpack.c.b16 %v3548, %v3532
    %v3597 = vpack.c.b16 %v3549, %v3533
    %v3598 = vpack.c.b16 %v3550, %v3534
    %v3599 = vpack.c.b16 %v3551, %v3535
    %v3600 = vpack.c.b16 %v3552, %v3536
    %v3601 = vpack.c.b16 %v3553, %v3537
    %v3602 = vpack.c.b16 %v3554, %v3538
    %v3603 = vpack.c.b16 %v3555, %v3539
    %v3604 = vpack.c.b16 %v3572, %v3556
    %v3605 = vpack.c.b16 %v3573, %v3557
    %v3606 = vpack.c.b16 %v3574, %v3558
    %v3607 = vpack.c.b16 %v3575, %v3559
    %v3608 = vpack.c.b16 %v3576, %v3560
    %v3609 = vpack.c.b16 %v3577, %v3561
    %v3610 = vpack.c.b16 %v3578, %v3562
    %v3611 = vpack.c.b16 %v3579, %v3563
    %v3612 = vpack.c.b16 %v3580, %v3564
    %v3613 = vpack.c.b16 %v3581, %v3565
    %v3614 = vpack.c.b16 %v3582, %v3566
    %v3615 = vpack.c.b16 %v3583, %v3567
    %v3616 = vpack.c.b16 %v3584, %v3568
    %v3617 = vpack.c.b16 %v3585, %v3569
    %v3618 = vpack.c.b16 %v3586, %v3570
    %v3619 = vpack.c.b16 %v3587, %v3571
    %3652 = vmatprep.subr.bf16.mxu0 0
    %3653 = vmatpush1.bf16.xpose.msra.mxu0 0
    %3654 = vmatprep.subr.bf16.mxu0 0
    %3655 = vmatpush1.bf16.xpose.msra.mxu0 0
    %3656 = vmatprep.subr.bf16.mxu0 0
    %3657 = vmatpush1.bf16.xpose.msra.mxu0 0
    %3658 = vmatprep.subr.bf16.mxu0 0
    %3659 = vmatpush1.bf16.xpose.msra.mxu0 0
    %3660 = vmatprep.subr.bf16.mxu0 0
    %3661 = vmatpush1.bf16.xpose.msra.mxu0 0
    %3662 = vmatprep.subr.bf16.mxu0 0
    %3663 = vmatpush1.bf16.xpose.msra.mxu0 0
    %3664 = vmatprep.subr.bf16.mxu0 %v3605
    %3665 = vmatpush1.bf16.xpose.msra.mxu0 %v3604
    %3666 = vmatprep.subr.bf16.mxu0 %v3589
    %3667 = vmatpush1.bf16.xpose.msra.mxu0 %v3588
    %3668 = vmatprep.subr.bf16.mxu0 0
    %3669 = vmatpush2.bf16.xpose.msra.mxu0 0
    %3670 = vmatprep.subr.bf16.mxu0 0
    %3671 = vmatpush2.bf16.xpose.msra.mxu0 0
    %3672 = vmatprep.subr.bf16.mxu0 0
    %3673 = vmatpush2.bf16.xpose.msra.mxu0 0
    %3674 = vmatprep.subr.bf16.mxu0 0
    %3675 = vmatpush2.bf16.xpose.msra.mxu0 0
    %3676 = vmatprep.subr.bf16.mxu0 0
    %3677 = vmatpush2.bf16.xpose.msra.mxu0 0
    %3678 = vmatprep.subr.bf16.mxu0 0
    %3679 = vmatpush2.bf16.xpose.msra.mxu0 0
    %3680 = vmatprep.subr.bf16.mxu0 0
    %3681 = vmatpush2.bf16.xpose.msra.mxu0 0
    %3682 = vmatprep.subr.bf16.mxu0 0
    %3683 = vmatpush2.bf16.xpose.msra.mxu0 0
    %3684 = vmatprep.mubr.bf16.mxu0 %v3438
    %3685 = vmatmul.mubr.bf16.gmra.mxu0 %v3437
    %v3686 = vpop.f32.mrf.mxu0
    %v3687 = vadd.f32 %v3490, %v3686
    %v3688 = vpop.f32.mrf.mxu0
    %v3689 = vpop.f32.mrf.mxu0
    %v3690 = vadd.f32 %v3490, %v3689
    %v3691 = vpop.f32.mrf.mxu0
    %3692 = vdwg.mxu0
    %3693 = vmatprep.subr.bf16.mxu0 0
    %3694 = vmatpush1.bf16.xpose.msra.mxu0 0
    %3695 = vmatprep.subr.bf16.mxu0 0
    %3696 = vmatpush1.bf16.xpose.msra.mxu0 0
    %3697 = vmatprep.subr.bf16.mxu0 0
    %3698 = vmatpush1.bf16.xpose.msra.mxu0 0
    %3699 = vmatprep.subr.bf16.mxu0 0
    %3700 = vmatpush1.bf16.xpose.msra.mxu0 0
    %3701 = vmatprep.subr.bf16.mxu0 0
    %3702 = vmatpush1.bf16.xpose.msra.mxu0 0
    %3703 = vmatprep.subr.bf16.mxu0 0
    %3704 = vmatpush1.bf16.xpose.msra.mxu0 0
    %3705 = vmatprep.subr.bf16.mxu0 %v3607
    %3706 = vmatpush1.bf16.xpose.msra.mxu0 %v3606
    %3707 = vmatprep.subr.bf16.mxu0 %v3591
    %3708 = vmatpush1.bf16.xpose.msra.mxu0 %v3590
    %3709 = vmatprep.subr.bf16.mxu0 0
    %3710 = vmatpush2.bf16.xpose.msra.mxu0 0
    %3711 = vmatprep.subr.bf16.mxu0 0
    %3712 = vmatpush2.bf16.xpose.msra.mxu0 0
    %3713 = vmatprep.subr.bf16.mxu0 0
    %3714 = vmatpush2.bf16.xpose.msra.mxu0 0
    %3715 = vmatprep.subr.bf16.mxu0 0
    %3716 = vmatpush2.bf16.xpose.msra.mxu0 0
    %3717 = vmatprep.subr.bf16.mxu0 0
    %3718 = vmatpush2.bf16.xpose.msra.mxu0 0
    %3719 = vmatprep.subr.bf16.mxu0 0
    %3720 = vmatpush2.bf16.xpose.msra.mxu0 0
    %3721 = vmatprep.subr.bf16.mxu0 0
    %3722 = vmatpush2.bf16.xpose.msra.mxu0 0
    %3723 = vmatprep.subr.bf16.mxu0 0
    %3724 = vmatpush2.bf16.xpose.msra.mxu0 0
    %3725 = vmatprep.mubr.bf16.mxu0 %v3440
    %3726 = vmatmul.mubr.bf16.gmra.mxu0 %v3439
    %v3727 = vpop.f32.mrf.mxu0
    %v3728 = vadd.f32 %v3687, %v3727
    %v3729 = vpop.f32.mrf.mxu0
    %v3730 = vpop.f32.mrf.mxu0
    %v3731 = vadd.f32 %v3690, %v3730
    %v3732 = vpop.f32.mrf.mxu0
    %3733 = vdwg.mxu0
    %3734 = vmatprep.subr.bf16.mxu0 0
    %3735 = vmatpush1.bf16.xpose.msra.mxu0 0
    %3736 = vmatprep.subr.bf16.mxu0 0
    %3737 = vmatpush1.bf16.xpose.msra.mxu0 0
    %3738 = vmatprep.subr.bf16.mxu0 0
    %3739 = vmatpush1.bf16.xpose.msra.mxu0 0
    %3740 = vmatprep.subr.bf16.mxu0 0
    %3741 = vmatpush1.bf16.xpose.msra.mxu0 0
    %3742 = vmatprep.subr.bf16.mxu0 0
    %3743 = vmatpush1.bf16.xpose.msra.mxu0 0
    %3744 = vmatprep.subr.bf16.mxu0 0
    %3745 = vmatpush1.bf16.xpose.msra.mxu0 0
    %3746 = vmatprep.subr.bf16.mxu0 %v3609
    %3747 = vmatpush1.bf16.xpose.msra.mxu0 %v3608
    %3748 = vmatprep.subr.bf16.mxu0 %v3593
    %3749 = vmatpush1.bf16.xpose.msra.mxu0 %v3592
    %3750 = vmatprep.subr.bf16.mxu0 0
    %3751 = vmatpush2.bf16.xpose.msra.mxu0 0
    %3752 = vmatprep.subr.bf16.mxu0 0
    %3753 = vmatpush2.bf16.xpose.msra.mxu0 0
    %3754 = vmatprep.subr.bf16.mxu0 0
    %3755 = vmatpush2.bf16.xpose.msra.mxu0 0
    %3756 = vmatprep.subr.bf16.mxu0 0
    %3757 = vmatpush2.bf16.xpose.msra.mxu0 0
    %3758 = vmatprep.subr.bf16.mxu0 0
    %3759 = vmatpush2.bf16.xpose.msra.mxu0 0
    %3760 = vmatprep.subr.bf16.mxu0 0
    %3761 = vmatpush2.bf16.xpose.msra.mxu0 0
    %3762 = vmatprep.subr.bf16.mxu0 0
    %3763 = vmatpush2.bf16.xpose.msra.mxu0 0
    %3764 = vmatprep.subr.bf16.mxu0 0
    %3765 = vmatpush2.bf16.xpose.msra.mxu0 0
    %3766 = vmatprep.mubr.bf16.mxu0 %v3442
    %3767 = vmatmul.mubr.bf16.gmra.mxu0 %v3441
    %v3768 = vpop.f32.mrf.mxu0
    %v3769 = vadd.f32 %v3728, %v3768
    %v3770 = vpop.f32.mrf.mxu0
    %v3771 = vpop.f32.mrf.mxu0
    %v3772 = vadd.f32 %v3731, %v3771
    %v3773 = vpop.f32.mrf.mxu0
    %3774 = vdwg.mxu0
    %3775 = vmatprep.subr.bf16.mxu0 0
    %3776 = vmatpush1.bf16.xpose.msra.mxu0 0
    %3777 = vmatprep.subr.bf16.mxu0 0
    %3778 = vmatpush1.bf16.xpose.msra.mxu0 0
    %3779 = vmatprep.subr.bf16.mxu0 0
    %3780 = vmatpush1.bf16.xpose.msra.mxu0 0
    %3781 = vmatprep.subr.bf16.mxu0 0
    %3782 = vmatpush1.bf16.xpose.msra.mxu0 0
    %3783 = vmatprep.subr.bf16.mxu0 0
    %3784 = vmatpush1.bf16.xpose.msra.mxu0 0
    %3785 = vmatprep.subr.bf16.mxu0 0
    %3786 = vmatpush1.bf16.xpose.msra.mxu0 0
    %3787 = vmatprep.subr.bf16.mxu0 %v3611
    %3788 = vmatpush1.bf16.xpose.msra.mxu0 %v3610
    %3789 = vmatprep.subr.bf16.mxu0 %v3595
    %3790 = vmatpush1.bf16.xpose.msra.mxu0 %v3594
    %3791 = vmatprep.subr.bf16.mxu0 0
    %3792 = vmatpush2.bf16.xpose.msra.mxu0 0
    %3793 = vmatprep.subr.bf16.mxu0 0
    %3794 = vmatpush2.bf16.xpose.msra.mxu0 0
    %3795 = vmatprep.subr.bf16.mxu0 0
    %3796 = vmatpush2.bf16.xpose.msra.mxu0 0
    %3797 = vmatprep.subr.bf16.mxu0 0
    %3798 = vmatpush2.bf16.xpose.msra.mxu0 0
    %3799 = vmatprep.subr.bf16.mxu0 0
    %3800 = vmatpush2.bf16.xpose.msra.mxu0 0
    %3801 = vmatprep.subr.bf16.mxu0 0
    %3802 = vmatpush2.bf16.xpose.msra.mxu0 0
    %3803 = vmatprep.subr.bf16.mxu0 0
    %3804 = vmatpush2.bf16.xpose.msra.mxu0 0
    %3805 = vmatprep.subr.bf16.mxu0 0
    %3806 = vmatpush2.bf16.xpose.msra.mxu0 0
    %3807 = vmatprep.mubr.bf16.mxu0 %v3444
    %3808 = vmatmul.mubr.bf16.gmra.mxu0 %v3443
    %v3809 = vpop.f32.mrf.mxu0
    %v3810 = vadd.f32 %v3769, %v3809
    %v3811 = vpop.f32.mrf.mxu0
    %v3812 = vpop.f32.mrf.mxu0
    %v3813 = vadd.f32 %v3772, %v3812
    %v3814 = vpop.f32.mrf.mxu0
    %3815 = vdwg.mxu0
    %3816 = vmatprep.subr.bf16.mxu0 0
    %3817 = vmatpush1.bf16.xpose.msra.mxu0 0
    %3818 = vmatprep.subr.bf16.mxu0 0
    %3819 = vmatpush1.bf16.xpose.msra.mxu0 0
    %3820 = vmatprep.subr.bf16.mxu0 0
    %3821 = vmatpush1.bf16.xpose.msra.mxu0 0
    %3822 = vmatprep.subr.bf16.mxu0 0
    %3823 = vmatpush1.bf16.xpose.msra.mxu0 0
    %3824 = vmatprep.subr.bf16.mxu0 0
    %3825 = vmatpush1.bf16.xpose.msra.mxu0 0
    %3826 = vmatprep.subr.bf16.mxu0 0
    %3827 = vmatpush1.bf16.xpose.msra.mxu0 0
    %3828 = vmatprep.subr.bf16.mxu0 %v3613
    %3829 = vmatpush1.bf16.xpose.msra.mxu0 %v3612
    %3830 = vmatprep.subr.bf16.mxu0 %v3597
    %3831 = vmatpush1.bf16.xpose.msra.mxu0 %v3596
    %3832 = vmatprep.subr.bf16.mxu0 0
    %3833 = vmatpush2.bf16.xpose.msra.mxu0 0
    %3834 = vmatprep.subr.bf16.mxu0 0
    %3835 = vmatpush2.bf16.xpose.msra.mxu0 0
    %3836 = vmatprep.subr.bf16.mxu0 0
    %3837 = vmatpush2.bf16.xpose.msra.mxu0 0
    %3838 = vmatprep.subr.bf16.mxu0 0
    %3839 = vmatpush2.bf16.xpose.msra.mxu0 0
    %3840 = vmatprep.subr.bf16.mxu0 0
    %3841 = vmatpush2.bf16.xpose.msra.mxu0 0
    %3842 = vmatprep.subr.bf16.mxu0 0
    %3843 = vmatpush2.bf16.xpose.msra.mxu0 0
    %3844 = vmatprep.subr.bf16.mxu0 0
    %3845 = vmatpush2.bf16.xpose.msra.mxu0 0
    %3846 = vmatprep.subr.bf16.mxu0 0
    %3847 = vmatpush2.bf16.xpose.msra.mxu0 0
    %3848 = vmatprep.mubr.bf16.mxu0 %v3446
    %3849 = vmatmul.mubr.bf16.gmra.mxu0 %v3445
    %v3850 = vpop.f32.mrf.mxu0
    %v3851 = vadd.f32 %v3810, %v3850
    %v3852 = vpop.f32.mrf.mxu0
    %v3853 = vpop.f32.mrf.mxu0
    %v3854 = vadd.f32 %v3813, %v3853
    %v3855 = vpop.f32.mrf.mxu0
    %3856 = vdwg.mxu0
    %3857 = vmatprep.subr.bf16.mxu0 0
    %3858 = vmatpush1.bf16.xpose.msra.mxu0 0
    %3859 = vmatprep.subr.bf16.mxu0 0
    %3860 = vmatpush1.bf16.xpose.msra.mxu0 0
    %3861 = vmatprep.subr.bf16.mxu0 0
    %3862 = vmatpush1.bf16.xpose.msra.mxu0 0
    %3863 = vmatprep.subr.bf16.mxu0 0
    %3864 = vmatpush1.bf16.xpose.msra.mxu0 0
    %3865 = vmatprep.subr.bf16.mxu0 0
    %3866 = vmatpush1.bf16.xpose.msra.mxu0 0
    %3867 = vmatprep.subr.bf16.mxu0 0
    %3868 = vmatpush1.bf16.xpose.msra.mxu0 0
    %3869 = vmatprep.subr.bf16.mxu0 %v3615
    %3870 = vmatpush1.bf16.xpose.msra.mxu0 %v3614
    %3871 = vmatprep.subr.bf16.mxu0 %v3599
    %3872 = vmatpush1.bf16.xpose.msra.mxu0 %v3598
    %3873 = vmatprep.subr.bf16.mxu0 0
    %3874 = vmatpush2.bf16.xpose.msra.mxu0 0
    %3875 = vmatprep.subr.bf16.mxu0 0
    %3876 = vmatpush2.bf16.xpose.msra.mxu0 0
    %3877 = vmatprep.subr.bf16.mxu0 0
    %3878 = vmatpush2.bf16.xpose.msra.mxu0 0
    %3879 = vmatprep.subr.bf16.mxu0 0
    %3880 = vmatpush2.bf16.xpose.msra.mxu0 0
    %3881 = vmatprep.subr.bf16.mxu0 0
    %3882 = vmatpush2.bf16.xpose.msra.mxu0 0
    %3883 = vmatprep.subr.bf16.mxu0 0
    %3884 = vmatpush2.bf16.xpose.msra.mxu0 0
    %3885 = vmatprep.subr.bf16.mxu0 0
    %3886 = vmatpush2.bf16.xpose.msra.mxu0 0
    %3887 = vmatprep.subr.bf16.mxu0 0
    %3888 = vmatpush2.bf16.xpose.msra.mxu0 0
    %3889 = vmatprep.mubr.bf16.mxu0 %v3448
    %3890 = vmatmul.mubr.bf16.gmra.mxu0 %v3447
    %v3891 = vpop.f32.mrf.mxu0
    %v3892 = vadd.f32 %v3851, %v3891
    %v3893 = vpop.f32.mrf.mxu0
    %v3894 = vpop.f32.mrf.mxu0
    %v3895 = vadd.f32 %v3854, %v3894
    %v3896 = vpop.f32.mrf.mxu0
    %3897 = vdwg.mxu0
    %3898 = vmatprep.subr.bf16.mxu0 0
    %3899 = vmatpush1.bf16.xpose.msra.mxu0 0
    %3900 = vmatprep.subr.bf16.mxu0 0
    %3901 = vmatpush1.bf16.xpose.msra.mxu0 0
    %3902 = vmatprep.subr.bf16.mxu0 0
    %3903 = vmatpush1.bf16.xpose.msra.mxu0 0
    %3904 = vmatprep.subr.bf16.mxu0 0
    %3905 = vmatpush1.bf16.xpose.msra.mxu0 0
    %3906 = vmatprep.subr.bf16.mxu0 0
    %3907 = vmatpush1.bf16.xpose.msra.mxu0 0
    %3908 = vmatprep.subr.bf16.mxu0 0
    %3909 = vmatpush1.bf16.xpose.msra.mxu0 0
    %3910 = vmatprep.subr.bf16.mxu0 %v3617
    %3911 = vmatpush1.bf16.xpose.msra.mxu0 %v3616
    %3912 = vmatprep.subr.bf16.mxu0 %v3601
    %3913 = vmatpush1.bf16.xpose.msra.mxu0 %v3600
    %3914 = vmatprep.subr.bf16.mxu0 0
    %3915 = vmatpush2.bf16.xpose.msra.mxu0 0
    %3916 = vmatprep.subr.bf16.mxu0 0
    %3917 = vmatpush2.bf16.xpose.msra.mxu0 0
    %3918 = vmatprep.subr.bf16.mxu0 0
    %3919 = vmatpush2.bf16.xpose.msra.mxu0 0
    %3920 = vmatprep.subr.bf16.mxu0 0
    %3921 = vmatpush2.bf16.xpose.msra.mxu0 0
    %3922 = vmatprep.subr.bf16.mxu0 0
    %3923 = vmatpush2.bf16.xpose.msra.mxu0 0
    %3924 = vmatprep.subr.bf16.mxu0 0
    %3925 = vmatpush2.bf16.xpose.msra.mxu0 0
    %3926 = vmatprep.subr.bf16.mxu0 0
    %3927 = vmatpush2.bf16.xpose.msra.mxu0 0
    %3928 = vmatprep.subr.bf16.mxu0 0
    %3929 = vmatpush2.bf16.xpose.msra.mxu0 0
    %3930 = vmatprep.mubr.bf16.mxu0 %v3450
    %3931 = vmatmul.mubr.bf16.gmra.mxu0 %v3449
    %v3932 = vpop.f32.mrf.mxu0
    %v3933 = vadd.f32 %v3892, %v3932
    %v3934 = vpop.f32.mrf.mxu0
    %v3935 = vpop.f32.mrf.mxu0
    %v3936 = vadd.f32 %v3895, %v3935
    %v3937 = vpop.f32.mrf.mxu0
    %3938 = vdwg.mxu0
    %3939 = vmatprep.subr.bf16.mxu0 0
    %3940 = vmatpush1.bf16.xpose.msra.mxu0 0
    %3941 = vmatprep.subr.bf16.mxu0 0
    %3942 = vmatpush1.bf16.xpose.msra.mxu0 0
    %3943 = vmatprep.subr.bf16.mxu0 0
    %3944 = vmatpush1.bf16.xpose.msra.mxu0 0
    %3945 = vmatprep.subr.bf16.mxu0 0
    %3946 = vmatpush1.bf16.xpose.msra.mxu0 0
    %3947 = vmatprep.subr.bf16.mxu0 0
    %3948 = vmatpush1.bf16.xpose.msra.mxu0 0
    %3949 = vmatprep.subr.bf16.mxu0 0
    %3950 = vmatpush1.bf16.xpose.msra.mxu0 0
    %3951 = vmatprep.subr.bf16.mxu0 %v3619
    %3952 = vmatpush1.bf16.xpose.msra.mxu0 %v3618
    %3953 = vmatprep.subr.bf16.mxu0 %v3603
    %3954 = vmatpush1.bf16.xpose.msra.mxu0 %v3602
    %3955 = vmatprep.subr.bf16.mxu0 0
    %3956 = vmatpush2.bf16.xpose.msra.mxu0 0
    %3957 = vmatprep.subr.bf16.mxu0 0
    %3958 = vmatpush2.bf16.xpose.msra.mxu0 0
    %3959 = vmatprep.subr.bf16.mxu0 0
    %3960 = vmatpush2.bf16.xpose.msra.mxu0 0
    %3961 = vmatprep.subr.bf16.mxu0 0
    %3962 = vmatpush2.bf16.xpose.msra.mxu0 0
    %3963 = vmatprep.subr.bf16.mxu0 0
    %3964 = vmatpush2.bf16.xpose.msra.mxu0 0
    %3965 = vmatprep.subr.bf16.mxu0 0
    %3966 = vmatpush2.bf16.xpose.msra.mxu0 0
    %3967 = vmatprep.subr.bf16.mxu0 0
    %3968 = vmatpush2.bf16.xpose.msra.mxu0 0
    %3969 = vmatprep.subr.bf16.mxu0 0
    %3970 = vmatpush2.bf16.xpose.msra.mxu0 0
    %3971 = vmatprep.mubr.bf16.mxu0 %v3452
    %3972 = vmatmul.mubr.bf16.gmra.mxu0 %v3451
    %v3973 = vpop.f32.mrf.mxu0
    %v3974 = vadd.f32 %v3933, %v3973
    %v3975 = vpop.f32.mrf.mxu0
    %v3976 = vpop.f32.mrf.mxu0
    %v3977 = vadd.f32 %v3936, %v3976
    %v3978 = vpop.f32.mrf.mxu0
    %3979 = vdwg.mxu0
    %v3980 = vadd.f32 %v1691, %v3974
    %v3981 = vadd.f32 %v1692, %v3977
    %v3982 = vld [vmem:[%s11] sm:$0x1]
    %v3983 = vld [vmem:[%s12] sm:$0x1]
    %v3984 = vsel %vm73, %v3980, 0.0
    %3985 = vadd.xlane.f32.xlu0 %v3984
    %v3986 = vpop.xlane.xlu0 %3985
    %v3987 = vsel %vm73, %v3981, 0.0
    %3988 = vadd.xlane.f32.xlu0 %v3987
    %v3989 = vpop.xlane.xlu0 %3988
    %v3990 = vmul.f32 %v3986, %v1656
    %v3991 = vmul.f32 %v3989, %v1656
    %v3992 = vsub.f32 %v3980, %v3990
    %v3993 = vsub.f32 %v3981, %v3991
    %v3994 = vmul.f32 %v3992, %v3992
    %v3995 = vmul.f32 %v3993, %v3993
    %v3996 = vsel %vm73, %v3994, 0.0
    %3997 = vadd.xlane.f32.xlu0 %v3996
    %v3998 = vpop.xlane.xlu0 %3997
    %v3999 = vsel %vm73, %v3995, 0.0
    %4000 = vadd.xlane.f32.xlu0 %v3999
    %v4001 = vpop.xlane.xlu0 %4000
    %v4002 = vmul.f32 %v3998, %v1656
    %v4003 = vmul.f32 %v4001, %v1656
    %v4004 = vadd.f32 %v4002, 1e-05
    %v4005 = vadd.f32 %v4003, 1e-05
    %v4006 = vrsqrt.pop %v4004
    %v4007 = vrsqrt.pop %v4005
    %v4008 = vmul.f32 %v3992, %v4006
    %v4009 = vmul.f32 %v3993, %v4007
    %v4011 = vlaneseq
    %v4012 = vshrl.u32 %v4011, 7
    %v4013 = vsub.s32 0, %v4012
    %v4014 = vrot.slane %v3982, %v4013
    %v4016 = vmul.f32 %v4008, %v4014
    %v4017 = vmul.f32 %v4009, %v4014
    %v4019 = vlaneseq
    %v4020 = vshrl.u32 %v4019, 7
    %v4021 = vsub.s32 0, %v4020
    %v4022 = vrot.slane %v3983, %v4021
    %v4024 = vadd.f32 %v4016, %v4022
    %v4025 = vadd.f32 %v4017, %v4022
    %s4026 = scalar_lea.vmem %s1, 96
    %v4027 = vld [vmem:[%s4026] sm:$0xff]
    %v4028 = vld [vmem:[%s4026 + $0x8] sm:$0xff]
    %v4029 = vld [vmem:[%s4026 + $0x10] sm:$0xff]
    %v4030 = vld [vmem:[%s4026 + $0x18] sm:$0xff]
    %v4031 = vld [vmem:[%s4026 + $0x20] sm:$0xff]
    %v4032 = vld [vmem:[%s4026 + $0x28] sm:$0xff]
    %v4033 = vld [vmem:[%s4026 + $0x30] sm:$0xff]
    %v4034 = vld [vmem:[%s4026 + $0x38] sm:$0xff]
    %v4035 = vld [vmem:[%s4026 + $0x40] sm:$0xff]
    %v4036 = vld [vmem:[%s4026 + $0x48] sm:$0xff]
    %v4037 = vld [vmem:[%s4026 + $0x50] sm:$0xff]
    %v4038 = vld [vmem:[%s4026 + $0x58] sm:$0xff]
    %s4039 = scalar_lea.vmem %s2, 1
    %v4040 = vld [vmem:[%s4039] sm:$0x1]
    %v4042 = vlaneseq
    %v4043 = vshrl.u32 %v4042, 7
    %v4044 = vsub.s32 0, %v4043
    %v4045 = vrot.slane %v4040, %v4044
    %v4048 = vsel %vm73, %v4024, 0
    %v4051 = vsel %vm73, %v4025, 0
    %v4054 = vsel %vm73, %v4027, 0
    %v4057 = vsel %vm73, %v4028, 0
    %v4060 = vsel %vm73, %v4029, 0
    %v4063 = vsel %vm73, %v4030, 0
    %v4066 = vsel %vm73, %v4031, 0
    %v4069 = vsel %vm73, %v4032, 0
    %v4072 = vsel %vm73, %v4033, 0
    %v4075 = vsel %vm73, %v4034, 0
    %v4078 = vsel %vm73, %v4035, 0
    %v4081 = vsel %vm73, %v4036, 0
    %v4084 = vsel %vm73, %v4037, 0
    %v4087 = vsel %vm73, %v4038, 0
    %4089 = vmatprep.subr.mxu0 0.0
    %4090 = vmatpush1.xpose.msra.mxu0 0.0
    %4091 = vmatprep.subr.mxu0 0.0
    %4092 = vmatpush1.xpose.msra.mxu0 0.0
    %4093 = vmatprep.subr.mxu0 0.0
    %4094 = vmatpush1.xpose.msra.mxu0 0.0
    %4095 = vmatprep.subr.mxu0 0.0
    %4096 = vmatpush1.xpose.msra.mxu0 0.0
    %4097 = vmatprep.subr.mxu0 0.0
    %4098 = vmatpush1.xpose.msra.mxu0 %v4087
    %4099 = vmatprep.subr.mxu0 0.0
    %4100 = vmatpush1.xpose.msra.mxu0 %v4084
    %4101 = vmatprep.subr.mxu0 0.0
    %4102 = vmatpush1.xpose.msra.mxu0 %v4081
    %4103 = vmatprep.subr.mxu0 0.0
    %4104 = vmatpush1.xpose.msra.mxu0 %v4078
    %4105 = vmatprep.subr.mxu0 0.0
    %4106 = vmatpush1.xpose.msra.mxu0 %v4075
    %4107 = vmatprep.subr.mxu0 0.0
    %4108 = vmatpush1.xpose.msra.mxu0 %v4072
    %4109 = vmatprep.subr.mxu0 0.0
    %4110 = vmatpush1.xpose.msra.mxu0 %v4069
    %4111 = vmatprep.subr.mxu0 0.0
    %4112 = vmatpush1.xpose.msra.mxu0 %v4066
    %4113 = vmatprep.subr.mxu0 0.0
    %4114 = vmatpush1.xpose.msra.mxu0 %v4063
    %4115 = vmatprep.subr.mxu0 0.0
    %4116 = vmatpush1.xpose.msra.mxu0 %v4060
    %4117 = vmatprep.subr.mxu0 0.0
    %4118 = vmatpush1.xpose.msra.mxu0 %v4057
    %4119 = vmatprep.subr.mxu0 0.0
    %4120 = vmatpush1.xpose.msra.mxu0 %v4054
    %4121 = vmatprep.subr.mxu0 0.0
    %4122 = vmatpush2.xpose.msra.mxu0 0.0
    %4123 = vmatprep.subr.mxu0 0.0
    %4124 = vmatpush2.xpose.msra.mxu0 0.0
    %4125 = vmatprep.subr.mxu0 0.0
    %4126 = vmatpush2.xpose.msra.mxu0 0.0
    %4127 = vmatprep.subr.mxu0 0.0
    %4128 = vmatpush2.xpose.msra.mxu0 0.0
    %4129 = vmatprep.subr.mxu0 0.0
    %4130 = vmatpush2.xpose.msra.mxu0 0.0
    %4131 = vmatprep.subr.mxu0 0.0
    %4132 = vmatpush2.xpose.msra.mxu0 0.0
    %4133 = vmatprep.subr.mxu0 0.0
    %4134 = vmatpush2.xpose.msra.mxu0 0.0
    %4135 = vmatprep.subr.mxu0 0.0
    %4136 = vmatpush2.xpose.msra.mxu0 0.0
    %4137 = vmatprep.subr.mxu0 0.0
    %4138 = vmatpush2.xpose.msra.mxu0 0.0
    %4139 = vmatprep.subr.mxu0 0.0
    %4140 = vmatpush2.xpose.msra.mxu0 0.0
    %4141 = vmatprep.subr.mxu0 0.0
    %4142 = vmatpush2.xpose.msra.mxu0 0.0
    %4143 = vmatprep.subr.mxu0 0.0
    %4144 = vmatpush2.xpose.msra.mxu0 0.0
    %4145 = vmatprep.subr.mxu0 0.0
    %4146 = vmatpush2.xpose.msra.mxu0 0.0
    %4147 = vmatprep.subr.mxu0 0.0
    %4148 = vmatpush2.xpose.msra.mxu0 0.0
    %4149 = vmatprep.subr.mxu0 0.0
    %4150 = vmatpush2.xpose.msra.mxu0 0.0
    %4151 = vmatprep.subr.mxu0 0.0
    %4152 = vmatpush2.xpose.msra.mxu0 0.0
    %4153 = vmatprep.mubr.f32.mxu0 0.0
    %4154 = vmatmul.mubr.f32.gmra.mxu0 %v4048
    %v4155 = vpop.f32.mrf.mxu0
    %v4156 = vadd.f32 %v4045, %v4155
    %v4157 = vpop.f32.mrf.mxu0
    %4158 = vmatprep.mubr.f32.mxu0 0.0
    %4159 = vmatmul.mubr.f32.gmra.mxu0 %v4051
    %v4160 = vpop.f32.mrf.mxu0
    %v4161 = vadd.f32 %v4045, %v4160
    %v4162 = vpop.f32.mrf.mxu0
    %4163 = vdwg.mxu0
    %4165 = vrot.lane.b32.xlu0 %v4156, 96
    %v4166 = vpop.permute.xlu0 %4165
    %v4167 = vsel %vm194, %v4156, 0
    %v4169 = vsel %vm194, %v4166, 0
    %4171 = vmatprep.subr.mxu0 0.0
    %4172 = vmatpush1.xpose.msra.mxu0 0.0
    %4173 = vmatprep.subr.mxu0 0.0
    %4174 = vmatpush1.xpose.msra.mxu0 0.0
    %4175 = vmatprep.subr.mxu0 0.0
    %4176 = vmatpush1.xpose.msra.mxu0 0.0
    %4177 = vmatprep.subr.mxu0 0.0
    %4178 = vmatpush1.xpose.msra.mxu0 0.0
    %4179 = vmatprep.subr.mxu0 0.0
    %4180 = vmatpush1.xpose.msra.mxu0 0.0
    %4181 = vmatprep.subr.mxu0 0.0
    %4182 = vmatpush1.xpose.msra.mxu0 0.0
    %4183 = vmatprep.subr.mxu0 0.0
    %4184 = vmatpush1.xpose.msra.mxu0 0.0
    %4185 = vmatprep.subr.mxu0 0.0
    %4186 = vmatpush1.xpose.msra.mxu0 0.0
    %4187 = vmatprep.subr.mxu0 0.0
    %4188 = vmatpush1.xpose.msra.mxu0 0.0
    %4189 = vmatprep.subr.mxu0 0.0
    %4190 = vmatpush1.xpose.msra.mxu0 0.0
    %4191 = vmatprep.subr.mxu0 0.0
    %4192 = vmatpush1.xpose.msra.mxu0 0.0
    %4193 = vmatprep.subr.mxu0 0.0
    %4194 = vmatpush1.xpose.msra.mxu0 0.0
    %4195 = vmatprep.subr.mxu0 0.0
    %4196 = vmatpush1.xpose.msra.mxu0 0.0
    %4197 = vmatprep.subr.mxu0 0.0
    %4198 = vmatpush1.xpose.msra.mxu0 0.0
    %4199 = vmatprep.subr.mxu0 0.0
    %4200 = vmatpush1.xpose.msra.mxu0 0.0
    %4201 = vmatprep.subr.mxu0 0.0
    %4202 = vmatpush1.xpose.msra.mxu0 %v4169
    %4203 = vmatprep.subr.mxu0 0.0
    %4204 = vmatpush2.xpose.msra.mxu0 0.0
    %4205 = vmatprep.subr.mxu0 0.0
    %4206 = vmatpush2.xpose.msra.mxu0 0.0
    %4207 = vmatprep.subr.mxu0 0.0
    %4208 = vmatpush2.xpose.msra.mxu0 0.0
    %4209 = vmatprep.subr.mxu0 0.0
    %4210 = vmatpush2.xpose.msra.mxu0 0.0
    %4211 = vmatprep.subr.mxu0 0.0
    %4212 = vmatpush2.xpose.msra.mxu0 0.0
    %4213 = vmatprep.subr.mxu0 0.0
    %4214 = vmatpush2.xpose.msra.mxu0 0.0
    %4215 = vmatprep.subr.mxu0 0.0
    %4216 = vmatpush2.xpose.msra.mxu0 0.0
    %4217 = vmatprep.subr.mxu0 0.0
    %4218 = vmatpush2.xpose.msra.mxu0 0.0
    %4219 = vmatprep.subr.mxu0 0.0
    %4220 = vmatpush2.xpose.msra.mxu0 0.0
    %4221 = vmatprep.subr.mxu0 0.0
    %4222 = vmatpush2.xpose.msra.mxu0 0.0
    %4223 = vmatprep.subr.mxu0 0.0
    %4224 = vmatpush2.xpose.msra.mxu0 0.0
    %4225 = vmatprep.subr.mxu0 0.0
    %4226 = vmatpush2.xpose.msra.mxu0 0.0
    %4227 = vmatprep.subr.mxu0 0.0
    %4228 = vmatpush2.xpose.msra.mxu0 0.0
    %4229 = vmatprep.subr.mxu0 0.0
    %4230 = vmatpush2.xpose.msra.mxu0 0.0
    %4231 = vmatprep.subr.mxu0 0.0
    %4232 = vmatpush2.xpose.msra.mxu0 0.0
    %4233 = vmatprep.subr.mxu0 0.0
    %4234 = vmatpush2.xpose.msra.mxu0 0.0
    %4235 = vmatprep.mubr.f32.mxu0 0.0
    %4236 = vmatmul.mubr.f32.gmra.mxu0 %v4167
    %v4237 = vpop.f32.mrf.mxu0
    %v4238 = vadd.f32 0.0, %v4237
    %v4239 = vpop.f32.mrf.mxu0
    %4240 = vdwg.mxu0
    %4242 = vrot.lane.b32.xlu0 %v4161, 96
    %v4243 = vpop.permute.xlu0 %4242
    %v4244 = vsel %vm194, %v4161, 0
    %v4246 = vsel %vm194, %v4243, 0
    %4248 = vmatprep.subr.mxu0 0.0
    %4249 = vmatpush1.xpose.msra.mxu0 0.0
    %4250 = vmatprep.subr.mxu0 0.0
    %4251 = vmatpush1.xpose.msra.mxu0 0.0
    %4252 = vmatprep.subr.mxu0 0.0
    %4253 = vmatpush1.xpose.msra.mxu0 0.0
    %4254 = vmatprep.subr.mxu0 0.0
    %4255 = vmatpush1.xpose.msra.mxu0 0.0
    %4256 = vmatprep.subr.mxu0 0.0
    %4257 = vmatpush1.xpose.msra.mxu0 0.0
    %4258 = vmatprep.subr.mxu0 0.0
    %4259 = vmatpush1.xpose.msra.mxu0 0.0
    %4260 = vmatprep.subr.mxu0 0.0
    %4261 = vmatpush1.xpose.msra.mxu0 0.0
    %4262 = vmatprep.subr.mxu0 0.0
    %4263 = vmatpush1.xpose.msra.mxu0 0.0
    %4264 = vmatprep.subr.mxu0 0.0
    %4265 = vmatpush1.xpose.msra.mxu0 0.0
    %4266 = vmatprep.subr.mxu0 0.0
    %4267 = vmatpush1.xpose.msra.mxu0 0.0
    %4268 = vmatprep.subr.mxu0 0.0
    %4269 = vmatpush1.xpose.msra.mxu0 0.0
    %4270 = vmatprep.subr.mxu0 0.0
    %4271 = vmatpush1.xpose.msra.mxu0 0.0
    %4272 = vmatprep.subr.mxu0 0.0
    %4273 = vmatpush1.xpose.msra.mxu0 0.0
    %4274 = vmatprep.subr.mxu0 0.0
    %4275 = vmatpush1.xpose.msra.mxu0 0.0
    %4276 = vmatprep.subr.mxu0 0.0
    %4277 = vmatpush1.xpose.msra.mxu0 0.0
    %4278 = vmatprep.subr.mxu0 0.0
    %4279 = vmatpush1.xpose.msra.mxu0 %v4246
    %4280 = vmatprep.subr.mxu0 0.0
    %4281 = vmatpush2.xpose.msra.mxu0 0.0
    %4282 = vmatprep.subr.mxu0 0.0
    %4283 = vmatpush2.xpose.msra.mxu0 0.0
    %4284 = vmatprep.subr.mxu0 0.0
    %4285 = vmatpush2.xpose.msra.mxu0 0.0
    %4286 = vmatprep.subr.mxu0 0.0
    %4287 = vmatpush2.xpose.msra.mxu0 0.0
    %4288 = vmatprep.subr.mxu0 0.0
    %4289 = vmatpush2.xpose.msra.mxu0 0.0
    %4290 = vmatprep.subr.mxu0 0.0
    %4291 = vmatpush2.xpose.msra.mxu0 0.0
    %4292 = vmatprep.subr.mxu0 0.0
    %4293 = vmatpush2.xpose.msra.mxu0 0.0
    %4294 = vmatprep.subr.mxu0 0.0
    %4295 = vmatpush2.xpose.msra.mxu0 0.0
    %4296 = vmatprep.subr.mxu0 0.0
    %4297 = vmatpush2.xpose.msra.mxu0 0.0
    %4298 = vmatprep.subr.mxu0 0.0
    %4299 = vmatpush2.xpose.msra.mxu0 0.0
    %4300 = vmatprep.subr.mxu0 0.0
    %4301 = vmatpush2.xpose.msra.mxu0 0.0
    %4302 = vmatprep.subr.mxu0 0.0
    %4303 = vmatpush2.xpose.msra.mxu0 0.0
    %4304 = vmatprep.subr.mxu0 0.0
    %4305 = vmatpush2.xpose.msra.mxu0 0.0
    %4306 = vmatprep.subr.mxu0 0.0
    %4307 = vmatpush2.xpose.msra.mxu0 0.0
    %4308 = vmatprep.subr.mxu0 0.0
    %4309 = vmatpush2.xpose.msra.mxu0 0.0
    %4310 = vmatprep.subr.mxu0 0.0
    %4311 = vmatpush2.xpose.msra.mxu0 0.0
    %4312 = vmatprep.mubr.f32.mxu0 0.0
    %4313 = vmatmul.mubr.f32.gmra.mxu0 %v4244
    %v4314 = vpop.f32.mrf.mxu0
    %v4315 = vadd.f32 0.0, %v4314
    %v4316 = vpop.f32.mrf.mxu0
    %4317 = vdwg.mxu0
    %v4318 = vsel %vm194, %v4238, -inf
    %4319 = vmax.xlane.f32.xlu0 %v4318
    %v4320 = vpop.xlane.xlu0 %4319
    %v4321 = vsel %vm194, %v4315, -inf
    %4322 = vmax.xlane.f32.xlu0 %v4321
    %v4323 = vpop.xlane.xlu0 %4322
    %v4324 = vsub.f32 %v4238, %v4320
    %v4325 = vsub.f32 %v4315, %v4323
    %v4326 = vmul.f32 %v4324, 1.442695
    %v4327 = vpow.pop %v4326
    %v4328 = vmul.f32 %v4325, 1.442695
    %v4329 = vpow.pop %v4328
    %v4330 = vsel %vm194, %v4327, 0.0
    %4331 = vadd.xlane.f32.xlu0 %v4330
    %v4332 = vpop.xlane.xlu0 %4331
    %v4333 = vsel %vm194, %v4329, 0.0
    %4334 = vadd.xlane.f32.xlu0 %v4333
    %v4335 = vpop.xlane.xlu0 %4334
    %v4336 = vrcp.pop %v4332
    %v4337 = vrcp.pop %v4335
    %v4338 = vmul.f32 %v4327, %v4336
    %v4339 = vmul.f32 %v4329, %v4337
    %4340 = vrot.lane.b32.xlu0 %v4156, 64
    %v4341 = vpop.permute.xlu0 %4340
    %v4344 = vsel %vm194, %v4338, 0
    %4346 = vmatprep.subr.mxu0 0.0
    %4347 = vmatpush1.msra.mxu0 0.0
    %4348 = vmatprep.subr.mxu0 0.0
    %4349 = vmatpush1.msra.mxu0 0.0
    %4350 = vmatprep.subr.mxu0 0.0
    %4351 = vmatpush1.msra.mxu0 0.0
    %4352 = vmatprep.subr.mxu0 0.0
    %4353 = vmatpush1.msra.mxu0 0.0
    %4354 = vmatprep.subr.mxu0 0.0
    %4355 = vmatpush1.msra.mxu0 0.0
    %4356 = vmatprep.subr.mxu0 0.0
    %4357 = vmatpush1.msra.mxu0 0.0
    %4358 = vmatprep.subr.mxu0 0.0
    %4359 = vmatpush1.msra.mxu0 0.0
    %4360 = vmatprep.subr.mxu0 0.0
    %4361 = vmatpush1.msra.mxu0 0.0
    %4362 = vmatprep.subr.mxu0 0.0
    %4363 = vmatpush1.msra.mxu0 0.0
    %4364 = vmatprep.subr.mxu0 0.0
    %4365 = vmatpush1.msra.mxu0 0.0
    %4366 = vmatprep.subr.mxu0 0.0
    %4367 = vmatpush1.msra.mxu0 0.0
    %4368 = vmatprep.subr.mxu0 0.0
    %4369 = vmatpush1.msra.mxu0 0.0
    %4370 = vmatprep.subr.mxu0 0.0
    %4371 = vmatpush1.msra.mxu0 0.0
    %4372 = vmatprep.subr.mxu0 0.0
    %4373 = vmatpush1.msra.mxu0 0.0
    %4374 = vmatprep.subr.mxu0 0.0
    %4375 = vmatpush1.msra.mxu0 0.0
    %4376 = vmatprep.subr.mxu0 0.0
    %4377 = vmatpush1.msra.mxu0 %v4341
    %4378 = vmatprep.subr.mxu0 0.0
    %4379 = vmatpush2.msra.mxu0 0.0
    %4380 = vmatprep.subr.mxu0 0.0
    %4381 = vmatpush2.msra.mxu0 0.0
    %4382 = vmatprep.subr.mxu0 0.0
    %4383 = vmatpush2.msra.mxu0 0.0
    %4384 = vmatprep.subr.mxu0 0.0
    %4385 = vmatpush2.msra.mxu0 0.0
    %4386 = vmatprep.subr.mxu0 0.0
    %4387 = vmatpush2.msra.mxu0 0.0
    %4388 = vmatprep.subr.mxu0 0.0
    %4389 = vmatpush2.msra.mxu0 0.0
    %4390 = vmatprep.subr.mxu0 0.0
    %4391 = vmatpush2.msra.mxu0 0.0
    %4392 = vmatprep.subr.mxu0 0.0
    %4393 = vmatpush2.msra.mxu0 0.0
    %4394 = vmatprep.subr.mxu0 0.0
    %4395 = vmatpush2.msra.mxu0 0.0
    %4396 = vmatprep.subr.mxu0 0.0
    %4397 = vmatpush2.msra.mxu0 0.0
    %4398 = vmatprep.subr.mxu0 0.0
    %4399 = vmatpush2.msra.mxu0 0.0
    %4400 = vmatprep.subr.mxu0 0.0
    %4401 = vmatpush2.msra.mxu0 0.0
    %4402 = vmatprep.subr.mxu0 0.0
    %4403 = vmatpush2.msra.mxu0 0.0
    %4404 = vmatprep.subr.mxu0 0.0
    %4405 = vmatpush2.msra.mxu0 0.0
    %4406 = vmatprep.subr.mxu0 0.0
    %4407 = vmatpush2.msra.mxu0 0.0
    %4408 = vmatprep.subr.mxu0 0.0
    %4409 = vmatpush2.msra.mxu0 0.0
    %4410 = vmatprep.mubr.f32.mxu0 0.0
    %4411 = vmatmul.mubr.f32.gmra.mxu0 %v4344
    %v4412 = vpop.f32.mrf.mxu0
    %v4413 = vadd.f32 0.0, %v4412
    %v4414 = vpop.f32.mrf.mxu0
    %4415 = vdwg.mxu0
    %4416 = vrot.lane.b32.xlu0 %v4161, 64
    %v4417 = vpop.permute.xlu0 %4416
    %v4420 = vsel %vm194, %v4339, 0
    %4422 = vmatprep.subr.mxu0 0.0
    %4423 = vmatpush1.msra.mxu0 0.0
    %4424 = vmatprep.subr.mxu0 0.0
    %4425 = vmatpush1.msra.mxu0 0.0
    %4426 = vmatprep.subr.mxu0 0.0
    %4427 = vmatpush1.msra.mxu0 0.0
    %4428 = vmatprep.subr.mxu0 0.0
    %4429 = vmatpush1.msra.mxu0 0.0
    %4430 = vmatprep.subr.mxu0 0.0
    %4431 = vmatpush1.msra.mxu0 0.0
    %4432 = vmatprep.subr.mxu0 0.0
    %4433 = vmatpush1.msra.mxu0 0.0
    %4434 = vmatprep.subr.mxu0 0.0
    %4435 = vmatpush1.msra.mxu0 0.0
    %4436 = vmatprep.subr.mxu0 0.0
    %4437 = vmatpush1.msra.mxu0 0.0
    %4438 = vmatprep.subr.mxu0 0.0
    %4439 = vmatpush1.msra.mxu0 0.0
    %4440 = vmatprep.subr.mxu0 0.0
    %4441 = vmatpush1.msra.mxu0 0.0
    %4442 = vmatprep.subr.mxu0 0.0
    %4443 = vmatpush1.msra.mxu0 0.0
    %4444 = vmatprep.subr.mxu0 0.0
    %4445 = vmatpush1.msra.mxu0 0.0
    %4446 = vmatprep.subr.mxu0 0.0
    %4447 = vmatpush1.msra.mxu0 0.0
    %4448 = vmatprep.subr.mxu0 0.0
    %4449 = vmatpush1.msra.mxu0 0.0
    %4450 = vmatprep.subr.mxu0 0.0
    %4451 = vmatpush1.msra.mxu0 0.0
    %4452 = vmatprep.subr.mxu0 0.0
    %4453 = vmatpush1.msra.mxu0 %v4417
    %4454 = vmatprep.subr.mxu0 0.0
    %4455 = vmatpush2.msra.mxu0 0.0
    %4456 = vmatprep.subr.mxu0 0.0
    %4457 = vmatpush2.msra.mxu0 0.0
    %4458 = vmatprep.subr.mxu0 0.0
    %4459 = vmatpush2.msra.mxu0 0.0
    %4460 = vmatprep.subr.mxu0 0.0
    %4461 = vmatpush2.msra.mxu0 0.0
    %4462 = vmatprep.subr.mxu0 0.0
    %4463 = vmatpush2.msra.mxu0 0.0
    %4464 = vmatprep.subr.mxu0 0.0
    %4465 = vmatpush2.msra.mxu0 0.0
    %4466 = vmatprep.subr.mxu0 0.0
    %4467 = vmatpush2.msra.mxu0 0.0
    %4468 = vmatprep.subr.mxu0 0.0
    %4469 = vmatpush2.msra.mxu0 0.0
    %4470 = vmatprep.subr.mxu0 0.0
    %4471 = vmatpush2.msra.mxu0 0.0
    %4472 = vmatprep.subr.mxu0 0.0
    %4473 = vmatpush2.msra.mxu0 0.0
    %4474 = vmatprep.subr.mxu0 0.0
    %4475 = vmatpush2.msra.mxu0 0.0
    %4476 = vmatprep.subr.mxu0 0.0
    %4477 = vmatpush2.msra.mxu0 0.0
    %4478 = vmatprep.subr.mxu0 0.0
    %4479 = vmatpush2.msra.mxu0 0.0
    %4480 = vmatprep.subr.mxu0 0.0
    %4481 = vmatpush2.msra.mxu0 0.0
    %4482 = vmatprep.subr.mxu0 0.0
    %4483 = vmatpush2.msra.mxu0 0.0
    %4484 = vmatprep.subr.mxu0 0.0
    %4485 = vmatpush2.msra.mxu0 0.0
    %4486 = vmatprep.mubr.f32.mxu0 0.0
    %4487 = vmatmul.mubr.f32.gmra.mxu0 %v4420
    %v4488 = vpop.f32.mrf.mxu0
    %v4489 = vadd.f32 0.0, %v4488
    %v4490 = vpop.f32.mrf.mxu0
    %4491 = vdwg.mxu0
    %4492 = vrot.lane.b32.xlu0 %v4156, 120
    %v4493 = vpop.permute.xlu0 %4492
    %4494 = vrot.lane.b32.xlu0 %v4156, 88
    %v4495 = vpop.permute.xlu0 %4494
    %v4496 = vsel %vm194, %v4493, 0
    %v4498 = vsel %vm194, %v4495, 0
    %4500 = vmatprep.subr.mxu0 0.0
    %4501 = vmatpush1.xpose.msra.mxu0 0.0
    %4502 = vmatprep.subr.mxu0 0.0
    %4503 = vmatpush1.xpose.msra.mxu0 0.0
    %4504 = vmatprep.subr.mxu0 0.0
    %4505 = vmatpush1.xpose.msra.mxu0 0.0
    %4506 = vmatprep.subr.mxu0 0.0
    %4507 = vmatpush1.xpose.msra.mxu0 0.0
    %4508 = vmatprep.subr.mxu0 0.0
    %4509 = vmatpush1.xpose.msra.mxu0 0.0
    %4510 = vmatprep.subr.mxu0 0.0
    %4511 = vmatpush1.xpose.msra.mxu0 0.0
    %4512 = vmatprep.subr.mxu0 0.0
    %4513 = vmatpush1.xpose.msra.mxu0 0.0
    %4514 = vmatprep.subr.mxu0 0.0
    %4515 = vmatpush1.xpose.msra.mxu0 0.0
    %4516 = vmatprep.subr.mxu0 0.0
    %4517 = vmatpush1.xpose.msra.mxu0 0.0
    %4518 = vmatprep.subr.mxu0 0.0
    %4519 = vmatpush1.xpose.msra.mxu0 0.0
    %4520 = vmatprep.subr.mxu0 0.0
    %4521 = vmatpush1.xpose.msra.mxu0 0.0
    %4522 = vmatprep.subr.mxu0 0.0
    %4523 = vmatpush1.xpose.msra.mxu0 0.0
    %4524 = vmatprep.subr.mxu0 0.0
    %4525 = vmatpush1.xpose.msra.mxu0 0.0
    %4526 = vmatprep.subr.mxu0 0.0
    %4527 = vmatpush1.xpose.msra.mxu0 0.0
    %4528 = vmatprep.subr.mxu0 0.0
    %4529 = vmatpush1.xpose.msra.mxu0 0.0
    %4530 = vmatprep.subr.mxu0 0.0
    %4531 = vmatpush1.xpose.msra.mxu0 %v4498
    %4532 = vmatprep.subr.mxu0 0.0
    %4533 = vmatpush2.xpose.msra.mxu0 0.0
    %4534 = vmatprep.subr.mxu0 0.0
    %4535 = vmatpush2.xpose.msra.mxu0 0.0
    %4536 = vmatprep.subr.mxu0 0.0
    %4537 = vmatpush2.xpose.msra.mxu0 0.0
    %4538 = vmatprep.subr.mxu0 0.0
    %4539 = vmatpush2.xpose.msra.mxu0 0.0
    %4540 = vmatprep.subr.mxu0 0.0
    %4541 = vmatpush2.xpose.msra.mxu0 0.0
    %4542 = vmatprep.subr.mxu0 0.0
    %4543 = vmatpush2.xpose.msra.mxu0 0.0
    %4544 = vmatprep.subr.mxu0 0.0
    %4545 = vmatpush2.xpose.msra.mxu0 0.0
    %4546 = vmatprep.subr.mxu0 0.0
    %4547 = vmatpush2.xpose.msra.mxu0 0.0
    %4548 = vmatprep.subr.mxu0 0.0
    %4549 = vmatpush2.xpose.msra.mxu0 0.0
    %4550 = vmatprep.subr.mxu0 0.0
    %4551 = vmatpush2.xpose.msra.mxu0 0.0
    %4552 = vmatprep.subr.mxu0 0.0
    %4553 = vmatpush2.xpose.msra.mxu0 0.0
    %4554 = vmatprep.subr.mxu0 0.0
    %4555 = vmatpush2.xpose.msra.mxu0 0.0
    %4556 = vmatprep.subr.mxu0 0.0
    %4557 = vmatpush2.xpose.msra.mxu0 0.0
    %4558 = vmatprep.subr.mxu0 0.0
    %4559 = vmatpush2.xpose.msra.mxu0 0.0
    %4560 = vmatprep.subr.mxu0 0.0
    %4561 = vmatpush2.xpose.msra.mxu0 0.0
    %4562 = vmatprep.subr.mxu0 0.0
    %4563 = vmatpush2.xpose.msra.mxu0 0.0
    %4564 = vmatprep.mubr.f32.mxu0 0.0
    %4565 = vmatmul.mubr.f32.gmra.mxu0 %v4496
    %v4566 = vpop.f32.mrf.mxu0
    %v4567 = vadd.f32 0.0, %v4566
    %v4568 = vpop.f32.mrf.mxu0
    %4569 = vdwg.mxu0
    %4570 = vrot.lane.b32.xlu0 %v4161, 120
    %v4571 = vpop.permute.xlu0 %4570
    %4572 = vrot.lane.b32.xlu0 %v4161, 88
    %v4573 = vpop.permute.xlu0 %4572
    %v4574 = vsel %vm194, %v4571, 0
    %v4576 = vsel %vm194, %v4573, 0
    %4578 = vmatprep.subr.mxu0 0.0
    %4579 = vmatpush1.xpose.msra.mxu0 0.0
    %4580 = vmatprep.subr.mxu0 0.0
    %4581 = vmatpush1.xpose.msra.mxu0 0.0
    %4582 = vmatprep.subr.mxu0 0.0
    %4583 = vmatpush1.xpose.msra.mxu0 0.0
    %4584 = vmatprep.subr.mxu0 0.0
    %4585 = vmatpush1.xpose.msra.mxu0 0.0
    %4586 = vmatprep.subr.mxu0 0.0
    %4587 = vmatpush1.xpose.msra.mxu0 0.0
    %4588 = vmatprep.subr.mxu0 0.0
    %4589 = vmatpush1.xpose.msra.mxu0 0.0
    %4590 = vmatprep.subr.mxu0 0.0
    %4591 = vmatpush1.xpose.msra.mxu0 0.0
    %4592 = vmatprep.subr.mxu0 0.0
    %4593 = vmatpush1.xpose.msra.mxu0 0.0
    %4594 = vmatprep.subr.mxu0 0.0
    %4595 = vmatpush1.xpose.msra.mxu0 0.0
    %4596 = vmatprep.subr.mxu0 0.0
    %4597 = vmatpush1.xpose.msra.mxu0 0.0
    %4598 = vmatprep.subr.mxu0 0.0
    %4599 = vmatpush1.xpose.msra.mxu0 0.0
    %4600 = vmatprep.subr.mxu0 0.0
    %4601 = vmatpush1.xpose.msra.mxu0 0.0
    %4602 = vmatprep.subr.mxu0 0.0
    %4603 = vmatpush1.xpose.msra.mxu0 0.0
    %4604 = vmatprep.subr.mxu0 0.0
    %4605 = vmatpush1.xpose.msra.mxu0 0.0
    %4606 = vmatprep.subr.mxu0 0.0
    %4607 = vmatpush1.xpose.msra.mxu0 0.0
    %4608 = vmatprep.subr.mxu0 0.0
    %4609 = vmatpush1.xpose.msra.mxu0 %v4576
    %4610 = vmatprep.subr.mxu0 0.0
    %4611 = vmatpush2.xpose.msra.mxu0 0.0
    %4612 = vmatprep.subr.mxu0 0.0
    %4613 = vmatpush2.xpose.msra.mxu0 0.0
    %4614 = vmatprep.subr.mxu0 0.0
    %4615 = vmatpush2.xpose.msra.mxu0 0.0
    %4616 = vmatprep.subr.mxu0 0.0
    %4617 = vmatpush2.xpose.msra.mxu0 0.0
    %4618 = vmatprep.subr.mxu0 0.0
    %4619 = vmatpush2.xpose.msra.mxu0 0.0
    %4620 = vmatprep.subr.mxu0 0.0
    %4621 = vmatpush2.xpose.msra.mxu0 0.0
    %4622 = vmatprep.subr.mxu0 0.0
    %4623 = vmatpush2.xpose.msra.mxu0 0.0
    %4624 = vmatprep.subr.mxu0 0.0
    %4625 = vmatpush2.xpose.msra.mxu0 0.0
    %4626 = vmatprep.subr.mxu0 0.0
    %4627 = vmatpush2.xpose.msra.mxu0 0.0
    %4628 = vmatprep.subr.mxu0 0.0
    %4629 = vmatpush2.xpose.msra.mxu0 0.0
    %4630 = vmatprep.subr.mxu0 0.0
    %4631 = vmatpush2.xpose.msra.mxu0 0.0
    %4632 = vmatprep.subr.mxu0 0.0
    %4633 = vmatpush2.xpose.msra.mxu0 0.0
    %4634 = vmatprep.subr.mxu0 0.0
    %4635 = vmatpush2.xpose.msra.mxu0 0.0
    %4636 = vmatprep.subr.mxu0 0.0
    %4637 = vmatpush2.xpose.msra.mxu0 0.0
    %4638 = vmatprep.subr.mxu0 0.0
    %4639 = vmatpush2.xpose.msra.mxu0 0.0
    %4640 = vmatprep.subr.mxu0 0.0
    %4641 = vmatpush2.xpose.msra.mxu0 0.0
    %4642 = vmatprep.mubr.f32.mxu0 0.0
    %4643 = vmatmul.mubr.f32.gmra.mxu0 %v4574
    %v4644 = vpop.f32.mrf.mxu0
    %v4645 = vadd.f32 0.0, %v4644
    %v4646 = vpop.f32.mrf.mxu0
    %4647 = vdwg.mxu0
    %v4648 = vsel %vm194, %v4567, -inf
    %4649 = vmax.xlane.f32.xlu0 %v4648
    %v4650 = vpop.xlane.xlu0 %4649
    %v4651 = vsel %vm194, %v4645, -inf
    %4652 = vmax.xlane.f32.xlu0 %v4651
    %v4653 = vpop.xlane.xlu0 %4652
    %v4654 = vsub.f32 %v4567, %v4650
    %v4655 = vsub.f32 %v4645, %v4653
    %v4656 = vmul.f32 %v4654, 1.442695
    %v4657 = vpow.pop %v4656
    %v4658 = vmul.f32 %v4655, 1.442695
    %v4659 = vpow.pop %v4658
    %v4660 = vsel %vm194, %v4657, 0.0
    %4661 = vadd.xlane.f32.xlu0 %v4660
    %v4662 = vpop.xlane.xlu0 %4661
    %v4663 = vsel %vm194, %v4659, 0.0
    %4664 = vadd.xlane.f32.xlu0 %v4663
    %v4665 = vpop.xlane.xlu0 %4664
    %v4666 = vrcp.pop %v4662
    %v4667 = vrcp.pop %v4665
    %v4668 = vmul.f32 %v4657, %v4666
    %v4669 = vmul.f32 %v4659, %v4667
    %4670 = vrot.lane.b32.xlu0 %v4156, 56
    %v4671 = vpop.permute.xlu0 %4670
    %v4674 = vsel %vm194, %v4668, 0
    %4676 = vmatprep.subr.mxu0 0.0
    %4677 = vmatpush1.msra.mxu0 0.0
    %4678 = vmatprep.subr.mxu0 0.0
    %4679 = vmatpush1.msra.mxu0 0.0
    %4680 = vmatprep.subr.mxu0 0.0
    %4681 = vmatpush1.msra.mxu0 0.0
    %4682 = vmatprep.subr.mxu0 0.0
    %4683 = vmatpush1.msra.mxu0 0.0
    %4684 = vmatprep.subr.mxu0 0.0
    %4685 = vmatpush1.msra.mxu0 0.0
    %4686 = vmatprep.subr.mxu0 0.0
    %4687 = vmatpush1.msra.mxu0 0.0
    %4688 = vmatprep.subr.mxu0 0.0
    %4689 = vmatpush1.msra.mxu0 0.0
    %4690 = vmatprep.subr.mxu0 0.0
    %4691 = vmatpush1.msra.mxu0 0.0
    %4692 = vmatprep.subr.mxu0 0.0
    %4693 = vmatpush1.msra.mxu0 0.0
    %4694 = vmatprep.subr.mxu0 0.0
    %4695 = vmatpush1.msra.mxu0 0.0
    %4696 = vmatprep.subr.mxu0 0.0
    %4697 = vmatpush1.msra.mxu0 0.0
    %4698 = vmatprep.subr.mxu0 0.0
    %4699 = vmatpush1.msra.mxu0 0.0
    %4700 = vmatprep.subr.mxu0 0.0
    %4701 = vmatpush1.msra.mxu0 0.0
    %4702 = vmatprep.subr.mxu0 0.0
    %4703 = vmatpush1.msra.mxu0 0.0
    %4704 = vmatprep.subr.mxu0 0.0
    %4705 = vmatpush1.msra.mxu0 0.0
    %4706 = vmatprep.subr.mxu0 0.0
    %4707 = vmatpush1.msra.mxu0 %v4671
    %4708 = vmatprep.subr.mxu0 0.0
    %4709 = vmatpush2.msra.mxu0 0.0
    %4710 = vmatprep.subr.mxu0 0.0
    %4711 = vmatpush2.msra.mxu0 0.0
    %4712 = vmatprep.subr.mxu0 0.0
    %4713 = vmatpush2.msra.mxu0 0.0
    %4714 = vmatprep.subr.mxu0 0.0
    %4715 = vmatpush2.msra.mxu0 0.0
    %4716 = vmatprep.subr.mxu0 0.0
    %4717 = vmatpush2.msra.mxu0 0.0
    %4718 = vmatprep.subr.mxu0 0.0
    %4719 = vmatpush2.msra.mxu0 0.0
    %4720 = vmatprep.subr.mxu0 0.0
    %4721 = vmatpush2.msra.mxu0 0.0
    %4722 = vmatprep.subr.mxu0 0.0
    %4723 = vmatpush2.msra.mxu0 0.0
    %4724 = vmatprep.subr.mxu0 0.0
    %4725 = vmatpush2.msra.mxu0 0.0
    %4726 = vmatprep.subr.mxu0 0.0
    %4727 = vmatpush2.msra.mxu0 0.0
    %4728 = vmatprep.subr.mxu0 0.0
    %4729 = vmatpush2.msra.mxu0 0.0
    %4730 = vmatprep.subr.mxu0 0.0
    %4731 = vmatpush2.msra.mxu0 0.0
    %4732 = vmatprep.subr.mxu0 0.0
    %4733 = vmatpush2.msra.mxu0 0.0
    %4734 = vmatprep.subr.mxu0 0.0
    %4735 = vmatpush2.msra.mxu0 0.0
    %4736 = vmatprep.subr.mxu0 0.0
    %4737 = vmatpush2.msra.mxu0 0.0
    %4738 = vmatprep.subr.mxu0 0.0
    %4739 = vmatpush2.msra.mxu0 0.0
    %4740 = vmatprep.mubr.f32.mxu0 0.0
    %4741 = vmatmul.mubr.f32.gmra.mxu0 %v4674
    %v4742 = vpop.f32.mrf.mxu0
    %v4743 = vadd.f32 0.0, %v4742
    %v4744 = vpop.f32.mrf.mxu0
    %4745 = vdwg.mxu0
    %4746 = vrot.lane.b32.xlu0 %v4161, 56
    %v4747 = vpop.permute.xlu0 %4746
    %v4750 = vsel %vm194, %v4669, 0
    %4752 = vmatprep.subr.mxu0 0.0
    %4753 = vmatpush1.msra.mxu0 0.0
    %4754 = vmatprep.subr.mxu0 0.0
    %4755 = vmatpush1.msra.mxu0 0.0
    %4756 = vmatprep.subr.mxu0 0.0
    %4757 = vmatpush1.msra.mxu0 0.0
    %4758 = vmatprep.subr.mxu0 0.0
    %4759 = vmatpush1.msra.mxu0 0.0
    %4760 = vmatprep.subr.mxu0 0.0
    %4761 = vmatpush1.msra.mxu0 0.0
    %4762 = vmatprep.subr.mxu0 0.0
    %4763 = vmatpush1.msra.mxu0 0.0
    %4764 = vmatprep.subr.mxu0 0.0
    %4765 = vmatpush1.msra.mxu0 0.0
    %4766 = vmatprep.subr.mxu0 0.0
    %4767 = vmatpush1.msra.mxu0 0.0
    %4768 = vmatprep.subr.mxu0 0.0
    %4769 = vmatpush1.msra.mxu0 0.0
    %4770 = vmatprep.subr.mxu0 0.0
    %4771 = vmatpush1.msra.mxu0 0.0
    %4772 = vmatprep.subr.mxu0 0.0
    %4773 = vmatpush1.msra.mxu0 0.0
    %4774 = vmatprep.subr.mxu0 0.0
    %4775 = vmatpush1.msra.mxu0 0.0
    %4776 = vmatprep.subr.mxu0 0.0
    %4777 = vmatpush1.msra.mxu0 0.0
    %4778 = vmatprep.subr.mxu0 0.0
    %4779 = vmatpush1.msra.mxu0 0.0
    %4780 = vmatprep.subr.mxu0 0.0
    %4781 = vmatpush1.msra.mxu0 0.0
    %4782 = vmatprep.subr.mxu0 0.0
    %4783 = vmatpush1.msra.mxu0 %v4747
    %4784 = vmatprep.subr.mxu0 0.0
    %4785 = vmatpush2.msra.mxu0 0.0
    %4786 = vmatprep.subr.mxu0 0.0
    %4787 = vmatpush2.msra.mxu0 0.0
    %4788 = vmatprep.subr.mxu0 0.0
    %4789 = vmatpush2.msra.mxu0 0.0
    %4790 = vmatprep.subr.mxu0 0.0
    %4791 = vmatpush2.msra.mxu0 0.0
    %4792 = vmatprep.subr.mxu0 0.0
    %4793 = vmatpush2.msra.mxu0 0.0
    %4794 = vmatprep.subr.mxu0 0.0
    %4795 = vmatpush2.msra.mxu0 0.0
    %4796 = vmatprep.subr.mxu0 0.0
    %4797 = vmatpush2.msra.mxu0 0.0
    %4798 = vmatprep.subr.mxu0 0.0
    %4799 = vmatpush2.msra.mxu0 0.0
    %4800 = vmatprep.subr.mxu0 0.0
    %4801 = vmatpush2.msra.mxu0 0.0
    %4802 = vmatprep.subr.mxu0 0.0
    %4803 = vmatpush2.msra.mxu0 0.0
    %4804 = vmatprep.subr.mxu0 0.0
    %4805 = vmatpush2.msra.mxu0 0.0
    %4806 = vmatprep.subr.mxu0 0.0
    %4807 = vmatpush2.msra.mxu0 0.0
    %4808 = vmatprep.subr.mxu0 0.0
    %4809 = vmatpush2.msra.mxu0 0.0
    %4810 = vmatprep.subr.mxu0 0.0
    %4811 = vmatpush2.msra.mxu0 0.0
    %4812 = vmatprep.subr.mxu0 0.0
    %4813 = vmatpush2.msra.mxu0 0.0
    %4814 = vmatprep.subr.mxu0 0.0
    %4815 = vmatpush2.msra.mxu0 0.0
    %4816 = vmatprep.mubr.f32.mxu0 0.0
    %4817 = vmatmul.mubr.f32.gmra.mxu0 %v4750
    %v4818 = vpop.f32.mrf.mxu0
    %v4819 = vadd.f32 0.0, %v4818
    %v4820 = vpop.f32.mrf.mxu0
    %4821 = vdwg.mxu0
    %4822 = vrot.lane.b32.xlu0 %v4156, 112
    %v4823 = vpop.permute.xlu0 %4822
    %4824 = vrot.lane.b32.xlu0 %v4156, 80
    %v4825 = vpop.permute.xlu0 %4824
    %v4826 = vsel %vm194, %v4823, 0
    %v4828 = vsel %vm194, %v4825, 0
    %4830 = vmatprep.subr.mxu0 0.0
    %4831 = vmatpush1.xpose.msra.mxu0 0.0
    %4832 = vmatprep.subr.mxu0 0.0
    %4833 = vmatpush1.xpose.msra.mxu0 0.0
    %4834 = vmatprep.subr.mxu0 0.0
    %4835 = vmatpush1.xpose.msra.mxu0 0.0
    %4836 = vmatprep.subr.mxu0 0.0
    %4837 = vmatpush1.xpose.msra.mxu0 0.0
    %4838 = vmatprep.subr.mxu0 0.0
    %4839 = vmatpush1.xpose.msra.mxu0 0.0
    %4840 = vmatprep.subr.mxu0 0.0
    %4841 = vmatpush1.xpose.msra.mxu0 0.0
    %4842 = vmatprep.subr.mxu0 0.0
    %4843 = vmatpush1.xpose.msra.mxu0 0.0
    %4844 = vmatprep.subr.mxu0 0.0
    %4845 = vmatpush1.xpose.msra.mxu0 0.0
    %4846 = vmatprep.subr.mxu0 0.0
    %4847 = vmatpush1.xpose.msra.mxu0 0.0
    %4848 = vmatprep.subr.mxu0 0.0
    %4849 = vmatpush1.xpose.msra.mxu0 0.0
    %4850 = vmatprep.subr.mxu0 0.0
    %4851 = vmatpush1.xpose.msra.mxu0 0.0
    %4852 = vmatprep.subr.mxu0 0.0
    %4853 = vmatpush1.xpose.msra.mxu0 0.0
    %4854 = vmatprep.subr.mxu0 0.0
    %4855 = vmatpush1.xpose.msra.mxu0 0.0
    %4856 = vmatprep.subr.mxu0 0.0
    %4857 = vmatpush1.xpose.msra.mxu0 0.0
    %4858 = vmatprep.subr.mxu0 0.0
    %4859 = vmatpush1.xpose.msra.mxu0 0.0
    %4860 = vmatprep.subr.mxu0 0.0
    %4861 = vmatpush1.xpose.msra.mxu0 %v4828
    %4862 = vmatprep.subr.mxu0 0.0
    %4863 = vmatpush2.xpose.msra.mxu0 0.0
    %4864 = vmatprep.subr.mxu0 0.0
    %4865 = vmatpush2.xpose.msra.mxu0 0.0
    %4866 = vmatprep.subr.mxu0 0.0
    %4867 = vmatpush2.xpose.msra.mxu0 0.0
    %4868 = vmatprep.subr.mxu0 0.0
    %4869 = vmatpush2.xpose.msra.mxu0 0.0
    %4870 = vmatprep.subr.mxu0 0.0
    %4871 = vmatpush2.xpose.msra.mxu0 0.0
    %4872 = vmatprep.subr.mxu0 0.0
    %4873 = vmatpush2.xpose.msra.mxu0 0.0
    %4874 = vmatprep.subr.mxu0 0.0
    %4875 = vmatpush2.xpose.msra.mxu0 0.0
    %4876 = vmatprep.subr.mxu0 0.0
    %4877 = vmatpush2.xpose.msra.mxu0 0.0
    %4878 = vmatprep.subr.mxu0 0.0
    %4879 = vmatpush2.xpose.msra.mxu0 0.0
    %4880 = vmatprep.subr.mxu0 0.0
    %4881 = vmatpush2.xpose.msra.mxu0 0.0
    %4882 = vmatprep.subr.mxu0 0.0
    %4883 = vmatpush2.xpose.msra.mxu0 0.0
    %4884 = vmatprep.subr.mxu0 0.0
    %4885 = vmatpush2.xpose.msra.mxu0 0.0
    %4886 = vmatprep.subr.mxu0 0.0
    %4887 = vmatpush2.xpose.msra.mxu0 0.0
    %4888 = vmatprep.subr.mxu0 0.0
    %4889 = vmatpush2.xpose.msra.mxu0 0.0
    %4890 = vmatprep.subr.mxu0 0.0
    %4891 = vmatpush2.xpose.msra.mxu0 0.0
    %4892 = vmatprep.subr.mxu0 0.0
    %4893 = vmatpush2.xpose.msra.mxu0 0.0
    %4894 = vmatprep.mubr.f32.mxu0 0.0
    %4895 = vmatmul.mubr.f32.gmra.mxu0 %v4826
    %v4896 = vpop.f32.mrf.mxu0
    %v4897 = vadd.f32 0.0, %v4896
    %v4898 = vpop.f32.mrf.mxu0
    %4899 = vdwg.mxu0
    %4900 = vrot.lane.b32.xlu0 %v4161, 112
    %v4901 = vpop.permute.xlu0 %4900
    %4902 = vrot.lane.b32.xlu0 %v4161, 80
    %v4903 = vpop.permute.xlu0 %4902
    %v4904 = vsel %vm194, %v4901, 0
    %v4906 = vsel %vm194, %v4903, 0
    %4908 = vmatprep.subr.mxu0 0.0
    %4909 = vmatpush1.xpose.msra.mxu0 0.0
    %4910 = vmatprep.subr.mxu0 0.0
    %4911 = vmatpush1.xpose.msra.mxu0 0.0
    %4912 = vmatprep.subr.mxu0 0.0
    %4913 = vmatpush1.xpose.msra.mxu0 0.0
    %4914 = vmatprep.subr.mxu0 0.0
    %4915 = vmatpush1.xpose.msra.mxu0 0.0
    %4916 = vmatprep.subr.mxu0 0.0
    %4917 = vmatpush1.xpose.msra.mxu0 0.0
    %4918 = vmatprep.subr.mxu0 0.0
    %4919 = vmatpush1.xpose.msra.mxu0 0.0
    %4920 = vmatprep.subr.mxu0 0.0
    %4921 = vmatpush1.xpose.msra.mxu0 0.0
    %4922 = vmatprep.subr.mxu0 0.0
    %4923 = vmatpush1.xpose.msra.mxu0 0.0
    %4924 = vmatprep.subr.mxu0 0.0
    %4925 = vmatpush1.xpose.msra.mxu0 0.0
    %4926 = vmatprep.subr.mxu0 0.0
    %4927 = vmatpush1.xpose.msra.mxu0 0.0
    %4928 = vmatprep.subr.mxu0 0.0
    %4929 = vmatpush1.xpose.msra.mxu0 0.0
    %4930 = vmatprep.subr.mxu0 0.0
    %4931 = vmatpush1.xpose.msra.mxu0 0.0
    %4932 = vmatprep.subr.mxu0 0.0
    %4933 = vmatpush1.xpose.msra.mxu0 0.0
    %4934 = vmatprep.subr.mxu0 0.0
    %4935 = vmatpush1.xpose.msra.mxu0 0.0
    %4936 = vmatprep.subr.mxu0 0.0
    %4937 = vmatpush1.xpose.msra.mxu0 0.0
    %4938 = vmatprep.subr.mxu0 0.0
    %4939 = vmatpush1.xpose.msra.mxu0 %v4906
    %4940 = vmatprep.subr.mxu0 0.0
    %4941 = vmatpush2.xpose.msra.mxu0 0.0
    %4942 = vmatprep.subr.mxu0 0.0
    %4943 = vmatpush2.xpose.msra.mxu0 0.0
    %4944 = vmatprep.subr.mxu0 0.0
    %4945 = vmatpush2.xpose.msra.mxu0 0.0
    %4946 = vmatprep.subr.mxu0 0.0
    %4947 = vmatpush2.xpose.msra.mxu0 0.0
    %4948 = vmatprep.subr.mxu0 0.0
    %4949 = vmatpush2.xpose.msra.mxu0 0.0
    %4950 = vmatprep.subr.mxu0 0.0
    %4951 = vmatpush2.xpose.msra.mxu0 0.0
    %4952 = vmatprep.subr.mxu0 0.0
    %4953 = vmatpush2.xpose.msra.mxu0 0.0
    %4954 = vmatprep.subr.mxu0 0.0
    %4955 = vmatpush2.xpose.msra.mxu0 0.0
    %4956 = vmatprep.subr.mxu0 0.0
    %4957 = vmatpush2.xpose.msra.mxu0 0.0
    %4958 = vmatprep.subr.mxu0 0.0
    %4959 = vmatpush2.xpose.msra.mxu0 0.0
    %4960 = vmatprep.subr.mxu0 0.0
    %4961 = vmatpush2.xpose.msra.mxu0 0.0
    %4962 = vmatprep.subr.mxu0 0.0
    %4963 = vmatpush2.xpose.msra.mxu0 0.0
    %4964 = vmatprep.subr.mxu0 0.0
    %4965 = vmatpush2.xpose.msra.mxu0 0.0
    %4966 = vmatprep.subr.mxu0 0.0
    %4967 = vmatpush2.xpose.msra.mxu0 0.0
    %4968 = vmatprep.subr.mxu0 0.0
    %4969 = vmatpush2.xpose.msra.mxu0 0.0
    %4970 = vmatprep.subr.mxu0 0.0
    %4971 = vmatpush2.xpose.msra.mxu0 0.0
    %4972 = vmatprep.mubr.f32.mxu0 0.0
    %4973 = vmatmul.mubr.f32.gmra.mxu0 %v4904
    %v4974 = vpop.f32.mrf.mxu0
    %v4975 = vadd.f32 0.0, %v4974
    %v4976 = vpop.f32.mrf.mxu0
    %4977 = vdwg.mxu0
    %v4978 = vsel %vm194, %v4897, -inf
    %4979 = vmax.xlane.f32.xlu0 %v4978
    %v4980 = vpop.xlane.xlu0 %4979
    %v4981 = vsel %vm194, %v4975, -inf
    %4982 = vmax.xlane.f32.xlu0 %v4981
    %v4983 = vpop.xlane.xlu0 %4982
    %v4984 = vsub.f32 %v4897, %v4980
    %v4985 = vsub.f32 %v4975, %v4983
    %v4986 = vmul.f32 %v4984, 1.442695
    %v4987 = vpow.pop %v4986
    %v4988 = vmul.f32 %v4985, 1.442695
    %v4989 = vpow.pop %v4988
    %v4990 = vsel %vm194, %v4987, 0.0
    %4991 = vadd.xlane.f32.xlu0 %v4990
    %v4992 = vpop.xlane.xlu0 %4991
    %v4993 = vsel %vm194, %v4989, 0.0
    %4994 = vadd.xlane.f32.xlu0 %v4993
    %v4995 = vpop.xlane.xlu0 %4994
    %v4996 = vrcp.pop %v4992
    %v4997 = vrcp.pop %v4995
    %v4998 = vmul.f32 %v4987, %v4996
    %v4999 = vmul.f32 %v4989, %v4997
    %5000 = vrot.lane.b32.xlu0 %v4156, 48
    %v5001 = vpop.permute.xlu0 %5000
    %v5004 = vsel %vm194, %v4998, 0
    %5006 = vmatprep.subr.mxu0 0.0
    %5007 = vmatpush1.msra.mxu0 0.0
    %5008 = vmatprep.subr.mxu0 0.0
    %5009 = vmatpush1.msra.mxu0 0.0
    %5010 = vmatprep.subr.mxu0 0.0
    %5011 = vmatpush1.msra.mxu0 0.0
    %5012 = vmatprep.subr.mxu0 0.0
    %5013 = vmatpush1.msra.mxu0 0.0
    %5014 = vmatprep.subr.mxu0 0.0
    %5015 = vmatpush1.msra.mxu0 0.0
    %5016 = vmatprep.subr.mxu0 0.0
    %5017 = vmatpush1.msra.mxu0 0.0
    %5018 = vmatprep.subr.mxu0 0.0
    %5019 = vmatpush1.msra.mxu0 0.0
    %5020 = vmatprep.subr.mxu0 0.0
    %5021 = vmatpush1.msra.mxu0 0.0
    %5022 = vmatprep.subr.mxu0 0.0
    %5023 = vmatpush1.msra.mxu0 0.0
    %5024 = vmatprep.subr.mxu0 0.0
    %5025 = vmatpush1.msra.mxu0 0.0
    %5026 = vmatprep.subr.mxu0 0.0
    %5027 = vmatpush1.msra.mxu0 0.0
    %5028 = vmatprep.subr.mxu0 0.0
    %5029 = vmatpush1.msra.mxu0 0.0
    %5030 = vmatprep.subr.mxu0 0.0
    %5031 = vmatpush1.msra.mxu0 0.0
    %5032 = vmatprep.subr.mxu0 0.0
    %5033 = vmatpush1.msra.mxu0 0.0
    %5034 = vmatprep.subr.mxu0 0.0
    %5035 = vmatpush1.msra.mxu0 0.0
    %5036 = vmatprep.subr.mxu0 0.0
    %5037 = vmatpush1.msra.mxu0 %v5001
    %5038 = vmatprep.subr.mxu0 0.0
    %5039 = vmatpush2.msra.mxu0 0.0
    %5040 = vmatprep.subr.mxu0 0.0
    %5041 = vmatpush2.msra.mxu0 0.0
    %5042 = vmatprep.subr.mxu0 0.0
    %5043 = vmatpush2.msra.mxu0 0.0
    %5044 = vmatprep.subr.mxu0 0.0
    %5045 = vmatpush2.msra.mxu0 0.0
    %5046 = vmatprep.subr.mxu0 0.0
    %5047 = vmatpush2.msra.mxu0 0.0
    %5048 = vmatprep.subr.mxu0 0.0
    %5049 = vmatpush2.msra.mxu0 0.0
    %5050 = vmatprep.subr.mxu0 0.0
    %5051 = vmatpush2.msra.mxu0 0.0
    %5052 = vmatprep.subr.mxu0 0.0
    %5053 = vmatpush2.msra.mxu0 0.0
    %5054 = vmatprep.subr.mxu0 0.0
    %5055 = vmatpush2.msra.mxu0 0.0
    %5056 = vmatprep.subr.mxu0 0.0
    %5057 = vmatpush2.msra.mxu0 0.0
    %5058 = vmatprep.subr.mxu0 0.0
    %5059 = vmatpush2.msra.mxu0 0.0
    %5060 = vmatprep.subr.mxu0 0.0
    %5061 = vmatpush2.msra.mxu0 0.0
    %5062 = vmatprep.subr.mxu0 0.0
    %5063 = vmatpush2.msra.mxu0 0.0
    %5064 = vmatprep.subr.mxu0 0.0
    %5065 = vmatpush2.msra.mxu0 0.0
    %5066 = vmatprep.subr.mxu0 0.0
    %5067 = vmatpush2.msra.mxu0 0.0
    %5068 = vmatprep.subr.mxu0 0.0
    %5069 = vmatpush2.msra.mxu0 0.0
    %5070 = vmatprep.mubr.f32.mxu0 0.0
    %5071 = vmatmul.mubr.f32.gmra.mxu0 %v5004
    %v5072 = vpop.f32.mrf.mxu0
    %v5073 = vadd.f32 0.0, %v5072
    %v5074 = vpop.f32.mrf.mxu0
    %5075 = vdwg.mxu0
    %5076 = vrot.lane.b32.xlu0 %v4161, 48
    %v5077 = vpop.permute.xlu0 %5076
    %v5080 = vsel %vm194, %v4999, 0
    %5082 = vmatprep.subr.mxu0 0.0
    %5083 = vmatpush1.msra.mxu0 0.0
    %5084 = vmatprep.subr.mxu0 0.0
    %5085 = vmatpush1.msra.mxu0 0.0
    %5086 = vmatprep.subr.mxu0 0.0
    %5087 = vmatpush1.msra.mxu0 0.0
    %5088 = vmatprep.subr.mxu0 0.0
    %5089 = vmatpush1.msra.mxu0 0.0
    %5090 = vmatprep.subr.mxu0 0.0
    %5091 = vmatpush1.msra.mxu0 0.0
    %5092 = vmatprep.subr.mxu0 0.0
    %5093 = vmatpush1.msra.mxu0 0.0
    %5094 = vmatprep.subr.mxu0 0.0
    %5095 = vmatpush1.msra.mxu0 0.0
    %5096 = vmatprep.subr.mxu0 0.0
    %5097 = vmatpush1.msra.mxu0 0.0
    %5098 = vmatprep.subr.mxu0 0.0
    %5099 = vmatpush1.msra.mxu0 0.0
    %5100 = vmatprep.subr.mxu0 0.0
    %5101 = vmatpush1.msra.mxu0 0.0
    %5102 = vmatprep.subr.mxu0 0.0
    %5103 = vmatpush1.msra.mxu0 0.0
    %5104 = vmatprep.subr.mxu0 0.0
    %5105 = vmatpush1.msra.mxu0 0.0
    %5106 = vmatprep.subr.mxu0 0.0
    %5107 = vmatpush1.msra.mxu0 0.0
    %5108 = vmatprep.subr.mxu0 0.0
    %5109 = vmatpush1.msra.mxu0 0.0
    %5110 = vmatprep.subr.mxu0 0.0
    %5111 = vmatpush1.msra.mxu0 0.0
    %5112 = vmatprep.subr.mxu0 0.0
    %5113 = vmatpush1.msra.mxu0 %v5077
    %5114 = vmatprep.subr.mxu0 0.0
    %5115 = vmatpush2.msra.mxu0 0.0
    %5116 = vmatprep.subr.mxu0 0.0
    %5117 = vmatpush2.msra.mxu0 0.0
    %5118 = vmatprep.subr.mxu0 0.0
    %5119 = vmatpush2.msra.mxu0 0.0
    %5120 = vmatprep.subr.mxu0 0.0
    %5121 = vmatpush2.msra.mxu0 0.0
    %5122 = vmatprep.subr.mxu0 0.0
    %5123 = vmatpush2.msra.mxu0 0.0
    %5124 = vmatprep.subr.mxu0 0.0
    %5125 = vmatpush2.msra.mxu0 0.0
    %5126 = vmatprep.subr.mxu0 0.0
    %5127 = vmatpush2.msra.mxu0 0.0
    %5128 = vmatprep.subr.mxu0 0.0
    %5129 = vmatpush2.msra.mxu0 0.0
    %5130 = vmatprep.subr.mxu0 0.0
    %5131 = vmatpush2.msra.mxu0 0.0
    %5132 = vmatprep.subr.mxu0 0.0
    %5133 = vmatpush2.msra.mxu0 0.0
    %5134 = vmatprep.subr.mxu0 0.0
    %5135 = vmatpush2.msra.mxu0 0.0
    %5136 = vmatprep.subr.mxu0 0.0
    %5137 = vmatpush2.msra.mxu0 0.0
    %5138 = vmatprep.subr.mxu0 0.0
    %5139 = vmatpush2.msra.mxu0 0.0
    %5140 = vmatprep.subr.mxu0 0.0
    %5141 = vmatpush2.msra.mxu0 0.0
    %5142 = vmatprep.subr.mxu0 0.0
    %5143 = vmatpush2.msra.mxu0 0.0
    %5144 = vmatprep.subr.mxu0 0.0
    %5145 = vmatpush2.msra.mxu0 0.0
    %5146 = vmatprep.mubr.f32.mxu0 0.0
    %5147 = vmatmul.mubr.f32.gmra.mxu0 %v5080
    %v5148 = vpop.f32.mrf.mxu0
    %v5149 = vadd.f32 0.0, %v5148
    %v5150 = vpop.f32.mrf.mxu0
    %5151 = vdwg.mxu0
    %5152 = vrot.lane.b32.xlu0 %v4156, 104
    %v5153 = vpop.permute.xlu0 %5152
    %5154 = vrot.lane.b32.xlu0 %v4156, 72
    %v5155 = vpop.permute.xlu0 %5154
    %v5156 = vsel %vm194, %v5153, 0
    %v5158 = vsel %vm194, %v5155, 0
    %5160 = vmatprep.subr.mxu0 0.0
    %5161 = vmatpush1.xpose.msra.mxu0 0.0
    %5162 = vmatprep.subr.mxu0 0.0
    %5163 = vmatpush1.xpose.msra.mxu0 0.0
    %5164 = vmatprep.subr.mxu0 0.0
    %5165 = vmatpush1.xpose.msra.mxu0 0.0
    %5166 = vmatprep.subr.mxu0 0.0
    %5167 = vmatpush1.xpose.msra.mxu0 0.0
    %5168 = vmatprep.subr.mxu0 0.0
    %5169 = vmatpush1.xpose.msra.mxu0 0.0
    %5170 = vmatprep.subr.mxu0 0.0
    %5171 = vmatpush1.xpose.msra.mxu0 0.0
    %5172 = vmatprep.subr.mxu0 0.0
    %5173 = vmatpush1.xpose.msra.mxu0 0.0
    %5174 = vmatprep.subr.mxu0 0.0
    %5175 = vmatpush1.xpose.msra.mxu0 0.0
    %5176 = vmatprep.subr.mxu0 0.0
    %5177 = vmatpush1.xpose.msra.mxu0 0.0
    %5178 = vmatprep.subr.mxu0 0.0
    %5179 = vmatpush1.xpose.msra.mxu0 0.0
    %5180 = vmatprep.subr.mxu0 0.0
    %5181 = vmatpush1.xpose.msra.mxu0 0.0
    %5182 = vmatprep.subr.mxu0 0.0
    %5183 = vmatpush1.xpose.msra.mxu0 0.0
    %5184 = vmatprep.subr.mxu0 0.0
    %5185 = vmatpush1.xpose.msra.mxu0 0.0
    %5186 = vmatprep.subr.mxu0 0.0
    %5187 = vmatpush1.xpose.msra.mxu0 0.0
    %5188 = vmatprep.subr.mxu0 0.0
    %5189 = vmatpush1.xpose.msra.mxu0 0.0
    %5190 = vmatprep.subr.mxu0 0.0
    %5191 = vmatpush1.xpose.msra.mxu0 %v5158
    %5192 = vmatprep.subr.mxu0 0.0
    %5193 = vmatpush2.xpose.msra.mxu0 0.0
    %5194 = vmatprep.subr.mxu0 0.0
    %5195 = vmatpush2.xpose.msra.mxu0 0.0
    %5196 = vmatprep.subr.mxu0 0.0
    %5197 = vmatpush2.xpose.msra.mxu0 0.0
    %5198 = vmatprep.subr.mxu0 0.0
    %5199 = vmatpush2.xpose.msra.mxu0 0.0
    %5200 = vmatprep.subr.mxu0 0.0
    %5201 = vmatpush2.xpose.msra.mxu0 0.0
    %5202 = vmatprep.subr.mxu0 0.0
    %5203 = vmatpush2.xpose.msra.mxu0 0.0
    %5204 = vmatprep.subr.mxu0 0.0
    %5205 = vmatpush2.xpose.msra.mxu0 0.0
    %5206 = vmatprep.subr.mxu0 0.0
    %5207 = vmatpush2.xpose.msra.mxu0 0.0
    %5208 = vmatprep.subr.mxu0 0.0
    %5209 = vmatpush2.xpose.msra.mxu0 0.0
    %5210 = vmatprep.subr.mxu0 0.0
    %5211 = vmatpush2.xpose.msra.mxu0 0.0
    %5212 = vmatprep.subr.mxu0 0.0
    %5213 = vmatpush2.xpose.msra.mxu0 0.0
    %5214 = vmatprep.subr.mxu0 0.0
    %5215 = vmatpush2.xpose.msra.mxu0 0.0
    %5216 = vmatprep.subr.mxu0 0.0
    %5217 = vmatpush2.xpose.msra.mxu0 0.0
    %5218 = vmatprep.subr.mxu0 0.0
    %5219 = vmatpush2.xpose.msra.mxu0 0.0
    %5220 = vmatprep.subr.mxu0 0.0
    %5221 = vmatpush2.xpose.msra.mxu0 0.0
    %5222 = vmatprep.subr.mxu0 0.0
    %5223 = vmatpush2.xpose.msra.mxu0 0.0
    %5224 = vmatprep.mubr.f32.mxu0 0.0
    %5225 = vmatmul.mubr.f32.gmra.mxu0 %v5156
    %v5226 = vpop.f32.mrf.mxu0
    %v5227 = vadd.f32 0.0, %v5226
    %v5228 = vpop.f32.mrf.mxu0
    %5229 = vdwg.mxu0
    %5230 = vrot.lane.b32.xlu0 %v4161, 104
    %v5231 = vpop.permute.xlu0 %5230
    %5232 = vrot.lane.b32.xlu0 %v4161, 72
    %v5233 = vpop.permute.xlu0 %5232
    %v5234 = vsel %vm194, %v5231, 0
    %v5236 = vsel %vm194, %v5233, 0
    %5238 = vmatprep.subr.mxu0 0.0
    %5239 = vmatpush1.xpose.msra.mxu0 0.0
    %5240 = vmatprep.subr.mxu0 0.0
    %5241 = vmatpush1.xpose.msra.mxu0 0.0
    %5242 = vmatprep.subr.mxu0 0.0
    %5243 = vmatpush1.xpose.msra.mxu0 0.0
    %5244 = vmatprep.subr.mxu0 0.0
    %5245 = vmatpush1.xpose.msra.mxu0 0.0
    %5246 = vmatprep.subr.mxu0 0.0
    %5247 = vmatpush1.xpose.msra.mxu0 0.0
    %5248 = vmatprep.subr.mxu0 0.0
    %5249 = vmatpush1.xpose.msra.mxu0 0.0
    %5250 = vmatprep.subr.mxu0 0.0
    %5251 = vmatpush1.xpose.msra.mxu0 0.0
    %5252 = vmatprep.subr.mxu0 0.0
    %5253 = vmatpush1.xpose.msra.mxu0 0.0
    %5254 = vmatprep.subr.mxu0 0.0
    %5255 = vmatpush1.xpose.msra.mxu0 0.0
    %5256 = vmatprep.subr.mxu0 0.0
    %5257 = vmatpush1.xpose.msra.mxu0 0.0
    %5258 = vmatprep.subr.mxu0 0.0
    %5259 = vmatpush1.xpose.msra.mxu0 0.0
    %5260 = vmatprep.subr.mxu0 0.0
    %5261 = vmatpush1.xpose.msra.mxu0 0.0
    %5262 = vmatprep.subr.mxu0 0.0
    %5263 = vmatpush1.xpose.msra.mxu0 0.0
    %5264 = vmatprep.subr.mxu0 0.0
    %5265 = vmatpush1.xpose.msra.mxu0 0.0
    %5266 = vmatprep.subr.mxu0 0.0
    %5267 = vmatpush1.xpose.msra.mxu0 0.0
    %5268 = vmatprep.subr.mxu0 0.0
    %5269 = vmatpush1.xpose.msra.mxu0 %v5236
    %5270 = vmatprep.subr.mxu0 0.0
    %5271 = vmatpush2.xpose.msra.mxu0 0.0
    %5272 = vmatprep.subr.mxu0 0.0
    %5273 = vmatpush2.xpose.msra.mxu0 0.0
    %5274 = vmatprep.subr.mxu0 0.0
    %5275 = vmatpush2.xpose.msra.mxu0 0.0
    %5276 = vmatprep.subr.mxu0 0.0
    %5277 = vmatpush2.xpose.msra.mxu0 0.0
    %5278 = vmatprep.subr.mxu0 0.0
    %5279 = vmatpush2.xpose.msra.mxu0 0.0
    %5280 = vmatprep.subr.mxu0 0.0
    %5281 = vmatpush2.xpose.msra.mxu0 0.0
    %5282 = vmatprep.subr.mxu0 0.0
    %5283 = vmatpush2.xpose.msra.mxu0 0.0
    %5284 = vmatprep.subr.mxu0 0.0
    %5285 = vmatpush2.xpose.msra.mxu0 0.0
    %5286 = vmatprep.subr.mxu0 0.0
    %5287 = vmatpush2.xpose.msra.mxu0 0.0
    %5288 = vmatprep.subr.mxu0 0.0
    %5289 = vmatpush2.xpose.msra.mxu0 0.0
    %5290 = vmatprep.subr.mxu0 0.0
    %5291 = vmatpush2.xpose.msra.mxu0 0.0
    %5292 = vmatprep.subr.mxu0 0.0
    %5293 = vmatpush2.xpose.msra.mxu0 0.0
    %5294 = vmatprep.subr.mxu0 0.0
    %5295 = vmatpush2.xpose.msra.mxu0 0.0
    %5296 = vmatprep.subr.mxu0 0.0
    %5297 = vmatpush2.xpose.msra.mxu0 0.0
    %5298 = vmatprep.subr.mxu0 0.0
    %5299 = vmatpush2.xpose.msra.mxu0 0.0
    %5300 = vmatprep.subr.mxu0 0.0
    %5301 = vmatpush2.xpose.msra.mxu0 0.0
    %5302 = vmatprep.mubr.f32.mxu0 0.0
    %5303 = vmatmul.mubr.f32.gmra.mxu0 %v5234
    %v5304 = vpop.f32.mrf.mxu0
    %v5305 = vadd.f32 0.0, %v5304
    %v5306 = vpop.f32.mrf.mxu0
    %5307 = vdwg.mxu0
    %v5308 = vsel %vm194, %v5227, -inf
    %5309 = vmax.xlane.f32.xlu0 %v5308
    %v5310 = vpop.xlane.xlu0 %5309
    %v5311 = vsel %vm194, %v5305, -inf
    %5312 = vmax.xlane.f32.xlu0 %v5311
    %v5313 = vpop.xlane.xlu0 %5312
    %v5314 = vsub.f32 %v5227, %v5310
    %v5315 = vsub.f32 %v5305, %v5313
    %v5316 = vmul.f32 %v5314, 1.442695
    %v5317 = vpow.pop %v5316
    %v5318 = vmul.f32 %v5315, 1.442695
    %v5319 = vpow.pop %v5318
    %v5320 = vsel %vm194, %v5317, 0.0
    %5321 = vadd.xlane.f32.xlu0 %v5320
    %v5322 = vpop.xlane.xlu0 %5321
    %v5323 = vsel %vm194, %v5319, 0.0
    %5324 = vadd.xlane.f32.xlu0 %v5323
    %v5325 = vpop.xlane.xlu0 %5324
    %v5326 = vrcp.pop %v5322
    %v5327 = vrcp.pop %v5325
    %v5328 = vmul.f32 %v5317, %v5326
    %v5329 = vmul.f32 %v5319, %v5327
    %5330 = vrot.lane.b32.xlu0 %v4156, 40
    %v5331 = vpop.permute.xlu0 %5330
    %v5334 = vsel %vm194, %v5328, 0
    %5336 = vmatprep.subr.mxu0 0.0
    %5337 = vmatpush1.msra.mxu0 0.0
    %5338 = vmatprep.subr.mxu0 0.0
    %5339 = vmatpush1.msra.mxu0 0.0
    %5340 = vmatprep.subr.mxu0 0.0
    %5341 = vmatpush1.msra.mxu0 0.0
    %5342 = vmatprep.subr.mxu0 0.0
    %5343 = vmatpush1.msra.mxu0 0.0
    %5344 = vmatprep.subr.mxu0 0.0
    %5345 = vmatpush1.msra.mxu0 0.0
    %5346 = vmatprep.subr.mxu0 0.0
    %5347 = vmatpush1.msra.mxu0 0.0
    %5348 = vmatprep.subr.mxu0 0.0
    %5349 = vmatpush1.msra.mxu0 0.0
    %5350 = vmatprep.subr.mxu0 0.0
    %5351 = vmatpush1.msra.mxu0 0.0
    %5352 = vmatprep.subr.mxu0 0.0
    %5353 = vmatpush1.msra.mxu0 0.0
    %5354 = vmatprep.subr.mxu0 0.0
    %5355 = vmatpush1.msra.mxu0 0.0
    %5356 = vmatprep.subr.mxu0 0.0
    %5357 = vmatpush1.msra.mxu0 0.0
    %5358 = vmatprep.subr.mxu0 0.0
    %5359 = vmatpush1.msra.mxu0 0.0
    %5360 = vmatprep.subr.mxu0 0.0
    %5361 = vmatpush1.msra.mxu0 0.0
    %5362 = vmatprep.subr.mxu0 0.0
    %5363 = vmatpush1.msra.mxu0 0.0
    %5364 = vmatprep.subr.mxu0 0.0
    %5365 = vmatpush1.msra.mxu0 0.0
    %5366 = vmatprep.subr.mxu0 0.0
    %5367 = vmatpush1.msra.mxu0 %v5331
    %5368 = vmatprep.subr.mxu0 0.0
    %5369 = vmatpush2.msra.mxu0 0.0
    %5370 = vmatprep.subr.mxu0 0.0
    %5371 = vmatpush2.msra.mxu0 0.0
    %5372 = vmatprep.subr.mxu0 0.0
    %5373 = vmatpush2.msra.mxu0 0.0
    %5374 = vmatprep.subr.mxu0 0.0
    %5375 = vmatpush2.msra.mxu0 0.0
    %5376 = vmatprep.subr.mxu0 0.0
    %5377 = vmatpush2.msra.mxu0 0.0
    %5378 = vmatprep.subr.mxu0 0.0
    %5379 = vmatpush2.msra.mxu0 0.0
    %5380 = vmatprep.subr.mxu0 0.0
    %5381 = vmatpush2.msra.mxu0 0.0
    %5382 = vmatprep.subr.mxu0 0.0
    %5383 = vmatpush2.msra.mxu0 0.0
    %5384 = vmatprep.subr.mxu0 0.0
    %5385 = vmatpush2.msra.mxu0 0.0
    %5386 = vmatprep.subr.mxu0 0.0
    %5387 = vmatpush2.msra.mxu0 0.0
    %5388 = vmatprep.subr.mxu0 0.0
    %5389 = vmatpush2.msra.mxu0 0.0
    %5390 = vmatprep.subr.mxu0 0.0
    %5391 = vmatpush2.msra.mxu0 0.0
    %5392 = vmatprep.subr.mxu0 0.0
    %5393 = vmatpush2.msra.mxu0 0.0
    %5394 = vmatprep.subr.mxu0 0.0
    %5395 = vmatpush2.msra.mxu0 0.0
    %5396 = vmatprep.subr.mxu0 0.0
    %5397 = vmatpush2.msra.mxu0 0.0
    %5398 = vmatprep.subr.mxu0 0.0
    %5399 = vmatpush2.msra.mxu0 0.0
    %5400 = vmatprep.mubr.f32.mxu0 0.0
    %5401 = vmatmul.mubr.f32.gmra.mxu0 %v5334
    %v5402 = vpop.f32.mrf.mxu0
    %v5403 = vadd.f32 0.0, %v5402
    %v5404 = vpop.f32.mrf.mxu0
    %5405 = vdwg.mxu0
    %5406 = vrot.lane.b32.xlu0 %v4161, 40
    %v5407 = vpop.permute.xlu0 %5406
    %v5410 = vsel %vm194, %v5329, 0
    %5412 = vmatprep.subr.mxu0 0.0
    %5413 = vmatpush1.msra.mxu0 0.0
    %5414 = vmatprep.subr.mxu0 0.0
    %5415 = vmatpush1.msra.mxu0 0.0
    %5416 = vmatprep.subr.mxu0 0.0
    %5417 = vmatpush1.msra.mxu0 0.0
    %5418 = vmatprep.subr.mxu0 0.0
    %5419 = vmatpush1.msra.mxu0 0.0
    %5420 = vmatprep.subr.mxu0 0.0
    %5421 = vmatpush1.msra.mxu0 0.0
    %5422 = vmatprep.subr.mxu0 0.0
    %5423 = vmatpush1.msra.mxu0 0.0
    %5424 = vmatprep.subr.mxu0 0.0
    %5425 = vmatpush1.msra.mxu0 0.0
    %5426 = vmatprep.subr.mxu0 0.0
    %5427 = vmatpush1.msra.mxu0 0.0
    %5428 = vmatprep.subr.mxu0 0.0
    %5429 = vmatpush1.msra.mxu0 0.0
    %5430 = vmatprep.subr.mxu0 0.0
    %5431 = vmatpush1.msra.mxu0 0.0
    %5432 = vmatprep.subr.mxu0 0.0
    %5433 = vmatpush1.msra.mxu0 0.0
    %5434 = vmatprep.subr.mxu0 0.0
    %5435 = vmatpush1.msra.mxu0 0.0
    %5436 = vmatprep.subr.mxu0 0.0
    %5437 = vmatpush1.msra.mxu0 0.0
    %5438 = vmatprep.subr.mxu0 0.0
    %5439 = vmatpush1.msra.mxu0 0.0
    %5440 = vmatprep.subr.mxu0 0.0
    %5441 = vmatpush1.msra.mxu0 0.0
    %5442 = vmatprep.subr.mxu0 0.0
    %5443 = vmatpush1.msra.mxu0 %v5407
    %5444 = vmatprep.subr.mxu0 0.0
    %5445 = vmatpush2.msra.mxu0 0.0
    %5446 = vmatprep.subr.mxu0 0.0
    %5447 = vmatpush2.msra.mxu0 0.0
    %5448 = vmatprep.subr.mxu0 0.0
    %5449 = vmatpush2.msra.mxu0 0.0
    %5450 = vmatprep.subr.mxu0 0.0
    %5451 = vmatpush2.msra.mxu0 0.0
    %5452 = vmatprep.subr.mxu0 0.0
    %5453 = vmatpush2.msra.mxu0 0.0
    %5454 = vmatprep.subr.mxu0 0.0
    %5455 = vmatpush2.msra.mxu0 0.0
    %5456 = vmatprep.subr.mxu0 0.0
    %5457 = vmatpush2.msra.mxu0 0.0
    %5458 = vmatprep.subr.mxu0 0.0
    %5459 = vmatpush2.msra.mxu0 0.0
    %5460 = vmatprep.subr.mxu0 0.0
    %5461 = vmatpush2.msra.mxu0 0.0
    %5462 = vmatprep.subr.mxu0 0.0
    %5463 = vmatpush2.msra.mxu0 0.0
    %5464 = vmatprep.subr.mxu0 0.0
    %5465 = vmatpush2.msra.mxu0 0.0
    %5466 = vmatprep.subr.mxu0 0.0
    %5467 = vmatpush2.msra.mxu0 0.0
    %5468 = vmatprep.subr.mxu0 0.0
    %5469 = vmatpush2.msra.mxu0 0.0
    %5470 = vmatprep.subr.mxu0 0.0
    %5471 = vmatpush2.msra.mxu0 0.0
    %5472 = vmatprep.subr.mxu0 0.0
    %5473 = vmatpush2.msra.mxu0 0.0
    %5474 = vmatprep.subr.mxu0 0.0
    %5475 = vmatpush2.msra.mxu0 0.0
    %5476 = vmatprep.mubr.f32.mxu0 0.0
    %5477 = vmatmul.mubr.f32.gmra.mxu0 %v5410
    %v5478 = vpop.f32.mrf.mxu0
    %v5479 = vadd.f32 0.0, %v5478
    %v5480 = vpop.f32.mrf.mxu0
    %5481 = vdwg.mxu0
    %5484 = vrot.lane.b32.xlu0 %v4743, 8
    %v5485 = vpop.permute.xlu0 %5484
    %5486 = vrot.lane.b32.xlu0 %v4819, 8
    %v5487 = vpop.permute.xlu0 %5486
    %5492 = vrot.lane.b32.xlu0 %v5073, 16
    %v5493 = vpop.permute.xlu0 %5492
    %5494 = vrot.lane.b32.xlu0 %v5149, 16
    %v5495 = vpop.permute.xlu0 %5494
    %5500 = vrot.lane.b32.xlu0 %v5403, 24
    %v5501 = vpop.permute.xlu0 %5500
    %5502 = vrot.lane.b32.xlu0 %v5479, 24
    %v5503 = vpop.permute.xlu0 %5502
    %v5506 = vsel %vm194, %v4413, %v5485
    %v5507 = vsel %vm194, %v4489, %v5487
    %v5508 = vsel %vm1536, %v5506, %v5493
    %v5509 = vsel %vm1536, %v5507, %v5495
    %v5510 = vsel %vm1539, %v5508, %v5501
    %v5511 = vsel %vm1539, %v5509, %v5503
    %s5512 = scalar_lea.vmem %s3, 32
    %v5513 = vld [vmem:[%s5512] sm:$0xff]
    %v5514 = vld [vmem:[%s5512 + $0x8] sm:$0xff]
    %v5515 = vld [vmem:[%s5512 + $0x10] sm:$0xff]
    %v5516 = vld [vmem:[%s5512 + $0x18] sm:$0xff]
    %s5517 = scalar_lea.vmem %s4, 1
    %v5518 = vld [vmem:[%s5517] sm:$0x1]
    %v5520 = vlaneseq
    %v5521 = vshrl.u32 %v5520, 7
    %v5522 = vsub.s32 0, %v5521
    %v5523 = vrot.slane %v5518, %v5522
    %v5526 = vsel %vm73, %v5510, 0
    %v5529 = vsel %vm73, %v5511, 0
    %v5532 = vsel %vm73, %v5513, 0
    %v5535 = vsel %vm73, %v5514, 0
    %v5538 = vsel %vm73, %v5515, 0
    %v5541 = vsel %vm73, %v5516, 0
    %5543 = vmatprep.subr.mxu0 0.0
    %5544 = vmatpush1.xpose.msra.mxu0 0.0
    %5545 = vmatprep.subr.mxu0 0.0
    %5546 = vmatpush1.xpose.msra.mxu0 0.0
    %5547 = vmatprep.subr.mxu0 0.0
    %5548 = vmatpush1.xpose.msra.mxu0 0.0
    %5549 = vmatprep.subr.mxu0 0.0
    %5550 = vmatpush1.xpose.msra.mxu0 0.0
    %5551 = vmatprep.subr.mxu0 0.0
    %5552 = vmatpush1.xpose.msra.mxu0 0.0
    %5553 = vmatprep.subr.mxu0 0.0
    %5554 = vmatpush1.xpose.msra.mxu0 0.0
    %5555 = vmatprep.subr.mxu0 0.0
    %5556 = vmatpush1.xpose.msra.mxu0 0.0
    %5557 = vmatprep.subr.mxu0 0.0
    %5558 = vmatpush1.xpose.msra.mxu0 0.0
    %5559 = vmatprep.subr.mxu0 0.0
    %5560 = vmatpush1.xpose.msra.mxu0 0.0
    %5561 = vmatprep.subr.mxu0 0.0
    %5562 = vmatpush1.xpose.msra.mxu0 0.0
    %5563 = vmatprep.subr.mxu0 0.0
    %5564 = vmatpush1.xpose.msra.mxu0 0.0
    %5565 = vmatprep.subr.mxu0 0.0
    %5566 = vmatpush1.xpose.msra.mxu0 0.0
    %5567 = vmatprep.subr.mxu0 0.0
    %5568 = vmatpush1.xpose.msra.mxu0 %v5541
    %5569 = vmatprep.subr.mxu0 0.0
    %5570 = vmatpush1.xpose.msra.mxu0 %v5538
    %5571 = vmatprep.subr.mxu0 0.0
    %5572 = vmatpush1.xpose.msra.mxu0 %v5535
    %5573 = vmatprep.subr.mxu0 0.0
    %5574 = vmatpush1.xpose.msra.mxu0 %v5532
    %5575 = vmatprep.subr.mxu0 0.0
    %5576 = vmatpush2.xpose.msra.mxu0 0.0
    %5577 = vmatprep.subr.mxu0 0.0
    %5578 = vmatpush2.xpose.msra.mxu0 0.0
    %5579 = vmatprep.subr.mxu0 0.0
    %5580 = vmatpush2.xpose.msra.mxu0 0.0
    %5581 = vmatprep.subr.mxu0 0.0
    %5582 = vmatpush2.xpose.msra.mxu0 0.0
    %5583 = vmatprep.subr.mxu0 0.0
    %5584 = vmatpush2.xpose.msra.mxu0 0.0
    %5585 = vmatprep.subr.mxu0 0.0
    %5586 = vmatpush2.xpose.msra.mxu0 0.0
    %5587 = vmatprep.subr.mxu0 0.0
    %5588 = vmatpush2.xpose.msra.mxu0 0.0
    %5589 = vmatprep.subr.mxu0 0.0
    %5590 = vmatpush2.xpose.msra.mxu0 0.0
    %5591 = vmatprep.subr.mxu0 0.0
    %5592 = vmatpush2.xpose.msra.mxu0 0.0
    %5593 = vmatprep.subr.mxu0 0.0
    %5594 = vmatpush2.xpose.msra.mxu0 0.0
    %5595 = vmatprep.subr.mxu0 0.0
    %5596 = vmatpush2.xpose.msra.mxu0 0.0
    %5597 = vmatprep.subr.mxu0 0.0
    %5598 = vmatpush2.xpose.msra.mxu0 0.0
    %5599 = vmatprep.subr.mxu0 0.0
    %5600 = vmatpush2.xpose.msra.mxu0 0.0
    %5601 = vmatprep.subr.mxu0 0.0
    %5602 = vmatpush2.xpose.msra.mxu0 0.0
    %5603 = vmatprep.subr.mxu0 0.0
    %5604 = vmatpush2.xpose.msra.mxu0 0.0
    %5605 = vmatprep.subr.mxu0 0.0
    %5606 = vmatpush2.xpose.msra.mxu0 0.0
    %5607 = vmatprep.mubr.f32.mxu0 0.0
    %5608 = vmatmul.mubr.f32.gmra.mxu0 %v5526
    %v5609 = vpop.f32.mrf.mxu0
    %v5610 = vadd.f32 %v5523, %v5609
    %v5611 = vpop.f32.mrf.mxu0
    %5612 = vmatprep.mubr.f32.mxu0 0.0
    %5613 = vmatmul.mubr.f32.gmra.mxu0 %v5529
    %v5614 = vpop.f32.mrf.mxu0
    %v5615 = vadd.f32 %v5523, %v5614
    %v5616 = vpop.f32.mrf.mxu0
    %5617 = vdwg.mxu0
    %v5618 = vadd.f32 %v4024, %v5610
    %v5619 = vadd.f32 %v4025, %v5615
    %s5620 = scalar_lea.vmem %s5, 1
    %v5621 = vld [vmem:[%s5620] sm:$0x1]
    %s5622 = scalar_lea.vmem %s6, 1
    %v5623 = vld [vmem:[%s5622] sm:$0x1]
    %v5624 = vsel %vm73, %v5618, 0.0
    %5625 = vadd.xlane.f32.xlu0 %v5624
    %v5626 = vpop.xlane.xlu0 %5625
    %v5627 = vsel %vm73, %v5619, 0.0
    %5628 = vadd.xlane.f32.xlu0 %v5627
    %v5629 = vpop.xlane.xlu0 %5628
    %v5630 = vmul.f32 %v5626, %v1656
    %v5631 = vmul.f32 %v5629, %v1656
    %v5632 = vsub.f32 %v5618, %v5630
    %v5633 = vsub.f32 %v5619, %v5631
    %v5634 = vmul.f32 %v5632, %v5632
    %v5635 = vmul.f32 %v5633, %v5633
    %v5636 = vsel %vm73, %v5634, 0.0
    %5637 = vadd.xlane.f32.xlu0 %v5636
    %v5638 = vpop.xlane.xlu0 %5637
    %v5639 = vsel %vm73, %v5635, 0.0
    %5640 = vadd.xlane.f32.xlu0 %v5639
    %v5641 = vpop.xlane.xlu0 %5640
    %v5642 = vmul.f32 %v5638, %v1656
    %v5643 = vmul.f32 %v5641, %v1656
    %v5644 = vadd.f32 %v5642, 1e-05
    %v5645 = vadd.f32 %v5643, 1e-05
    %v5646 = vrsqrt.pop %v5644
    %v5647 = vrsqrt.pop %v5645
    %v5648 = vmul.f32 %v5632, %v5646
    %v5649 = vmul.f32 %v5633, %v5647
    %v5651 = vlaneseq
    %v5652 = vshrl.u32 %v5651, 7
    %v5653 = vsub.s32 0, %v5652
    %v5654 = vrot.slane %v5621, %v5653
    %v5656 = vmul.f32 %v5648, %v5654
    %v5657 = vmul.f32 %v5649, %v5654
    %v5659 = vlaneseq
    %v5660 = vshrl.u32 %v5659, 7
    %v5661 = vsub.s32 0, %v5660
    %v5662 = vrot.slane %v5623, %v5661
    %v5664 = vadd.f32 %v5656, %v5662
    %v5665 = vadd.f32 %v5657, %v5662
    %v5666 = vpack.c.bf16 %v5665, %v5664
    %s5667 = scalar_lea.vmem %s7, 1024
    %v5668 = vld [vmem:[%s5667] sm:$0xf]
    %v5669 = vld [vmem:[%s5667 + $0x4] sm:$0xf]
    %v5670 = vld [vmem:[%s5667 + $0x8] sm:$0xf]
    %v5671 = vld [vmem:[%s5667 + $0xc] sm:$0xf]
    %v5672 = vld [vmem:[%s5667 + $0x10] sm:$0xf]
    %v5673 = vld [vmem:[%s5667 + $0x14] sm:$0xf]
    %v5674 = vld [vmem:[%s5667 + $0x18] sm:$0xf]
    %v5675 = vld [vmem:[%s5667 + $0x1c] sm:$0xf]
    %v5676 = vld [vmem:[%s5667 + $0x20] sm:$0xf]
    %v5677 = vld [vmem:[%s5667 + $0x24] sm:$0xf]
    %v5678 = vld [vmem:[%s5667 + $0x28] sm:$0xf]
    %v5679 = vld [vmem:[%s5667 + $0x2c] sm:$0xf]
    %v5680 = vld [vmem:[%s5667 + $0x30] sm:$0xf]
    %v5681 = vld [vmem:[%s5667 + $0x34] sm:$0xf]
    %v5682 = vld [vmem:[%s5667 + $0x38] sm:$0xf]
    %v5683 = vld [vmem:[%s5667 + $0x3c] sm:$0xf]
    %v5684 = vld [vmem:[%s5667 + $0x40] sm:$0xf]
    %v5685 = vld [vmem:[%s5667 + $0x44] sm:$0xf]
    %v5686 = vld [vmem:[%s5667 + $0x48] sm:$0xf]
    %v5687 = vld [vmem:[%s5667 + $0x4c] sm:$0xf]
    %v5688 = vld [vmem:[%s5667 + $0x50] sm:$0xf]
    %v5689 = vld [vmem:[%s5667 + $0x54] sm:$0xf]
    %v5690 = vld [vmem:[%s5667 + $0x58] sm:$0xf]
    %v5691 = vld [vmem:[%s5667 + $0x5c] sm:$0xf]
    %v5692 = vld [vmem:[%s5667 + $0x60] sm:$0xf]
    %v5693 = vld [vmem:[%s5667 + $0x64] sm:$0xf]
    %v5694 = vld [vmem:[%s5667 + $0x68] sm:$0xf]
    %v5695 = vld [vmem:[%s5667 + $0x6c] sm:$0xf]
    %v5696 = vld [vmem:[%s5667 + $0x70] sm:$0xf]
    %v5697 = vld [vmem:[%s5667 + $0x74] sm:$0xf]
    %v5698 = vld [vmem:[%s5667 + $0x78] sm:$0xf]
    %v5699 = vld [vmem:[%s5667 + $0x7c] sm:$0xf]
    %v5700 = vld [vmem:[%s5667 + $0x80] sm:$0xf]
    %v5701 = vld [vmem:[%s5667 + $0x84] sm:$0xf]
    %v5702 = vld [vmem:[%s5667 + $0x88] sm:$0xf]
    %v5703 = vld [vmem:[%s5667 + $0x8c] sm:$0xf]
    %v5704 = vld [vmem:[%s5667 + $0x90] sm:$0xf]
    %v5705 = vld [vmem:[%s5667 + $0x94] sm:$0xf]
    %v5706 = vld [vmem:[%s5667 + $0x98] sm:$0xf]
    %v5707 = vld [vmem:[%s5667 + $0x9c] sm:$0xf]
    %v5708 = vld [vmem:[%s5667 + $0xa0] sm:$0xf]
    %v5709 = vld [vmem:[%s5667 + $0xa4] sm:$0xf]
    %v5710 = vld [vmem:[%s5667 + $0xa8] sm:$0xf]
    %v5711 = vld [vmem:[%s5667 + $0xac] sm:$0xf]
    %v5712 = vld [vmem:[%s5667 + $0xb0] sm:$0xf]
    %v5713 = vld [vmem:[%s5667 + $0xb4] sm:$0xf]
    %v5714 = vld [vmem:[%s5667 + $0xb8] sm:$0xf]
    %v5715 = vld [vmem:[%s5667 + $0xbc] sm:$0xf]
    %v5716 = vld [vmem:[%s5667 + $0xc0] sm:$0xf]
    %v5717 = vld [vmem:[%s5667 + $0xc4] sm:$0xf]
    %v5718 = vld [vmem:[%s5667 + $0xc8] sm:$0xf]
    %v5719 = vld [vmem:[%s5667 + $0xcc] sm:$0xf]
    %v5720 = vld [vmem:[%s5667 + $0xd0] sm:$0xf]
    %v5721 = vld [vmem:[%s5667 + $0xd4] sm:$0xf]
    %v5722 = vld [vmem:[%s5667 + $0xd8] sm:$0xf]
    %v5723 = vld [vmem:[%s5667 + $0xdc] sm:$0xf]
    %v5724 = vld [vmem:[%s5667 + $0xe0] sm:$0xf]
    %v5725 = vld [vmem:[%s5667 + $0xe4] sm:$0xf]
    %v5726 = vld [vmem:[%s5667 + $0xe8] sm:$0xf]
    %v5727 = vld [vmem:[%s5667 + $0xec] sm:$0xf]
    %v5728 = vld [vmem:[%s5667 + $0xf0] sm:$0xf]
    %v5729 = vld [vmem:[%s5667 + $0xf4] sm:$0xf]
    %v5730 = vld [vmem:[%s5667 + $0xf8] sm:$0xf]
    %v5731 = vld [vmem:[%s5667 + $0xfc] sm:$0xf]
    %v5732 = vld [vmem:[%s5667 + $0x100] sm:$0xf]
    %v5733 = vld [vmem:[%s5667 + $0x104] sm:$0xf]
    %v5734 = vld [vmem:[%s5667 + $0x108] sm:$0xf]
    %v5735 = vld [vmem:[%s5667 + $0x10c] sm:$0xf]
    %v5736 = vld [vmem:[%s5667 + $0x110] sm:$0xf]
    %v5737 = vld [vmem:[%s5667 + $0x114] sm:$0xf]
    %v5738 = vld [vmem:[%s5667 + $0x118] sm:$0xf]
    %v5739 = vld [vmem:[%s5667 + $0x11c] sm:$0xf]
    %v5740 = vld [vmem:[%s5667 + $0x120] sm:$0xf]
    %v5741 = vld [vmem:[%s5667 + $0x124] sm:$0xf]
    %v5742 = vld [vmem:[%s5667 + $0x128] sm:$0xf]
    %v5743 = vld [vmem:[%s5667 + $0x12c] sm:$0xf]
    %v5744 = vld [vmem:[%s5667 + $0x130] sm:$0xf]
    %v5745 = vld [vmem:[%s5667 + $0x134] sm:$0xf]
    %v5746 = vld [vmem:[%s5667 + $0x138] sm:$0xf]
    %v5747 = vld [vmem:[%s5667 + $0x13c] sm:$0xf]
    %v5748 = vld [vmem:[%s5667 + $0x140] sm:$0xf]
    %v5749 = vld [vmem:[%s5667 + $0x144] sm:$0xf]
    %v5750 = vld [vmem:[%s5667 + $0x148] sm:$0xf]
    %v5751 = vld [vmem:[%s5667 + $0x14c] sm:$0xf]
    %v5752 = vld [vmem:[%s5667 + $0x150] sm:$0xf]
    %v5753 = vld [vmem:[%s5667 + $0x154] sm:$0xf]
    %v5754 = vld [vmem:[%s5667 + $0x158] sm:$0xf]
    %v5755 = vld [vmem:[%s5667 + $0x15c] sm:$0xf]
    %v5756 = vld [vmem:[%s5667 + $0x160] sm:$0xf]
    %v5757 = vld [vmem:[%s5667 + $0x164] sm:$0xf]
    %v5758 = vld [vmem:[%s5667 + $0x168] sm:$0xf]
    %v5759 = vld [vmem:[%s5667 + $0x16c] sm:$0xf]
    %v5760 = vld [vmem:[%s5667 + $0x170] sm:$0xf]
    %v5761 = vld [vmem:[%s5667 + $0x174] sm:$0xf]
    %v5762 = vld [vmem:[%s5667 + $0x178] sm:$0xf]
    %v5763 = vld [vmem:[%s5667 + $0x17c] sm:$0xf]
    %v5764 = vld [vmem:[%s5667 + $0x180] sm:$0xf]
    %v5765 = vld [vmem:[%s5667 + $0x184] sm:$0xf]
    %v5766 = vld [vmem:[%s5667 + $0x188] sm:$0xf]
    %v5767 = vld [vmem:[%s5667 + $0x18c] sm:$0xf]
    %v5768 = vld [vmem:[%s5667 + $0x190] sm:$0xf]
    %v5769 = vld [vmem:[%s5667 + $0x194] sm:$0xf]
    %v5770 = vld [vmem:[%s5667 + $0x198] sm:$0xf]
    %v5771 = vld [vmem:[%s5667 + $0x19c] sm:$0xf]
    %v5772 = vld [vmem:[%s5667 + $0x1a0] sm:$0xf]
    %v5773 = vld [vmem:[%s5667 + $0x1a4] sm:$0xf]
    %v5774 = vld [vmem:[%s5667 + $0x1a8] sm:$0xf]
    %v5775 = vld [vmem:[%s5667 + $0x1ac] sm:$0xf]
    %v5776 = vld [vmem:[%s5667 + $0x1b0] sm:$0xf]
    %v5777 = vld [vmem:[%s5667 + $0x1b4] sm:$0xf]
    %v5778 = vld [vmem:[%s5667 + $0x1b8] sm:$0xf]
    %v5779 = vld [vmem:[%s5667 + $0x1bc] sm:$0xf]
    %v5780 = vld [vmem:[%s5667 + $0x1c0] sm:$0xf]
    %v5781 = vld [vmem:[%s5667 + $0x1c4] sm:$0xf]
    %v5782 = vld [vmem:[%s5667 + $0x1c8] sm:$0xf]
    %v5783 = vld [vmem:[%s5667 + $0x1cc] sm:$0xf]
    %v5784 = vld [vmem:[%s5667 + $0x1d0] sm:$0xf]
    %v5785 = vld [vmem:[%s5667 + $0x1d4] sm:$0xf]
    %v5786 = vld [vmem:[%s5667 + $0x1d8] sm:$0xf]
    %v5787 = vld [vmem:[%s5667 + $0x1dc] sm:$0xf]
    %v5788 = vld [vmem:[%s5667 + $0x1e0] sm:$0xf]
    %v5789 = vld [vmem:[%s5667 + $0x1e4] sm:$0xf]
    %v5790 = vld [vmem:[%s5667 + $0x1e8] sm:$0xf]
    %v5791 = vld [vmem:[%s5667 + $0x1ec] sm:$0xf]
    %v5792 = vld [vmem:[%s5667 + $0x1f0] sm:$0xf]
    %v5793 = vld [vmem:[%s5667 + $0x1f4] sm:$0xf]
    %v5794 = vld [vmem:[%s5667 + $0x1f8] sm:$0xf]
    %v5795 = vld [vmem:[%s5667 + $0x1fc] sm:$0xf]
    %v5796 = vld [vmem:[%s5667 + $0x200] sm:$0xf]
    %v5797 = vld [vmem:[%s5667 + $0x204] sm:$0xf]
    %v5798 = vld [vmem:[%s5667 + $0x208] sm:$0xf]
    %v5799 = vld [vmem:[%s5667 + $0x20c] sm:$0xf]
    %v5800 = vld [vmem:[%s5667 + $0x210] sm:$0xf]
    %v5801 = vld [vmem:[%s5667 + $0x214] sm:$0xf]
    %v5802 = vld [vmem:[%s5667 + $0x218] sm:$0xf]
    %v5803 = vld [vmem:[%s5667 + $0x21c] sm:$0xf]
    %v5804 = vld [vmem:[%s5667 + $0x220] sm:$0xf]
    %v5805 = vld [vmem:[%s5667 + $0x224] sm:$0xf]
    %v5806 = vld [vmem:[%s5667 + $0x228] sm:$0xf]
    %v5807 = vld [vmem:[%s5667 + $0x22c] sm:$0xf]
    %v5808 = vld [vmem:[%s5667 + $0x230] sm:$0xf]
    %v5809 = vld [vmem:[%s5667 + $0x234] sm:$0xf]
    %v5810 = vld [vmem:[%s5667 + $0x238] sm:$0xf]
    %v5811 = vld [vmem:[%s5667 + $0x23c] sm:$0xf]
    %v5812 = vld [vmem:[%s5667 + $0x240] sm:$0xf]
    %v5813 = vld [vmem:[%s5667 + $0x244] sm:$0xf]
    %v5814 = vld [vmem:[%s5667 + $0x248] sm:$0xf]
    %v5815 = vld [vmem:[%s5667 + $0x24c] sm:$0xf]
    %v5816 = vld [vmem:[%s5667 + $0x250] sm:$0xf]
    %v5817 = vld [vmem:[%s5667 + $0x254] sm:$0xf]
    %v5818 = vld [vmem:[%s5667 + $0x258] sm:$0xf]
    %v5819 = vld [vmem:[%s5667 + $0x25c] sm:$0xf]
    %v5820 = vld [vmem:[%s5667 + $0x260] sm:$0xf]
    %v5821 = vld [vmem:[%s5667 + $0x264] sm:$0xf]
    %v5822 = vld [vmem:[%s5667 + $0x268] sm:$0xf]
    %v5823 = vld [vmem:[%s5667 + $0x26c] sm:$0xf]
    %v5824 = vld [vmem:[%s5667 + $0x270] sm:$0xf]
    %v5825 = vld [vmem:[%s5667 + $0x274] sm:$0xf]
    %v5826 = vld [vmem:[%s5667 + $0x278] sm:$0xf]
    %v5827 = vld [vmem:[%s5667 + $0x27c] sm:$0xf]
    %v5828 = vld [vmem:[%s5667 + $0x280] sm:$0xf]
    %v5829 = vld [vmem:[%s5667 + $0x284] sm:$0xf]
    %v5830 = vld [vmem:[%s5667 + $0x288] sm:$0xf]
    %v5831 = vld [vmem:[%s5667 + $0x28c] sm:$0xf]
    %v5832 = vld [vmem:[%s5667 + $0x290] sm:$0xf]
    %v5833 = vld [vmem:[%s5667 + $0x294] sm:$0xf]
    %v5834 = vld [vmem:[%s5667 + $0x298] sm:$0xf]
    %v5835 = vld [vmem:[%s5667 + $0x29c] sm:$0xf]
    %v5836 = vld [vmem:[%s5667 + $0x2a0] sm:$0xf]
    %v5837 = vld [vmem:[%s5667 + $0x2a4] sm:$0xf]
    %v5838 = vld [vmem:[%s5667 + $0x2a8] sm:$0xf]
    %v5839 = vld [vmem:[%s5667 + $0x2ac] sm:$0xf]
    %v5840 = vld [vmem:[%s5667 + $0x2b0] sm:$0xf]
    %v5841 = vld [vmem:[%s5667 + $0x2b4] sm:$0xf]
    %v5842 = vld [vmem:[%s5667 + $0x2b8] sm:$0xf]
    %v5843 = vld [vmem:[%s5667 + $0x2bc] sm:$0xf]
    %v5844 = vld [vmem:[%s5667 + $0x2c0] sm:$0xf]
    %v5845 = vld [vmem:[%s5667 + $0x2c4] sm:$0xf]
    %v5846 = vld [vmem:[%s5667 + $0x2c8] sm:$0xf]
    %v5847 = vld [vmem:[%s5667 + $0x2cc] sm:$0xf]
    %v5848 = vld [vmem:[%s5667 + $0x2d0] sm:$0xf]
    %v5849 = vld [vmem:[%s5667 + $0x2d4] sm:$0xf]
    %v5850 = vld [vmem:[%s5667 + $0x2d8] sm:$0xf]
    %v5851 = vld [vmem:[%s5667 + $0x2dc] sm:$0xf]
    %v5852 = vld [vmem:[%s5667 + $0x2e0] sm:$0xf]
    %v5853 = vld [vmem:[%s5667 + $0x2e4] sm:$0xf]
    %v5854 = vld [vmem:[%s5667 + $0x2e8] sm:$0xf]
    %v5855 = vld [vmem:[%s5667 + $0x2ec] sm:$0xf]
    %v5856 = vld [vmem:[%s5667 + $0x2f0] sm:$0xf]
    %v5857 = vld [vmem:[%s5667 + $0x2f4] sm:$0xf]
    %v5858 = vld [vmem:[%s5667 + $0x2f8] sm:$0xf]
    %v5859 = vld [vmem:[%s5667 + $0x2fc] sm:$0xf]
    %v5860 = vld [vmem:[%s5667 + $0x300] sm:$0xf]
    %v5861 = vld [vmem:[%s5667 + $0x304] sm:$0xf]
    %v5862 = vld [vmem:[%s5667 + $0x308] sm:$0xf]
    %v5863 = vld [vmem:[%s5667 + $0x30c] sm:$0xf]
    %v5864 = vld [vmem:[%s5667 + $0x310] sm:$0xf]
    %v5865 = vld [vmem:[%s5667 + $0x314] sm:$0xf]
    %v5866 = vld [vmem:[%s5667 + $0x318] sm:$0xf]
    %v5867 = vld [vmem:[%s5667 + $0x31c] sm:$0xf]
    %v5868 = vld [vmem:[%s5667 + $0x320] sm:$0xf]
    %v5869 = vld [vmem:[%s5667 + $0x324] sm:$0xf]
    %v5870 = vld [vmem:[%s5667 + $0x328] sm:$0xf]
    %v5871 = vld [vmem:[%s5667 + $0x32c] sm:$0xf]
    %v5872 = vld [vmem:[%s5667 + $0x330] sm:$0xf]
    %v5873 = vld [vmem:[%s5667 + $0x334] sm:$0xf]
    %v5874 = vld [vmem:[%s5667 + $0x338] sm:$0xf]
    %v5875 = vld [vmem:[%s5667 + $0x33c] sm:$0xf]
    %v5876 = vld [vmem:[%s5667 + $0x340] sm:$0xf]
    %v5877 = vld [vmem:[%s5667 + $0x344] sm:$0xf]
    %v5878 = vld [vmem:[%s5667 + $0x348] sm:$0xf]
    %v5879 = vld [vmem:[%s5667 + $0x34c] sm:$0xf]
    %v5880 = vld [vmem:[%s5667 + $0x350] sm:$0xf]
    %v5881 = vld [vmem:[%s5667 + $0x354] sm:$0xf]
    %v5882 = vld [vmem:[%s5667 + $0x358] sm:$0xf]
    %v5883 = vld [vmem:[%s5667 + $0x35c] sm:$0xf]
    %v5884 = vld [vmem:[%s5667 + $0x360] sm:$0xf]
    %v5885 = vld [vmem:[%s5667 + $0x364] sm:$0xf]
    %v5886 = vld [vmem:[%s5667 + $0x368] sm:$0xf]
    %v5887 = vld [vmem:[%s5667 + $0x36c] sm:$0xf]
    %v5888 = vld [vmem:[%s5667 + $0x370] sm:$0xf]
    %v5889 = vld [vmem:[%s5667 + $0x374] sm:$0xf]
    %v5890 = vld [vmem:[%s5667 + $0x378] sm:$0xf]
    %v5891 = vld [vmem:[%s5667 + $0x37c] sm:$0xf]
    %v5892 = vld [vmem:[%s5667 + $0x380] sm:$0xf]
    %v5893 = vld [vmem:[%s5667 + $0x384] sm:$0xf]
    %v5894 = vld [vmem:[%s5667 + $0x388] sm:$0xf]
    %v5895 = vld [vmem:[%s5667 + $0x38c] sm:$0xf]
    %v5896 = vld [vmem:[%s5667 + $0x390] sm:$0xf]
    %v5897 = vld [vmem:[%s5667 + $0x394] sm:$0xf]
    %v5898 = vld [vmem:[%s5667 + $0x398] sm:$0xf]
    %v5899 = vld [vmem:[%s5667 + $0x39c] sm:$0xf]
    %v5900 = vld [vmem:[%s5667 + $0x3a0] sm:$0xf]
    %v5901 = vld [vmem:[%s5667 + $0x3a4] sm:$0xf]
    %v5902 = vld [vmem:[%s5667 + $0x3a8] sm:$0xf]
    %v5903 = vld [vmem:[%s5667 + $0x3ac] sm:$0xf]
    %v5904 = vld [vmem:[%s5667 + $0x3b0] sm:$0xf]
    %v5905 = vld [vmem:[%s5667 + $0x3b4] sm:$0xf]
    %v5906 = vld [vmem:[%s5667 + $0x3b8] sm:$0xf]
    %v5907 = vld [vmem:[%s5667 + $0x3bc] sm:$0xf]
    %v5908 = vld [vmem:[%s5667 + $0x3c0] sm:$0xf]
    %v5909 = vld [vmem:[%s5667 + $0x3c4] sm:$0xf]
    %v5910 = vld [vmem:[%s5667 + $0x3c8] sm:$0xf]
    %v5911 = vld [vmem:[%s5667 + $0x3cc] sm:$0xf]
    %v5912 = vld [vmem:[%s5667 + $0x3d0] sm:$0xf]
    %v5913 = vld [vmem:[%s5667 + $0x3d4] sm:$0xf]
    %v5914 = vld [vmem:[%s5667 + $0x3d8] sm:$0xf]
    %v5915 = vld [vmem:[%s5667 + $0x3dc] sm:$0xf]
    %v5916 = vld [vmem:[%s5667 + $0x3e0] sm:$0xf]
    %v5917 = vld [vmem:[%s5667 + $0x3e4] sm:$0xf]
    %v5918 = vld [vmem:[%s5667 + $0x3e8] sm:$0xf]
    %v5919 = vld [vmem:[%s5667 + $0x3ec] sm:$0xf]
    %v5920 = vld [vmem:[%s5667 + $0x3f0] sm:$0xf]
    %v5921 = vld [vmem:[%s5667 + $0x3f4] sm:$0xf]
    %v5922 = vld [vmem:[%s5667 + $0x3f8] sm:$0xf]
    %v5923 = vld [vmem:[%s5667 + $0x3fc] sm:$0xf]
    %s5924 = scalar_lea.vmem %s8, 16
    %v5925 = vld [vmem:[%s5924] sm:$0xff]
    %v5926 = vld [vmem:[%s5924 + $0x8] sm:$0xff]
    %v5929 = vlaneseq
    %v5930 = vshrl.u32 %v5929, 7
    %v5931 = vsub.s32 0, %v5930
    %v5932 = vrot.slane %v5925, %v5931
    %v5933 = vlaneseq
    %v5934 = vshrl.u32 %v5933, 7
    %v5935 = vsub.s32 1, %v5934
    %v5936 = vrot.slane %v5925, %v5935
    %v5937 = vlaneseq
    %v5938 = vshrl.u32 %v5937, 7
    %v5939 = vsub.s32 2, %v5938
    %v5940 = vrot.slane %v5925, %v5939
    %v5941 = vlaneseq
    %v5942 = vshrl.u32 %v5941, 7
    %v5943 = vsub.s32 3, %v5942
    %v5944 = vrot.slane %v5925, %v5943
    %v5945 = vlaneseq
    %v5946 = vshrl.u32 %v5945, 7
    %v5947 = vsub.s32 4, %v5946
    %v5948 = vrot.slane %v5925, %v5947
    %v5949 = vlaneseq
    %v5950 = vshrl.u32 %v5949, 7
    %v5951 = vsub.s32 5, %v5950
    %v5952 = vrot.slane %v5925, %v5951
    %v5953 = vlaneseq
    %v5954 = vshrl.u32 %v5953, 7
    %v5955 = vsub.s32 6, %v5954
    %v5956 = vrot.slane %v5925, %v5955
    %v5957 = vlaneseq
    %v5958 = vshrl.u32 %v5957, 7
    %v5959 = vsub.s32 7, %v5958
    %v5960 = vrot.slane %v5925, %v5959
    %v5961 = vlaneseq
    %v5962 = vshrl.u32 %v5961, 7
    %v5963 = vsub.s32 0, %v5962
    %v5964 = vrot.slane %v5926, %v5963
    %v5965 = vlaneseq
    %v5966 = vshrl.u32 %v5965, 7
    %v5967 = vsub.s32 1, %v5966
    %v5968 = vrot.slane %v5926, %v5967
    %v5969 = vlaneseq
    %v5970 = vshrl.u32 %v5969, 7
    %v5971 = vsub.s32 2, %v5970
    %v5972 = vrot.slane %v5926, %v5971
    %v5973 = vlaneseq
    %v5974 = vshrl.u32 %v5973, 7
    %v5975 = vsub.s32 3, %v5974
    %v5976 = vrot.slane %v5926, %v5975
    %v5977 = vlaneseq
    %v5978 = vshrl.u32 %v5977, 7
    %v5979 = vsub.s32 4, %v5978
    %v5980 = vrot.slane %v5926, %v5979
    %v5981 = vlaneseq
    %v5982 = vshrl.u32 %v5981, 7
    %v5983 = vsub.s32 5, %v5982
    %v5984 = vrot.slane %v5926, %v5983
    %v5985 = vlaneseq
    %v5986 = vshrl.u32 %v5985, 7
    %v5987 = vsub.s32 6, %v5986
    %v5988 = vrot.slane %v5926, %v5987
    %v5989 = vlaneseq
    %v5990 = vshrl.u32 %v5989, 7
    %v5991 = vsub.s32 7, %v5990
    %v5992 = vrot.slane %v5926, %v5991
    %v6265 = vunpack.c.l.b16 %v5668
    %v6266 = vunpack.c.l.b16 %v5669
    %v6267 = vunpack.c.l.b16 %v5670
    %v6268 = vunpack.c.l.b16 %v5671
    %v6269 = vunpack.c.l.b16 %v5672
    %v6270 = vunpack.c.l.b16 %v5673
    %v6271 = vunpack.c.l.b16 %v5674
    %v6272 = vunpack.c.l.b16 %v5675
    %v6273 = vunpack.c.l.b16 %v5676
    %v6274 = vunpack.c.l.b16 %v5677
    %v6275 = vunpack.c.l.b16 %v5678
    %v6276 = vunpack.c.l.b16 %v5679
    %v6277 = vunpack.c.l.b16 %v5680
    %v6278 = vunpack.c.l.b16 %v5681
    %v6279 = vunpack.c.l.b16 %v5682
    %v6280 = vunpack.c.l.b16 %v5683
    %v6281 = vunpack.c.l.b16 %v5684
    %v6282 = vunpack.c.l.b16 %v5685
    %v6283 = vunpack.c.l.b16 %v5686
    %v6284 = vunpack.c.l.b16 %v5687
    %v6285 = vunpack.c.l.b16 %v5688
    %v6286 = vunpack.c.l.b16 %v5689
    %v6287 = vunpack.c.l.b16 %v5690
    %v6288 = vunpack.c.l.b16 %v5691
    %v6289 = vunpack.c.l.b16 %v5692
    %v6290 = vunpack.c.l.b16 %v5693
    %v6291 = vunpack.c.l.b16 %v5694
    %v6292 = vunpack.c.l.b16 %v5695
    %v6293 = vunpack.c.l.b16 %v5696
    %v6294 = vunpack.c.l.b16 %v5697
    %v6295 = vunpack.c.l.b16 %v5698
    %v6296 = vunpack.c.l.b16 %v5699
    %v6297 = vunpack.c.l.b16 %v5700
    %v6298 = vunpack.c.l.b16 %v5701
    %v6299 = vunpack.c.l.b16 %v5702
    %v6300 = vunpack.c.l.b16 %v5703
    %v6301 = vunpack.c.l.b16 %v5704
    %v6302 = vunpack.c.l.b16 %v5705
    %v6303 = vunpack.c.l.b16 %v5706
    %v6304 = vunpack.c.l.b16 %v5707
    %v6305 = vunpack.c.l.b16 %v5708
    %v6306 = vunpack.c.l.b16 %v5709
    %v6307 = vunpack.c.l.b16 %v5710
    %v6308 = vunpack.c.l.b16 %v5711
    %v6309 = vunpack.c.l.b16 %v5712
    %v6310 = vunpack.c.l.b16 %v5713
    %v6311 = vunpack.c.l.b16 %v5714
    %v6312 = vunpack.c.l.b16 %v5715
    %v6313 = vunpack.c.l.b16 %v5716
    %v6314 = vunpack.c.l.b16 %v5717
    %v6315 = vunpack.c.l.b16 %v5718
    %v6316 = vunpack.c.l.b16 %v5719
    %v6317 = vunpack.c.l.b16 %v5720
    %v6318 = vunpack.c.l.b16 %v5721
    %v6319 = vunpack.c.l.b16 %v5722
    %v6320 = vunpack.c.l.b16 %v5723
    %v6321 = vunpack.c.l.b16 %v5724
    %v6322 = vunpack.c.l.b16 %v5725
    %v6323 = vunpack.c.l.b16 %v5726
    %v6324 = vunpack.c.l.b16 %v5727
    %v6325 = vunpack.c.l.b16 %v5728
    %v6326 = vunpack.c.l.b16 %v5729
    %v6327 = vunpack.c.l.b16 %v5730
    %v6328 = vunpack.c.l.b16 %v5731
    %v6329 = vunpack.c.l.b16 %v5732
    %v6330 = vunpack.c.l.b16 %v5733
    %v6331 = vunpack.c.l.b16 %v5734
    %v6332 = vunpack.c.l.b16 %v5735
    %v6333 = vunpack.c.l.b16 %v5736
    %v6334 = vunpack.c.l.b16 %v5737
    %v6335 = vunpack.c.l.b16 %v5738
    %v6336 = vunpack.c.l.b16 %v5739
    %v6337 = vunpack.c.l.b16 %v5740
    %v6338 = vunpack.c.l.b16 %v5741
    %v6339 = vunpack.c.l.b16 %v5742
    %v6340 = vunpack.c.l.b16 %v5743
    %v6341 = vunpack.c.l.b16 %v5744
    %v6342 = vunpack.c.l.b16 %v5745
    %v6343 = vunpack.c.l.b16 %v5746
    %v6344 = vunpack.c.l.b16 %v5747
    %v6345 = vunpack.c.l.b16 %v5748
    %v6346 = vunpack.c.l.b16 %v5749
    %v6347 = vunpack.c.l.b16 %v5750
    %v6348 = vunpack.c.l.b16 %v5751
    %v6349 = vunpack.c.l.b16 %v5752
    %v6350 = vunpack.c.l.b16 %v5753
    %v6351 = vunpack.c.l.b16 %v5754
    %v6352 = vunpack.c.l.b16 %v5755
    %v6353 = vunpack.c.l.b16 %v5756
    %v6354 = vunpack.c.l.b16 %v5757
    %v6355 = vunpack.c.l.b16 %v5758
    %v6356 = vunpack.c.l.b16 %v5759
    %v6357 = vunpack.c.l.b16 %v5760
    %v6358 = vunpack.c.l.b16 %v5761
    %v6359 = vunpack.c.l.b16 %v5762
    %v6360 = vunpack.c.l.b16 %v5763
    %v6361 = vunpack.c.l.b16 %v5764
    %v6362 = vunpack.c.l.b16 %v5765
    %v6363 = vunpack.c.l.b16 %v5766
    %v6364 = vunpack.c.l.b16 %v5767
    %v6365 = vunpack.c.l.b16 %v5768
    %v6366 = vunpack.c.l.b16 %v5769
    %v6367 = vunpack.c.l.b16 %v5770
    %v6368 = vunpack.c.l.b16 %v5771
    %v6369 = vunpack.c.l.b16 %v5772
    %v6370 = vunpack.c.l.b16 %v5773
    %v6371 = vunpack.c.l.b16 %v5774
    %v6372 = vunpack.c.l.b16 %v5775
    %v6373 = vunpack.c.l.b16 %v5776
    %v6374 = vunpack.c.l.b16 %v5777
    %v6375 = vunpack.c.l.b16 %v5778
    %v6376 = vunpack.c.l.b16 %v5779
    %v6377 = vunpack.c.l.b16 %v5780
    %v6378 = vunpack.c.l.b16 %v5781
    %v6379 = vunpack.c.l.b16 %v5782
    %v6380 = vunpack.c.l.b16 %v5783
    %v6381 = vunpack.c.l.b16 %v5784
    %v6382 = vunpack.c.l.b16 %v5785
    %v6383 = vunpack.c.l.b16 %v5786
    %v6384 = vunpack.c.l.b16 %v5787
    %v6385 = vunpack.c.l.b16 %v5788
    %v6386 = vunpack.c.l.b16 %v5789
    %v6387 = vunpack.c.l.b16 %v5790
    %v6388 = vunpack.c.l.b16 %v5791
    %v6389 = vunpack.c.l.b16 %v5792
    %v6390 = vunpack.c.l.b16 %v5793
    %v6391 = vunpack.c.l.b16 %v5794
    %v6392 = vunpack.c.l.b16 %v5795
    %v6393 = vunpack.c.l.b16 %v5796
    %v6394 = vunpack.c.l.b16 %v5797
    %v6395 = vunpack.c.l.b16 %v5798
    %v6396 = vunpack.c.l.b16 %v5799
    %v6397 = vunpack.c.l.b16 %v5800
    %v6398 = vunpack.c.l.b16 %v5801
    %v6399 = vunpack.c.l.b16 %v5802
    %v6400 = vunpack.c.l.b16 %v5803
    %v6401 = vunpack.c.l.b16 %v5804
    %v6402 = vunpack.c.l.b16 %v5805
    %v6403 = vunpack.c.l.b16 %v5806
    %v6404 = vunpack.c.l.b16 %v5807
    %v6405 = vunpack.c.l.b16 %v5808
    %v6406 = vunpack.c.l.b16 %v5809
    %v6407 = vunpack.c.l.b16 %v5810
    %v6408 = vunpack.c.l.b16 %v5811
    %v6409 = vunpack.c.l.b16 %v5812
    %v6410 = vunpack.c.l.b16 %v5813
    %v6411 = vunpack.c.l.b16 %v5814
    %v6412 = vunpack.c.l.b16 %v5815
    %v6413 = vunpack.c.l.b16 %v5816
    %v6414 = vunpack.c.l.b16 %v5817
    %v6415 = vunpack.c.l.b16 %v5818
    %v6416 = vunpack.c.l.b16 %v5819
    %v6417 = vunpack.c.l.b16 %v5820
    %v6418 = vunpack.c.l.b16 %v5821
    %v6419 = vunpack.c.l.b16 %v5822
    %v6420 = vunpack.c.l.b16 %v5823
    %v6421 = vunpack.c.l.b16 %v5824
    %v6422 = vunpack.c.l.b16 %v5825
    %v6423 = vunpack.c.l.b16 %v5826
    %v6424 = vunpack.c.l.b16 %v5827
    %v6425 = vunpack.c.l.b16 %v5828
    %v6426 = vunpack.c.l.b16 %v5829
    %v6427 = vunpack.c.l.b16 %v5830
    %v6428 = vunpack.c.l.b16 %v5831
    %v6429 = vunpack.c.l.b16 %v5832
    %v6430 = vunpack.c.l.b16 %v5833
    %v6431 = vunpack.c.l.b16 %v5834
    %v6432 = vunpack.c.l.b16 %v5835
    %v6433 = vunpack.c.l.b16 %v5836
    %v6434 = vunpack.c.l.b16 %v5837
    %v6435 = vunpack.c.l.b16 %v5838
    %v6436 = vunpack.c.l.b16 %v5839
    %v6437 = vunpack.c.l.b16 %v5840
    %v6438 = vunpack.c.l.b16 %v5841
    %v6439 = vunpack.c.l.b16 %v5842
    %v6440 = vunpack.c.l.b16 %v5843
    %v6441 = vunpack.c.l.b16 %v5844
    %v6442 = vunpack.c.l.b16 %v5845
    %v6443 = vunpack.c.l.b16 %v5846
    %v6444 = vunpack.c.l.b16 %v5847
    %v6445 = vunpack.c.l.b16 %v5848
    %v6446 = vunpack.c.l.b16 %v5849
    %v6447 = vunpack.c.l.b16 %v5850
    %v6448 = vunpack.c.l.b16 %v5851
    %v6449 = vunpack.c.l.b16 %v5852
    %v6450 = vunpack.c.l.b16 %v5853
    %v6451 = vunpack.c.l.b16 %v5854
    %v6452 = vunpack.c.l.b16 %v5855
    %v6453 = vunpack.c.l.b16 %v5856
    %v6454 = vunpack.c.l.b16 %v5857
    %v6455 = vunpack.c.l.b16 %v5858
    %v6456 = vunpack.c.l.b16 %v5859
    %v6457 = vunpack.c.l.b16 %v5860
    %v6458 = vunpack.c.l.b16 %v5861
    %v6459 = vunpack.c.l.b16 %v5862
    %v6460 = vunpack.c.l.b16 %v5863
    %v6461 = vunpack.c.l.b16 %v5864
    %v6462 = vunpack.c.l.b16 %v5865
    %v6463 = vunpack.c.l.b16 %v5866
    %v6464 = vunpack.c.l.b16 %v5867
    %v6465 = vunpack.c.l.b16 %v5868
    %v6466 = vunpack.c.l.b16 %v5869
    %v6467 = vunpack.c.l.b16 %v5870
    %v6468 = vunpack.c.l.b16 %v5871
    %v6469 = vunpack.c.l.b16 %v5872
    %v6470 = vunpack.c.l.b16 %v5873
    %v6471 = vunpack.c.l.b16 %v5874
    %v6472 = vunpack.c.l.b16 %v5875
    %v6473 = vunpack.c.l.b16 %v5876
    %v6474 = vunpack.c.l.b16 %v5877
    %v6475 = vunpack.c.l.b16 %v5878
    %v6476 = vunpack.c.l.b16 %v5879
    %v6477 = vunpack.c.l.b16 %v5880
    %v6478 = vunpack.c.l.b16 %v5881
    %v6479 = vunpack.c.l.b16 %v5882
    %v6480 = vunpack.c.l.b16 %v5883
    %v6481 = vunpack.c.l.b16 %v5884
    %v6482 = vunpack.c.l.b16 %v5885
    %v6483 = vunpack.c.l.b16 %v5886
    %v6484 = vunpack.c.l.b16 %v5887
    %v6485 = vunpack.c.l.b16 %v5888
    %v6486 = vunpack.c.l.b16 %v5889
    %v6487 = vunpack.c.l.b16 %v5890
    %v6488 = vunpack.c.l.b16 %v5891
    %v6489 = vunpack.c.l.b16 %v5892
    %v6490 = vunpack.c.l.b16 %v5893
    %v6491 = vunpack.c.l.b16 %v5894
    %v6492 = vunpack.c.l.b16 %v5895
    %v6493 = vunpack.c.l.b16 %v5896
    %v6494 = vunpack.c.l.b16 %v5897
    %v6495 = vunpack.c.l.b16 %v5898
    %v6496 = vunpack.c.l.b16 %v5899
    %v6497 = vunpack.c.l.b16 %v5900
    %v6498 = vunpack.c.l.b16 %v5901
    %v6499 = vunpack.c.l.b16 %v5902
    %v6500 = vunpack.c.l.b16 %v5903
    %v6501 = vunpack.c.l.b16 %v5904
    %v6502 = vunpack.c.l.b16 %v5905
    %v6503 = vunpack.c.l.b16 %v5906
    %v6504 = vunpack.c.l.b16 %v5907
    %v6505 = vunpack.c.l.b16 %v5908
    %v6506 = vunpack.c.l.b16 %v5909
    %v6507 = vunpack.c.l.b16 %v5910
    %v6508 = vunpack.c.l.b16 %v5911
    %v6509 = vunpack.c.l.b16 %v5912
    %v6510 = vunpack.c.l.b16 %v5913
    %v6511 = vunpack.c.l.b16 %v5914
    %v6512 = vunpack.c.l.b16 %v5915
    %v6513 = vunpack.c.l.b16 %v5916
    %v6514 = vunpack.c.l.b16 %v5917
    %v6515 = vunpack.c.l.b16 %v5918
    %v6516 = vunpack.c.l.b16 %v5919
    %v6517 = vunpack.c.l.b16 %v5920
    %v6518 = vunpack.c.l.b16 %v5921
    %v6519 = vunpack.c.l.b16 %v5922
    %v6520 = vunpack.c.l.b16 %v5923
    %v6521 = vpack.c.b16 %v6266, %v6265
    %v6522 = vpack.c.b16 %v6268, %v6267
    %v6523 = vpack.c.b16 %v6270, %v6269
    %v6524 = vpack.c.b16 %v6272, %v6271
    %v6525 = vpack.c.b16 %v6274, %v6273
    %v6526 = vpack.c.b16 %v6276, %v6275
    %v6527 = vpack.c.b16 %v6278, %v6277
    %v6528 = vpack.c.b16 %v6280, %v6279
    %v6529 = vpack.c.b16 %v6282, %v6281
    %v6530 = vpack.c.b16 %v6284, %v6283
    %v6531 = vpack.c.b16 %v6286, %v6285
    %v6532 = vpack.c.b16 %v6288, %v6287
    %v6533 = vpack.c.b16 %v6290, %v6289
    %v6534 = vpack.c.b16 %v6292, %v6291
    %v6535 = vpack.c.b16 %v6294, %v6293
    %v6536 = vpack.c.b16 %v6296, %v6295
    %v6537 = vpack.c.b16 %v6298, %v6297
    %v6538 = vpack.c.b16 %v6300, %v6299
    %v6539 = vpack.c.b16 %v6302, %v6301
    %v6540 = vpack.c.b16 %v6304, %v6303
    %v6541 = vpack.c.b16 %v6306, %v6305
    %v6542 = vpack.c.b16 %v6308, %v6307
    %v6543 = vpack.c.b16 %v6310, %v6309
    %v6544 = vpack.c.b16 %v6312, %v6311
    %v6545 = vpack.c.b16 %v6314, %v6313
    %v6546 = vpack.c.b16 %v6316, %v6315
    %v6547 = vpack.c.b16 %v6318, %v6317
    %v6548 = vpack.c.b16 %v6320, %v6319
    %v6549 = vpack.c.b16 %v6322, %v6321
    %v6550 = vpack.c.b16 %v6324, %v6323
    %v6551 = vpack.c.b16 %v6326, %v6325
    %v6552 = vpack.c.b16 %v6328, %v6327
    %v6553 = vpack.c.b16 %v6330, %v6329
    %v6554 = vpack.c.b16 %v6332, %v6331
    %v6555 = vpack.c.b16 %v6334, %v6333
    %v6556 = vpack.c.b16 %v6336, %v6335
    %v6557 = vpack.c.b16 %v6338, %v6337
    %v6558 = vpack.c.b16 %v6340, %v6339
    %v6559 = vpack.c.b16 %v6342, %v6341
    %v6560 = vpack.c.b16 %v6344, %v6343
    %v6561 = vpack.c.b16 %v6346, %v6345
    %v6562 = vpack.c.b16 %v6348, %v6347
    %v6563 = vpack.c.b16 %v6350, %v6349
    %v6564 = vpack.c.b16 %v6352, %v6351
    %v6565 = vpack.c.b16 %v6354, %v6353
    %v6566 = vpack.c.b16 %v6356, %v6355
    %v6567 = vpack.c.b16 %v6358, %v6357
    %v6568 = vpack.c.b16 %v6360, %v6359
    %v6569 = vpack.c.b16 %v6362, %v6361
    %v6570 = vpack.c.b16 %v6364, %v6363
    %v6571 = vpack.c.b16 %v6366, %v6365
    %v6572 = vpack.c.b16 %v6368, %v6367
    %v6573 = vpack.c.b16 %v6370, %v6369
    %v6574 = vpack.c.b16 %v6372, %v6371
    %v6575 = vpack.c.b16 %v6374, %v6373
    %v6576 = vpack.c.b16 %v6376, %v6375
    %v6577 = vpack.c.b16 %v6378, %v6377
    %v6578 = vpack.c.b16 %v6380, %v6379
    %v6579 = vpack.c.b16 %v6382, %v6381
    %v6580 = vpack.c.b16 %v6384, %v6383
    %v6581 = vpack.c.b16 %v6386, %v6385
    %v6582 = vpack.c.b16 %v6388, %v6387
    %v6583 = vpack.c.b16 %v6390, %v6389
    %v6584 = vpack.c.b16 %v6392, %v6391
    %v6585 = vpack.c.b16 %v6394, %v6393
    %v6586 = vpack.c.b16 %v6396, %v6395
    %v6587 = vpack.c.b16 %v6398, %v6397
    %v6588 = vpack.c.b16 %v6400, %v6399
    %v6589 = vpack.c.b16 %v6402, %v6401
    %v6590 = vpack.c.b16 %v6404, %v6403
    %v6591 = vpack.c.b16 %v6406, %v6405
    %v6592 = vpack.c.b16 %v6408, %v6407
    %v6593 = vpack.c.b16 %v6410, %v6409
    %v6594 = vpack.c.b16 %v6412, %v6411
    %v6595 = vpack.c.b16 %v6414, %v6413
    %v6596 = vpack.c.b16 %v6416, %v6415
    %v6597 = vpack.c.b16 %v6418, %v6417
    %v6598 = vpack.c.b16 %v6420, %v6419
    %v6599 = vpack.c.b16 %v6422, %v6421
    %v6600 = vpack.c.b16 %v6424, %v6423
    %v6601 = vpack.c.b16 %v6426, %v6425
    %v6602 = vpack.c.b16 %v6428, %v6427
    %v6603 = vpack.c.b16 %v6430, %v6429
    %v6604 = vpack.c.b16 %v6432, %v6431
    %v6605 = vpack.c.b16 %v6434, %v6433
    %v6606 = vpack.c.b16 %v6436, %v6435
    %v6607 = vpack.c.b16 %v6438, %v6437
    %v6608 = vpack.c.b16 %v6440, %v6439
    %v6609 = vpack.c.b16 %v6442, %v6441
    %v6610 = vpack.c.b16 %v6444, %v6443
    %v6611 = vpack.c.b16 %v6446, %v6445
    %v6612 = vpack.c.b16 %v6448, %v6447
    %v6613 = vpack.c.b16 %v6450, %v6449
    %v6614 = vpack.c.b16 %v6452, %v6451
    %v6615 = vpack.c.b16 %v6454, %v6453
    %v6616 = vpack.c.b16 %v6456, %v6455
    %v6617 = vpack.c.b16 %v6458, %v6457
    %v6618 = vpack.c.b16 %v6460, %v6459
    %v6619 = vpack.c.b16 %v6462, %v6461
    %v6620 = vpack.c.b16 %v6464, %v6463
    %v6621 = vpack.c.b16 %v6466, %v6465
    %v6622 = vpack.c.b16 %v6468, %v6467
    %v6623 = vpack.c.b16 %v6470, %v6469
    %v6624 = vpack.c.b16 %v6472, %v6471
    %v6625 = vpack.c.b16 %v6474, %v6473
    %v6626 = vpack.c.b16 %v6476, %v6475
    %v6627 = vpack.c.b16 %v6478, %v6477
    %v6628 = vpack.c.b16 %v6480, %v6479
    %v6629 = vpack.c.b16 %v6482, %v6481
    %v6630 = vpack.c.b16 %v6484, %v6483
    %v6631 = vpack.c.b16 %v6486, %v6485
    %v6632 = vpack.c.b16 %v6488, %v6487
    %v6633 = vpack.c.b16 %v6490, %v6489
    %v6634 = vpack.c.b16 %v6492, %v6491
    %v6635 = vpack.c.b16 %v6494, %v6493
    %v6636 = vpack.c.b16 %v6496, %v6495
    %v6637 = vpack.c.b16 %v6498, %v6497
    %v6638 = vpack.c.b16 %v6500, %v6499
    %v6639 = vpack.c.b16 %v6502, %v6501
    %v6640 = vpack.c.b16 %v6504, %v6503
    %v6641 = vpack.c.b16 %v6506, %v6505
    %v6642 = vpack.c.b16 %v6508, %v6507
    %v6643 = vpack.c.b16 %v6510, %v6509
    %v6644 = vpack.c.b16 %v6512, %v6511
    %v6645 = vpack.c.b16 %v6514, %v6513
    %v6646 = vpack.c.b16 %v6516, %v6515
    %v6647 = vpack.c.b16 %v6518, %v6517
    %v6648 = vpack.c.b16 %v6520, %v6519
    %v6650 = vsel %vm73, %v5666, 0
    %v6653 = vsel %vm73, %v6521, 0
    %v6656 = vsel %vm73, %v6522, 0
    %v6659 = vsel %vm73, %v6523, 0
    %v6662 = vsel %vm73, %v6524, 0
    %v6665 = vsel %vm73, %v6525, 0
    %v6668 = vsel %vm73, %v6526, 0
    %v6671 = vsel %vm73, %v6527, 0
    %v6674 = vsel %vm73, %v6528, 0
    %v6677 = vsel %vm73, %v6529, 0
    %v6680 = vsel %vm73, %v6530, 0
    %v6683 = vsel %vm73, %v6531, 0
    %v6686 = vsel %vm73, %v6532, 0
    %v6689 = vsel %vm73, %v6533, 0
    %v6692 = vsel %vm73, %v6534, 0
    %v6695 = vsel %vm73, %v6535, 0
    %v6698 = vsel %vm73, %v6536, 0
    %v6701 = vsel %vm73, %v6537, 0
    %v6704 = vsel %vm73, %v6538, 0
    %v6707 = vsel %vm73, %v6539, 0
    %v6710 = vsel %vm73, %v6540, 0
    %v6713 = vsel %vm73, %v6541, 0
    %v6716 = vsel %vm73, %v6542, 0
    %v6719 = vsel %vm73, %v6543, 0
    %v6722 = vsel %vm73, %v6544, 0
    %v6725 = vsel %vm73, %v6545, 0
    %v6728 = vsel %vm73, %v6546, 0
    %v6731 = vsel %vm73, %v6547, 0
    %v6734 = vsel %vm73, %v6548, 0
    %v6737 = vsel %vm73, %v6549, 0
    %v6740 = vsel %vm73, %v6550, 0
    %v6743 = vsel %vm73, %v6551, 0
    %v6746 = vsel %vm73, %v6552, 0
    %v6749 = vsel %vm73, %v6553, 0
    %v6752 = vsel %vm73, %v6554, 0
    %v6755 = vsel %vm73, %v6555, 0
    %v6758 = vsel %vm73, %v6556, 0
    %v6761 = vsel %vm73, %v6557, 0
    %v6764 = vsel %vm73, %v6558, 0
    %v6767 = vsel %vm73, %v6559, 0
    %v6770 = vsel %vm73, %v6560, 0
    %v6773 = vsel %vm73, %v6561, 0
    %v6776 = vsel %vm73, %v6562, 0
    %v6779 = vsel %vm73, %v6563, 0
    %v6782 = vsel %vm73, %v6564, 0
    %v6785 = vsel %vm73, %v6565, 0
    %v6788 = vsel %vm73, %v6566, 0
    %v6791 = vsel %vm73, %v6567, 0
    %v6794 = vsel %vm73, %v6568, 0
    %v6797 = vsel %vm73, %v6569, 0
    %v6800 = vsel %vm73, %v6570, 0
    %v6803 = vsel %vm73, %v6571, 0
    %v6806 = vsel %vm73, %v6572, 0
    %v6809 = vsel %vm73, %v6573, 0
    %v6812 = vsel %vm73, %v6574, 0
    %v6815 = vsel %vm73, %v6575, 0
    %v6818 = vsel %vm73, %v6576, 0
    %v6821 = vsel %vm73, %v6577, 0
    %v6824 = vsel %vm73, %v6578, 0
    %v6827 = vsel %vm73, %v6579, 0
    %v6830 = vsel %vm73, %v6580, 0
    %v6833 = vsel %vm73, %v6581, 0
    %v6836 = vsel %vm73, %v6582, 0
    %v6839 = vsel %vm73, %v6583, 0
    %v6842 = vsel %vm73, %v6584, 0
    %v6845 = vsel %vm73, %v6585, 0
    %v6848 = vsel %vm73, %v6586, 0
    %v6851 = vsel %vm73, %v6587, 0
    %v6854 = vsel %vm73, %v6588, 0
    %v6857 = vsel %vm73, %v6589, 0
    %v6860 = vsel %vm73, %v6590, 0
    %v6863 = vsel %vm73, %v6591, 0
    %v6866 = vsel %vm73, %v6592, 0
    %v6869 = vsel %vm73, %v6593, 0
    %v6872 = vsel %vm73, %v6594, 0
    %v6875 = vsel %vm73, %v6595, 0
    %v6878 = vsel %vm73, %v6596, 0
    %v6881 = vsel %vm73, %v6597, 0
    %v6884 = vsel %vm73, %v6598, 0
    %v6887 = vsel %vm73, %v6599, 0
    %v6890 = vsel %vm73, %v6600, 0
    %v6893 = vsel %vm73, %v6601, 0
    %v6896 = vsel %vm73, %v6602, 0
    %v6899 = vsel %vm73, %v6603, 0
    %v6902 = vsel %vm73, %v6604, 0
    %v6905 = vsel %vm73, %v6605, 0
    %v6908 = vsel %vm73, %v6606, 0
    %v6911 = vsel %vm73, %v6607, 0
    %v6914 = vsel %vm73, %v6608, 0
    %v6917 = vsel %vm73, %v6609, 0
    %v6920 = vsel %vm73, %v6610, 0
    %v6923 = vsel %vm73, %v6611, 0
    %v6926 = vsel %vm73, %v6612, 0
    %v6929 = vsel %vm73, %v6613, 0
    %v6932 = vsel %vm73, %v6614, 0
    %v6935 = vsel %vm73, %v6615, 0
    %v6938 = vsel %vm73, %v6616, 0
    %v6941 = vsel %vm73, %v6617, 0
    %v6944 = vsel %vm73, %v6618, 0
    %v6947 = vsel %vm73, %v6619, 0
    %v6950 = vsel %vm73, %v6620, 0
    %v6953 = vsel %vm73, %v6621, 0
    %v6956 = vsel %vm73, %v6622, 0
    %v6959 = vsel %vm73, %v6623, 0
    %v6962 = vsel %vm73, %v6624, 0
    %v6965 = vsel %vm73, %v6625, 0
    %v6968 = vsel %vm73, %v6626, 0
    %v6971 = vsel %vm73, %v6627, 0
    %v6974 = vsel %vm73, %v6628, 0
    %v6977 = vsel %vm73, %v6629, 0
    %v6980 = vsel %vm73, %v6630, 0
    %v6983 = vsel %vm73, %v6631, 0
    %v6986 = vsel %vm73, %v6632, 0
    %v6989 = vsel %vm73, %v6633, 0
    %v6992 = vsel %vm73, %v6634, 0
    %v6995 = vsel %vm73, %v6635, 0
    %v6998 = vsel %vm73, %v6636, 0
    %v7001 = vsel %vm73, %v6637, 0
    %v7004 = vsel %vm73, %v6638, 0
    %v7007 = vsel %vm73, %v6639, 0
    %v7010 = vsel %vm73, %v6640, 0
    %v7013 = vsel %vm73, %v6641, 0
    %v7016 = vsel %vm73, %v6642, 0
    %v7019 = vsel %vm73, %v6643, 0
    %v7022 = vsel %vm73, %v6644, 0
    %v7025 = vsel %vm73, %v6645, 0
    %v7028 = vsel %vm73, %v6646, 0
    %v7031 = vsel %vm73, %v6647, 0
    %v7034 = vsel %vm73, %v6648, 0
    %7036 = vmatprep.subr.bf16.mxu0 0
    %7037 = vmatpush1.bf16.xpose.msra.mxu0 %v6674
    %7038 = vmatprep.subr.bf16.mxu0 0
    %7039 = vmatpush1.bf16.xpose.msra.mxu0 %v6671
    %7040 = vmatprep.subr.bf16.mxu0 0
    %7041 = vmatpush1.bf16.xpose.msra.mxu0 %v6668
    %7042 = vmatprep.subr.bf16.mxu0 0
    %7043 = vmatpush1.bf16.xpose.msra.mxu0 %v6665
    %7044 = vmatprep.subr.bf16.mxu0 0
    %7045 = vmatpush1.bf16.xpose.msra.mxu0 %v6662
    %7046 = vmatprep.subr.bf16.mxu0 0
    %7047 = vmatpush1.bf16.xpose.msra.mxu0 %v6659
    %7048 = vmatprep.subr.bf16.mxu0 0
    %7049 = vmatpush1.bf16.xpose.msra.mxu0 %v6656
    %7050 = vmatprep.subr.bf16.mxu0 0
    %7051 = vmatpush1.bf16.xpose.msra.mxu0 %v6653
    %7052 = vmatprep.subr.bf16.mxu0 0
    %7053 = vmatpush2.bf16.xpose.msra.mxu0 %v6698
    %7054 = vmatprep.subr.bf16.mxu0 0
    %7055 = vmatpush2.bf16.xpose.msra.mxu0 %v6695
    %7056 = vmatprep.subr.bf16.mxu0 0
    %7057 = vmatpush2.bf16.xpose.msra.mxu0 %v6692
    %7058 = vmatprep.subr.bf16.mxu0 0
    %7059 = vmatpush2.bf16.xpose.msra.mxu0 %v6689
    %7060 = vmatprep.subr.bf16.mxu0 0
    %7061 = vmatpush2.bf16.xpose.msra.mxu0 %v6686
    %7062 = vmatprep.subr.bf16.mxu0 0
    %7063 = vmatpush2.bf16.xpose.msra.mxu0 %v6683
    %7064 = vmatprep.subr.bf16.mxu0 0
    %7065 = vmatpush2.bf16.xpose.msra.mxu0 %v6680
    %7066 = vmatprep.subr.bf16.mxu0 0
    %7067 = vmatpush2.bf16.xpose.msra.mxu0 %v6677
    %7068 = vmatprep.mubr.bf16.mxu0 0
    %7069 = vmatmul.mubr.bf16.gmra.mxu0 %v6650
    %v7070 = vpop.f32.mrf.mxu0
    %v7071 = vadd.f32 %v5932, %v7070
    %v7072 = vpop.f32.mrf.mxu0
    %v7073 = vadd.f32 %v5936, %v7072
    %v7074 = vpop.f32.mrf.mxu0
    %v7075 = vadd.f32 %v5932, %v7074
    %v7076 = vpop.f32.mrf.mxu0
    %v7077 = vadd.f32 %v5936, %v7076
    %7078 = vdwg.mxu0
    %7079 = vmatprep.subr.bf16.mxu0 0
    %7080 = vmatpush1.bf16.xpose.msra.mxu0 %v6722
    %7081 = vmatprep.subr.bf16.mxu0 0
    %7082 = vmatpush1.bf16.xpose.msra.mxu0 %v6719
    %7083 = vmatprep.subr.bf16.mxu0 0
    %7084 = vmatpush1.bf16.xpose.msra.mxu0 %v6716
    %7085 = vmatprep.subr.bf16.mxu0 0
    %7086 = vmatpush1.bf16.xpose.msra.mxu0 %v6713
    %7087 = vmatprep.subr.bf16.mxu0 0
    %7088 = vmatpush1.bf16.xpose.msra.mxu0 %v6710
    %7089 = vmatprep.subr.bf16.mxu0 0
    %7090 = vmatpush1.bf16.xpose.msra.mxu0 %v6707
    %7091 = vmatprep.subr.bf16.mxu0 0
    %7092 = vmatpush1.bf16.xpose.msra.mxu0 %v6704
    %7093 = vmatprep.subr.bf16.mxu0 0
    %7094 = vmatpush1.bf16.xpose.msra.mxu0 %v6701
    %7095 = vmatprep.subr.bf16.mxu0 0
    %7096 = vmatpush2.bf16.xpose.msra.mxu0 %v6746
    %7097 = vmatprep.subr.bf16.mxu0 0
    %7098 = vmatpush2.bf16.xpose.msra.mxu0 %v6743
    %7099 = vmatprep.subr.bf16.mxu0 0
    %7100 = vmatpush2.bf16.xpose.msra.mxu0 %v6740
    %7101 = vmatprep.subr.bf16.mxu0 0
    %7102 = vmatpush2.bf16.xpose.msra.mxu0 %v6737
    %7103 = vmatprep.subr.bf16.mxu0 0
    %7104 = vmatpush2.bf16.xpose.msra.mxu0 %v6734
    %7105 = vmatprep.subr.bf16.mxu0 0
    %7106 = vmatpush2.bf16.xpose.msra.mxu0 %v6731
    %7107 = vmatprep.subr.bf16.mxu0 0
    %7108 = vmatpush2.bf16.xpose.msra.mxu0 %v6728
    %7109 = vmatprep.subr.bf16.mxu0 0
    %7110 = vmatpush2.bf16.xpose.msra.mxu0 %v6725
    %7111 = vmatprep.mubr.bf16.mxu0 0
    %7112 = vmatmul.mubr.bf16.gmra.mxu0 %v6650
    %v7113 = vpop.f32.mrf.mxu0
    %v7114 = vadd.f32 %v5940, %v7113
    %v7115 = vpop.f32.mrf.mxu0
    %v7116 = vadd.f32 %v5944, %v7115
    %v7117 = vpop.f32.mrf.mxu0
    %v7118 = vadd.f32 %v5940, %v7117
    %v7119 = vpop.f32.mrf.mxu0
    %v7120 = vadd.f32 %v5944, %v7119
    %7121 = vdwg.mxu0
    %7122 = vmatprep.subr.bf16.mxu0 0
    %7123 = vmatpush1.bf16.xpose.msra.mxu0 %v6770
    %7124 = vmatprep.subr.bf16.mxu0 0
    %7125 = vmatpush1.bf16.xpose.msra.mxu0 %v6767
    %7126 = vmatprep.subr.bf16.mxu0 0
    %7127 = vmatpush1.bf16.xpose.msra.mxu0 %v6764
    %7128 = vmatprep.subr.bf16.mxu0 0
    %7129 = vmatpush1.bf16.xpose.msra.mxu0 %v6761
    %7130 = vmatprep.subr.bf16.mxu0 0
    %7131 = vmatpush1.bf16.xpose.msra.mxu0 %v6758
    %7132 = vmatprep.subr.bf16.mxu0 0
    %7133 = vmatpush1.bf16.xpose.msra.mxu0 %v6755
    %7134 = vmatprep.subr.bf16.mxu0 0
    %7135 = vmatpush1.bf16.xpose.msra.mxu0 %v6752
    %7136 = vmatprep.subr.bf16.mxu0 0
    %7137 = vmatpush1.bf16.xpose.msra.mxu0 %v6749
    %7138 = vmatprep.subr.bf16.mxu0 0
    %7139 = vmatpush2.bf16.xpose.msra.mxu0 %v6794
    %7140 = vmatprep.subr.bf16.mxu0 0
    %7141 = vmatpush2.bf16.xpose.msra.mxu0 %v6791
    %7142 = vmatprep.subr.bf16.mxu0 0
    %7143 = vmatpush2.bf16.xpose.msra.mxu0 %v6788
    %7144 = vmatprep.subr.bf16.mxu0 0
    %7145 = vmatpush2.bf16.xpose.msra.mxu0 %v6785
    %7146 = vmatprep.subr.bf16.mxu0 0
    %7147 = vmatpush2.bf16.xpose.msra.mxu0 %v6782
    %7148 = vmatprep.subr.bf16.mxu0 0
    %7149 = vmatpush2.bf16.xpose.msra.mxu0 %v6779
    %7150 = vmatprep.subr.bf16.mxu0 0
    %7151 = vmatpush2.bf16.xpose.msra.mxu0 %v6776
    %7152 = vmatprep.subr.bf16.mxu0 0
    %7153 = vmatpush2.bf16.xpose.msra.mxu0 %v6773
    %7154 = vmatprep.mubr.bf16.mxu0 0
    %7155 = vmatmul.mubr.bf16.gmra.mxu0 %v6650
    %v7156 = vpop.f32.mrf.mxu0
    %v7157 = vadd.f32 %v5948, %v7156
    %v7158 = vpop.f32.mrf.mxu0
    %v7159 = vadd.f32 %v5952, %v7158
    %v7160 = vpop.f32.mrf.mxu0
    %v7161 = vadd.f32 %v5948, %v7160
    %v7162 = vpop.f32.mrf.mxu0
    %v7163 = vadd.f32 %v5952, %v7162
    %7164 = vdwg.mxu0
    %7165 = vmatprep.subr.bf16.mxu0 0
    %7166 = vmatpush1.bf16.xpose.msra.mxu0 %v6818
    %7167 = vmatprep.subr.bf16.mxu0 0
    %7168 = vmatpush1.bf16.xpose.msra.mxu0 %v6815
    %7169 = vmatprep.subr.bf16.mxu0 0
    %7170 = vmatpush1.bf16.xpose.msra.mxu0 %v6812
    %7171 = vmatprep.subr.bf16.mxu0 0
    %7172 = vmatpush1.bf16.xpose.msra.mxu0 %v6809
    %7173 = vmatprep.subr.bf16.mxu0 0
    %7174 = vmatpush1.bf16.xpose.msra.mxu0 %v6806
    %7175 = vmatprep.subr.bf16.mxu0 0
    %7176 = vmatpush1.bf16.xpose.msra.mxu0 %v6803
    %7177 = vmatprep.subr.bf16.mxu0 0
    %7178 = vmatpush1.bf16.xpose.msra.mxu0 %v6800
    %7179 = vmatprep.subr.bf16.mxu0 0
    %7180 = vmatpush1.bf16.xpose.msra.mxu0 %v6797
    %7181 = vmatprep.subr.bf16.mxu0 0
    %7182 = vmatpush2.bf16.xpose.msra.mxu0 %v6842
    %7183 = vmatprep.subr.bf16.mxu0 0
    %7184 = vmatpush2.bf16.xpose.msra.mxu0 %v6839
    %7185 = vmatprep.subr.bf16.mxu0 0
    %7186 = vmatpush2.bf16.xpose.msra.mxu0 %v6836
    %7187 = vmatprep.subr.bf16.mxu0 0
    %7188 = vmatpush2.bf16.xpose.msra.mxu0 %v6833
    %7189 = vmatprep.subr.bf16.mxu0 0
    %7190 = vmatpush2.bf16.xpose.msra.mxu0 %v6830
    %7191 = vmatprep.subr.bf16.mxu0 0
    %7192 = vmatpush2.bf16.xpose.msra.mxu0 %v6827
    %7193 = vmatprep.subr.bf16.mxu0 0
    %7194 = vmatpush2.bf16.xpose.msra.mxu0 %v6824
    %7195 = vmatprep.subr.bf16.mxu0 0
    %7196 = vmatpush2.bf16.xpose.msra.mxu0 %v6821
    %7197 = vmatprep.mubr.bf16.mxu0 0
    %7198 = vmatmul.mubr.bf16.gmra.mxu0 %v6650
    %v7199 = vpop.f32.mrf.mxu0
    %v7200 = vadd.f32 %v5956, %v7199
    %v7201 = vpop.f32.mrf.mxu0
    %v7202 = vadd.f32 %v5960, %v7201
    %v7203 = vpop.f32.mrf.mxu0
    %v7204 = vadd.f32 %v5956, %v7203
    %v7205 = vpop.f32.mrf.mxu0
    %v7206 = vadd.f32 %v5960, %v7205
    %7207 = vdwg.mxu0
    %7208 = vmatprep.subr.bf16.mxu0 0
    %7209 = vmatpush1.bf16.xpose.msra.mxu0 %v6866
    %7210 = vmatprep.subr.bf16.mxu0 0
    %7211 = vmatpush1.bf16.xpose.msra.mxu0 %v6863
    %7212 = vmatprep.subr.bf16.mxu0 0
    %7213 = vmatpush1.bf16.xpose.msra.mxu0 %v6860
    %7214 = vmatprep.subr.bf16.mxu0 0
    %7215 = vmatpush1.bf16.xpose.msra.mxu0 %v6857
    %7216 = vmatprep.subr.bf16.mxu0 0
    %7217 = vmatpush1.bf16.xpose.msra.mxu0 %v6854
    %7218 = vmatprep.subr.bf16.mxu0 0
    %7219 = vmatpush1.bf16.xpose.msra.mxu0 %v6851
    %7220 = vmatprep.subr.bf16.mxu0 0
    %7221 = vmatpush1.bf16.xpose.msra.mxu0 %v6848
    %7222 = vmatprep.subr.bf16.mxu0 0
    %7223 = vmatpush1.bf16.xpose.msra.mxu0 %v6845
    %7224 = vmatprep.subr.bf16.mxu0 0
    %7225 = vmatpush2.bf16.xpose.msra.mxu0 %v6890
    %7226 = vmatprep.subr.bf16.mxu0 0
    %7227 = vmatpush2.bf16.xpose.msra.mxu0 %v6887
    %7228 = vmatprep.subr.bf16.mxu0 0
    %7229 = vmatpush2.bf16.xpose.msra.mxu0 %v6884
    %7230 = vmatprep.subr.bf16.mxu0 0
    %7231 = vmatpush2.bf16.xpose.msra.mxu0 %v6881
    %7232 = vmatprep.subr.bf16.mxu0 0
    %7233 = vmatpush2.bf16.xpose.msra.mxu0 %v6878
    %7234 = vmatprep.subr.bf16.mxu0 0
    %7235 = vmatpush2.bf16.xpose.msra.mxu0 %v6875
    %7236 = vmatprep.subr.bf16.mxu0 0
    %7237 = vmatpush2.bf16.xpose.msra.mxu0 %v6872
    %7238 = vmatprep.subr.bf16.mxu0 0
    %7239 = vmatpush2.bf16.xpose.msra.mxu0 %v6869
    %7240 = vmatprep.mubr.bf16.mxu0 0
    %7241 = vmatmul.mubr.bf16.gmra.mxu0 %v6650
    %v7242 = vpop.f32.mrf.mxu0
    %v7243 = vadd.f32 %v5964, %v7242
    %v7244 = vpop.f32.mrf.mxu0
    %v7245 = vadd.f32 %v5968, %v7244
    %v7246 = vpop.f32.mrf.mxu0
    %v7247 = vadd.f32 %v5964, %v7246
    %v7248 = vpop.f32.mrf.mxu0
    %v7249 = vadd.f32 %v5968, %v7248
    %7250 = vdwg.mxu0
    %7251 = vmatprep.subr.bf16.mxu0 0
    %7252 = vmatpush1.bf16.xpose.msra.mxu0 %v6914
    %7253 = vmatprep.subr.bf16.mxu0 0
    %7254 = vmatpush1.bf16.xpose.msra.mxu0 %v6911
    %7255 = vmatprep.subr.bf16.mxu0 0
    %7256 = vmatpush1.bf16.xpose.msra.mxu0 %v6908
    %7257 = vmatprep.subr.bf16.mxu0 0
    %7258 = vmatpush1.bf16.xpose.msra.mxu0 %v6905
    %7259 = vmatprep.subr.bf16.mxu0 0
    %7260 = vmatpush1.bf16.xpose.msra.mxu0 %v6902
    %7261 = vmatprep.subr.bf16.mxu0 0
    %7262 = vmatpush1.bf16.xpose.msra.mxu0 %v6899
    %7263 = vmatprep.subr.bf16.mxu0 0
    %7264 = vmatpush1.bf16.xpose.msra.mxu0 %v6896
    %7265 = vmatprep.subr.bf16.mxu0 0
    %7266 = vmatpush1.bf16.xpose.msra.mxu0 %v6893
    %7267 = vmatprep.subr.bf16.mxu0 0
    %7268 = vmatpush2.bf16.xpose.msra.mxu0 %v6938
    %7269 = vmatprep.subr.bf16.mxu0 0
    %7270 = vmatpush2.bf16.xpose.msra.mxu0 %v6935
    %7271 = vmatprep.subr.bf16.mxu0 0
    %7272 = vmatpush2.bf16.xpose.msra.mxu0 %v6932
    %7273 = vmatprep.subr.bf16.mxu0 0
    %7274 = vmatpush2.bf16.xpose.msra.mxu0 %v6929
    %7275 = vmatprep.subr.bf16.mxu0 0
    %7276 = vmatpush2.bf16.xpose.msra.mxu0 %v6926
    %7277 = vmatprep.subr.bf16.mxu0 0
    %7278 = vmatpush2.bf16.xpose.msra.mxu0 %v6923
    %7279 = vmatprep.subr.bf16.mxu0 0
    %7280 = vmatpush2.bf16.xpose.msra.mxu0 %v6920
    %7281 = vmatprep.subr.bf16.mxu0 0
    %7282 = vmatpush2.bf16.xpose.msra.mxu0 %v6917
    %7283 = vmatprep.mubr.bf16.mxu0 0
    %7284 = vmatmul.mubr.bf16.gmra.mxu0 %v6650
    %v7285 = vpop.f32.mrf.mxu0
    %v7286 = vadd.f32 %v5972, %v7285
    %v7287 = vpop.f32.mrf.mxu0
    %v7288 = vadd.f32 %v5976, %v7287
    %v7289 = vpop.f32.mrf.mxu0
    %v7290 = vadd.f32 %v5972, %v7289
    %v7291 = vpop.f32.mrf.mxu0
    %v7292 = vadd.f32 %v5976, %v7291
    %7293 = vdwg.mxu0
    %7294 = vmatprep.subr.bf16.mxu0 0
    %7295 = vmatpush1.bf16.xpose.msra.mxu0 %v6962
    %7296 = vmatprep.subr.bf16.mxu0 0
    %7297 = vmatpush1.bf16.xpose.msra.mxu0 %v6959
    %7298 = vmatprep.subr.bf16.mxu0 0
    %7299 = vmatpush1.bf16.xpose.msra.mxu0 %v6956
    %7300 = vmatprep.subr.bf16.mxu0 0
    %7301 = vmatpush1.bf16.xpose.msra.mxu0 %v6953
    %7302 = vmatprep.subr.bf16.mxu0 0
    %7303 = vmatpush1.bf16.xpose.msra.mxu0 %v6950
    %7304 = vmatprep.subr.bf16.mxu0 0
    %7305 = vmatpush1.bf16.xpose.msra.mxu0 %v6947
    %7306 = vmatprep.subr.bf16.mxu0 0
    %7307 = vmatpush1.bf16.xpose.msra.mxu0 %v6944
    %7308 = vmatprep.subr.bf16.mxu0 0
    %7309 = vmatpush1.bf16.xpose.msra.mxu0 %v6941
    %7310 = vmatprep.subr.bf16.mxu0 0
    %7311 = vmatpush2.bf16.xpose.msra.mxu0 %v6986
    %7312 = vmatprep.subr.bf16.mxu0 0
    %7313 = vmatpush2.bf16.xpose.msra.mxu0 %v6983
    %7314 = vmatprep.subr.bf16.mxu0 0
    %7315 = vmatpush2.bf16.xpose.msra.mxu0 %v6980
    %7316 = vmatprep.subr.bf16.mxu0 0
    %7317 = vmatpush2.bf16.xpose.msra.mxu0 %v6977
    %7318 = vmatprep.subr.bf16.mxu0 0
    %7319 = vmatpush2.bf16.xpose.msra.mxu0 %v6974
    %7320 = vmatprep.subr.bf16.mxu0 0
    %7321 = vmatpush2.bf16.xpose.msra.mxu0 %v6971
    %7322 = vmatprep.subr.bf16.mxu0 0
    %7323 = vmatpush2.bf16.xpose.msra.mxu0 %v6968
    %7324 = vmatprep.subr.bf16.mxu0 0
    %7325 = vmatpush2.bf16.xpose.msra.mxu0 %v6965
    %7326 = vmatprep.mubr.bf16.mxu0 0
    %7327 = vmatmul.mubr.bf16.gmra.mxu0 %v6650
    %v7328 = vpop.f32.mrf.mxu0
    %v7329 = vadd.f32 %v5980, %v7328
    %v7330 = vpop.f32.mrf.mxu0
    %v7331 = vadd.f32 %v5984, %v7330
    %v7332 = vpop.f32.mrf.mxu0
    %v7333 = vadd.f32 %v5980, %v7332
    %v7334 = vpop.f32.mrf.mxu0
    %v7335 = vadd.f32 %v5984, %v7334
    %7336 = vdwg.mxu0
    %7337 = vmatprep.subr.bf16.mxu0 0
    %7338 = vmatpush1.bf16.xpose.msra.mxu0 %v7010
    %7339 = vmatprep.subr.bf16.mxu0 0
    %7340 = vmatpush1.bf16.xpose.msra.mxu0 %v7007
    %7341 = vmatprep.subr.bf16.mxu0 0
    %7342 = vmatpush1.bf16.xpose.msra.mxu0 %v7004
    %7343 = vmatprep.subr.bf16.mxu0 0
    %7344 = vmatpush1.bf16.xpose.msra.mxu0 %v7001
    %7345 = vmatprep.subr.bf16.mxu0 0
    %7346 = vmatpush1.bf16.xpose.msra.mxu0 %v6998
    %7347 = vmatprep.subr.bf16.mxu0 0
    %7348 = vmatpush1.bf16.xpose.msra.mxu0 %v6995
    %7349 = vmatprep.subr.bf16.mxu0 0
    %7350 = vmatpush1.bf16.xpose.msra.mxu0 %v6992
    %7351 = vmatprep.subr.bf16.mxu0 0
    %7352 = vmatpush1.bf16.xpose.msra.mxu0 %v6989
    %7353 = vmatprep.subr.bf16.mxu0 0
    %7354 = vmatpush2.bf16.xpose.msra.mxu0 %v7034
    %7355 = vmatprep.subr.bf16.mxu0 0
    %7356 = vmatpush2.bf16.xpose.msra.mxu0 %v7031
    %7357 = vmatprep.subr.bf16.mxu0 0
    %7358 = vmatpush2.bf16.xpose.msra.mxu0 %v7028
    %7359 = vmatprep.subr.bf16.mxu0 0
    %7360 = vmatpush2.bf16.xpose.msra.mxu0 %v7025
    %7361 = vmatprep.subr.bf16.mxu0 0
    %7362 = vmatpush2.bf16.xpose.msra.mxu0 %v7022
    %7363 = vmatprep.subr.bf16.mxu0 0
    %7364 = vmatpush2.bf16.xpose.msra.mxu0 %v7019
    %7365 = vmatprep.subr.bf16.mxu0 0
    %7366 = vmatpush2.bf16.xpose.msra.mxu0 %v7016
    %7367 = vmatprep.subr.bf16.mxu0 0
    %7368 = vmatpush2.bf16.xpose.msra.mxu0 %v7013
    %7369 = vmatprep.mubr.bf16.mxu0 0
    %7370 = vmatmul.mubr.bf16.gmra.mxu0 %v6650
    %v7371 = vpop.f32.mrf.mxu0
    %v7372 = vadd.f32 %v5988, %v7371
    %v7373 = vpop.f32.mrf.mxu0
    %v7374 = vadd.f32 %v5992, %v7373
    %v7375 = vpop.f32.mrf.mxu0
    %v7376 = vadd.f32 %v5988, %v7375
    %v7377 = vpop.f32.mrf.mxu0
    %v7378 = vadd.f32 %v5992, %v7377
    %7379 = vdwg.mxu0
    %v7380 = vmax.f32 %v7071, 0.0
    %v7381 = vmax.f32 %v7073, 0.0
    %v7382 = vmax.f32 %v7114, 0.0
    %v7383 = vmax.f32 %v7116, 0.0
    %v7384 = vmax.f32 %v7157, 0.0
    %v7385 = vmax.f32 %v7159, 0.0
    %v7386 = vmax.f32 %v7200, 0.0
    %v7387 = vmax.f32 %v7202, 0.0
    %v7388 = vmax.f32 %v7243, 0.0
    %v7389 = vmax.f32 %v7245, 0.0
    %v7390 = vmax.f32 %v7286, 0.0
    %v7391 = vmax.f32 %v7288, 0.0
    %v7392 = vmax.f32 %v7329, 0.0
    %v7393 = vmax.f32 %v7331, 0.0
    %v7394 = vmax.f32 %v7372, 0.0
    %v7395 = vmax.f32 %v7374, 0.0
    %v7396 = vmax.f32 %v7075, 0.0
    %v7397 = vmax.f32 %v7077, 0.0
    %v7398 = vmax.f32 %v7118, 0.0
    %v7399 = vmax.f32 %v7120, 0.0
    %v7400 = vmax.f32 %v7161, 0.0
    %v7401 = vmax.f32 %v7163, 0.0
    %v7402 = vmax.f32 %v7204, 0.0
    %v7403 = vmax.f32 %v7206, 0.0
    %v7404 = vmax.f32 %v7247, 0.0
    %v7405 = vmax.f32 %v7249, 0.0
    %v7406 = vmax.f32 %v7290, 0.0
    %v7407 = vmax.f32 %v7292, 0.0
    %v7408 = vmax.f32 %v7333, 0.0
    %v7409 = vmax.f32 %v7335, 0.0
    %v7410 = vmax.f32 %v7376, 0.0
    %v7411 = vmax.f32 %v7378, 0.0
    %v7412 = vpack.c.bf16 %v7396, %v7380
    %v7413 = vpack.c.bf16 %v7397, %v7381
    %v7414 = vpack.c.bf16 %v7398, %v7382
    %v7415 = vpack.c.bf16 %v7399, %v7383
    %v7416 = vpack.c.bf16 %v7400, %v7384
    %v7417 = vpack.c.bf16 %v7401, %v7385
    %v7418 = vpack.c.bf16 %v7402, %v7386
    %v7419 = vpack.c.bf16 %v7403, %v7387
    %v7420 = vpack.c.bf16 %v7404, %v7388
    %v7421 = vpack.c.bf16 %v7405, %v7389
    %v7422 = vpack.c.bf16 %v7406, %v7390
    %v7423 = vpack.c.bf16 %v7407, %v7391
    %v7424 = vpack.c.bf16 %v7408, %v7392
    %v7425 = vpack.c.bf16 %v7409, %v7393
    %v7426 = vpack.c.bf16 %v7410, %v7394
    %v7427 = vpack.c.bf16 %v7411, %v7395
    %s7428 = scalar_lea.vmem %s9, 256
    %v7429 = vld [vmem:[%s7428] sm:$0xff]
    %v7430 = vld [vmem:[%s7428 + $0x8] sm:$0xff]
    %v7431 = vld [vmem:[%s7428 + $0x10] sm:$0xff]
    %v7432 = vld [vmem:[%s7428 + $0x18] sm:$0xff]
    %v7433 = vld [vmem:[%s7428 + $0x20] sm:$0xff]
    %v7434 = vld [vmem:[%s7428 + $0x28] sm:$0xff]
    %v7435 = vld [vmem:[%s7428 + $0x30] sm:$0xff]
    %v7436 = vld [vmem:[%s7428 + $0x38] sm:$0xff]
    %v7437 = vld [vmem:[%s7428 + $0x40] sm:$0xff]
    %v7438 = vld [vmem:[%s7428 + $0x48] sm:$0xff]
    %v7439 = vld [vmem:[%s7428 + $0x50] sm:$0xff]
    %v7440 = vld [vmem:[%s7428 + $0x58] sm:$0xff]
    %v7441 = vld [vmem:[%s7428 + $0x60] sm:$0xff]
    %v7442 = vld [vmem:[%s7428 + $0x68] sm:$0xff]
    %v7443 = vld [vmem:[%s7428 + $0x70] sm:$0xff]
    %v7444 = vld [vmem:[%s7428 + $0x78] sm:$0xff]
    %v7445 = vld [vmem:[%s7428 + $0x80] sm:$0xff]
    %v7446 = vld [vmem:[%s7428 + $0x88] sm:$0xff]
    %v7447 = vld [vmem:[%s7428 + $0x90] sm:$0xff]
    %v7448 = vld [vmem:[%s7428 + $0x98] sm:$0xff]
    %v7449 = vld [vmem:[%s7428 + $0xa0] sm:$0xff]
    %v7450 = vld [vmem:[%s7428 + $0xa8] sm:$0xff]
    %v7451 = vld [vmem:[%s7428 + $0xb0] sm:$0xff]
    %v7452 = vld [vmem:[%s7428 + $0xb8] sm:$0xff]
    %v7453 = vld [vmem:[%s7428 + $0xc0] sm:$0xff]
    %v7454 = vld [vmem:[%s7428 + $0xc8] sm:$0xff]
    %v7455 = vld [vmem:[%s7428 + $0xd0] sm:$0xff]
    %v7456 = vld [vmem:[%s7428 + $0xd8] sm:$0xff]
    %v7457 = vld [vmem:[%s7428 + $0xe0] sm:$0xff]
    %v7458 = vld [vmem:[%s7428 + $0xe8] sm:$0xff]
    %v7459 = vld [vmem:[%s7428 + $0xf0] sm:$0xff]
    %v7460 = vld [vmem:[%s7428 + $0xf8] sm:$0xff]
    %s7461 = scalar_lea.vmem %s10, 1
    %v7462 = vld [vmem:[%s7461] sm:$0x1]
    %v7464 = vlaneseq
    %v7465 = vshrl.u32 %v7464, 7
    %v7466 = vsub.s32 0, %v7465
    %v7467 = vrot.slane %v7462, %v7466
    %v7501 = vunpack.c.l.b16 %v7429
    %v7502 = vunpack.c.h.b16 %v7429
    %v7503 = vunpack.c.l.b16 %v7430
    %v7504 = vunpack.c.h.b16 %v7430
    %v7505 = vunpack.c.l.b16 %v7431
    %v7506 = vunpack.c.h.b16 %v7431
    %v7507 = vunpack.c.l.b16 %v7432
    %v7508 = vunpack.c.h.b16 %v7432
    %v7509 = vunpack.c.l.b16 %v7433
    %v7510 = vunpack.c.h.b16 %v7433
    %v7511 = vunpack.c.l.b16 %v7434
    %v7512 = vunpack.c.h.b16 %v7434
    %v7513 = vunpack.c.l.b16 %v7435
    %v7514 = vunpack.c.h.b16 %v7435
    %v7515 = vunpack.c.l.b16 %v7436
    %v7516 = vunpack.c.h.b16 %v7436
    %v7517 = vunpack.c.l.b16 %v7437
    %v7518 = vunpack.c.h.b16 %v7437
    %v7519 = vunpack.c.l.b16 %v7438
    %v7520 = vunpack.c.h.b16 %v7438
    %v7521 = vunpack.c.l.b16 %v7439
    %v7522 = vunpack.c.h.b16 %v7439
    %v7523 = vunpack.c.l.b16 %v7440
    %v7524 = vunpack.c.h.b16 %v7440
    %v7525 = vunpack.c.l.b16 %v7441
    %v7526 = vunpack.c.h.b16 %v7441
    %v7527 = vunpack.c.l.b16 %v7442
    %v7528 = vunpack.c.h.b16 %v7442
    %v7529 = vunpack.c.l.b16 %v7443
    %v7530 = vunpack.c.h.b16 %v7443
    %v7531 = vunpack.c.l.b16 %v7444
    %v7532 = vunpack.c.h.b16 %v7444
    %v7533 = vunpack.c.l.b16 %v7445
    %v7534 = vunpack.c.h.b16 %v7445
    %v7535 = vunpack.c.l.b16 %v7446
    %v7536 = vunpack.c.h.b16 %v7446
    %v7537 = vunpack.c.l.b16 %v7447
    %v7538 = vunpack.c.h.b16 %v7447
    %v7539 = vunpack.c.l.b16 %v7448
    %v7540 = vunpack.c.h.b16 %v7448
    %v7541 = vunpack.c.l.b16 %v7449
    %v7542 = vunpack.c.h.b16 %v7449
    %v7543 = vunpack.c.l.b16 %v7450
    %v7544 = vunpack.c.h.b16 %v7450
    %v7545 = vunpack.c.l.b16 %v7451
    %v7546 = vunpack.c.h.b16 %v7451
    %v7547 = vunpack.c.l.b16 %v7452
    %v7548 = vunpack.c.h.b16 %v7452
    %v7549 = vunpack.c.l.b16 %v7453
    %v7550 = vunpack.c.h.b16 %v7453
    %v7551 = vunpack.c.l.b16 %v7454
    %v7552 = vunpack.c.h.b16 %v7454
    %v7553 = vunpack.c.l.b16 %v7455
    %v7554 = vunpack.c.h.b16 %v7455
    %v7555 = vunpack.c.l.b16 %v7456
    %v7556 = vunpack.c.h.b16 %v7456
    %v7557 = vunpack.c.l.b16 %v7457
    %v7558 = vunpack.c.h.b16 %v7457
    %v7559 = vunpack.c.l.b16 %v7458
    %v7560 = vunpack.c.h.b16 %v7458
    %v7561 = vunpack.c.l.b16 %v7459
    %v7562 = vunpack.c.h.b16 %v7459
    %v7563 = vunpack.c.l.b16 %v7460
    %v7564 = vunpack.c.h.b16 %v7460
    %v7565 = vpack.c.b16 %v7517, %v7501
    %v7566 = vpack.c.b16 %v7518, %v7502
    %v7567 = vpack.c.b16 %v7519, %v7503
    %v7568 = vpack.c.b16 %v7520, %v7504
    %v7569 = vpack.c.b16 %v7521, %v7505
    %v7570 = vpack.c.b16 %v7522, %v7506
    %v7571 = vpack.c.b16 %v7523, %v7507
    %v7572 = vpack.c.b16 %v7524, %v7508
    %v7573 = vpack.c.b16 %v7525, %v7509
    %v7574 = vpack.c.b16 %v7526, %v7510
    %v7575 = vpack.c.b16 %v7527, %v7511
    %v7576 = vpack.c.b16 %v7528, %v7512
    %v7577 = vpack.c.b16 %v7529, %v7513
    %v7578 = vpack.c.b16 %v7530, %v7514
    %v7579 = vpack.c.b16 %v7531, %v7515
    %v7580 = vpack.c.b16 %v7532, %v7516
    %v7581 = vpack.c.b16 %v7549, %v7533
    %v7582 = vpack.c.b16 %v7550, %v7534
    %v7583 = vpack.c.b16 %v7551, %v7535
    %v7584 = vpack.c.b16 %v7552, %v7536
    %v7585 = vpack.c.b16 %v7553, %v7537
    %v7586 = vpack.c.b16 %v7554, %v7538
    %v7587 = vpack.c.b16 %v7555, %v7539
    %v7588 = vpack.c.b16 %v7556, %v7540
    %v7589 = vpack.c.b16 %v7557, %v7541
    %v7590 = vpack.c.b16 %v7558, %v7542
    %v7591 = vpack.c.b16 %v7559, %v7543
    %v7592 = vpack.c.b16 %v7560, %v7544
    %v7593 = vpack.c.b16 %v7561, %v7545
    %v7594 = vpack.c.b16 %v7562, %v7546
    %v7595 = vpack.c.b16 %v7563, %v7547
    %v7596 = vpack.c.b16 %v7564, %v7548
    %7629 = vmatprep.subr.bf16.mxu0 0
    %7630 = vmatpush1.bf16.xpose.msra.mxu0 0
    %7631 = vmatprep.subr.bf16.mxu0 0
    %7632 = vmatpush1.bf16.xpose.msra.mxu0 0
    %7633 = vmatprep.subr.bf16.mxu0 0
    %7634 = vmatpush1.bf16.xpose.msra.mxu0 0
    %7635 = vmatprep.subr.bf16.mxu0 0
    %7636 = vmatpush1.bf16.xpose.msra.mxu0 0
    %7637 = vmatprep.subr.bf16.mxu0 0
    %7638 = vmatpush1.bf16.xpose.msra.mxu0 0
    %7639 = vmatprep.subr.bf16.mxu0 0
    %7640 = vmatpush1.bf16.xpose.msra.mxu0 0
    %7641 = vmatprep.subr.bf16.mxu0 %v7582
    %7642 = vmatpush1.bf16.xpose.msra.mxu0 %v7581
    %7643 = vmatprep.subr.bf16.mxu0 %v7566
    %7644 = vmatpush1.bf16.xpose.msra.mxu0 %v7565
    %7645 = vmatprep.subr.bf16.mxu0 0
    %7646 = vmatpush2.bf16.xpose.msra.mxu0 0
    %7647 = vmatprep.subr.bf16.mxu0 0
    %7648 = vmatpush2.bf16.xpose.msra.mxu0 0
    %7649 = vmatprep.subr.bf16.mxu0 0
    %7650 = vmatpush2.bf16.xpose.msra.mxu0 0
    %7651 = vmatprep.subr.bf16.mxu0 0
    %7652 = vmatpush2.bf16.xpose.msra.mxu0 0
    %7653 = vmatprep.subr.bf16.mxu0 0
    %7654 = vmatpush2.bf16.xpose.msra.mxu0 0
    %7655 = vmatprep.subr.bf16.mxu0 0
    %7656 = vmatpush2.bf16.xpose.msra.mxu0 0
    %7657 = vmatprep.subr.bf16.mxu0 0
    %7658 = vmatpush2.bf16.xpose.msra.mxu0 0
    %7659 = vmatprep.subr.bf16.mxu0 0
    %7660 = vmatpush2.bf16.xpose.msra.mxu0 0
    %7661 = vmatprep.mubr.bf16.mxu0 %v7413
    %7662 = vmatmul.mubr.bf16.gmra.mxu0 %v7412
    %v7663 = vpop.f32.mrf.mxu0
    %v7664 = vadd.f32 %v7467, %v7663
    %v7665 = vpop.f32.mrf.mxu0
    %v7666 = vpop.f32.mrf.mxu0
    %v7667 = vadd.f32 %v7467, %v7666
    %v7668 = vpop.f32.mrf.mxu0
    %7669 = vdwg.mxu0
    %7670 = vmatprep.subr.bf16.mxu0 0
    %7671 = vmatpush1.bf16.xpose.msra.mxu0 0
    %7672 = vmatprep.subr.bf16.mxu0 0
    %7673 = vmatpush1.bf16.xpose.msra.mxu0 0
    %7674 = vmatprep.subr.bf16.mxu0 0
    %7675 = vmatpush1.bf16.xpose.msra.mxu0 0
    %7676 = vmatprep.subr.bf16.mxu0 0
    %7677 = vmatpush1.bf16.xpose.msra.mxu0 0
    %7678 = vmatprep.subr.bf16.mxu0 0
    %7679 = vmatpush1.bf16.xpose.msra.mxu0 0
    %7680 = vmatprep.subr.bf16.mxu0 0
    %7681 = vmatpush1.bf16.xpose.msra.mxu0 0
    %7682 = vmatprep.subr.bf16.mxu0 %v7584
    %7683 = vmatpush1.bf16.xpose.msra.mxu0 %v7583
    %7684 = vmatprep.subr.bf16.mxu0 %v7568
    %7685 = vmatpush1.bf16.xpose.msra.mxu0 %v7567
    %7686 = vmatprep.subr.bf16.mxu0 0
    %7687 = vmatpush2.bf16.xpose.msra.mxu0 0
    %7688 = vmatprep.subr.bf16.mxu0 0
    %7689 = vmatpush2.bf16.xpose.msra.mxu0 0
    %7690 = vmatprep.subr.bf16.mxu0 0
    %7691 = vmatpush2.bf16.xpose.msra.mxu0 0
    %7692 = vmatprep.subr.bf16.mxu0 0
    %7693 = vmatpush2.bf16.xpose.msra.mxu0 0
    %7694 = vmatprep.subr.bf16.mxu0 0
    %7695 = vmatpush2.bf16.xpose.msra.mxu0 0
    %7696 = vmatprep.subr.bf16.mxu0 0
    %7697 = vmatpush2.bf16.xpose.msra.mxu0 0
    %7698 = vmatprep.subr.bf16.mxu0 0
    %7699 = vmatpush2.bf16.xpose.msra.mxu0 0
    %7700 = vmatprep.subr.bf16.mxu0 0
    %7701 = vmatpush2.bf16.xpose.msra.mxu0 0
    %7702 = vmatprep.mubr.bf16.mxu0 %v7415
    %7703 = vmatmul.mubr.bf16.gmra.mxu0 %v7414
    %v7704 = vpop.f32.mrf.mxu0
    %v7705 = vadd.f32 %v7664, %v7704
    %v7706 = vpop.f32.mrf.mxu0
    %v7707 = vpop.f32.mrf.mxu0
    %v7708 = vadd.f32 %v7667, %v7707
    %v7709 = vpop.f32.mrf.mxu0
    %7710 = vdwg.mxu0
    %7711 = vmatprep.subr.bf16.mxu0 0
    %7712 = vmatpush1.bf16.xpose.msra.mxu0 0
    %7713 = vmatprep.subr.bf16.mxu0 0
    %7714 = vmatpush1.bf16.xpose.msra.mxu0 0
    %7715 = vmatprep.subr.bf16.mxu0 0
    %7716 = vmatpush1.bf16.xpose.msra.mxu0 0
    %7717 = vmatprep.subr.bf16.mxu0 0
    %7718 = vmatpush1.bf16.xpose.msra.mxu0 0
    %7719 = vmatprep.subr.bf16.mxu0 0
    %7720 = vmatpush1.bf16.xpose.msra.mxu0 0
    %7721 = vmatprep.subr.bf16.mxu0 0
    %7722 = vmatpush1.bf16.xpose.msra.mxu0 0
    %7723 = vmatprep.subr.bf16.mxu0 %v7586
    %7724 = vmatpush1.bf16.xpose.msra.mxu0 %v7585
    %7725 = vmatprep.subr.bf16.mxu0 %v7570
    %7726 = vmatpush1.bf16.xpose.msra.mxu0 %v7569
    %7727 = vmatprep.subr.bf16.mxu0 0
    %7728 = vmatpush2.bf16.xpose.msra.mxu0 0
    %7729 = vmatprep.subr.bf16.mxu0 0
    %7730 = vmatpush2.bf16.xpose.msra.mxu0 0
    %7731 = vmatprep.subr.bf16.mxu0 0
    %7732 = vmatpush2.bf16.xpose.msra.mxu0 0
    %7733 = vmatprep.subr.bf16.mxu0 0
    %7734 = vmatpush2.bf16.xpose.msra.mxu0 0
    %7735 = vmatprep.subr.bf16.mxu0 0
    %7736 = vmatpush2.bf16.xpose.msra.mxu0 0
    %7737 = vmatprep.subr.bf16.mxu0 0
    %7738 = vmatpush2.bf16.xpose.msra.mxu0 0
    %7739 = vmatprep.subr.bf16.mxu0 0
    %7740 = vmatpush2.bf16.xpose.msra.mxu0 0
    %7741 = vmatprep.subr.bf16.mxu0 0
    %7742 = vmatpush2.bf16.xpose.msra.mxu0 0
    %7743 = vmatprep.mubr.bf16.mxu0 %v7417
    %7744 = vmatmul.mubr.bf16.gmra.mxu0 %v7416
    %v7745 = vpop.f32.mrf.mxu0
    %v7746 = vadd.f32 %v7705, %v7745
    %v7747 = vpop.f32.mrf.mxu0
    %v7748 = vpop.f32.mrf.mxu0
    %v7749 = vadd.f32 %v7708, %v7748
    %v7750 = vpop.f32.mrf.mxu0
    %7751 = vdwg.mxu0
    %7752 = vmatprep.subr.bf16.mxu0 0
    %7753 = vmatpush1.bf16.xpose.msra.mxu0 0
    %7754 = vmatprep.subr.bf16.mxu0 0
    %7755 = vmatpush1.bf16.xpose.msra.mxu0 0
    %7756 = vmatprep.subr.bf16.mxu0 0
    %7757 = vmatpush1.bf16.xpose.msra.mxu0 0
    %7758 = vmatprep.subr.bf16.mxu0 0
    %7759 = vmatpush1.bf16.xpose.msra.mxu0 0
    %7760 = vmatprep.subr.bf16.mxu0 0
    %7761 = vmatpush1.bf16.xpose.msra.mxu0 0
    %7762 = vmatprep.subr.bf16.mxu0 0
    %7763 = vmatpush1.bf16.xpose.msra.mxu0 0
    %7764 = vmatprep.subr.bf16.mxu0 %v7588
    %7765 = vmatpush1.bf16.xpose.msra.mxu0 %v7587
    %7766 = vmatprep.subr.bf16.mxu0 %v7572
    %7767 = vmatpush1.bf16.xpose.msra.mxu0 %v7571
    %7768 = vmatprep.subr.bf16.mxu0 0
    %7769 = vmatpush2.bf16.xpose.msra.mxu0 0
    %7770 = vmatprep.subr.bf16.mxu0 0
    %7771 = vmatpush2.bf16.xpose.msra.mxu0 0
    %7772 = vmatprep.subr.bf16.mxu0 0
    %7773 = vmatpush2.bf16.xpose.msra.mxu0 0
    %7774 = vmatprep.subr.bf16.mxu0 0
    %7775 = vmatpush2.bf16.xpose.msra.mxu0 0
    %7776 = vmatprep.subr.bf16.mxu0 0
    %7777 = vmatpush2.bf16.xpose.msra.mxu0 0
    %7778 = vmatprep.subr.bf16.mxu0 0
    %7779 = vmatpush2.bf16.xpose.msra.mxu0 0
    %7780 = vmatprep.subr.bf16.mxu0 0
    %7781 = vmatpush2.bf16.xpose.msra.mxu0 0
    %7782 = vmatprep.subr.bf16.mxu0 0
    %7783 = vmatpush2.bf16.xpose.msra.mxu0 0
    %7784 = vmatprep.mubr.bf16.mxu0 %v7419
    %7785 = vmatmul.mubr.bf16.gmra.mxu0 %v7418
    %v7786 = vpop.f32.mrf.mxu0
    %v7787 = vadd.f32 %v7746, %v7786
    %v7788 = vpop.f32.mrf.mxu0
    %v7789 = vpop.f32.mrf.mxu0
    %v7790 = vadd.f32 %v7749, %v7789
    %v7791 = vpop.f32.mrf.mxu0
    %7792 = vdwg.mxu0
    %7793 = vmatprep.subr.bf16.mxu0 0
    %7794 = vmatpush1.bf16.xpose.msra.mxu0 0
    %7795 = vmatprep.subr.bf16.mxu0 0
    %7796 = vmatpush1.bf16.xpose.msra.mxu0 0
    %7797 = vmatprep.subr.bf16.mxu0 0
    %7798 = vmatpush1.bf16.xpose.msra.mxu0 0
    %7799 = vmatprep.subr.bf16.mxu0 0
    %7800 = vmatpush1.bf16.xpose.msra.mxu0 0
    %7801 = vmatprep.subr.bf16.mxu0 0
    %7802 = vmatpush1.bf16.xpose.msra.mxu0 0
    %7803 = vmatprep.subr.bf16.mxu0 0
    %7804 = vmatpush1.bf16.xpose.msra.mxu0 0
    %7805 = vmatprep.subr.bf16.mxu0 %v7590
    %7806 = vmatpush1.bf16.xpose.msra.mxu0 %v7589
    %7807 = vmatprep.subr.bf16.mxu0 %v7574
    %7808 = vmatpush1.bf16.xpose.msra.mxu0 %v7573
    %7809 = vmatprep.subr.bf16.mxu0 0
    %7810 = vmatpush2.bf16.xpose.msra.mxu0 0
    %7811 = vmatprep.subr.bf16.mxu0 0
    %7812 = vmatpush2.bf16.xpose.msra.mxu0 0
    %7813 = vmatprep.subr.bf16.mxu0 0
    %7814 = vmatpush2.bf16.xpose.msra.mxu0 0
    %7815 = vmatprep.subr.bf16.mxu0 0
    %7816 = vmatpush2.bf16.xpose.msra.mxu0 0
    %7817 = vmatprep.subr.bf16.mxu0 0
    %7818 = vmatpush2.bf16.xpose.msra.mxu0 0
    %7819 = vmatprep.subr.bf16.mxu0 0
    %7820 = vmatpush2.bf16.xpose.msra.mxu0 0
    %7821 = vmatprep.subr.bf16.mxu0 0
    %7822 = vmatpush2.bf16.xpose.msra.mxu0 0
    %7823 = vmatprep.subr.bf16.mxu0 0
    %7824 = vmatpush2.bf16.xpose.msra.mxu0 0
    %7825 = vmatprep.mubr.bf16.mxu0 %v7421
    %7826 = vmatmul.mubr.bf16.gmra.mxu0 %v7420
    %v7827 = vpop.f32.mrf.mxu0
    %v7828 = vadd.f32 %v7787, %v7827
    %v7829 = vpop.f32.mrf.mxu0
    %v7830 = vpop.f32.mrf.mxu0
    %v7831 = vadd.f32 %v7790, %v7830
    %v7832 = vpop.f32.mrf.mxu0
    %7833 = vdwg.mxu0
    %7834 = vmatprep.subr.bf16.mxu0 0
    %7835 = vmatpush1.bf16.xpose.msra.mxu0 0
    %7836 = vmatprep.subr.bf16.mxu0 0
    %7837 = vmatpush1.bf16.xpose.msra.mxu0 0
    %7838 = vmatprep.subr.bf16.mxu0 0
    %7839 = vmatpush1.bf16.xpose.msra.mxu0 0
    %7840 = vmatprep.subr.bf16.mxu0 0
    %7841 = vmatpush1.bf16.xpose.msra.mxu0 0
    %7842 = vmatprep.subr.bf16.mxu0 0
    %7843 = vmatpush1.bf16.xpose.msra.mxu0 0
    %7844 = vmatprep.subr.bf16.mxu0 0
    %7845 = vmatpush1.bf16.xpose.msra.mxu0 0
    %7846 = vmatprep.subr.bf16.mxu0 %v7592
    %7847 = vmatpush1.bf16.xpose.msra.mxu0 %v7591
    %7848 = vmatprep.subr.bf16.mxu0 %v7576
    %7849 = vmatpush1.bf16.xpose.msra.mxu0 %v7575
    %7850 = vmatprep.subr.bf16.mxu0 0
    %7851 = vmatpush2.bf16.xpose.msra.mxu0 0
    %7852 = vmatprep.subr.bf16.mxu0 0
    %7853 = vmatpush2.bf16.xpose.msra.mxu0 0
    %7854 = vmatprep.subr.bf16.mxu0 0
    %7855 = vmatpush2.bf16.xpose.msra.mxu0 0
    %7856 = vmatprep.subr.bf16.mxu0 0
    %7857 = vmatpush2.bf16.xpose.msra.mxu0 0
    %7858 = vmatprep.subr.bf16.mxu0 0
    %7859 = vmatpush2.bf16.xpose.msra.mxu0 0
    %7860 = vmatprep.subr.bf16.mxu0 0
    %7861 = vmatpush2.bf16.xpose.msra.mxu0 0
    %7862 = vmatprep.subr.bf16.mxu0 0
    %7863 = vmatpush2.bf16.xpose.msra.mxu0 0
    %7864 = vmatprep.subr.bf16.mxu0 0
    %7865 = vmatpush2.bf16.xpose.msra.mxu0 0
    %7866 = vmatprep.mubr.bf16.mxu0 %v7423
    %7867 = vmatmul.mubr.bf16.gmra.mxu0 %v7422
    %v7868 = vpop.f32.mrf.mxu0
    %v7869 = vadd.f32 %v7828, %v7868
    %v7870 = vpop.f32.mrf.mxu0
    %v7871 = vpop.f32.mrf.mxu0
    %v7872 = vadd.f32 %v7831, %v7871
    %v7873 = vpop.f32.mrf.mxu0
    %7874 = vdwg.mxu0
    %7875 = vmatprep.subr.bf16.mxu0 0
    %7876 = vmatpush1.bf16.xpose.msra.mxu0 0
    %7877 = vmatprep.subr.bf16.mxu0 0
    %7878 = vmatpush1.bf16.xpose.msra.mxu0 0
    %7879 = vmatprep.subr.bf16.mxu0 0
    %7880 = vmatpush1.bf16.xpose.msra.mxu0 0
    %7881 = vmatprep.subr.bf16.mxu0 0
    %7882 = vmatpush1.bf16.xpose.msra.mxu0 0
    %7883 = vmatprep.subr.bf16.mxu0 0
    %7884 = vmatpush1.bf16.xpose.msra.mxu0 0
    %7885 = vmatprep.subr.bf16.mxu0 0
    %7886 = vmatpush1.bf16.xpose.msra.mxu0 0
    %7887 = vmatprep.subr.bf16.mxu0 %v7594
    %7888 = vmatpush1.bf16.xpose.msra.mxu0 %v7593
    %7889 = vmatprep.subr.bf16.mxu0 %v7578
    %7890 = vmatpush1.bf16.xpose.msra.mxu0 %v7577
    %7891 = vmatprep.subr.bf16.mxu0 0
    %7892 = vmatpush2.bf16.xpose.msra.mxu0 0
    %7893 = vmatprep.subr.bf16.mxu0 0
    %7894 = vmatpush2.bf16.xpose.msra.mxu0 0
    %7895 = vmatprep.subr.bf16.mxu0 0
    %7896 = vmatpush2.bf16.xpose.msra.mxu0 0
    %7897 = vmatprep.subr.bf16.mxu0 0
    %7898 = vmatpush2.bf16.xpose.msra.mxu0 0
    %7899 = vmatprep.subr.bf16.mxu0 0
    %7900 = vmatpush2.bf16.xpose.msra.mxu0 0
    %7901 = vmatprep.subr.bf16.mxu0 0
    %7902 = vmatpush2.bf16.xpose.msra.mxu0 0
    %7903 = vmatprep.subr.bf16.mxu0 0
    %7904 = vmatpush2.bf16.xpose.msra.mxu0 0
    %7905 = vmatprep.subr.bf16.mxu0 0
    %7906 = vmatpush2.bf16.xpose.msra.mxu0 0
    %7907 = vmatprep.mubr.bf16.mxu0 %v7425
    %7908 = vmatmul.mubr.bf16.gmra.mxu0 %v7424
    %v7909 = vpop.f32.mrf.mxu0
    %v7910 = vadd.f32 %v7869, %v7909
    %v7911 = vpop.f32.mrf.mxu0
    %v7912 = vpop.f32.mrf.mxu0
    %v7913 = vadd.f32 %v7872, %v7912
    %v7914 = vpop.f32.mrf.mxu0
    %7915 = vdwg.mxu0
    %7916 = vmatprep.subr.bf16.mxu0 0
    %7917 = vmatpush1.bf16.xpose.msra.mxu0 0
    %7918 = vmatprep.subr.bf16.mxu0 0
    %7919 = vmatpush1.bf16.xpose.msra.mxu0 0
    %7920 = vmatprep.subr.bf16.mxu0 0
    %7921 = vmatpush1.bf16.xpose.msra.mxu0 0
    %7922 = vmatprep.subr.bf16.mxu0 0
    %7923 = vmatpush1.bf16.xpose.msra.mxu0 0
    %7924 = vmatprep.subr.bf16.mxu0 0
    %7925 = vmatpush1.bf16.xpose.msra.mxu0 0
    %7926 = vmatprep.subr.bf16.mxu0 0
    %7927 = vmatpush1.bf16.xpose.msra.mxu0 0
    %7928 = vmatprep.subr.bf16.mxu0 %v7596
    %7929 = vmatpush1.bf16.xpose.msra.mxu0 %v7595
    %7930 = vmatprep.subr.bf16.mxu0 %v7580
    %7931 = vmatpush1.bf16.xpose.msra.mxu0 %v7579
    %7932 = vmatprep.subr.bf16.mxu0 0
    %7933 = vmatpush2.bf16.xpose.msra.mxu0 0
    %7934 = vmatprep.subr.bf16.mxu0 0
    %7935 = vmatpush2.bf16.xpose.msra.mxu0 0
    %7936 = vmatprep.subr.bf16.mxu0 0
    %7937 = vmatpush2.bf16.xpose.msra.mxu0 0
    %7938 = vmatprep.subr.bf16.mxu0 0
    %7939 = vmatpush2.bf16.xpose.msra.mxu0 0
    %7940 = vmatprep.subr.bf16.mxu0 0
    %7941 = vmatpush2.bf16.xpose.msra.mxu0 0
    %7942 = vmatprep.subr.bf16.mxu0 0
    %7943 = vmatpush2.bf16.xpose.msra.mxu0 0
    %7944 = vmatprep.subr.bf16.mxu0 0
    %7945 = vmatpush2.bf16.xpose.msra.mxu0 0
    %7946 = vmatprep.subr.bf16.mxu0 0
    %7947 = vmatpush2.bf16.xpose.msra.mxu0 0
    %7948 = vmatprep.mubr.bf16.mxu0 %v7427
    %7949 = vmatmul.mubr.bf16.gmra.mxu0 %v7426
    %v7950 = vpop.f32.mrf.mxu0
    %v7951 = vadd.f32 %v7910, %v7950
    %v7952 = vpop.f32.mrf.mxu0
    %v7953 = vpop.f32.mrf.mxu0
    %v7954 = vadd.f32 %v7913, %v7953
    %v7955 = vpop.f32.mrf.mxu0
    %7956 = vdwg.mxu0
    %v7957 = vadd.f32 %v5664, %v7951
    %v7958 = vadd.f32 %v5665, %v7954
    %s7959 = scalar_lea.vmem %s11, 1
    %v7960 = vld [vmem:[%s7959] sm:$0x1]
    %s7961 = scalar_lea.vmem %s12, 1
    %v7962 = vld [vmem:[%s7961] sm:$0x1]
    %v7963 = vsel %vm73, %v7957, 0.0
    %7964 = vadd.xlane.f32.xlu0 %v7963
    %v7965 = vpop.xlane.xlu0 %7964
    %v7966 = vsel %vm73, %v7958, 0.0
    %7967 = vadd.xlane.f32.xlu0 %v7966
    %v7968 = vpop.xlane.xlu0 %7967
    %v7969 = vmul.f32 %v7965, %v1656
    %v7970 = vmul.f32 %v7968, %v1656
    %v7971 = vsub.f32 %v7957, %v7969
    %v7972 = vsub.f32 %v7958, %v7970
    %v7973 = vmul.f32 %v7971, %v7971
    %v7974 = vmul.f32 %v7972, %v7972
    %v7975 = vsel %vm73, %v7973, 0.0
    %7976 = vadd.xlane.f32.xlu0 %v7975
    %v7977 = vpop.xlane.xlu0 %7976
    %v7978 = vsel %vm73, %v7974, 0.0
    %7979 = vadd.xlane.f32.xlu0 %v7978
    %v7980 = vpop.xlane.xlu0 %7979
    %v7981 = vmul.f32 %v7977, %v1656
    %v7982 = vmul.f32 %v7980, %v1656
    %v7983 = vadd.f32 %v7981, 1e-05
    %v7984 = vadd.f32 %v7982, 1e-05
    %v7985 = vrsqrt.pop %v7983
    %v7986 = vrsqrt.pop %v7984
    %v7987 = vmul.f32 %v7971, %v7985
    %v7988 = vmul.f32 %v7972, %v7986
    %v7990 = vlaneseq
    %v7991 = vshrl.u32 %v7990, 7
    %v7992 = vsub.s32 0, %v7991
    %v7993 = vrot.slane %v7960, %v7992
    %v7995 = vmul.f32 %v7987, %v7993
    %v7996 = vmul.f32 %v7988, %v7993
    %v7998 = vlaneseq
    %v7999 = vshrl.u32 %v7998, 7
    %v8000 = vsub.s32 0, %v7999
    %v8001 = vrot.slane %v7962, %v8000
    %v8003 = vadd.f32 %v7995, %v8001
    %v8004 = vadd.f32 %v7996, %v8001
    %v8005 = vsel %vm73, %v8003, 0.0
    %v8006 = vrot.slane %v8005, 4
    %v8007 = vadd.f32 %v8005, %v8006
    %v8008 = vrot.slane %v8007, 2
    %v8009 = vadd.f32 %v8007, %v8008
    %v8010 = vrot.slane %v8009, 1
    %v8011 = vadd.f32 %v8009, %v8010
    %v8012 = vsel %vm73, %v8004, 0.0
    %v8013 = vrot.slane %v8012, 4
    %v8014 = vadd.f32 %v8012, %v8013
    %v8015 = vrot.slane %v8014, 2
    %v8016 = vadd.f32 %v8014, %v8015
    %v8017 = vrot.slane %v8016, 1
    %v8018 = vadd.f32 %v8016, %v8017
    %v8019 = vrcp.pop 8.0
    %v8020 = vmul.f32 %v8011, %v8019
    %v8021 = vmul.f32 %v8018, %v8019
    %v8022 = vld [vmem:[%s13] sm:$0xff]
    %v8023 = vld [vmem:[%s13 + $0x8] sm:$0xff]
    %v8024 = vld [vmem:[%s14] sm:$0x1]
    %v8026 = vlaneseq
    %v8027 = vshrl.u32 %v8026, 7
    %v8028 = vsub.s32 0, %v8027
    %v8029 = vrot.slane %v8024, %v8028
    %vm8033 = vcmask 1041409
    %v8034 = vsel %vm8033, %v8021, %v8020
    %v8035 = vsel %vm73, %v8034, 0
    %v8038 = vsel %vm73, %v8022, 0
    %v8041 = vsel %vm73, %v8023, 0
    %8043 = vmatprep.subr.mxu0 0.0
    %8044 = vmatpush1.xpose.msra.mxu0 0.0
    %8045 = vmatprep.subr.mxu0 0.0
    %8046 = vmatpush1.xpose.msra.mxu0 0.0
    %8047 = vmatprep.subr.mxu0 0.0
    %8048 = vmatpush1.xpose.msra.mxu0 0.0
    %8049 = vmatprep.subr.mxu0 0.0
    %8050 = vmatpush1.xpose.msra.mxu0 0.0
    %8051 = vmatprep.subr.mxu0 0.0
    %8052 = vmatpush1.xpose.msra.mxu0 0.0
    %8053 = vmatprep.subr.mxu0 0.0
    %8054 = vmatpush1.xpose.msra.mxu0 0.0
    %8055 = vmatprep.subr.mxu0 0.0
    %8056 = vmatpush1.xpose.msra.mxu0 0.0
    %8057 = vmatprep.subr.mxu0 0.0
    %8058 = vmatpush1.xpose.msra.mxu0 0.0
    %8059 = vmatprep.subr.mxu0 0.0
    %8060 = vmatpush1.xpose.msra.mxu0 0.0
    %8061 = vmatprep.subr.mxu0 0.0
    %8062 = vmatpush1.xpose.msra.mxu0 0.0
    %8063 = vmatprep.subr.mxu0 0.0
    %8064 = vmatpush1.xpose.msra.mxu0 0.0
    %8065 = vmatprep.subr.mxu0 0.0
    %8066 = vmatpush1.xpose.msra.mxu0 0.0
    %8067 = vmatprep.subr.mxu0 0.0
    %8068 = vmatpush1.xpose.msra.mxu0 0.0
    %8069 = vmatprep.subr.mxu0 0.0
    %8070 = vmatpush1.xpose.msra.mxu0 0.0
    %8071 = vmatprep.subr.mxu0 0.0
    %8072 = vmatpush1.xpose.msra.mxu0 %v8041
    %8073 = vmatprep.subr.mxu0 0.0
    %8074 = vmatpush1.xpose.msra.mxu0 %v8038
    %8075 = vmatprep.subr.mxu0 0.0
    %8076 = vmatpush2.xpose.msra.mxu0 0.0
    %8077 = vmatprep.subr.mxu0 0.0
    %8078 = vmatpush2.xpose.msra.mxu0 0.0
    %8079 = vmatprep.subr.mxu0 0.0
    %8080 = vmatpush2.xpose.msra.mxu0 0.0
    %8081 = vmatprep.subr.mxu0 0.0
    %8082 = vmatpush2.xpose.msra.mxu0 0.0
    %8083 = vmatprep.subr.mxu0 0.0
    %8084 = vmatpush2.xpose.msra.mxu0 0.0
    %8085 = vmatprep.subr.mxu0 0.0
    %8086 = vmatpush2.xpose.msra.mxu0 0.0
    %8087 = vmatprep.subr.mxu0 0.0
    %8088 = vmatpush2.xpose.msra.mxu0 0.0
    %8089 = vmatprep.subr.mxu0 0.0
    %8090 = vmatpush2.xpose.msra.mxu0 0.0
    %8091 = vmatprep.subr.mxu0 0.0
    %8092 = vmatpush2.xpose.msra.mxu0 0.0
    %8093 = vmatprep.subr.mxu0 0.0
    %8094 = vmatpush2.xpose.msra.mxu0 0.0
    %8095 = vmatprep.subr.mxu0 0.0
    %8096 = vmatpush2.xpose.msra.mxu0 0.0
    %8097 = vmatprep.subr.mxu0 0.0
    %8098 = vmatpush2.xpose.msra.mxu0 0.0
    %8099 = vmatprep.subr.mxu0 0.0
    %8100 = vmatpush2.xpose.msra.mxu0 0.0
    %8101 = vmatprep.subr.mxu0 0.0
    %8102 = vmatpush2.xpose.msra.mxu0 0.0
    %8103 = vmatprep.subr.mxu0 0.0
    %8104 = vmatpush2.xpose.msra.mxu0 0.0
    %8105 = vmatprep.subr.mxu0 0.0
    %8106 = vmatpush2.xpose.msra.mxu0 0.0
    %8107 = vmatprep.mubr.f32.mxu0 0.0
    %8108 = vmatmul.mubr.f32.gmra.mxu0 %v8035
    %v8109 = vpop.f32.mrf.mxu0
    %v8110 = vadd.f32 %v8029, %v8109
    %v8111 = vpop.f32.mrf.mxu0
    %8112 = vdwg.mxu0
    %vm8113 = vcmask 123904
    %8114 = vst.msk [vmem:[#allocation2] sm:$0x3] %vm8113, %v8110
    // Predicated region
    $region62: #{neural_ca_forward.1} parent=1 // pred_check
      _
    $region63: #{neural_ca_forward.1} parent=1 // pred_check_branch
      %8116 = sbr.rel (0) target = $region65
    $region64: #{neural_ca_forward.1} parent=1 // pred_region
      %s8118 = ssub.s32 32, 32
      %8119 = vsyncadd [#allocation3], %s8118
      %s8121 = sshll.u32 [#allocation2], 4
      %s8122 = int_to_ptr.vmem [resolvable:$true] %s8121
      %8124 = dma.vmem_to_hbm [thread:$0]  %s8122, 32, %s15, [#allocation3]
    $region65: #{neural_ca_forward.1} parent=1 // pred_fallthru
      _
    // Predicated region
    $region66: #{neural_ca_forward.1} parent=1 // pred_check
      _
    $region67: #{neural_ca_forward.1} parent=1 // pred_check_branch
      %8126 = sbr.rel (0) target = $region69
    $region68: #{neural_ca_forward.1} parent=1 // pred_region
      %8127 = dma.done [#allocation3], 32
    $region69: #{neural_ca_forward.1} parent=1 // pred_fallthru
      _
    %8128 = vsyncpa [#allocation3], 1

</llo_original>
